<compile_context>
chip_gen: v7x
topology: tpu7x:2x2x1
jax: 0.10.0
libtpu: 0.0.40
codegen_flags: <defaults>
</compile_context>

<pallas_src>
import math

import jax
import jax.numpy as jnp
from jax.experimental import pallas as pl
from jax.experimental.pallas import tpu as pltpu

EPS = 1e-5
VMEM_LIMIT = 32 * 1024 * 1024  # explicit scoped-VMEM budget (fits v5e/v6e/v7x)


# ----------------------------- Pallas kernels --------------------------------

def _stage1_kernel(x_ref, w1_ref, wr_ref, c1_ref, cr_ref, st_ref, xp_ref):
    # x_ref : (1, H, W, Cin)      f32 input block (one batch element)
    # w1_ref: (3, 3, Cin, Cout)   bf16 conv3x3 weights
    # wr_ref: (Cin, Cout)         bf16 residual conv1x1 weights
    # c1_ref: (1, H, W, Cout)     f32 conv3x3 output
    # cr_ref: (1, H, W, Cout)     f32 conv1x1 output
    # st_ref: (1, 4, Cout)        f32 [sum(c1), sumsq(c1), sum(cr), sumsq(cr)]
    # xp_ref: VMEM (H+2, W+2, Cin) f32 scratch: zero-padded copy of the input
    _, H, W, Cout = c1_ref.shape
    Cin = x_ref.shape[3]

    # in-kernel zero padding (no jnp.pad HBM round-trip)
    xp_ref[...] = jnp.zeros_like(xp_ref)
    xp_ref[pl.ds(1, H), pl.ds(1, W), :] = x_ref[0]

    # residual 1x1 conv shares the same input DMA
    xb = x_ref[0].reshape(H * W, Cin).astype(jnp.bfloat16)
    cr = jnp.dot(xb, wr_ref[...], preferred_element_type=jnp.float32)

    # 3x3 conv: hoist the dy row slice, reuse across dx; bf16 operands, f32 acc
    acc = jnp.zeros((H * W, Cout), jnp.float32)
    for dy in range(3):
        row = xp_ref[pl.ds(dy, H), :, :].astype(jnp.bfloat16)   # (H, W+2, Cin)
        for dx in range(3):
            patch = row[:, dx:dx + W, :].reshape(H * W, Cin)
            acc = acc + jnp.dot(patch, w1_ref[dy, dx],
                                preferred_element_type=jnp.float32)

    c1_ref[...] = acc.reshape(1, H, W, Cout)
    cr_ref[...] = cr.reshape(1, H, W, Cout)

    # per-block partial stats for BN (avoids re-reading c1/cr from HBM)
    st = jnp.concatenate(
        [jnp.sum(acc, axis=0, keepdims=True),
         jnp.sum(acc * acc, axis=0, keepdims=True),
         jnp.sum(cr, axis=0, keepdims=True),
         jnp.sum(cr * cr, axis=0, keepdims=True)], axis=0)
    st_ref[...] = st.reshape(1, 4, Cout)


def _stage2_kernel(c1_ref, s1_ref, t1_ref, w2_ref, c2_ref, st_ref, yp_ref):
    # Fused: y1 = relu(BN1(c1)) (into a zero-padded VMEM scratch) -> conv3x3(w2)
    # c1_ref: (1, H, W, C) f32 ; s1/t1: (1, C) f32 ; w2_ref: (3, 3, C, Cout) bf16
    # c2_ref: (1, H, W, Cout) f32 ; st_ref: (1, 2, Cout) f32 [sum(c2), sumsq(c2)]
    # yp_ref: VMEM (H+2, W+2, C) f32
    _, H, W, Cout = c2_ref.shape
    C = c1_ref.shape[3]

    yp_ref[...] = jnp.zeros_like(yp_ref)
    s1 = s1_ref[...].reshape(1, 1, C)
    t1 = t1_ref[...].reshape(1, 1, C)
    y = jnp.maximum(c1_ref[0] * s1 + t1, 0.0)          # BN1 apply + ReLU, f32
    yp_ref[pl.ds(1, H), pl.ds(1, W), :] = y             # y1 never hits HBM

    acc = jnp.zeros((H * W, Cout), jnp.float32)
    for dy in range(3):
        row = yp_ref[pl.ds(dy, H), :, :].astype(jnp.bfloat16)   # (H, W+2, C)
        for dx in range(3):
            patch = row[:, dx:dx + W, :].reshape(H * W, C)
            acc = acc + jnp.dot(patch, w2_ref[dy, dx],
                                preferred_element_type=jnp.float32)

    c2_ref[...] = acc.reshape(1, H, W, Cout)
    st = jnp.concatenate(
        [jnp.sum(acc, axis=0, keepdims=True),
         jnp.sum(acc * acc, axis=0, keepdims=True)], axis=0)
    st_ref[...] = st.reshape(1, 2, Cout)


def _bn_add_relu_kernel(a_ref, r_ref, sa_ref, ta_ref, sr_ref, tr_ref, o_ref):
    # relu( BN2(c2) + BNr(cr) ) on a lane-dense (TR, L) tile (L multiple of 128).
    y = (a_ref[...] * sa_ref[...] + ta_ref[...] +
         r_ref[...] * sr_ref[...] + tr_ref[...])
    o_ref[...] = jnp.maximum(y, 0.0)


# ------------------------------ wrappers --------------------------------------

def stage1(x, w1, wr):
    N, H, W, Cin = x.shape
    Cout = w1.shape[-1]
    return pl.pallas_call(
        _stage1_kernel,
        out_shape=(jax.ShapeDtypeStruct((N, H, W, Cout), jnp.float32),
                   jax.ShapeDtypeStruct((N, H, W, Cout), jnp.float32),
                   jax.ShapeDtypeStruct((N, 4, Cout), jnp.float32)),
        grid=(N,),
        in_specs=[
            pl.BlockSpec((1, H, W, Cin), lambda n: (n, 0, 0, 0)),
            pl.BlockSpec((3, 3, Cin, Cout), lambda n: (0, 0, 0, 0)),
            pl.BlockSpec((Cin, Cout), lambda n: (0, 0)),
        ],
        out_specs=(
            pl.BlockSpec((1, H, W, Cout), lambda n: (n, 0, 0, 0)),
            pl.BlockSpec((1, H, W, Cout), lambda n: (n, 0, 0, 0)),
            pl.BlockSpec((1, 4, Cout), lambda n: (n, 0, 0)),
        ),
        scratch_shapes=[pltpu.VMEM((H + 2, W + 2, Cin), jnp.float32)],
        compiler_params=pltpu.CompilerParams(
            dimension_semantics=("parallel",),
            vmem_limit_bytes=VMEM_LIMIT),
    )(x, w1, wr)


def stage2(c1, s1, t1, w2):
    N, H, W, C = c1.shape
    Cout = w2.shape[-1]
    return pl.pallas_call(
        _stage2_kernel,
        out_shape=(jax.ShapeDtypeStruct((N, H, W, Cout), jnp.float32),
                   jax.ShapeDtypeStruct((N, 2, Cout), jnp.float32)),
        grid=(N,),
        in_specs=[
            pl.BlockSpec((1, H, W, C), lambda n: (n, 0, 0, 0)),
            pl.BlockSpec((1, C), lambda n: (0, 0)),
            pl.BlockSpec((1, C), lambda n: (0, 0)),
            pl.BlockSpec((3, 3, C, Cout), lambda n: (0, 0, 0, 0)),
        ],
        out_specs=(
            pl.BlockSpec((1, H, W, Cout), lambda n: (n, 0, 0, 0)),
            pl.BlockSpec((1, 2, Cout), lambda n: (n, 0, 0)),
        ),
        scratch_shapes=[pltpu.VMEM((H + 2, W + 2, C), jnp.float32)],
        compiler_params=pltpu.CompilerParams(
            dimension_semantics=("parallel",),
            vmem_limit_bytes=VMEM_LIMIT),
    )(c1, s1.reshape(1, C).astype(jnp.float32),
      t1.reshape(1, C).astype(jnp.float32), w2)


def bn_add_relu(a, r, sa, ta, sr, tr):
    # relu( BN(a) + BN(r) ); a, r: (N, H, W, C).
    # Repack to lane-dense (M//k, k*C) rows (k*C multiple of 128 => unmasked vst),
    # tile rows for pipelined, megacore-parallel execution.
    N, H, W, C = a.shape
    M = N * H * W
    k = 128 // math.gcd(128, C)
    if M % k != 0:
        k = 1
    R, L = M // k, k * C
    a2 = a.reshape(R, L)
    r2 = r.reshape(R, L)
    tile_vec = lambda v: jnp.tile(v.astype(jnp.float32), k).reshape(1, L)

    TR = min(R, 512)
    while TR > 1 and (R % TR or (TR % 8 and TR != R)):
        TR -= 1
    if R % TR or (TR % 8 and TR != R):
        TR = R

    out = pl.pallas_call(
        _bn_add_relu_kernel,
        out_shape=jax.ShapeDtypeStruct((R, L), jnp.float32),
        grid=(R // TR,),
        in_specs=[
            pl.BlockSpec((TR, L), lambda i: (i, 0)),
            pl.BlockSpec((TR, L), lambda i: (i, 0)),
            pl.BlockSpec((1, L), lambda i: (0, 0)),
            pl.BlockSpec((1, L), lambda i: (0, 0)),
            pl.BlockSpec((1, L), lambda i: (0, 0)),
            pl.BlockSpec((1, L), lambda i: (0, 0)),
        ],
        out_specs=pl.BlockSpec((TR, L), lambda i: (i, 0)),
        compiler_params=pltpu.CompilerParams(
            dimension_semantics=("parallel",),
            vmem_limit_bytes=VMEM_LIMIT),
    )(a2, r2, tile_vec(sa), tile_vec(ta), tile_vec(sr), tile_vec(tr))
    return out.reshape(N, H, W, C)


def _scale_shift(s, ss, count, gamma, beta):
    # Training-mode BN from partial sums: biased variance, eps=1e-5.
    mean = s / count
    var = jnp.maximum(ss / count - mean * mean, 0.0)
    scale = gamma * jax.lax.rsqrt(var + EPS)
    shift = beta - mean * scale
    return scale, shift


def block_forward(x_nchw, p):
    x = jnp.transpose(x_nchw, (0, 2, 3, 1)).astype(jnp.float32)   # NCHW -> NHWC
    N, H, W, _ = x.shape
    cnt = jnp.float32(N * H * W)

    # bf16 MXU operands (f32 accumulation inside the kernels)
    w1 = p["w1"].astype(jnp.bfloat16)
    w2 = p["w2"].astype(jnp.bfloat16)
    wr = p["wr"].astype(jnp.bfloat16)

    # Stage 1: conv3x3(w1) + residual conv1x1(wr) + partial BN stats.
    # (conv biases b1/b2 are dropped: they cancel under training-mode BN.)
    c1, cr, st1 = stage1(x, w1, wr)
    st1 = jnp.sum(st1, axis=0)                       # (4, Cout)
    s1, t1 = _scale_shift(st1[0], st1[1], cnt, p["g1"], p["be1"])
    sr, tr = _scale_shift(st1[2], st1[3], cnt, p["gr"], p["ber"])

    # Stage 2: fused BN1-apply + ReLU + conv3x3(w2) + partial BN stats.
    c2, st2 = stage2(c1, s1, t1, w2)
    st2 = jnp.sum(st2, axis=0)                       # (2, Cout)
    s2, t2 = _scale_shift(st2[0], st2[1], cnt, p["g2"], p["be2"])

    # Stage 3: relu( BN2(c2) + BNr(cr) )
    out = bn_add_relu(c2, cr, s2, t2, sr, tr)
    return jnp.transpose(out, (0, 3, 1, 2))          # NHWC -> NCHW


# ------------------------------ reference (pure JAX) ---------------------------

def _reference_forward(x_nchw, p):
    x = jnp.transpose(x_nchw, (0, 2, 3, 1)).astype(jnp.float32)
    dn = ("NHWC", "HWIO", "NHWC")

    def bn(v, g, b):
        m = jnp.mean(v, axis=(0, 1, 2))
        var = jnp.var(v, axis=(0, 1, 2))
        return (v - m) * (g * jax.lax.rsqrt(var + EPS)) + b

    conv = lambda v, w: jax.lax.conv_general_dilated(
        v, w, (1, 1), "SAME", dimension_numbers=dn)
    c1 = conv(x, p["w1"]) + p["b1"]
    y1 = jnp.maximum(bn(c1, p["g1"], p["be1"]), 0.0)
    c2 = conv(y1, p["w2"]) + p["b2"]
    cr = conv(x, p["wr"].reshape(1, 1, *p["wr"].shape))
    out = jnp.maximum(bn(c2, p["g2"], p["be2"]) + bn(cr, p["gr"], p["ber"]), 0.0)
    return jnp.transpose(out, (0, 3, 1, 2))


# --------------------------------- params --------------------------------------

def init_params(key, cin, cout):
    ks = jax.random.split(key, 6)
    f32 = jnp.float32
    w1 = jax.random.normal(ks[0], (3, 3, cin, cout), f32) / (3 * 3 * cin) ** 0.5
    b1 = jax.random.normal(ks[1], (cout,), f32) * 0.01
    w2 = jax.random.normal(ks[2], (3, 3, cout, cout), f32) / (3 * 3 * cout) ** 0.5
    b2 = jax.random.normal(ks[3], (cout,), f32) * 0.01
    wr = jax.random.normal(ks[4], (cin, cout), f32) / cin ** 0.5
    idx = jnp.arange(cout, dtype=f32)
    # b1/b2 are kept for module parity; training-mode BN cancels them exactly,
    # so the Pallas path does not compute them (validated vs the reference).
    return {
        "w1": w1, "b1": b1, "g1": 1.0 + 0.05 * idx, "be1": 0.01 * idx,
        "w2": w2, "b2": b2, "g2": 1.0 - 0.02 * idx, "be2": -0.01 * idx,
        "wr": wr, "gr": 1.0 + 0.03 * idx, "ber": 0.02 * idx,
    }


if __name__ == "__main__":
    key = jax.random.PRNGKey(0)
    k_x, k_p = jax.random.split(key)
    N, CIN, COUT, H, W = 2, 4, 8, 16, 16
    x = jax.random.normal(k_x, (N, CIN, H, W), jnp.float32)   # PyTorch NCHW input
    params = init_params(k_p, CIN, COUT)

    out = jax.jit(block_forward)(x, params)
    out = jax.block_until_ready(out)
    assert out.shape == (N, COUT, H, W)
    assert bool(jnp.all(jnp.isfinite(out)))

    ref = jax.jit(_reference_forward)(x, params)
    ref = jax.block_until_ready(ref)
    max_diff = float(jnp.max(jnp.abs(out - ref)))
    # bf16 MXU operands -> small numerical difference vs f32 reference
    assert max_diff < 0.25, f"max diff vs reference too large: {max_diff}"

    print("KERNEL_OK")
</pallas_src>

<mosaic_0001>
module attributes {stable_mosaic.version = 11 : i64} {
  func.func @_stage1_kernel(%arg0: i32, %arg1: memref<1x16x16x4xf32, #tpu.memory_space<vmem>>, %arg2: memref<3x3x4x8xbf16, #tpu.memory_space<vmem>>, %arg3: memref<4x8xbf16, #tpu.memory_space<vmem>>, %arg4: memref<1x16x16x8xf32, #tpu.memory_space<vmem>>, %arg5: memref<1x16x16x8xf32, #tpu.memory_space<vmem>>, %arg6: memref<1x4x8xf32, #tpu.memory_space<vmem>>, %arg7: memref<18x18x4xf32, #tpu.memory_space<vmem>>) attributes {dimension_semantics = [#tpu.dimension_semantics<parallel>], iteration_bounds = array<i64: 2>, scalar_prefetch = 0 : i64, scratch_operands = 1 : i64, tpu.core_type = #tpu.core_type<tc>, window_params = [{transform_indices = @transform_0, window_bounds = array<i64: 1, 16, 16, 4>}, {pipeline_mode = #tpu.pipeline_mode<synchronous>, transform_indices = @transform_1, window_bounds = array<i64: 3, 3, 4, 8>}, {pipeline_mode = #tpu.pipeline_mode<synchronous>, transform_indices = @transform_2, window_bounds = array<i64: 4, 8>}, {transform_indices = @transform_3, window_bounds = array<i64: 1, 16, 16, 8>}, {transform_indices = @transform_4, window_bounds = array<i64: 1, 16, 16, 8>}, {transform_indices = @transform_5, window_bounds = array<i64: 1, 4, 8>}]} {
    %cst = arith.constant 0.000000e+00 : f32
    %0 = vector.broadcast %cst : f32 to vector<18x18x4xf32>
    %c0 = arith.constant 0 : index
    %c0_0 = arith.constant 0 : index
    %c0_1 = arith.constant 0 : index
    %1 = vector.load %arg7[%c0, %c0_0, %c0_1] : memref<18x18x4xf32, #tpu.memory_space<vmem>>, vector<18x18x4xf32>
    tpu.vector_store %arg7[%c0, %c0_0, %c0_1], %0 {strides = array<i32>} : memref<18x18x4xf32, #tpu.memory_space<vmem>>, vector<18x18x4xf32>,
    %c0_2 = arith.constant 0 : index
    %c0_3 = arith.constant 0 : index
    %c0_4 = arith.constant 0 : index
    %c0_5 = arith.constant 0 : index
    %2 = vector.load %arg1[%c0_2, %c0_3, %c0_4, %c0_5] : memref<1x16x16x4xf32, #tpu.memory_space<vmem>>, vector<1x16x16x4xf32>
    %3 = vector.shape_cast %2 : vector<1x16x16x4xf32> to vector<16x16x4xf32>
    %c1 = arith.constant 1 : index
    %c1_6 = arith.constant 1 : index
    %c0_7 = arith.constant 0 : index
    %4 = vector.load %arg7[%c1, %c1_6, %c0_7] : memref<18x18x4xf32, #tpu.memory_space<vmem>>, vector<16x16x4xf32>
    tpu.vector_store %arg7[%c1, %c1_6, %c0_7], %3 {strides = array<i32>} : memref<18x18x4xf32, #tpu.memory_space<vmem>>, vector<16x16x4xf32>,
    %c0_8 = arith.constant 0 : index
    %c0_9 = arith.constant 0 : index
    %c0_10 = arith.constant 0 : index
    %c0_11 = arith.constant 0 : index
    %5 = vector.load %arg1[%c0_8, %c0_9, %c0_10, %c0_11] : memref<1x16x16x4xf32, #tpu.memory_space<vmem>>, vector<1x16x16x4xf32>
    %6 = vector.shape_cast %5 : vector<1x16x16x4xf32> to vector<16x16x4xf32>
    %7 = vector.shape_cast %6 : vector<16x16x4xf32> to vector<256x4xf32>
    %8 = arith.truncf %7 : vector<256x4xf32> to vector<256x4xbf16>
    %c0_12 = arith.constant 0 : index
    %c0_13 = arith.constant 0 : index
    %9 = vector.load %arg3[%c0_12, %c0_13] : memref<4x8xbf16, #tpu.memory_space<vmem>>, vector<4x8xbf16>
    %cst_14 = arith.constant dense<0.000000e+00> : vector<256x8xf32>
    %10 = tpu.matmul %8, %9, %cst_14 {dimension_numbers = #tpu.dot_dimension_numbers<[1], [0], [0], [1], [0, 0, 1, 1], [], []>} : vector<256x4xbf16>, vector<4x8xbf16>, vector<256x8xf32> -> vector<256x8xf32>
    %cst_15 = arith.constant 0.000000e+00 : f32
    %11 = vector.broadcast %cst_15 : f32 to vector<256x8xf32>
    %c0_16 = arith.constant 0 : index
    %c0_17 = arith.constant 0 : index
    %c0_18 = arith.constant 0 : index
    %12 = vector.load %arg7[%c0_16, %c0_17, %c0_18] : memref<18x18x4xf32, #tpu.memory_space<vmem>>, vector<16x18x4xf32>
    %13 = arith.truncf %12 : vector<16x18x4xf32> to vector<16x18x4xbf16>
    %14 = vector.extract_strided_slice %13 {offsets = [0, 0, 0], sizes = [16, 16, 4], strides = [1, 1, 1]} : vector<16x18x4xbf16> to vector<16x16x4xbf16>
    %15 = vector.shape_cast %14 : vector<16x16x4xbf16> to vector<256x4xbf16>
    %c0_19 = arith.constant 0 : index
    %c0_20 = arith.constant 0 : index
    %c0_21 = arith.constant 0 : index
    %c0_22 = arith.constant 0 : index
    %16 = vector.load %arg2[%c0_19, %c0_20, %c0_21, %c0_22] : memref<3x3x4x8xbf16, #tpu.memory_space<vmem>>, vector<1x1x4x8xbf16>
    %17 = vector.shape_cast %16 : vector<1x1x4x8xbf16> to vector<4x8xbf16>
    %cst_23 = arith.constant dense<0.000000e+00> : vector<256x8xf32>
    %18 = tpu.matmul %15, %17, %cst_23 {dimension_numbers = #tpu.dot_dimension_numbers<[1], [0], [0], [1], [0, 0, 1, 1], [], []>} : vector<256x4xbf16>, vector<4x8xbf16>, vector<256x8xf32> -> vector<256x8xf32>
    %19 = arith.addf %11, %18 : vector<256x8xf32>
    %20 = vector.extract_strided_slice %13 {offsets = [0, 1, 0], sizes = [16, 16, 4], strides = [1, 1, 1]} : vector<16x18x4xbf16> to vector<16x16x4xbf16>
    %21 = vector.shape_cast %20 : vector<16x16x4xbf16> to vector<256x4xbf16>
    %c0_24 = arith.constant 0 : index
    %c1_25 = arith.constant 1 : index
    %c0_26 = arith.constant 0 : index
    %c0_27 = arith.constant 0 : index
    %22 = vector.load %arg2[%c0_24, %c1_25, %c0_26, %c0_27] : memref<3x3x4x8xbf16, #tpu.memory_space<vmem>>, vector<1x1x4x8xbf16>
    %23 = vector.shape_cast %22 : vector<1x1x4x8xbf16> to vector<4x8xbf16>
    %cst_28 = arith.constant dense<0.000000e+00> : vector<256x8xf32>
    %24 = tpu.matmul %21, %23, %cst_28 {dimension_numbers = #tpu.dot_dimension_numbers<[1], [0], [0], [1], [0, 0, 1, 1], [], []>} : vector<256x4xbf16>, vector<4x8xbf16>, vector<256x8xf32> -> vector<256x8xf32>
    %25 = arith.addf %19, %24 : vector<256x8xf32>
    %26 = vector.extract_strided_slice %13 {offsets = [0, 2, 0], sizes = [16, 16, 4], strides = [1, 1, 1]} : vector<16x18x4xbf16> to vector<16x16x4xbf16>
    %27 = vector.shape_cast %26 : vector<16x16x4xbf16> to vector<256x4xbf16>
    %c0_29 = arith.constant 0 : index
    %c2 = arith.constant 2 : index
    %c0_30 = arith.constant 0 : index
    %c0_31 = arith.constant 0 : index
    %28 = vector.load %arg2[%c0_29, %c2, %c0_30, %c0_31] : memref<3x3x4x8xbf16, #tpu.memory_space<vmem>>, vector<1x1x4x8xbf16>
    %29 = vector.shape_cast %28 : vector<1x1x4x8xbf16> to vector<4x8xbf16>
    %cst_32 = arith.constant dense<0.000000e+00> : vector<256x8xf32>
    %30 = tpu.matmul %27, %29, %cst_32 {dimension_numbers = #tpu.dot_dimension_numbers<[1], [0], [0], [1], [0, 0, 1, 1], [], []>} : vector<256x4xbf16>, vector<4x8xbf16>, vector<256x8xf32> -> vector<256x8xf32>
    %31 = arith.addf %25, %30 : vector<256x8xf32>
    %c1_33 = arith.constant 1 : index
    %c0_34 = arith.constant 0 : index
    %c0_35 = arith.constant 0 : index
    %32 = vector.load %arg7[%c1_33, %c0_34, %c0_35] : memref<18x18x4xf32, #tpu.memory_space<vmem>>, vector<16x18x4xf32>
    %33 = arith.truncf %32 : vector<16x18x4xf32> to vector<16x18x4xbf16>
    %34 = vector.extract_strided_slice %33 {offsets = [0, 0, 0], sizes = [16, 16, 4], strides = [1, 1, 1]} : vector<16x18x4xbf16> to vector<16x16x4xbf16>
    %35 = vector.shape_cast %34 : vector<16x16x4xbf16> to vector<256x4xbf16>
    %c1_36 = arith.constant 1 : index
    %c0_37 = arith.constant 0 : index
    %c0_38 = arith.constant 0 : index
    %c0_39 = arith.constant 0 : index
    %36 = vector.load %arg2[%c1_36, %c0_37, %c0_38, %c0_39] : memref<3x3x4x8xbf16, #tpu.memory_space<vmem>>, vector<1x1x4x8xbf16>
    %37 = vector.shape_cast %36 : vector<1x1x4x8xbf16> to vector<4x8xbf16>
    %cst_40 = arith.constant dense<0.000000e+00> : vector<256x8xf32>
    %38 = tpu.matmul %35, %37, %cst_40 {dimension_numbers = #tpu.dot_dimension_numbers<[1], [0], [0], [1], [0, 0, 1, 1], [], []>} : vector<256x4xbf16>, vector<4x8xbf16>, vector<256x8xf32> -> vector<256x8xf32>
    %39 = arith.addf %31, %38 : vector<256x8xf32>
    %40 = vector.extract_strided_slice %33 {offsets = [0, 1, 0], sizes = [16, 16, 4], strides = [1, 1, 1]} : vector<16x18x4xbf16> to vector<16x16x4xbf16>
    %41 = vector.shape_cast %40 : vector<16x16x4xbf16> to vector<256x4xbf16>
    %c1_41 = arith.constant 1 : index
    %c1_42 = arith.constant 1 : index
    %c0_43 = arith.constant 0 : index
    %c0_44 = arith.constant 0 : index
    %42 = vector.load %arg2[%c1_41, %c1_42, %c0_43, %c0_44] : memref<3x3x4x8xbf16, #tpu.memory_space<vmem>>, vector<1x1x4x8xbf16>
    %43 = vector.shape_cast %42 : vector<1x1x4x8xbf16> to vector<4x8xbf16>
    %cst_45 = arith.constant dense<0.000000e+00> : vector<256x8xf32>
    %44 = tpu.matmul %41, %43, %cst_45 {dimension_numbers = #tpu.dot_dimension_numbers<[1], [0], [0], [1], [0, 0, 1, 1], [], []>} : vector<256x4xbf16>, vector<4x8xbf16>, vector<256x8xf32> -> vector<256x8xf32>
    %45 = arith.addf %39, %44 : vector<256x8xf32>
    %46 = vector.extract_strided_slice %33 {offsets = [0, 2, 0], sizes = [16, 16, 4], strides = [1, 1, 1]} : vector<16x18x4xbf16> to vector<16x16x4xbf16>
    %47 = vector.shape_cast %46 : vector<16x16x4xbf16> to vector<256x4xbf16>
    %c1_46 = arith.constant 1 : index
    %c2_47 = arith.constant 2 : index
    %c0_48 = arith.constant 0 : index
    %c0_49 = arith.constant 0 : index
    %48 = vector.load %arg2[%c1_46, %c2_47, %c0_48, %c0_49] : memref<3x3x4x8xbf16, #tpu.memory_space<vmem>>, vector<1x1x4x8xbf16>
    %49 = vector.shape_cast %48 : vector<1x1x4x8xbf16> to vector<4x8xbf16>
    %cst_50 = arith.constant dense<0.000000e+00> : vector<256x8xf32>
    %50 = tpu.matmul %47, %49, %cst_50 {dimension_numbers = #tpu.dot_dimension_numbers<[1], [0], [0], [1], [0, 0, 1, 1], [], []>} : vector<256x4xbf16>, vector<4x8xbf16>, vector<256x8xf32> -> vector<256x8xf32>
    %51 = arith.addf %45, %50 : vector<256x8xf32>
    %c2_51 = arith.constant 2 : index
    %c0_52 = arith.constant 0 : index
    %c0_53 = arith.constant 0 : index
    %52 = vector.load %arg7[%c2_51, %c0_52, %c0_53] : memref<18x18x4xf32, #tpu.memory_space<vmem>>, vector<16x18x4xf32>
    %53 = arith.truncf %52 : vector<16x18x4xf32> to vector<16x18x4xbf16>
    %54 = vector.extract_strided_slice %53 {offsets = [0, 0, 0], sizes = [16, 16, 4], strides = [1, 1, 1]} : vector<16x18x4xbf16> to vector<16x16x4xbf16>
    %55 = vector.shape_cast %54 : vector<16x16x4xbf16> to vector<256x4xbf16>
    %c2_54 = arith.constant 2 : index
    %c0_55 = arith.constant 0 : index
    %c0_56 = arith.constant 0 : index
    %c0_57 = arith.constant 0 : index
    %56 = vector.load %arg2[%c2_54, %c0_55, %c0_56, %c0_57] : memref<3x3x4x8xbf16, #tpu.memory_space<vmem>>, vector<1x1x4x8xbf16>
    %57 = vector.shape_cast %56 : vector<1x1x4x8xbf16> to vector<4x8xbf16>
    %cst_58 = arith.constant dense<0.000000e+00> : vector<256x8xf32>
    %58 = tpu.matmul %55, %57, %cst_58 {dimension_numbers = #tpu.dot_dimension_numbers<[1], [0], [0], [1], [0, 0, 1, 1], [], []>} : vector<256x4xbf16>, vector<4x8xbf16>, vector<256x8xf32> -> vector<256x8xf32>
    %59 = arith.addf %51, %58 : vector<256x8xf32>
    %60 = vector.extract_strided_slice %53 {offsets = [0, 1, 0], sizes = [16, 16, 4], strides = [1, 1, 1]} : vector<16x18x4xbf16> to vector<16x16x4xbf16>
    %61 = vector.shape_cast %60 : vector<16x16x4xbf16> to vector<256x4xbf16>
    %c2_59 = arith.constant 2 : index
    %c1_60 = arith.constant 1 : index
    %c0_61 = arith.constant 0 : index
    %c0_62 = arith.constant 0 : index
    %62 = vector.load %arg2[%c2_59, %c1_60, %c0_61, %c0_62] : memref<3x3x4x8xbf16, #tpu.memory_space<vmem>>, vector<1x1x4x8xbf16>
    %63 = vector.shape_cast %62 : vector<1x1x4x8xbf16> to vector<4x8xbf16>
    %cst_63 = arith.constant dense<0.000000e+00> : vector<256x8xf32>
    %64 = tpu.matmul %61, %63, %cst_63 {dimension_numbers = #tpu.dot_dimension_numbers<[1], [0], [0], [1], [0, 0, 1, 1], [], []>} : vector<256x4xbf16>, vector<4x8xbf16>, vector<256x8xf32> -> vector<256x8xf32>
    %65 = arith.addf %59, %64 : vector<256x8xf32>
    %66 = vector.extract_strided_slice %53 {offsets = [0, 2, 0], sizes = [16, 16, 4], strides = [1, 1, 1]} : vector<16x18x4xbf16> to vector<16x16x4xbf16>
    %67 = vector.shape_cast %66 : vector<16x16x4xbf16> to vector<256x4xbf16>
    %c2_64 = arith.constant 2 : index
    %c2_65 = arith.constant 2 : index
    %c0_66 = arith.constant 0 : index
    %c0_67 = arith.constant 0 : index
    %68 = vector.load %arg2[%c2_64, %c2_65, %c0_66, %c0_67] : memref<3x3x4x8xbf16, #tpu.memory_space<vmem>>, vector<1x1x4x8xbf16>
    %69 = vector.shape_cast %68 : vector<1x1x4x8xbf16> to vector<4x8xbf16>
    %cst_68 = arith.constant dense<0.000000e+00> : vector<256x8xf32>
    %70 = tpu.matmul %67, %69, %cst_68 {dimension_numbers = #tpu.dot_dimension_numbers<[1], [0], [0], [1], [0, 0, 1, 1], [], []>} : vector<256x4xbf16>, vector<4x8xbf16>, vector<256x8xf32> -> vector<256x8xf32>
    %71 = arith.addf %65, %70 : vector<256x8xf32>
    %72 = vector.shape_cast %71 : vector<256x8xf32> to vector<1x16x16x8xf32>
    %c0_69 = arith.constant 0 : index
    %c0_70 = arith.constant 0 : index
    %c0_71 = arith.constant 0 : index
    %c0_72 = arith.constant 0 : index
    %73 = vector.load %arg4[%c0_69, %c0_70, %c0_71, %c0_72] : memref<1x16x16x8xf32, #tpu.memory_space<vmem>>, vector<1x16x16x8xf32>
    tpu.vector_store %arg4[%c0_69, %c0_70, %c0_71, %c0_72], %72 {strides = array<i32>} : memref<1x16x16x8xf32, #tpu.memory_space<vmem>>, vector<1x16x16x8xf32>,
    %74 = vector.shape_cast %10 : vector<256x8xf32> to vector<1x16x16x8xf32>
    %c0_73 = arith.constant 0 : index
    %c0_74 = arith.constant 0 : index
    %c0_75 = arith.constant 0 : index
    %c0_76 = arith.constant 0 : index
    %75 = vector.load %arg5[%c0_73, %c0_74, %c0_75, %c0_76] : memref<1x16x16x8xf32, #tpu.memory_space<vmem>>, vector<1x16x16x8xf32>
    tpu.vector_store %arg5[%c0_73, %c0_74, %c0_75, %c0_76], %74 {strides = array<i32>} : memref<1x16x16x8xf32, #tpu.memory_space<vmem>>, vector<1x16x16x8xf32>,
    %cst_77 = arith.constant dense<0.000000e+00> : vector<8xf32>
    %76 = vector.multi_reduction <add>, %71, %cst_77 [0] : vector<256x8xf32> to vector<8xf32>
    %77 = vector.shape_cast %76 : vector<8xf32> to vector<1x8xf32>
    %78 = arith.mulf %71, %71 : vector<256x8xf32>
    %cst_78 = arith.constant dense<0.000000e+00> : vector<8xf32>
    %79 = vector.multi_reduction <add>, %78, %cst_78 [0] : vector<256x8xf32> to vector<8xf32>
    %80 = vector.shape_cast %79 : vector<8xf32> to vector<1x8xf32>
    %cst_79 = arith.constant dense<0.000000e+00> : vector<8xf32>
    %81 = vector.multi_reduction <add>, %10, %cst_79 [0] : vector<256x8xf32> to vector<8xf32>
    %82 = vector.shape_cast %81 : vector<8xf32> to vector<1x8xf32>
    %83 = arith.mulf %10, %10 : vector<256x8xf32>
    %cst_80 = arith.constant dense<0.000000e+00> : vector<8xf32>
    %84 = vector.multi_reduction <add>, %83, %cst_80 [0] : vector<256x8xf32> to vector<8xf32>
    %85 = vector.shape_cast %84 : vector<8xf32> to vector<1x8xf32>
    %86 = tpu.concatenate %77, %80, %82, %85 in 0 : vector<1x8xf32>, vector<1x8xf32>, vector<1x8xf32>, vector<1x8xf32> -> vector<4x8xf32>
    %87 = vector.shape_cast %86 : vector<4x8xf32> to vector<1x4x8xf32>
    %c0_81 = arith.constant 0 : index
    %c0_82 = arith.constant 0 : index
    %c0_83 = arith.constant 0 : index
    %88 = vector.load %arg6[%c0_81, %c0_82, %c0_83] : memref<1x4x8xf32, #tpu.memory_space<vmem>>, vector<1x4x8xf32>
    tpu.vector_store %arg6[%c0_81, %c0_82, %c0_83], %87 {strides = array<i32>} : memref<1x4x8xf32, #tpu.memory_space<vmem>>, vector<1x4x8xf32>,
    return
  }
  func.func @transform_0(%arg0: i32) -> (i32, i32, i32, i32) {
    %c0_i32 = arith.constant 0 : i32
    %c0_i32_0 = arith.constant 0 : i32
    %c0_i32_1 = arith.constant 0 : i32
    %c0_i32_2 = arith.constant 0 : i32
    return %arg0, %c0_i32, %c0_i32_0, %c0_i32_1 : i32, i32, i32, i32
  }
  func.func @transform_1(%arg0: i32) -> (i32, i32, i32, i32) {
    %c0_i32 = arith.constant 0 : i32
    %c0_i32_0 = arith.constant 0 : i32
    %c0_i32_1 = arith.constant 0 : i32
    %c0_i32_2 = arith.constant 0 : i32
    %c0_i32_3 = arith.constant 0 : i32
    return %c0_i32, %c0_i32_0, %c0_i32_1, %c0_i32_2 : i32, i32, i32, i32
  }
  func.func @transform_2(%arg0: i32) -> (i32, i32) {
    %c0_i32 = arith.constant 0 : i32
    %c0_i32_0 = arith.constant 0 : i32
    %c0_i32_1 = arith.constant 0 : i32
    return %c0_i32, %c0_i32_0 : i32, i32
  }
  func.func @transform_3(%arg0: i32) -> (i32, i32, i32, i32) {
    %c0_i32 = arith.constant 0 : i32
    %c0_i32_0 = arith.constant 0 : i32
    %c0_i32_1 = arith.constant 0 : i32
    %c0_i32_2 = arith.constant 0 : i32
    return %arg0, %c0_i32, %c0_i32_0, %c0_i32_1 : i32, i32, i32, i32
  }
  func.func @transform_4(%arg0: i32) -> (i32, i32, i32, i32) {
    %c0_i32 = arith.constant 0 : i32
    %c0_i32_0 = arith.constant 0 : i32
    %c0_i32_1 = arith.constant 0 : i32
    %c0_i32_2 = arith.constant 0 : i32
    return %arg0, %c0_i32, %c0_i32_0, %c0_i32_1 : i32, i32, i32, i32
  }
  func.func @transform_5(%arg0: i32) -> (i32, i32, i32) {
    %c0_i32 = arith.constant 0 : i32
    %c0_i32_0 = arith.constant 0 : i32
    %c0_i32_1 = arith.constant 0 : i32
    return %arg0, %c0_i32, %c0_i32_0 : i32, i32, i32
  }
}

module attributes {stable_mosaic.version = 11 : i64} {
  func.func @_stage2_kernel(%arg0: i32, %arg1: memref<1x16x16x8xf32, #tpu.memory_space<vmem>>, %arg2: memref<1x8xf32, #tpu.memory_space<vmem>>, %arg3: memref<1x8xf32, #tpu.memory_space<vmem>>, %arg4: memref<3x3x8x8xbf16, #tpu.memory_space<vmem>>, %arg5: memref<1x16x16x8xf32, #tpu.memory_space<vmem>>, %arg6: memref<1x2x8xf32, #tpu.memory_space<vmem>>, %arg7: memref<18x18x8xf32, #tpu.memory_space<vmem>>) attributes {dimension_semantics = [#tpu.dimension_semantics<parallel>], iteration_bounds = array<i64: 2>, scalar_prefetch = 0 : i64, scratch_operands = 1 : i64, tpu.core_type = #tpu.core_type<tc>, window_params = [{transform_indices = @transform_0, window_bounds = array<i64: 1, 16, 16, 8>}, {pipeline_mode = #tpu.pipeline_mode<synchronous>, transform_indices = @transform_1, window_bounds = array<i64: 1, 8>}, {pipeline_mode = #tpu.pipeline_mode<synchronous>, transform_indices = @transform_2, window_bounds = array<i64: 1, 8>}, {pipeline_mode = #tpu.pipeline_mode<synchronous>, transform_indices = @transform_3, window_bounds = array<i64: 3, 3, 8, 8>}, {transform_indices = @transform_4, window_bounds = array<i64: 1, 16, 16, 8>}, {transform_indices = @transform_5, window_bounds = array<i64: 1, 2, 8>}]} {
    %cst = arith.constant 0.000000e+00 : f32
    %0 = vector.broadcast %cst : f32 to vector<18x18x8xf32>
    %c0 = arith.constant 0 : index
    %c0_0 = arith.constant 0 : index
    %c0_1 = arith.constant 0 : index
    %1 = vector.load %arg7[%c0, %c0_0, %c0_1] : memref<18x18x8xf32, #tpu.memory_space<vmem>>, vector<18x18x8xf32>
    tpu.vector_store %arg7[%c0, %c0_0, %c0_1], %0 {strides = array<i32>} : memref<18x18x8xf32, #tpu.memory_space<vmem>>, vector<18x18x8xf32>,
    %c0_2 = arith.constant 0 : index
    %c0_3 = arith.constant 0 : index
    %2 = vector.load %arg2[%c0_2, %c0_3] : memref<1x8xf32, #tpu.memory_space<vmem>>, vector<1x8xf32>
    %3 = vector.shape_cast %2 : vector<1x8xf32> to vector<1x1x8xf32>
    %c0_4 = arith.constant 0 : index
    %c0_5 = arith.constant 0 : index
    %4 = vector.load %arg3[%c0_4, %c0_5] : memref<1x8xf32, #tpu.memory_space<vmem>>, vector<1x8xf32>
    %5 = vector.shape_cast %4 : vector<1x8xf32> to vector<1x1x8xf32>
    %c0_6 = arith.constant 0 : index
    %c0_7 = arith.constant 0 : index
    %c0_8 = arith.constant 0 : index
    %c0_9 = arith.constant 0 : index
    %6 = vector.load %arg1[%c0_6, %c0_7, %c0_8, %c0_9] : memref<1x16x16x8xf32, #tpu.memory_space<vmem>>, vector<1x16x16x8xf32>
    %7 = vector.shape_cast %6 : vector<1x16x16x8xf32> to vector<16x16x8xf32>
    %8 = vector.broadcast %3 : vector<1x1x8xf32> to vector<16x16x8xf32>
    %9 = arith.mulf %7, %8 : vector<16x16x8xf32>
    %10 = vector.broadcast %5 : vector<1x1x8xf32> to vector<16x16x8xf32>
    %11 = arith.addf %9, %10 : vector<16x16x8xf32>
    %cst_10 = arith.constant 0.000000e+00 : f32
    %12 = vector.broadcast %cst_10 : f32 to vector<16x16x8xf32>
    %13 = arith.maximumf %11, %12 : vector<16x16x8xf32>
    %c1 = arith.constant 1 : index
    %c1_11 = arith.constant 1 : index
    %c0_12 = arith.constant 0 : index
    %14 = vector.load %arg7[%c1, %c1_11, %c0_12] : memref<18x18x8xf32, #tpu.memory_space<vmem>>, vector<16x16x8xf32>
    tpu.vector_store %arg7[%c1, %c1_11, %c0_12], %13 {strides = array<i32>} : memref<18x18x8xf32, #tpu.memory_space<vmem>>, vector<16x16x8xf32>,
    %cst_13 = arith.constant 0.000000e+00 : f32
    %15 = vector.broadcast %cst_13 : f32 to vector<256x8xf32>
    %c0_14 = arith.constant 0 : index
    %c0_15 = arith.constant 0 : index
    %c0_16 = arith.constant 0 : index
    %16 = vector.load %arg7[%c0_14, %c0_15, %c0_16] : memref<18x18x8xf32, #tpu.memory_space<vmem>>, vector<16x18x8xf32>
    %17 = arith.truncf %16 : vector<16x18x8xf32> to vector<16x18x8xbf16>
    %18 = vector.extract_strided_slice %17 {offsets = [0, 0, 0], sizes = [16, 16, 8], strides = [1, 1, 1]} : vector<16x18x8xbf16> to vector<16x16x8xbf16>
    %19 = vector.shape_cast %18 : vector<16x16x8xbf16> to vector<256x8xbf16>
    %c0_17 = arith.constant 0 : index
    %c0_18 = arith.constant 0 : index
    %c0_19 = arith.constant 0 : index
    %c0_20 = arith.constant 0 : index
    %20 = vector.load %arg4[%c0_17, %c0_18, %c0_19, %c0_20] : memref<3x3x8x8xbf16, #tpu.memory_space<vmem>>, vector<1x1x8x8xbf16>
    %21 = vector.shape_cast %20 : vector<1x1x8x8xbf16> to vector<8x8xbf16>
    %cst_21 = arith.constant dense<0.000000e+00> : vector<256x8xf32>
    %22 = tpu.matmul %19, %21, %cst_21 {dimension_numbers = #tpu.dot_dimension_numbers<[1], [0], [0], [1], [0, 0, 1, 1], [], []>} : vector<256x8xbf16>, vector<8x8xbf16>, vector<256x8xf32> -> vector<256x8xf32>
    %23 = arith.addf %15, %22 : vector<256x8xf32>
    %24 = vector.extract_strided_slice %17 {offsets = [0, 1, 0], sizes = [16, 16, 8], strides = [1, 1, 1]} : vector<16x18x8xbf16> to vector<16x16x8xbf16>
    %25 = vector.shape_cast %24 : vector<16x16x8xbf16> to vector<256x8xbf16>
    %c0_22 = arith.constant 0 : index
    %c1_23 = arith.constant 1 : index
    %c0_24 = arith.constant 0 : index
    %c0_25 = arith.constant 0 : index
    %26 = vector.load %arg4[%c0_22, %c1_23, %c0_24, %c0_25] : memref<3x3x8x8xbf16, #tpu.memory_space<vmem>>, vector<1x1x8x8xbf16>
    %27 = vector.shape_cast %26 : vector<1x1x8x8xbf16> to vector<8x8xbf16>
    %cst_26 = arith.constant dense<0.000000e+00> : vector<256x8xf32>
    %28 = tpu.matmul %25, %27, %cst_26 {dimension_numbers = #tpu.dot_dimension_numbers<[1], [0], [0], [1], [0, 0, 1, 1], [], []>} : vector<256x8xbf16>, vector<8x8xbf16>, vector<256x8xf32> -> vector<256x8xf32>
    %29 = arith.addf %23, %28 : vector<256x8xf32>
    %30 = vector.extract_strided_slice %17 {offsets = [0, 2, 0], sizes = [16, 16, 8], strides = [1, 1, 1]} : vector<16x18x8xbf16> to vector<16x16x8xbf16>
    %31 = vector.shape_cast %30 : vector<16x16x8xbf16> to vector<256x8xbf16>
    %c0_27 = arith.constant 0 : index
    %c2 = arith.constant 2 : index
    %c0_28 = arith.constant 0 : index
    %c0_29 = arith.constant 0 : index
    %32 = vector.load %arg4[%c0_27, %c2, %c0_28, %c0_29] : memref<3x3x8x8xbf16, #tpu.memory_space<vmem>>, vector<1x1x8x8xbf16>
    %33 = vector.shape_cast %32 : vector<1x1x8x8xbf16> to vector<8x8xbf16>
    %cst_30 = arith.constant dense<0.000000e+00> : vector<256x8xf32>
    %34 = tpu.matmul %31, %33, %cst_30 {dimension_numbers = #tpu.dot_dimension_numbers<[1], [0], [0], [1], [0, 0, 1, 1], [], []>} : vector<256x8xbf16>, vector<8x8xbf16>, vector<256x8xf32> -> vector<256x8xf32>
    %35 = arith.addf %29, %34 : vector<256x8xf32>
    %c1_31 = arith.constant 1 : index
    %c0_32 = arith.constant 0 : index
    %c0_33 = arith.constant 0 : index
    %36 = vector.load %arg7[%c1_31, %c0_32, %c0_33] : memref<18x18x8xf32, #tpu.memory_space<vmem>>, vector<16x18x8xf32>
    %37 = arith.truncf %36 : vector<16x18x8xf32> to vector<16x18x8xbf16>
    %38 = vector.extract_strided_slice %37 {offsets = [0, 0, 0], sizes = [16, 16, 8], strides = [1, 1, 1]} : vector<16x18x8xbf16> to vector<16x16x8xbf16>
    %39 = vector.shape_cast %38 : vector<16x16x8xbf16> to vector<256x8xbf16>
    %c1_34 = arith.constant 1 : index
    %c0_35 = arith.constant 0 : index
    %c0_36 = arith.constant 0 : index
    %c0_37 = arith.constant 0 : index
    %40 = vector.load %arg4[%c1_34, %c0_35, %c0_36, %c0_37] : memref<3x3x8x8xbf16, #tpu.memory_space<vmem>>, vector<1x1x8x8xbf16>
    %41 = vector.shape_cast %40 : vector<1x1x8x8xbf16> to vector<8x8xbf16>
    %cst_38 = arith.constant dense<0.000000e+00> : vector<256x8xf32>
    %42 = tpu.matmul %39, %41, %cst_38 {dimension_numbers = #tpu.dot_dimension_numbers<[1], [0], [0], [1], [0, 0, 1, 1], [], []>} : vector<256x8xbf16>, vector<8x8xbf16>, vector<256x8xf32> -> vector<256x8xf32>
    %43 = arith.addf %35, %42 : vector<256x8xf32>
    %44 = vector.extract_strided_slice %37 {offsets = [0, 1, 0], sizes = [16, 16, 8], strides = [1, 1, 1]} : vector<16x18x8xbf16> to vector<16x16x8xbf16>
    %45 = vector.shape_cast %44 : vector<16x16x8xbf16> to vector<256x8xbf16>
    %c1_39 = arith.constant 1 : index
    %c1_40 = arith.constant 1 : index
    %c0_41 = arith.constant 0 : index
    %c0_42 = arith.constant 0 : index
    %46 = vector.load %arg4[%c1_39, %c1_40, %c0_41, %c0_42] : memref<3x3x8x8xbf16, #tpu.memory_space<vmem>>, vector<1x1x8x8xbf16>
    %47 = vector.shape_cast %46 : vector<1x1x8x8xbf16> to vector<8x8xbf16>
    %cst_43 = arith.constant dense<0.000000e+00> : vector<256x8xf32>
    %48 = tpu.matmul %45, %47, %cst_43 {dimension_numbers = #tpu.dot_dimension_numbers<[1], [0], [0], [1], [0, 0, 1, 1], [], []>} : vector<256x8xbf16>, vector<8x8xbf16>, vector<256x8xf32> -> vector<256x8xf32>
    %49 = arith.addf %43, %48 : vector<256x8xf32>
    %50 = vector.extract_strided_slice %37 {offsets = [0, 2, 0], sizes = [16, 16, 8], strides = [1, 1, 1]} : vector<16x18x8xbf16> to vector<16x16x8xbf16>
    %51 = vector.shape_cast %50 : vector<16x16x8xbf16> to vector<256x8xbf16>
    %c1_44 = arith.constant 1 : index
    %c2_45 = arith.constant 2 : index
    %c0_46 = arith.constant 0 : index
    %c0_47 = arith.constant 0 : index
    %52 = vector.load %arg4[%c1_44, %c2_45, %c0_46, %c0_47] : memref<3x3x8x8xbf16, #tpu.memory_space<vmem>>, vector<1x1x8x8xbf16>
    %53 = vector.shape_cast %52 : vector<1x1x8x8xbf16> to vector<8x8xbf16>
    %cst_48 = arith.constant dense<0.000000e+00> : vector<256x8xf32>
    %54 = tpu.matmul %51, %53, %cst_48 {dimension_numbers = #tpu.dot_dimension_numbers<[1], [0], [0], [1], [0, 0, 1, 1], [], []>} : vector<256x8xbf16>, vector<8x8xbf16>, vector<256x8xf32> -> vector<256x8xf32>
    %55 = arith.addf %49, %54 : vector<256x8xf32>
    %c2_49 = arith.constant 2 : index
    %c0_50 = arith.constant 0 : index
    %c0_51 = arith.constant 0 : index
    %56 = vector.load %arg7[%c2_49, %c0_50, %c0_51] : memref<18x18x8xf32, #tpu.memory_space<vmem>>, vector<16x18x8xf32>
    %57 = arith.truncf %56 : vector<16x18x8xf32> to vector<16x18x8xbf16>
    %58 = vector.extract_strided_slice %57 {offsets = [0, 0, 0], sizes = [16, 16, 8], strides = [1, 1, 1]} : vector<16x18x8xbf16> to vector<16x16x8xbf16>
    %59 = vector.shape_cast %58 : vector<16x16x8xbf16> to vector<256x8xbf16>
    %c2_52 = arith.constant 2 : index
    %c0_53 = arith.constant 0 : index
    %c0_54 = arith.constant 0 : index
    %c0_55 = arith.constant 0 : index
    %60 = vector.load %arg4[%c2_52, %c0_53, %c0_54, %c0_55] : memref<3x3x8x8xbf16, #tpu.memory_space<vmem>>, vector<1x1x8x8xbf16>
    %61 = vector.shape_cast %60 : vector<1x1x8x8xbf16> to vector<8x8xbf16>
    %cst_56 = arith.constant dense<0.000000e+00> : vector<256x8xf32>
    %62 = tpu.matmul %59, %61, %cst_56 {dimension_numbers = #tpu.dot_dimension_numbers<[1], [0], [0], [1], [0, 0, 1, 1], [], []>} : vector<256x8xbf16>, vector<8x8xbf16>, vector<256x8xf32> -> vector<256x8xf32>
    %63 = arith.addf %55, %62 : vector<256x8xf32>
    %64 = vector.extract_strided_slice %57 {offsets = [0, 1, 0], sizes = [16, 16, 8], strides = [1, 1, 1]} : vector<16x18x8xbf16> to vector<16x16x8xbf16>
    %65 = vector.shape_cast %64 : vector<16x16x8xbf16> to vector<256x8xbf16>
    %c2_57 = arith.constant 2 : index
    %c1_58 = arith.constant 1 : index
    %c0_59 = arith.constant 0 : index
    %c0_60 = arith.constant 0 : index
    %66 = vector.load %arg4[%c2_57, %c1_58, %c0_59, %c0_60] : memref<3x3x8x8xbf16, #tpu.memory_space<vmem>>, vector<1x1x8x8xbf16>
    %67 = vector.shape_cast %66 : vector<1x1x8x8xbf16> to vector<8x8xbf16>
    %cst_61 = arith.constant dense<0.000000e+00> : vector<256x8xf32>
    %68 = tpu.matmul %65, %67, %cst_61 {dimension_numbers = #tpu.dot_dimension_numbers<[1], [0], [0], [1], [0, 0, 1, 1], [], []>} : vector<256x8xbf16>, vector<8x8xbf16>, vector<256x8xf32> -> vector<256x8xf32>
    %69 = arith.addf %63, %68 : vector<256x8xf32>
    %70 = vector.extract_strided_slice %57 {offsets = [0, 2, 0], sizes = [16, 16, 8], strides = [1, 1, 1]} : vector<16x18x8xbf16> to vector<16x16x8xbf16>
    %71 = vector.shape_cast %70 : vector<16x16x8xbf16> to vector<256x8xbf16>
    %c2_62 = arith.constant 2 : index
    %c2_63 = arith.constant 2 : index
    %c0_64 = arith.constant 0 : index
    %c0_65 = arith.constant 0 : index
    %72 = vector.load %arg4[%c2_62, %c2_63, %c0_64, %c0_65] : memref<3x3x8x8xbf16, #tpu.memory_space<vmem>>, vector<1x1x8x8xbf16>
    %73 = vector.shape_cast %72 : vector<1x1x8x8xbf16> to vector<8x8xbf16>
    %cst_66 = arith.constant dense<0.000000e+00> : vector<256x8xf32>
    %74 = tpu.matmul %71, %73, %cst_66 {dimension_numbers = #tpu.dot_dimension_numbers<[1], [0], [0], [1], [0, 0, 1, 1], [], []>} : vector<256x8xbf16>, vector<8x8xbf16>, vector<256x8xf32> -> vector<256x8xf32>
    %75 = arith.addf %69, %74 : vector<256x8xf32>
    %76 = vector.shape_cast %75 : vector<256x8xf32> to vector<1x16x16x8xf32>
    %c0_67 = arith.constant 0 : index
    %c0_68 = arith.constant 0 : index
    %c0_69 = arith.constant 0 : index
    %c0_70 = arith.constant 0 : index
    %77 = vector.load %arg5[%c0_67, %c0_68, %c0_69, %c0_70] : memref<1x16x16x8xf32, #tpu.memory_space<vmem>>, vector<1x16x16x8xf32>
    tpu.vector_store %arg5[%c0_67, %c0_68, %c0_69, %c0_70], %76 {strides = array<i32>} : memref<1x16x16x8xf32, #tpu.memory_space<vmem>>, vector<1x16x16x8xf32>,
    %cst_71 = arith.constant dense<0.000000e+00> : vector<8xf32>
    %78 = vector.multi_reduction <add>, %75, %cst_71 [0] : vector<256x8xf32> to vector<8xf32>
    %79 = vector.shape_cast %78 : vector<8xf32> to vector<1x8xf32>
    %80 = arith.mulf %75, %75 : vector<256x8xf32>
    %cst_72 = arith.constant dense<0.000000e+00> : vector<8xf32>
    %81 = vector.multi_reduction <add>, %80, %cst_72 [0] : vector<256x8xf32> to vector<8xf32>
    %82 = vector.shape_cast %81 : vector<8xf32> to vector<1x8xf32>
    %83 = tpu.concatenate %79, %82 in 0 : vector<1x8xf32>, vector<1x8xf32> -> vector<2x8xf32>
    %84 = vector.shape_cast %83 : vector<2x8xf32> to vector<1x2x8xf32>
    %c0_73 = arith.constant 0 : index
    %c0_74 = arith.constant 0 : index
    %c0_75 = arith.constant 0 : index
    %85 = vector.load %arg6[%c0_73, %c0_74, %c0_75] : memref<1x2x8xf32, #tpu.memory_space<vmem>>, vector<1x2x8xf32>
    tpu.vector_store %arg6[%c0_73, %c0_74, %c0_75], %84 {strides = array<i32>} : memref<1x2x8xf32, #tpu.memory_space<vmem>>, vector<1x2x8xf32>,
    return
  }
  func.func @transform_0(%arg0: i32) -> (i32, i32, i32, i32) {
    %c0_i32 = arith.constant 0 : i32
    %c0_i32_0 = arith.constant 0 : i32
    %c0_i32_1 = arith.constant 0 : i32
    %c0_i32_2 = arith.constant 0 : i32
    return %arg0, %c0_i32, %c0_i32_0, %c0_i32_1 : i32, i32, i32, i32
  }
  func.func @transform_1(%arg0: i32) -> (i32, i32) {
    %c0_i32 = arith.constant 0 : i32
    %c0_i32_0 = arith.constant 0 : i32
    %c0_i32_1 = arith.constant 0 : i32
    return %c0_i32, %c0_i32_0 : i32, i32
  }
  func.func @transform_2(%arg0: i32) -> (i32, i32) {
    %c0_i32 = arith.constant 0 : i32
    %c0_i32_0 = arith.constant 0 : i32
    %c0_i32_1 = arith.constant 0 : i32
    return %c0_i32, %c0_i32_0 : i32, i32
  }
  func.func @transform_3(%arg0: i32) -> (i32, i32, i32, i32) {
    %c0_i32 = arith.constant 0 : i32
    %c0_i32_0 = arith.constant 0 : i32
    %c0_i32_1 = arith.constant 0 : i32
    %c0_i32_2 = arith.constant 0 : i32
    %c0_i32_3 = arith.constant 0 : i32
    return %c0_i32, %c0_i32_0, %c0_i32_1, %c0_i32_2 : i32, i32, i32, i32
  }
  func.func @transform_4(%arg0: i32) -> (i32, i32, i32, i32) {
    %c0_i32 = arith.constant 0 : i32
    %c0_i32_0 = arith.constant 0 : i32
    %c0_i32_1 = arith.constant 0 : i32
    %c0_i32_2 = arith.constant 0 : i32
    return %arg0, %c0_i32, %c0_i32_0, %c0_i32_1 : i32, i32, i32, i32
  }
  func.func @transform_5(%arg0: i32) -> (i32, i32, i32) {
    %c0_i32 = arith.constant 0 : i32
    %c0_i32_0 = arith.constant 0 : i32
    %c0_i32_1 = arith.constant 0 : i32
    return %arg0, %c0_i32, %c0_i32_0 : i32, i32, i32
  }
}

module attributes {stable_mosaic.version = 11 : i64} {
  func.func @_bn_add_relu_kernel(%arg0: i32, %arg1: memref<32x128xf32, #tpu.memory_space<vmem>>, %arg2: memref<32x128xf32, #tpu.memory_space<vmem>>, %arg3: memref<1x128xf32, #tpu.memory_space<vmem>>, %arg4: memref<1x128xf32, #tpu.memory_space<vmem>>, %arg5: memref<1x128xf32, #tpu.memory_space<vmem>>, %arg6: memref<1x128xf32, #tpu.memory_space<vmem>>, %arg7: memref<32x128xf32, #tpu.memory_space<vmem>>) attributes {dimension_semantics = [#tpu.dimension_semantics<parallel>], iteration_bounds = array<i64: 1>, scalar_prefetch = 0 : i64, scratch_operands = 0 : i64, tpu.core_type = #tpu.core_type<tc>, window_params = [{transform_indices = @transform_0, window_bounds = array<i64: 32, 128>}, {transform_indices = @transform_1, window_bounds = array<i64: 32, 128>}, {pipeline_mode = #tpu.pipeline_mode<synchronous>, transform_indices = @transform_2, window_bounds = array<i64: 1, 128>}, {pipeline_mode = #tpu.pipeline_mode<synchronous>, transform_indices = @transform_3, window_bounds = array<i64: 1, 128>}, {pipeline_mode = #tpu.pipeline_mode<synchronous>, transform_indices = @transform_4, window_bounds = array<i64: 1, 128>}, {pipeline_mode = #tpu.pipeline_mode<synchronous>, transform_indices = @transform_5, window_bounds = array<i64: 1, 128>}, {transform_indices = @transform_6, window_bounds = array<i64: 32, 128>}]} {
    %c0 = arith.constant 0 : index
    %c0_0 = arith.constant 0 : index
    %0 = vector.load %arg1[%c0, %c0_0] : memref<32x128xf32, #tpu.memory_space<vmem>>, vector<32x128xf32>
    %c0_1 = arith.constant 0 : index
    %c0_2 = arith.constant 0 : index
    %1 = vector.load %arg3[%c0_1, %c0_2] : memref<1x128xf32, #tpu.memory_space<vmem>>, vector<1x128xf32>
    %2 = vector.broadcast %1 : vector<1x128xf32> to vector<32x128xf32>
    %3 = arith.mulf %0, %2 : vector<32x128xf32>
    %c0_3 = arith.constant 0 : index
    %c0_4 = arith.constant 0 : index
    %4 = vector.load %arg4[%c0_3, %c0_4] : memref<1x128xf32, #tpu.memory_space<vmem>>, vector<1x128xf32>
    %5 = vector.broadcast %4 : vector<1x128xf32> to vector<32x128xf32>
    %6 = arith.addf %3, %5 : vector<32x128xf32>
    %c0_5 = arith.constant 0 : index
    %c0_6 = arith.constant 0 : index
    %7 = vector.load %arg2[%c0_5, %c0_6] : memref<32x128xf32, #tpu.memory_space<vmem>>, vector<32x128xf32>
    %c0_7 = arith.constant 0 : index
    %c0_8 = arith.constant 0 : index
    %8 = vector.load %arg5[%c0_7, %c0_8] : memref<1x128xf32, #tpu.memory_space<vmem>>, vector<1x128xf32>
    %9 = vector.broadcast %8 : vector<1x128xf32> to vector<32x128xf32>
    %10 = arith.mulf %7, %9 : vector<32x128xf32>
    %11 = arith.addf %6, %10 : vector<32x128xf32>
    %c0_9 = arith.constant 0 : index
    %c0_10 = arith.constant 0 : index
    %12 = vector.load %arg6[%c0_9, %c0_10] : memref<1x128xf32, #tpu.memory_space<vmem>>, vector<1x128xf32>
    %13 = vector.broadcast %12 : vector<1x128xf32> to vector<32x128xf32>
    %14 = arith.addf %11, %13 : vector<32x128xf32>
    %cst = arith.constant 0.000000e+00 : f32
    %15 = vector.broadcast %cst : f32 to vector<32x128xf32>
    %16 = arith.maximumf %14, %15 : vector<32x128xf32>
    %c0_11 = arith.constant 0 : index
    %c0_12 = arith.constant 0 : index
    %17 = vector.load %arg7[%c0_11, %c0_12] : memref<32x128xf32, #tpu.memory_space<vmem>>, vector<32x128xf32>
    tpu.vector_store %arg7[%c0_11, %c0_12], %16 {strides = array<i32>} : memref<32x128xf32, #tpu.memory_space<vmem>>, vector<32x128xf32>,
    return
  }
  func.func @transform_0(%arg0: i32) -> (i32, i32) {
    %c0_i32 = arith.constant 0 : i32
    %c0_i32_0 = arith.constant 0 : i32
    return %arg0, %c0_i32 : i32, i32
  }
  func.func @transform_1(%arg0: i32) -> (i32, i32) {
    %c0_i32 = arith.constant 0 : i32
    %c0_i32_0 = arith.constant 0 : i32
    return %arg0, %c0_i32 : i32, i32
  }
  func.func @transform_2(%arg0: i32) -> (i32, i32) {
    %c0_i32 = arith.constant 0 : i32
    %c0_i32_0 = arith.constant 0 : i32
    %c0_i32_1 = arith.constant 0 : i32
    return %c0_i32, %c0_i32_0 : i32, i32
  }
  func.func @transform_3(%arg0: i32) -> (i32, i32) {
    %c0_i32 = arith.constant 0 : i32
    %c0_i32_0 = arith.constant 0 : i32
    %c0_i32_1 = arith.constant 0 : i32
    return %c0_i32, %c0_i32_0 : i32, i32
  }
  func.func @transform_4(%arg0: i32) -> (i32, i32) {
    %c0_i32 = arith.constant 0 : i32
    %c0_i32_0 = arith.constant 0 : i32
    %c0_i32_1 = arith.constant 0 : i32
    return %c0_i32, %c0_i32_0 : i32, i32
  }
  func.func @transform_5(%arg0: i32) -> (i32, i32) {
    %c0_i32 = arith.constant 0 : i32
    %c0_i32_0 = arith.constant 0 : i32
    %c0_i32_1 = arith.constant 0 : i32
    return %c0_i32, %c0_i32_0 : i32, i32
  }
  func.func @transform_6(%arg0: i32) -> (i32, i32) {
    %c0_i32 = arith.constant 0 : i32
    %c0_i32_0 = arith.constant 0 : i32
    return %arg0, %c0_i32 : i32, i32
  }
}

</mosaic_0001>

<llo_original>
// kernel: tile.23
$region0: #{tile.23}
  #allocation0 [shape = 's32[1]{0}', space=sflag, size = 0x4, scoped, tag = 'scoped memory for tile.23']
  %s0 = inlined_call_operand.vmem [shape: f32[8], index: 0, kind: input, shape index: {}]
  %s1 = inlined_call_operand.vmem [shape: f32[16,8], index: 1, kind: output, shape index: {}]
  // Predicated region
  $region2: #{tile.23} parent=0 // pred_check
    _
  $region3: #{tile.23} parent=0 // pred_check_branch
    %3 = sbr.rel (0) target = $region5
  $region4: #{tile.23} parent=0 // pred_region
    _
  $region5: #{tile.23} parent=0 // pred_fallthru
    _
  %v4 = vld [vmem:[%s0] ss:$0 sm:$0xff]
  %5 = vst [vmem:[%s1] sm:$0xff] %v4
  %s6 = scalar_lea.vmem %s1, 8
  %7 = vst [vmem:[%s6] sm:$0xff] %v4

// kernel: tile.24
$region0: #{tile.24}
  %s0 = inlined_call_operand.vmem [shape: f32[16,8], index: 0, kind: input, shape index: {}]
  %s1 = inlined_call_operand.vmem [shape: f32[1,128], index: 1, kind: output, shape index: {}]
  $region1: #{tile.24} parent=0
    #allocation0 [shape = 'u8[4096]{0}', space=vmem, size = 0x1000, scoped, tag = 'scoped mem for output reshape']
    %v2 = vld [vmem:[%s0] sm:$0x1]
    %vm3 = vcmask 64512
    %4 = vst.msk [vmem:[#allocation0] sm:$0x1] %vm3, %v2
    %s5 = scalar_lea.vmem %s0, 15
    %v6 = vld [vmem:[%s5] sm:$0x1]
    %7 = vrot.lane.b32.xlu0 %v6, 120
    %v8 = vpop.permute.xlu0 %7
    %vm9 = vcmask 1048512
    %10 = vst.msk [vmem:[#allocation0] sm:$0x1] %vm9, %v8
    %s11 = scalar_lea.vmem %s0, 14
    %v12 = vld [vmem:[%s11] sm:$0x1]
    %13 = vrot.lane.b32.xlu0 %v12, 112
    %v14 = vpop.permute.xlu0 %13
    %vm15 = vcmask 982912
    %16 = vst.msk [vmem:[#allocation0] sm:$0x1] %vm15, %v14
    %s17 = scalar_lea.vmem %s0, 13
    %v18 = vld [vmem:[%s17] sm:$0x1]
    %19 = vrot.lane.b32.xlu0 %v18, 104
    %v20 = vpop.permute.xlu0 %19
    %vm21 = vcmask 917312
    %22 = vst.msk [vmem:[#allocation0] sm:$0x1] %vm21, %v20
    %s23 = scalar_lea.vmem %s0, 12
    %v24 = vld [vmem:[%s23] sm:$0x1]
    %25 = vrot.lane.b32.xlu0 %v24, 96
    %v26 = vpop.permute.xlu0 %25
    %vm27 = vcmask 851712
    %28 = vst.msk [vmem:[#allocation0] sm:$0x1] %vm27, %v26
    %s29 = scalar_lea.vmem %s0, 11
    %v30 = vld [vmem:[%s29] sm:$0x1]
    %31 = vrot.lane.b32.xlu0 %v30, 88
    %v32 = vpop.permute.xlu0 %31
    %vm33 = vcmask 786112
    %34 = vst.msk [vmem:[#allocation0] sm:$0x1] %vm33, %v32
    %s35 = scalar_lea.vmem %s0, 10
    %v36 = vld [vmem:[%s35] sm:$0x1]
    %37 = vrot.lane.b32.xlu0 %v36, 80
    %v38 = vpop.permute.xlu0 %37
    %vm39 = vcmask 720512
    %40 = vst.msk [vmem:[#allocation0] sm:$0x1] %vm39, %v38
    %s41 = scalar_lea.vmem %s0, 9
    %v42 = vld [vmem:[%s41] sm:$0x1]
    %43 = vrot.lane.b32.xlu0 %v42, 72
    %v44 = vpop.permute.xlu0 %43
    %vm45 = vcmask 654912
    %46 = vst.msk [vmem:[#allocation0] sm:$0x1] %vm45, %v44
    %s47 = scalar_lea.vmem %s0, 8
    %v48 = vld [vmem:[%s47] sm:$0x1]
    %49 = vrot.lane.b32.xlu0 %v48, 64
    %v50 = vpop.permute.xlu0 %49
    %vm51 = vcmask 589312
    %52 = vst.msk [vmem:[#allocation0] sm:$0x1] %vm51, %v50
    %s53 = scalar_lea.vmem %s0, 7
    %v54 = vld [vmem:[%s53] sm:$0x1]
    %55 = vrot.lane.b32.xlu0 %v54, 56
    %v56 = vpop.permute.xlu0 %55
    %vm57 = vcmask 523712
    %58 = vst.msk [vmem:[#allocation0] sm:$0x1] %vm57, %v56
    %s59 = scalar_lea.vmem %s0, 6
    %v60 = vld [vmem:[%s59] sm:$0x1]
    %61 = vrot.lane.b32.xlu0 %v60, 48
    %v62 = vpop.permute.xlu0 %61
    %vm63 = vcmask 458112
    %64 = vst.msk [vmem:[#allocation0] sm:$0x1] %vm63, %v62
    %s65 = scalar_lea.vmem %s0, 5
    %v66 = vld [vmem:[%s65] sm:$0x1]
    %67 = vrot.lane.b32.xlu0 %v66, 40
    %v68 = vpop.permute.xlu0 %67
    %vm69 = vcmask 392512
    %70 = vst.msk [vmem:[#allocation0] sm:$0x1] %vm69, %v68
    %s71 = scalar_lea.vmem %s0, 4
    %v72 = vld [vmem:[%s71] sm:$0x1]
    %73 = vrot.lane.b32.xlu0 %v72, 32
    %v74 = vpop.permute.xlu0 %73
    %vm75 = vcmask 326912
    %76 = vst.msk [vmem:[#allocation0] sm:$0x1] %vm75, %v74
    %s77 = scalar_lea.vmem %s0, 3
    %v78 = vld [vmem:[%s77] sm:$0x1]
    %79 = vrot.lane.b32.xlu0 %v78, 24
    %v80 = vpop.permute.xlu0 %79
    %vm81 = vcmask 261312
    %82 = vst.msk [vmem:[#allocation0] sm:$0x1] %vm81, %v80
    %s83 = scalar_lea.vmem %s0, 2
    %v84 = vld [vmem:[%s83] sm:$0x1]
    %85 = vrot.lane.b32.xlu0 %v84, 16
    %v86 = vpop.permute.xlu0 %85
    %vm87 = vcmask 195712
    %88 = vst.msk [vmem:[#allocation0] sm:$0x1] %vm87, %v86
    %s89 = scalar_lea.vmem %s0, 1
    %v90 = vld [vmem:[%s89] sm:$0x1]
    %91 = vrot.lane.b32.xlu0 %v90, 8
    %v92 = vpop.permute.xlu0 %91
    %vm93 = vcmask 130112
    %94 = vst.msk [vmem:[#allocation0] sm:$0x1] %vm93, %v92
    %s96 = sshllo.u32 0, 1
    %v98 = vld [vmem:[#allocation0] sm:%s96]
    %s99 = sshllo.u32 0, 1
    %100 = vst [vmem:[%s1] sm:%s99] %v98

// kernel: block_forward.5
$region0: #{block_forward.5}
  #allocation0 [shape = 'u32[]', space=smem, size = 0x4, offset = 0x4, fixed_abs, tag = 'smem constant byte address 0x4 - core index']
  #allocation1 [shape = 'u32[144,128]{1,0:T(1,128)}', space=vmem, size = 0x12000, scoped, tag = 'internal scratch']
  %s0 = inlined_call_operand.vmem [shape: f32[32,128], index: 0, kind: input, shape index: {}]
  %s1 = inlined_call_operand.vmem [shape: f32[32,128], index: 1, kind: input, shape index: {}]
  %s2 = inlined_call_operand.vmem [shape: f32[1,128], index: 2, kind: input, shape index: {}]
  %s3 = inlined_call_operand.vmem [shape: f32[1,128], index: 3, kind: input, shape index: {}]
  %s4 = inlined_call_operand.vmem [shape: f32[1,128], index: 4, kind: input, shape index: {}]
  %s5 = inlined_call_operand.vmem [shape: f32[1,128], index: 5, kind: input, shape index: {}]
  %s6 = inlined_call_operand.vmem [shape: f32[32,128], index: 6, kind: output, shape index: {}]
  %s7 = sld [smem:[#allocation0]]
  $region34: #{block_forward.5} parent=0
    _
  %s9 = ssub.s32 1, %s7
  %s10 = scalar_select 0, %s9, %s7
  // Predicated region
  $region2: #{block_forward.5} parent=0 // pred_check
    _
  $region3: #{block_forward.5} parent=0 // pred_check_branch
    %12 = sbr.rel (0) target = $region5
  $region4: #{block_forward.5} parent=0 // pred_region
    _
  $region5: #{block_forward.5} parent=0 // pred_fallthru
    _
  // Predicated region
  $region6: #{block_forward.5} parent=0 // pred_check
    _
  $region7: #{block_forward.5} parent=0 // pred_check_branch
    %14 = sbr.rel (0) target = $region9
  $region8: #{block_forward.5} parent=0 // pred_region
    _
  $region9: #{block_forward.5} parent=0 // pred_fallthru
    _
  // Predicated region
  $region10: #{block_forward.5} parent=0 // pred_check
    _
  $region11: #{block_forward.5} parent=0 // pred_check_branch
    %16 = sbr.rel (0) target = $region13
  $region12: #{block_forward.5} parent=0 // pred_region
    _
  $region13: #{block_forward.5} parent=0 // pred_fallthru
    _
  // Predicated region
  $region14: #{block_forward.5} parent=0 // pred_check
    _
  $region15: #{block_forward.5} parent=0 // pred_check_branch
    %18 = sbr.rel (0) target = $region17
  $region16: #{block_forward.5} parent=0 // pred_region
    _
  $region17: #{block_forward.5} parent=0 // pred_fallthru
    _
  // Predicated region
  $region18: #{block_forward.5} parent=0 // pred_check
    _
  $region19: #{block_forward.5} parent=0 // pred_check_branch
    %20 = sbr.rel (0) target = $region21
  $region20: #{block_forward.5} parent=0 // pred_region
    _
  $region21: #{block_forward.5} parent=0 // pred_fallthru
    _
  // Predicated region
  $region22: #{block_forward.5} parent=0 // pred_check
    _
  $region23: #{block_forward.5} parent=0 // pred_check_branch
    %22 = sbr.rel (0) target = $region25
  $region24: #{block_forward.5} parent=0 // pred_region
    _
  $region25: #{block_forward.5} parent=0 // pred_fallthru
    _
  %v23 = vld [vmem:[%s0] sm:$0xff]
  %v24 = vld [vmem:[%s0 + $0x8] sm:$0xff]
  %v25 = vld [vmem:[%s0 + $0x10] sm:$0xff]
  %v26 = vld [vmem:[%s0 + $0x18] sm:$0xff]
  %v27 = vld [vmem:[%s2] sm:$0x1]
  %v29 = vlaneseq
  %v30 = vshrl.u32 %v29, 7
  %v31 = vsub.s32 0, %v30
  %v32 = vrot.slane %v27, %v31
  %v34 = vmul.f32 %v23, %v32
  %v35 = vmul.f32 %v24, %v32
  %v36 = vmul.f32 %v25, %v32
  %v37 = vmul.f32 %v26, %v32
  %v38 = vld [vmem:[%s3] sm:$0x1]
  %v40 = vlaneseq
  %v41 = vshrl.u32 %v40, 7
  %v42 = vsub.s32 0, %v41
  %v43 = vrot.slane %v38, %v42
  %v45 = vadd.f32 %v34, %v43
  %v46 = vadd.f32 %v35, %v43
  %v47 = vadd.f32 %v36, %v43
  %v48 = vadd.f32 %v37, %v43
  %v49 = vld [vmem:[%s1] sm:$0xff]
  %v50 = vld [vmem:[%s1 + $0x8] sm:$0xff]
  %v51 = vld [vmem:[%s1 + $0x10] sm:$0xff]
  %v52 = vld [vmem:[%s1 + $0x18] sm:$0xff]
  %v53 = vld [vmem:[%s4] sm:$0x1]
  %v55 = vlaneseq
  %v56 = vshrl.u32 %v55, 7
  %v57 = vsub.s32 0, %v56
  %v58 = vrot.slane %v53, %v57
  %v60 = vmul.f32 %v49, %v58
  %v61 = vmul.f32 %v50, %v58
  %v62 = vmul.f32 %v51, %v58
  %v63 = vmul.f32 %v52, %v58
  %v64 = vadd.f32 %v45, %v60
  %v65 = vadd.f32 %v46, %v61
  %v66 = vadd.f32 %v47, %v62
  %v67 = vadd.f32 %v48, %v63
  %v68 = vld [vmem:[%s5] sm:$0x1]
  %v70 = vlaneseq
  %v71 = vshrl.u32 %v70, 7
  %v72 = vsub.s32 0, %v71
  %v73 = vrot.slane %v68, %v72
  %v75 = vadd.f32 %v64, %v73
  %v76 = vadd.f32 %v65, %v73
  %v77 = vadd.f32 %v66, %v73
  %v78 = vadd.f32 %v67, %v73
  %v79 = vmax.f32 %v75, 0.0
  %v80 = vmax.f32 %v76, 0.0
  %v81 = vmax.f32 %v77, 0.0
  %v82 = vmax.f32 %v78, 0.0
  %83 = vst [vmem:[%s6] sm:$0xff] %v79
  %84 = vst [vmem:[%s6 + $0x8] sm:$0xff] %v80
  %85 = vst [vmem:[%s6 + $0x10] sm:$0xff] %v81
  %86 = vst [vmem:[%s6 + $0x18] sm:$0xff] %v82
  // Predicated region
  $region26: #{block_forward.5} parent=0 // pred_check
    _
  $region27: #{block_forward.5} parent=0 // pred_check_branch
    %88 = sbr.rel (0) target = $region29
  $region28: #{block_forward.5} parent=0 // pred_region
    _
  $region29: #{block_forward.5} parent=0 // pred_fallthru
    _
  // Predicated region
  $region30: #{block_forward.5} parent=0 // pred_check
    _
  $region31: #{block_forward.5} parent=0 // pred_check_branch
    %90 = sbr.rel (0) target = $region33
  $region32: #{block_forward.5} parent=0 // pred_region
    _
  $region33: #{block_forward.5} parent=0 // pred_fallthru
    _

// kernel: block_forward.4
$region0: #{block_forward.4}
  #allocation0 [shape = 'u32[]', space=smem, size = 0x4, offset = 0x4, fixed_abs, tag = 'smem constant byte address 0x4 - core index']
  #allocation1 [shape = 'u32[144,128]{1,0:T(1,128)}', space=vmem, size = 0x12000, scoped, tag = 'internal scratch']
  #allocation2 [shape = 'f32[18,18,8]{2,1,0:T(8,128)}', space=vmem, size = 0x36000, scoped, tag = 'scratch operand']
  %s0 = inlined_call_operand.vmem [shape: f32[2,16,16,8], index: 0, kind: input, shape index: {}]
  %s1 = inlined_call_operand.vmem [shape: f32[1,8], index: 1, kind: input, shape index: {}]
  %s2 = inlined_call_operand.vmem [shape: f32[1,8], index: 2, kind: input, shape index: {}]
  %s3 = inlined_call_operand.vmem [shape: bf16[3,3,8,8], index: 3, kind: input, shape index: {}]
  %s4 = inlined_call_operand.vmem [shape: f32[2,16,16,8], index: 4, kind: output, shape index: {0}]
  %s5 = inlined_call_operand.vmem [shape: f32[2,2,8], index: 5, kind: output, shape index: {1}]
  %6 = xla_tuple %s4, %s5
  %s7 = sld [smem:[#allocation0]]
  $region57: #{block_forward.4} parent=0
    _
  %s9 = ssub.s32 1, %s7
  %s10 = scalar_select 0, %s9, %s7
  loop: start=0, step=1, limit=4
  $region2: #{block_forward.4} parent=0 // loop_pre_header
    _
  $region3: #{block_forward.4} parent=0 // loop_header
    %s12 = sphi 0, %s16
    %p13 = scmp.ge.s32.totalorder %s12, 4
    %s22 = sphi 0, %s24
    %s25 = sphi 0, %s22
    %s26 = sphi 0, %s25
    %s42 = sphi 0, %s26
    %s46 = sphi 0, %s46
    %s48 = sphi 0, %s46
    %s49 = sphi 0, %s48
    %s63 = sphi 0, %s49
    %s67 = sphi 0, %s67
    %s69 = sphi 0, %s67
    %s70 = sphi 0, %s69
    %s84 = sphi 0, %s70
    %s88 = sphi 0, %s88
    %s90 = sphi 0, %s88
    %s91 = sphi 0, %s90
    %s105 = sphi 0, %s91
    %s111 = sphi 0, %s113
    %s114 = sphi 0, %s111
    %s115 = sphi 0, %s114
    %s131 = sphi 0, %s115
    %s137 = sphi 0, %s139
    %s140 = sphi 0, %s137
    %s141 = sphi 0, %s140
    %s157 = sphi 0, %s141
  $region4: #{block_forward.4} parent=0 // loop_header_branch
    %15 = sbr.rel (%p13) target = $region8
  $region5: #{block_forward.4} parent=0 // loop_body
    %s17 = ssub.s32 %s12, 1
    %s18 = ssub.s32 %s12, 2
    %s19 = sadd.s32 %s12, 1
    %s20 = ssub.s32 %s12, %s19
    %p21 = scmp.eq.s32.totalorder %s20, 0
    %s23 = sadd.s32 %s22, 1
    %s24 = scalar_select %p21, %s22, %s23
    %p27 = pneg %p21
    %p28 = scmp.eq.s32.totalorder %s12, 1
    %p29 = por %p27, %p28
    %p30 = scmp.ne.s32.totalorder %s22, %s25
    %p31 = scmp.eq.s32.totalorder %s12, 0
    %p32 = por %p30, %p31
    %p33 = scmp.ne.s32.totalorder %s22, %s25
    %p34 = scmp.eq.s32.totalorder %s17, 1
    %p35 = por %p33, %p34
    %p36 = scmp.ne.s32.totalorder %s25, %s26
    %p37 = scmp.eq.s32.totalorder %s17, 0
    %p38 = por %p36, %p37
    %p39 = scmp.ne.s32.totalorder %s25, %s26
    %p40 = scmp.eq.s32.totalorder %s18, 1
    %p41 = por %p39, %p40
    %p43 = scmp.ne.s32.totalorder %s26, %s42
    %p44 = scmp.eq.s32.totalorder %s18, 0
    %p45 = por %p43, %p44
    %s47 = sadd.s32 %s46, 1
    %p50 = scmp.eq.s32.totalorder %s12, 1
    %p51 = scmp.ne.s32.totalorder %s46, %s48
    %p52 = scmp.eq.s32.totalorder %s12, 0
    %p53 = por %p51, %p52
    %p54 = scmp.ne.s32.totalorder %s46, %s48
    %p55 = scmp.eq.s32.totalorder %s17, 1
    %p56 = por %p54, %p55
    %p57 = scmp.ne.s32.totalorder %s48, %s49
    %p58 = scmp.eq.s32.totalorder %s17, 0
    %p59 = por %p57, %p58
    %p60 = scmp.ne.s32.totalorder %s48, %s49
    %p61 = scmp.eq.s32.totalorder %s18, 1
    %p62 = por %p60, %p61
    %p64 = scmp.ne.s32.totalorder %s49, %s63
    %p65 = scmp.eq.s32.totalorder %s18, 0
    %p66 = por %p64, %p65
    %s68 = sadd.s32 %s67, 1
    %p71 = scmp.eq.s32.totalorder %s12, 1
    %p72 = scmp.ne.s32.totalorder %s67, %s69
    %p73 = scmp.eq.s32.totalorder %s12, 0
    %p74 = por %p72, %p73
    %p75 = scmp.ne.s32.totalorder %s67, %s69
    %p76 = scmp.eq.s32.totalorder %s17, 1
    %p77 = por %p75, %p76
    %p78 = scmp.ne.s32.totalorder %s69, %s70
    %p79 = scmp.eq.s32.totalorder %s17, 0
    %p80 = por %p78, %p79
    %p81 = scmp.ne.s32.totalorder %s69, %s70
    %p82 = scmp.eq.s32.totalorder %s18, 1
    %p83 = por %p81, %p82
    %p85 = scmp.ne.s32.totalorder %s70, %s84
    %p86 = scmp.eq.s32.totalorder %s18, 0
    %p87 = por %p85, %p86
    %s89 = sadd.s32 %s88, 1
    %p92 = scmp.eq.s32.totalorder %s12, 1
    %p93 = scmp.ne.s32.totalorder %s88, %s90
    %p94 = scmp.eq.s32.totalorder %s12, 0
    %p95 = por %p93, %p94
    %p96 = scmp.ne.s32.totalorder %s88, %s90
    %p97 = scmp.eq.s32.totalorder %s17, 1
    %p98 = por %p96, %p97
    %p99 = scmp.ne.s32.totalorder %s90, %s91
    %p100 = scmp.eq.s32.totalorder %s17, 0
    %p101 = por %p99, %p100
    %p102 = scmp.ne.s32.totalorder %s90, %s91
    %p103 = scmp.eq.s32.totalorder %s18, 1
    %p104 = por %p102, %p103
    %p106 = scmp.ne.s32.totalorder %s91, %s105
    %p107 = scmp.eq.s32.totalorder %s18, 0
    %p108 = por %p106, %p107
    %s109 = ssub.s32 %s12, %s19
    %p110 = scmp.eq.s32.totalorder %s109, 0
    %s112 = sadd.s32 %s111, 1
    %s113 = scalar_select %p110, %s111, %s112
    %p116 = pneg %p110
    %p117 = scmp.eq.s32.totalorder %s12, 1
    %p118 = por %p116, %p117
    %p119 = scmp.ne.s32.totalorder %s111, %s114
    %p120 = scmp.eq.s32.totalorder %s12, 0
    %p121 = por %p119, %p120
    %p122 = scmp.ne.s32.totalorder %s111, %s114
    %p123 = scmp.eq.s32.totalorder %s17, 1
    %p124 = por %p122, %p123
    %p125 = scmp.ne.s32.totalorder %s114, %s115
    %p126 = scmp.eq.s32.totalorder %s17, 0
    %p127 = por %p125, %p126
    %p128 = scmp.ne.s32.totalorder %s114, %s115
    %p129 = scmp.eq.s32.totalorder %s18, 1
    %p130 = por %p128, %p129
    %p132 = scmp.ne.s32.totalorder %s115, %s131
    %p133 = scmp.eq.s32.totalorder %s18, 0
    %p134 = por %p132, %p133
    %s135 = ssub.s32 %s12, %s19
    %p136 = scmp.eq.s32.totalorder %s135, 0
    %s138 = sadd.s32 %s137, 1
    %s139 = scalar_select %p136, %s137, %s138
    %p142 = pneg %p136
    %p143 = scmp.eq.s32.totalorder %s12, 1
    %p144 = por %p142, %p143
    %p145 = scmp.ne.s32.totalorder %s137, %s140
    %p146 = scmp.eq.s32.totalorder %s12, 0
    %p147 = por %p145, %p146
    %p148 = scmp.ne.s32.totalorder %s137, %s140
    %p149 = scmp.eq.s32.totalorder %s17, 1
    %p150 = por %p148, %p149
    %p151 = scmp.ne.s32.totalorder %s140, %s141
    %p152 = scmp.eq.s32.totalorder %s17, 0
    %p153 = por %p151, %p152
    %p154 = scmp.ne.s32.totalorder %s140, %s141
    %p155 = scmp.eq.s32.totalorder %s18, 1
    %p156 = por %p154, %p155
    %p158 = scmp.ne.s32.totalorder %s141, %s157
    %p159 = scmp.eq.s32.totalorder %s18, 0
    %p160 = por %p158, %p159
    %p161 = scmp.le.s32.totalorder 1, %s12
    %p162 = scmp.lt.s32.totalorder %s12, 3
    %p163 = pnand %p161, %p162
    %p164 = pneg %p163
    // Predicated region
    $region9: #{block_forward.4} parent=5 // pred_check
      _
    $region10: #{block_forward.4} parent=5 // pred_check_branch
      %166 = sbr.rel (%p163) target = $region12
    $region11: #{block_forward.4} parent=5 // pred_region
      %s167 = ssub.s32 %s12, 1
      // Predicated region
      $region13: #{block_forward.4} parent=11 // pred_check
        %p168 = pneg %p59
      $region14: #{block_forward.4} parent=11 // pred_check_branch
        %170 = sbr.rel (%p168) target = $region16
      $region15: #{block_forward.4} parent=11 // pred_region
        _
      $region16: #{block_forward.4} parent=11 // pred_fallthru
        _
      // Predicated region
      $region17: #{block_forward.4} parent=11 // pred_check
        %p171 = pneg %p80
      $region18: #{block_forward.4} parent=11 // pred_check_branch
        %173 = sbr.rel (%p171) target = $region20
      $region19: #{block_forward.4} parent=11 // pred_region
        _
      $region20: #{block_forward.4} parent=11 // pred_fallthru
        _
      // Predicated region
      $region21: #{block_forward.4} parent=11 // pred_check
        %p174 = pneg %p101
      $region22: #{block_forward.4} parent=11 // pred_check_branch
        %176 = sbr.rel (%p174) target = $region24
      $region23: #{block_forward.4} parent=11 // pred_region
        _
      $region24: #{block_forward.4} parent=11 // pred_fallthru
        _
    $region12: #{block_forward.4} parent=5 // pred_fallthru
      _
    %p177 = scmp.lt.s32.totalorder %s12, 2
    // Predicated region
    $region25: #{block_forward.4} parent=5 // pred_check
      %p178 = pneg %p177
    $region26: #{block_forward.4} parent=5 // pred_check_branch
      %180 = sbr.rel (%p178) target = $region28
    $region27: #{block_forward.4} parent=5 // pred_region
      // Predicated region
      $region29: #{block_forward.4} parent=27 // pred_check
        %p181 = pneg %p32
      $region30: #{block_forward.4} parent=27 // pred_check_branch
        %183 = sbr.rel (%p181) target = $region32
      $region31: #{block_forward.4} parent=27 // pred_region
        %p184 = scmp.lt.s32.totalorder %s12, 1
        %s185 = scalar_select %p184, %s12, 1
        %s186 = smul.addr %s185, 32
        %s187 = smul.addr %s186, 8
        %s188 = scalar_lea.vmem %s0, %s187
      $region32: #{block_forward.4} parent=27 // pred_fallthru
        _
    $region28: #{block_forward.4} parent=5 // pred_fallthru
      _
    %p189 = scmp.le.s32.totalorder 1, %s12
    %p190 = scmp.lt.s32.totalorder %s12, 3
    %p191 = pnand %p189, %p190
    %p192 = pneg %p191
    // Predicated region
    $region33: #{block_forward.4} parent=5 // pred_check
      _
    $region34: #{block_forward.4} parent=5 // pred_check_branch
      %194 = sbr.rel (%p191) target = $region36
    $region35: #{block_forward.4} parent=5 // pred_region
      %s195 = ssub.s32 %s12, 1
      %p196 = scmp.lt.s32.totalorder %s17, 1
      %s197 = scalar_select %p196, %s17, 1
      %s198 = smul.addr %s197, 32
      %s199 = smul.addr %s198, 8
      %s200 = scalar_lea.vmem %s0, %s199
      %p201 = pneg %p38
      %p202 = pneg %p35
      %p203 = pneg %p59
      %p204 = pneg %p56
      %p205 = pneg %p80
      %p206 = pneg %p77
      %p207 = pneg %p101
      %p208 = pneg %p98
      %p209 = pneg %p127
      %p210 = pneg %p124
      %p211 = scmp.lt.s32.totalorder %s17, 1
      %s212 = scalar_select %p211, %s17, 1
      %s213 = smul.addr %s212, 32
      %s214 = smul.addr %s213, 8
      %s215 = scalar_lea.vmem %s4, %s214
      %p216 = pneg %p153
      %p217 = pneg %p150
      %p218 = scmp.lt.s32.totalorder %s17, 1
      %s219 = scalar_select %p218, %s17, 1
      %s220 = smul.addr %s219, 2
      %s221 = scalar_lea.vmem %s5, %s220
      %p222 = scmp.lt.s32.totalorder %s17, 1
      %s223 = scalar_select %p222, %s17, 1
      %s224 = smul.addr %s223, 32
      %s225 = smul.addr %s224, 8
      %s226 = scalar_lea.vmem %s0, %s225
      %p227 = scmp.lt.s32.totalorder %s17, 1
      %s228 = scalar_select %p227, %s17, 1
      %s229 = smul.addr %s228, 32
      %s230 = smul.addr %s229, 8
      %s231 = scalar_lea.vmem %s4, %s230
      %p232 = scmp.lt.s32.totalorder %s17, 1
      %s233 = scalar_select %p232, %s17, 1
      %s234 = smul.addr %s233, 2
      %s235 = scalar_lea.vmem %s5, %s234
      %vm237 = vcmask 64512
      %238 = vst.msk [vmem:[#allocation2] sm:$0xff] %vm237, 0.0
      %239 = vst.msk [vmem:[#allocation2 + $0x8] sm:$0xff] %vm237, 0.0
      %vm240 = vcmask 58368
      %241 = vst.msk [vmem:[#allocation2 + $0x10] sm:$0x3] %vm240, 0.0
      %242 = vst.msk [vmem:[#allocation2 + $0x18] sm:$0xff] %vm237, 0.0
      %243 = vst.msk [vmem:[#allocation2 + $0x20] sm:$0xff] %vm237, 0.0
      %244 = vst.msk [vmem:[#allocation2 + $0x28] sm:$0x3] %vm240, 0.0
      %245 = vst.msk [vmem:[#allocation2 + $0x30] sm:$0xff] %vm237, 0.0
      %246 = vst.msk [vmem:[#allocation2 + $0x38] sm:$0xff] %vm237, 0.0
      %247 = vst.msk [vmem:[#allocation2 + $0x40] sm:$0x3] %vm240, 0.0
      %248 = vst.msk [vmem:[#allocation2 + $0x48] sm:$0xff] %vm237, 0.0
      %249 = vst.msk [vmem:[#allocation2 + $0x50] sm:$0xff] %vm237, 0.0
      %250 = vst.msk [vmem:[#allocation2 + $0x58] sm:$0x3] %vm240, 0.0
      %251 = vst.msk [vmem:[#allocation2 + $0x60] sm:$0xff] %vm237, 0.0
      %252 = vst.msk [vmem:[#allocation2 + $0x68] sm:$0xff] %vm237, 0.0
      %253 = vst.msk [vmem:[#allocation2 + $0x70] sm:$0x3] %vm240, 0.0
      %254 = vst.msk [vmem:[#allocation2 + $0x78] sm:$0xff] %vm237, 0.0
      %255 = vst.msk [vmem:[#allocation2 + $0x80] sm:$0xff] %vm237, 0.0
      %256 = vst.msk [vmem:[#allocation2 + $0x88] sm:$0x3] %vm240, 0.0
      %257 = vst.msk [vmem:[#allocation2 + $0x90] sm:$0xff] %vm237, 0.0
      %258 = vst.msk [vmem:[#allocation2 + $0x98] sm:$0xff] %vm237, 0.0
      %259 = vst.msk [vmem:[#allocation2 + $0xa0] sm:$0x3] %vm240, 0.0
      %260 = vst.msk [vmem:[#allocation2 + $0xa8] sm:$0xff] %vm237, 0.0
      %261 = vst.msk [vmem:[#allocation2 + $0xb0] sm:$0xff] %vm237, 0.0
      %262 = vst.msk [vmem:[#allocation2 + $0xb8] sm:$0x3] %vm240, 0.0
      %263 = vst.msk [vmem:[#allocation2 + $0xc0] sm:$0xff] %vm237, 0.0
      %264 = vst.msk [vmem:[#allocation2 + $0xc8] sm:$0xff] %vm237, 0.0
      %265 = vst.msk [vmem:[#allocation2 + $0xd0] sm:$0x3] %vm240, 0.0
      %266 = vst.msk [vmem:[#allocation2 + $0xd8] sm:$0xff] %vm237, 0.0
      %267 = vst.msk [vmem:[#allocation2 + $0xe0] sm:$0xff] %vm237, 0.0
      %268 = vst.msk [vmem:[#allocation2 + $0xe8] sm:$0x3] %vm240, 0.0
      %269 = vst.msk [vmem:[#allocation2 + $0xf0] sm:$0xff] %vm237, 0.0
      %270 = vst.msk [vmem:[#allocation2 + $0xf8] sm:$0xff] %vm237, 0.0
      %271 = vst.msk [vmem:[#allocation2 + $0x100] sm:$0x3] %vm240, 0.0
      %272 = vst.msk [vmem:[#allocation2 + $0x108] sm:$0xff] %vm237, 0.0
      %273 = vst.msk [vmem:[#allocation2 + $0x110] sm:$0xff] %vm237, 0.0
      %274 = vst.msk [vmem:[#allocation2 + $0x118] sm:$0x3] %vm240, 0.0
      %275 = vst.msk [vmem:[#allocation2 + $0x120] sm:$0xff] %vm237, 0.0
      %276 = vst.msk [vmem:[#allocation2 + $0x128] sm:$0xff] %vm237, 0.0
      %277 = vst.msk [vmem:[#allocation2 + $0x130] sm:$0x3] %vm240, 0.0
      %278 = vst.msk [vmem:[#allocation2 + $0x138] sm:$0xff] %vm237, 0.0
      %279 = vst.msk [vmem:[#allocation2 + $0x140] sm:$0xff] %vm237, 0.0
      %280 = vst.msk [vmem:[#allocation2 + $0x148] sm:$0x3] %vm240, 0.0
      %281 = vst.msk [vmem:[#allocation2 + $0x150] sm:$0xff] %vm237, 0.0
      %282 = vst.msk [vmem:[#allocation2 + $0x158] sm:$0xff] %vm237, 0.0
      %283 = vst.msk [vmem:[#allocation2 + $0x160] sm:$0x3] %vm240, 0.0
      %284 = vst.msk [vmem:[#allocation2 + $0x168] sm:$0xff] %vm237, 0.0
      %285 = vst.msk [vmem:[#allocation2 + $0x170] sm:$0xff] %vm237, 0.0
      %286 = vst.msk [vmem:[#allocation2 + $0x178] sm:$0x3] %vm240, 0.0
      %287 = vst.msk [vmem:[#allocation2 + $0x180] sm:$0xff] %vm237, 0.0
      %288 = vst.msk [vmem:[#allocation2 + $0x188] sm:$0xff] %vm237, 0.0
      %289 = vst.msk [vmem:[#allocation2 + $0x190] sm:$0x3] %vm240, 0.0
      %290 = vst.msk [vmem:[#allocation2 + $0x198] sm:$0xff] %vm237, 0.0
      %291 = vst.msk [vmem:[#allocation2 + $0x1a0] sm:$0xff] %vm237, 0.0
      %292 = vst.msk [vmem:[#allocation2 + $0x1a8] sm:$0x3] %vm240, 0.0
      %v293 = vld [vmem:[%s1] sm:$0x1]
      %v294 = vld [vmem:[%s2] sm:$0x1]
      %v295 = vld [vmem:[%s226] sm:$0xff]
      %v296 = vld [vmem:[%s226 + $0x8] sm:$0xff]
      %v297 = vld [vmem:[%s226 + $0x10] sm:$0xff]
      %v298 = vld [vmem:[%s226 + $0x18] sm:$0xff]
      %v299 = vld [vmem:[%s226 + $0x20] sm:$0xff]
      %v300 = vld [vmem:[%s226 + $0x28] sm:$0xff]
      %v301 = vld [vmem:[%s226 + $0x30] sm:$0xff]
      %v302 = vld [vmem:[%s226 + $0x38] sm:$0xff]
      %v303 = vld [vmem:[%s226 + $0x40] sm:$0xff]
      %v304 = vld [vmem:[%s226 + $0x48] sm:$0xff]
      %v305 = vld [vmem:[%s226 + $0x50] sm:$0xff]
      %v306 = vld [vmem:[%s226 + $0x58] sm:$0xff]
      %v307 = vld [vmem:[%s226 + $0x60] sm:$0xff]
      %v308 = vld [vmem:[%s226 + $0x68] sm:$0xff]
      %v309 = vld [vmem:[%s226 + $0x70] sm:$0xff]
      %v310 = vld [vmem:[%s226 + $0x78] sm:$0xff]
      %v311 = vld [vmem:[%s226 + $0x80] sm:$0xff]
      %v312 = vld [vmem:[%s226 + $0x88] sm:$0xff]
      %v313 = vld [vmem:[%s226 + $0x90] sm:$0xff]
      %v314 = vld [vmem:[%s226 + $0x98] sm:$0xff]
      %v315 = vld [vmem:[%s226 + $0xa0] sm:$0xff]
      %v316 = vld [vmem:[%s226 + $0xa8] sm:$0xff]
      %v317 = vld [vmem:[%s226 + $0xb0] sm:$0xff]
      %v318 = vld [vmem:[%s226 + $0xb8] sm:$0xff]
      %v319 = vld [vmem:[%s226 + $0xc0] sm:$0xff]
      %v320 = vld [vmem:[%s226 + $0xc8] sm:$0xff]
      %v321 = vld [vmem:[%s226 + $0xd0] sm:$0xff]
      %v322 = vld [vmem:[%s226 + $0xd8] sm:$0xff]
      %v323 = vld [vmem:[%s226 + $0xe0] sm:$0xff]
      %v324 = vld [vmem:[%s226 + $0xe8] sm:$0xff]
      %v325 = vld [vmem:[%s226 + $0xf0] sm:$0xff]
      %v326 = vld [vmem:[%s226 + $0xf8] sm:$0xff]
      %v328 = vlaneseq
      %v329 = vshrl.u32 %v328, 7
      %v330 = vsub.s32 0, %v329
      %v331 = vrot.slane %v293, %v330
      %v333 = vmul.f32 %v295, %v331
      %v334 = vmul.f32 %v296, %v331
      %v335 = vmul.f32 %v297, %v331
      %v336 = vmul.f32 %v298, %v331
      %v337 = vmul.f32 %v299, %v331
      %v338 = vmul.f32 %v300, %v331
      %v339 = vmul.f32 %v301, %v331
      %v340 = vmul.f32 %v302, %v331
      %v341 = vmul.f32 %v303, %v331
      %v342 = vmul.f32 %v304, %v331
      %v343 = vmul.f32 %v305, %v331
      %v344 = vmul.f32 %v306, %v331
      %v345 = vmul.f32 %v307, %v331
      %v346 = vmul.f32 %v308, %v331
      %v347 = vmul.f32 %v309, %v331
      %v348 = vmul.f32 %v310, %v331
      %v349 = vmul.f32 %v311, %v331
      %v350 = vmul.f32 %v312, %v331
      %v351 = vmul.f32 %v313, %v331
      %v352 = vmul.f32 %v314, %v331
      %v353 = vmul.f32 %v315, %v331
      %v354 = vmul.f32 %v316, %v331
      %v355 = vmul.f32 %v317, %v331
      %v356 = vmul.f32 %v318, %v331
      %v357 = vmul.f32 %v319, %v331
      %v358 = vmul.f32 %v320, %v331
      %v359 = vmul.f32 %v321, %v331
      %v360 = vmul.f32 %v322, %v331
      %v361 = vmul.f32 %v323, %v331
      %v362 = vmul.f32 %v324, %v331
      %v363 = vmul.f32 %v325, %v331
      %v364 = vmul.f32 %v326, %v331
      %v366 = vlaneseq
      %v367 = vshrl.u32 %v366, 7
      %v368 = vsub.s32 0, %v367
      %v369 = vrot.slane %v294, %v368
      %v371 = vadd.f32 %v333, %v369
      %v372 = vadd.f32 %v334, %v369
      %v373 = vadd.f32 %v335, %v369
      %v374 = vadd.f32 %v336, %v369
      %v375 = vadd.f32 %v337, %v369
      %v376 = vadd.f32 %v338, %v369
      %v377 = vadd.f32 %v339, %v369
      %v378 = vadd.f32 %v340, %v369
      %v379 = vadd.f32 %v341, %v369
      %v380 = vadd.f32 %v342, %v369
      %v381 = vadd.f32 %v343, %v369
      %v382 = vadd.f32 %v344, %v369
      %v383 = vadd.f32 %v345, %v369
      %v384 = vadd.f32 %v346, %v369
      %v385 = vadd.f32 %v347, %v369
      %v386 = vadd.f32 %v348, %v369
      %v387 = vadd.f32 %v349, %v369
      %v388 = vadd.f32 %v350, %v369
      %v389 = vadd.f32 %v351, %v369
      %v390 = vadd.f32 %v352, %v369
      %v391 = vadd.f32 %v353, %v369
      %v392 = vadd.f32 %v354, %v369
      %v393 = vadd.f32 %v355, %v369
      %v394 = vadd.f32 %v356, %v369
      %v395 = vadd.f32 %v357, %v369
      %v396 = vadd.f32 %v358, %v369
      %v397 = vadd.f32 %v359, %v369
      %v398 = vadd.f32 %v360, %v369
      %v399 = vadd.f32 %v361, %v369
      %v400 = vadd.f32 %v362, %v369
      %v401 = vadd.f32 %v363, %v369
      %v402 = vadd.f32 %v364, %v369
      %v403 = vmax.f32 %v371, 0.0
      %v404 = vmax.f32 %v372, 0.0
      %v405 = vmax.f32 %v373, 0.0
      %v406 = vmax.f32 %v374, 0.0
      %v407 = vmax.f32 %v375, 0.0
      %v408 = vmax.f32 %v376, 0.0
      %v409 = vmax.f32 %v377, 0.0
      %v410 = vmax.f32 %v378, 0.0
      %v411 = vmax.f32 %v379, 0.0
      %v412 = vmax.f32 %v380, 0.0
      %v413 = vmax.f32 %v381, 0.0
      %v414 = vmax.f32 %v382, 0.0
      %v415 = vmax.f32 %v383, 0.0
      %v416 = vmax.f32 %v384, 0.0
      %v417 = vmax.f32 %v385, 0.0
      %v418 = vmax.f32 %v386, 0.0
      %v419 = vmax.f32 %v387, 0.0
      %v420 = vmax.f32 %v388, 0.0
      %v421 = vmax.f32 %v389, 0.0
      %v422 = vmax.f32 %v390, 0.0
      %v423 = vmax.f32 %v391, 0.0
      %v424 = vmax.f32 %v392, 0.0
      %v425 = vmax.f32 %v393, 0.0
      %v426 = vmax.f32 %v394, 0.0
      %v427 = vmax.f32 %v395, 0.0
      %v428 = vmax.f32 %v396, 0.0
      %v429 = vmax.f32 %v397, 0.0
      %v430 = vmax.f32 %v398, 0.0
      %v431 = vmax.f32 %v399, 0.0
      %v432 = vmax.f32 %v400, 0.0
      %v433 = vmax.f32 %v401, 0.0
      %v434 = vmax.f32 %v402, 0.0
      %s435 = scalar_lea.vmem [#allocation2], 24
      %436 = vst.msk [vmem:[%s435 + $0x1] sm:$0xff] %vm237, %v403
      %437 = vst.msk [vmem:[%s435 + $0x9] sm:$0xff] %vm237, %v404
      %438 = vst.msk [vmem:[%s435 + $0x19] sm:$0xff] %vm237, %v405
      %439 = vst.msk [vmem:[%s435 + $0x21] sm:$0xff] %vm237, %v406
      %440 = vst.msk [vmem:[%s435 + $0x31] sm:$0xff] %vm237, %v407
      %441 = vst.msk [vmem:[%s435 + $0x39] sm:$0xff] %vm237, %v408
      %442 = vst.msk [vmem:[%s435 + $0x49] sm:$0xff] %vm237, %v409
      %443 = vst.msk [vmem:[%s435 + $0x51] sm:$0xff] %vm237, %v410
      %444 = vst.msk [vmem:[%s435 + $0x61] sm:$0xff] %vm237, %v411
      %445 = vst.msk [vmem:[%s435 + $0x69] sm:$0xff] %vm237, %v412
      %446 = vst.msk [vmem:[%s435 + $0x79] sm:$0xff] %vm237, %v413
      %447 = vst.msk [vmem:[%s435 + $0x81] sm:$0xff] %vm237, %v414
      %448 = vst.msk [vmem:[%s435 + $0x91] sm:$0xff] %vm237, %v415
      %449 = vst.msk [vmem:[%s435 + $0x99] sm:$0xff] %vm237, %v416
      %450 = vst.msk [vmem:[%s435 + $0xa9] sm:$0xff] %vm237, %v417
      %451 = vst.msk [vmem:[%s435 + $0xb1] sm:$0xff] %vm237, %v418
      %452 = vst.msk [vmem:[%s435 + $0xc1] sm:$0xff] %vm237, %v419
      %453 = vst.msk [vmem:[%s435 + $0xc9] sm:$0xff] %vm237, %v420
      %454 = vst.msk [vmem:[%s435 + $0xd9] sm:$0xff] %vm237, %v421
      %455 = vst.msk [vmem:[%s435 + $0xe1] sm:$0xff] %vm237, %v422
      %456 = vst.msk [vmem:[%s435 + $0xf1] sm:$0xff] %vm237, %v423
      %457 = vst.msk [vmem:[%s435 + $0xf9] sm:$0xff] %vm237, %v424
      %458 = vst.msk [vmem:[%s435 + $0x109] sm:$0xff] %vm237, %v425
      %459 = vst.msk [vmem:[%s435 + $0x111] sm:$0xff] %vm237, %v426
      %460 = vst.msk [vmem:[%s435 + $0x121] sm:$0xff] %vm237, %v427
      %461 = vst.msk [vmem:[%s435 + $0x129] sm:$0xff] %vm237, %v428
      %462 = vst.msk [vmem:[%s435 + $0x139] sm:$0xff] %vm237, %v429
      %463 = vst.msk [vmem:[%s435 + $0x141] sm:$0xff] %vm237, %v430
      %464 = vst.msk [vmem:[%s435 + $0x151] sm:$0xff] %vm237, %v431
      %465 = vst.msk [vmem:[%s435 + $0x159] sm:$0xff] %vm237, %v432
      %466 = vst.msk [vmem:[%s435 + $0x169] sm:$0xff] %vm237, %v433
      %467 = vst.msk [vmem:[%s435 + $0x171] sm:$0xff] %vm237, %v434
      %v468 = vld [vmem:[#allocation2] sm:$0xff]
      %v469 = vld [vmem:[#allocation2 + $0x8] sm:$0xff]
      %v470 = vld [vmem:[#allocation2 + $0x10] sm:$0x3]
      %v471 = vld [vmem:[#allocation2 + $0x18] sm:$0xff]
      %v472 = vld [vmem:[#allocation2 + $0x20] sm:$0xff]
      %v473 = vld [vmem:[#allocation2 + $0x28] sm:$0x3]
      %v474 = vld [vmem:[#allocation2 + $0x30] sm:$0xff]
      %v475 = vld [vmem:[#allocation2 + $0x38] sm:$0xff]
      %v476 = vld [vmem:[#allocation2 + $0x40] sm:$0x3]
      %v477 = vld [vmem:[#allocation2 + $0x48] sm:$0xff]
      %v478 = vld [vmem:[#allocation2 + $0x50] sm:$0xff]
      %v479 = vld [vmem:[#allocation2 + $0x58] sm:$0x3]
      %v480 = vld [vmem:[#allocation2 + $0x60] sm:$0xff]
      %v481 = vld [vmem:[#allocation2 + $0x68] sm:$0xff]
      %v482 = vld [vmem:[#allocation2 + $0x70] sm:$0x3]
      %v483 = vld [vmem:[#allocation2 + $0x78] sm:$0xff]
      %v484 = vld [vmem:[#allocation2 + $0x80] sm:$0xff]
      %v485 = vld [vmem:[#allocation2 + $0x88] sm:$0x3]
      %v486 = vld [vmem:[#allocation2 + $0x90] sm:$0xff]
      %v487 = vld [vmem:[#allocation2 + $0x98] sm:$0xff]
      %v488 = vld [vmem:[#allocation2 + $0xa0] sm:$0x3]
      %v489 = vld [vmem:[#allocation2 + $0xa8] sm:$0xff]
      %v490 = vld [vmem:[#allocation2 + $0xb0] sm:$0xff]
      %v491 = vld [vmem:[#allocation2 + $0xb8] sm:$0x3]
      %v492 = vld [vmem:[#allocation2 + $0xc0] sm:$0xff]
      %v493 = vld [vmem:[#allocation2 + $0xc8] sm:$0xff]
      %v494 = vld [vmem:[#allocation2 + $0xd0] sm:$0x3]
      %v495 = vld [vmem:[#allocation2 + $0xd8] sm:$0xff]
      %v496 = vld [vmem:[#allocation2 + $0xe0] sm:$0xff]
      %v497 = vld [vmem:[#allocation2 + $0xe8] sm:$0x3]
      %v498 = vld [vmem:[#allocation2 + $0xf0] sm:$0xff]
      %v499 = vld [vmem:[#allocation2 + $0xf8] sm:$0xff]
      %v500 = vld [vmem:[#allocation2 + $0x100] sm:$0x3]
      %v501 = vld [vmem:[#allocation2 + $0x108] sm:$0xff]
      %v502 = vld [vmem:[#allocation2 + $0x110] sm:$0xff]
      %v503 = vld [vmem:[#allocation2 + $0x118] sm:$0x3]
      %v504 = vld [vmem:[#allocation2 + $0x120] sm:$0xff]
      %v505 = vld [vmem:[#allocation2 + $0x128] sm:$0xff]
      %v506 = vld [vmem:[#allocation2 + $0x130] sm:$0x3]
      %v507 = vld [vmem:[#allocation2 + $0x138] sm:$0xff]
      %v508 = vld [vmem:[#allocation2 + $0x140] sm:$0xff]
      %v509 = vld [vmem:[#allocation2 + $0x148] sm:$0x3]
      %v510 = vld [vmem:[#allocation2 + $0x150] sm:$0xff]
      %v511 = vld [vmem:[#allocation2 + $0x158] sm:$0xff]
      %v512 = vld [vmem:[#allocation2 + $0x160] sm:$0x3]
      %v513 = vld [vmem:[#allocation2 + $0x168] sm:$0xff]
      %v514 = vld [vmem:[#allocation2 + $0x170] sm:$0xff]
      %v515 = vld [vmem:[#allocation2 + $0x178] sm:$0x3]
      %v516 = vpack.c.bf16 %v469, %v468
      %v517 = vpack.c.bf16 %v470, %v470
      %v518 = vpack.c.bf16 %v472, %v471
      %v519 = vpack.c.bf16 %v473, %v473
      %v520 = vpack.c.bf16 %v475, %v474
      %v521 = vpack.c.bf16 %v476, %v476
      %v522 = vpack.c.bf16 %v478, %v477
      %v523 = vpack.c.bf16 %v479, %v479
      %v524 = vpack.c.bf16 %v481, %v480
      %v525 = vpack.c.bf16 %v482, %v482
      %v526 = vpack.c.bf16 %v484, %v483
      %v527 = vpack.c.bf16 %v485, %v485
      %v528 = vpack.c.bf16 %v487, %v486
      %v529 = vpack.c.bf16 %v488, %v488
      %v530 = vpack.c.bf16 %v490, %v489
      %v531 = vpack.c.bf16 %v491, %v491
      %v532 = vpack.c.bf16 %v493, %v492
      %v533 = vpack.c.bf16 %v494, %v494
      %v534 = vpack.c.bf16 %v496, %v495
      %v535 = vpack.c.bf16 %v497, %v497
      %v536 = vpack.c.bf16 %v499, %v498
      %v537 = vpack.c.bf16 %v500, %v500
      %v538 = vpack.c.bf16 %v502, %v501
      %v539 = vpack.c.bf16 %v503, %v503
      %v540 = vpack.c.bf16 %v505, %v504
      %v541 = vpack.c.bf16 %v506, %v506
      %v542 = vpack.c.bf16 %v508, %v507
      %v543 = vpack.c.bf16 %v509, %v509
      %v544 = vpack.c.bf16 %v511, %v510
      %v545 = vpack.c.bf16 %v512, %v512
      %v546 = vpack.c.bf16 %v514, %v513
      %v547 = vpack.c.bf16 %v515, %v515
      %v548 = vld [vmem:[%s3] sm:$0xf]
      %vm549 = vsmask.f32 7424
      %v551 = vshrl.u32 %v516, 16
      %v553 = vshll.u32 %v516, 16
      %v555 = vrot.slane %v553, 1
      %v556 = vor.u32 %v551, %v555
      %v558 = vshll.u32 %v517, 16
      %v560 = vrot.slane %v558, 1
      %v561 = vsel %vm549, %v556, %v560
      %v563 = vshrl.u32 %v518, 16
      %v565 = vshll.u32 %v518, 16
      %v567 = vrot.slane %v565, 1
      %v568 = vor.u32 %v563, %v567
      %v570 = vshll.u32 %v519, 16
      %v572 = vrot.slane %v570, 1
      %v573 = vsel %vm549, %v568, %v572
      %v575 = vshrl.u32 %v520, 16
      %v577 = vshll.u32 %v520, 16
      %v579 = vrot.slane %v577, 1
      %v580 = vor.u32 %v575, %v579
      %v582 = vshll.u32 %v521, 16
      %v584 = vrot.slane %v582, 1
      %v585 = vsel %vm549, %v580, %v584
      %v587 = vshrl.u32 %v522, 16
      %v589 = vshll.u32 %v522, 16
      %v591 = vrot.slane %v589, 1
      %v592 = vor.u32 %v587, %v591
      %v594 = vshll.u32 %v523, 16
      %v596 = vrot.slane %v594, 1
      %v597 = vsel %vm549, %v592, %v596
      %v599 = vshrl.u32 %v524, 16
      %v601 = vshll.u32 %v524, 16
      %v603 = vrot.slane %v601, 1
      %v604 = vor.u32 %v599, %v603
      %v606 = vshll.u32 %v525, 16
      %v608 = vrot.slane %v606, 1
      %v609 = vsel %vm549, %v604, %v608
      %v611 = vshrl.u32 %v526, 16
      %v613 = vshll.u32 %v526, 16
      %v615 = vrot.slane %v613, 1
      %v616 = vor.u32 %v611, %v615
      %v618 = vshll.u32 %v527, 16
      %v620 = vrot.slane %v618, 1
      %v621 = vsel %vm549, %v616, %v620
      %v623 = vshrl.u32 %v528, 16
      %v625 = vshll.u32 %v528, 16
      %v627 = vrot.slane %v625, 1
      %v628 = vor.u32 %v623, %v627
      %v630 = vshll.u32 %v529, 16
      %v632 = vrot.slane %v630, 1
      %v633 = vsel %vm549, %v628, %v632
      %v635 = vshrl.u32 %v530, 16
      %v637 = vshll.u32 %v530, 16
      %v639 = vrot.slane %v637, 1
      %v640 = vor.u32 %v635, %v639
      %v642 = vshll.u32 %v531, 16
      %v644 = vrot.slane %v642, 1
      %v645 = vsel %vm549, %v640, %v644
      %v647 = vshrl.u32 %v532, 16
      %v649 = vshll.u32 %v532, 16
      %v651 = vrot.slane %v649, 1
      %v652 = vor.u32 %v647, %v651
      %v654 = vshll.u32 %v533, 16
      %v656 = vrot.slane %v654, 1
      %v657 = vsel %vm549, %v652, %v656
      %v659 = vshrl.u32 %v534, 16
      %v661 = vshll.u32 %v534, 16
      %v663 = vrot.slane %v661, 1
      %v664 = vor.u32 %v659, %v663
      %v666 = vshll.u32 %v535, 16
      %v668 = vrot.slane %v666, 1
      %v669 = vsel %vm549, %v664, %v668
      %v671 = vshrl.u32 %v536, 16
      %v673 = vshll.u32 %v536, 16
      %v675 = vrot.slane %v673, 1
      %v676 = vor.u32 %v671, %v675
      %v678 = vshll.u32 %v537, 16
      %v680 = vrot.slane %v678, 1
      %v681 = vsel %vm549, %v676, %v680
      %v683 = vshrl.u32 %v538, 16
      %v685 = vshll.u32 %v538, 16
      %v687 = vrot.slane %v685, 1
      %v688 = vor.u32 %v683, %v687
      %v690 = vshll.u32 %v539, 16
      %v692 = vrot.slane %v690, 1
      %v693 = vsel %vm549, %v688, %v692
      %v695 = vshrl.u32 %v540, 16
      %v697 = vshll.u32 %v540, 16
      %v699 = vrot.slane %v697, 1
      %v700 = vor.u32 %v695, %v699
      %v702 = vshll.u32 %v541, 16
      %v704 = vrot.slane %v702, 1
      %v705 = vsel %vm549, %v700, %v704
      %v707 = vshrl.u32 %v542, 16
      %v709 = vshll.u32 %v542, 16
      %v711 = vrot.slane %v709, 1
      %v712 = vor.u32 %v707, %v711
      %v714 = vshll.u32 %v543, 16
      %v716 = vrot.slane %v714, 1
      %v717 = vsel %vm549, %v712, %v716
      %v719 = vshrl.u32 %v544, 16
      %v721 = vshll.u32 %v544, 16
      %v723 = vrot.slane %v721, 1
      %v724 = vor.u32 %v719, %v723
      %v726 = vshll.u32 %v545, 16
      %v728 = vrot.slane %v726, 1
      %v729 = vsel %vm549, %v724, %v728
      %v731 = vshrl.u32 %v546, 16
      %v733 = vshll.u32 %v546, 16
      %v735 = vrot.slane %v733, 1
      %v736 = vor.u32 %v731, %v735
      %v738 = vshll.u32 %v547, 16
      %v740 = vrot.slane %v738, 1
      %v741 = vsel %vm549, %v736, %v740
      %s742 = scalar_lea.vmem %s3, 4
      %v743 = vld [vmem:[%s742] sm:$0xf]
      %v745 = vsel %vm237, %v561, 0
      %v748 = vsel %vm237, %v573, 0
      %v751 = vsel %vm237, %v585, 0
      %v754 = vsel %vm237, %v597, 0
      %v757 = vsel %vm237, %v609, 0
      %v760 = vsel %vm237, %v621, 0
      %v763 = vsel %vm237, %v633, 0
      %v766 = vsel %vm237, %v645, 0
      %v769 = vsel %vm237, %v657, 0
      %v772 = vsel %vm237, %v669, 0
      %v775 = vsel %vm237, %v681, 0
      %v778 = vsel %vm237, %v693, 0
      %v781 = vsel %vm237, %v705, 0
      %v784 = vsel %vm237, %v717, 0
      %v787 = vsel %vm237, %v729, 0
      %v790 = vsel %vm237, %v741, 0
      %vm792 = vcmask 1043456
      %v794 = vsel %vm792, %v743, 0
      %796 = vmatprep.subr.bf16.mxu0 0
      %797 = vmatpush1.bf16.msra.mxu0 %v794
      %798 = vmatprep.subr.bf16.mxu0 0
      %799 = vmatpush1.bf16.msra.mxu0 0
      %800 = vmatprep.subr.bf16.mxu0 0
      %801 = vmatpush1.bf16.msra.mxu0 0
      %802 = vmatprep.subr.bf16.mxu0 0
      %803 = vmatpush1.bf16.msra.mxu0 0
      %804 = vmatprep.subr.bf16.mxu0 0
      %805 = vmatpush1.bf16.msra.mxu0 0
      %806 = vmatprep.subr.bf16.mxu0 0
      %807 = vmatpush1.bf16.msra.mxu0 0
      %808 = vmatprep.subr.bf16.mxu0 0
      %809 = vmatpush1.bf16.msra.mxu0 0
      %810 = vmatprep.subr.bf16.mxu0 0
      %811 = vmatpush1.bf16.msra.mxu0 0
      %812 = vmatprep.subr.bf16.mxu0 0
      %813 = vmatpush1.bf16.msra.mxu0 0
      %814 = vmatprep.subr.bf16.mxu0 0
      %815 = vmatpush1.bf16.msra.mxu0 0
      %816 = vmatprep.subr.bf16.mxu0 0
      %817 = vmatpush1.bf16.msra.mxu0 0
      %818 = vmatprep.subr.bf16.mxu0 0
      %819 = vmatpush1.bf16.msra.mxu0 0
      %820 = vmatprep.subr.bf16.mxu0 0
      %821 = vmatpush1.bf16.msra.mxu0 0
      %822 = vmatprep.subr.bf16.mxu0 0
      %823 = vmatpush1.bf16.msra.mxu0 0
      %824 = vmatprep.subr.bf16.mxu0 0
      %825 = vmatpush1.bf16.msra.mxu0 0
      %826 = vmatprep.subr.bf16.mxu0 0
      %827 = vmatpush1.bf16.msra.mxu0 0
      %828 = vmatprep.mubr.bf16.mxu0 0
      %829 = vmatmul.mubr.bf16.gmra.mrb[0].mxu0 %v745
      %v830 = vpop.f32.mrb[0].mxu0
      %v831 = vadd.f32 0.0, %v830
      %v832 = vpop.f32.mrb[0].mxu0
      %v833 = vpop.f32.mrb[0].mxu0
      %v834 = vadd.f32 0.0, %v833
      %v835 = vpop.f32.mrb[0].mxu0
      %836 = vmatprep.mubr.bf16.mxu0 0
      %837 = vmatmul.mubr.bf16.gmra.mrb[0].mxu0 %v748
      %v838 = vpop.f32.mrb[0].mxu0
      %v839 = vadd.f32 0.0, %v838
      %v840 = vpop.f32.mrb[0].mxu0
      %v841 = vpop.f32.mrb[0].mxu0
      %v842 = vadd.f32 0.0, %v841
      %v843 = vpop.f32.mrb[0].mxu0
      %844 = vmatprep.mubr.bf16.mxu0 0
      %845 = vmatmul.mubr.bf16.gmra.mrb[0].mxu0 %v751
      %v846 = vpop.f32.mrb[0].mxu0
      %v847 = vadd.f32 0.0, %v846
      %v848 = vpop.f32.mrb[0].mxu0
      %v849 = vpop.f32.mrb[0].mxu0
      %v850 = vadd.f32 0.0, %v849
      %v851 = vpop.f32.mrb[0].mxu0
      %852 = vmatprep.mubr.bf16.mxu0 0
      %853 = vmatmul.mubr.bf16.gmra.mrb[0].mxu0 %v754
      %v854 = vpop.f32.mrb[0].mxu0
      %v855 = vadd.f32 0.0, %v854
      %v856 = vpop.f32.mrb[0].mxu0
      %v857 = vpop.f32.mrb[0].mxu0
      %v858 = vadd.f32 0.0, %v857
      %v859 = vpop.f32.mrb[0].mxu0
      %860 = vmatprep.mubr.bf16.mxu0 0
      %861 = vmatmul.mubr.bf16.gmra.mrb[0].mxu0 %v757
      %v862 = vpop.f32.mrb[0].mxu0
      %v863 = vadd.f32 0.0, %v862
      %v864 = vpop.f32.mrb[0].mxu0
      %v865 = vpop.f32.mrb[0].mxu0
      %v866 = vadd.f32 0.0, %v865
      %v867 = vpop.f32.mrb[0].mxu0
      %868 = vmatprep.mubr.bf16.mxu0 0
      %869 = vmatmul.mubr.bf16.gmra.mrb[0].mxu0 %v760
      %v870 = vpop.f32.mrb[0].mxu0
      %v871 = vadd.f32 0.0, %v870
      %v872 = vpop.f32.mrb[0].mxu0
      %v873 = vpop.f32.mrb[0].mxu0
      %v874 = vadd.f32 0.0, %v873
      %v875 = vpop.f32.mrb[0].mxu0
      %876 = vmatprep.mubr.bf16.mxu0 0
      %877 = vmatmul.mubr.bf16.gmra.mrb[0].mxu0 %v763
      %v878 = vpop.f32.mrb[0].mxu0
      %v879 = vadd.f32 0.0, %v878
      %v880 = vpop.f32.mrb[0].mxu0
      %v881 = vpop.f32.mrb[0].mxu0
      %v882 = vadd.f32 0.0, %v881
      %v883 = vpop.f32.mrb[0].mxu0
      %884 = vmatprep.mubr.bf16.mxu0 0
      %885 = vmatmul.mubr.bf16.gmra.mrb[0].mxu0 %v766
      %v886 = vpop.f32.mrb[0].mxu0
      %v887 = vadd.f32 0.0, %v886
      %v888 = vpop.f32.mrb[0].mxu0
      %v889 = vpop.f32.mrb[0].mxu0
      %v890 = vadd.f32 0.0, %v889
      %v891 = vpop.f32.mrb[0].mxu0
      %892 = vmatprep.mubr.bf16.mxu0 0
      %893 = vmatmul.mubr.bf16.gmra.mrb[0].mxu0 %v769
      %v894 = vpop.f32.mrb[0].mxu0
      %v895 = vadd.f32 0.0, %v894
      %v896 = vpop.f32.mrb[0].mxu0
      %v897 = vpop.f32.mrb[0].mxu0
      %v898 = vadd.f32 0.0, %v897
      %v899 = vpop.f32.mrb[0].mxu0
      %900 = vmatprep.mubr.bf16.mxu0 0
      %901 = vmatmul.mubr.bf16.gmra.mrb[0].mxu0 %v772
      %v902 = vpop.f32.mrb[0].mxu0
      %v903 = vadd.f32 0.0, %v902
      %v904 = vpop.f32.mrb[0].mxu0
      %v905 = vpop.f32.mrb[0].mxu0
      %v906 = vadd.f32 0.0, %v905
      %v907 = vpop.f32.mrb[0].mxu0
      %908 = vmatprep.mubr.bf16.mxu0 0
      %909 = vmatmul.mubr.bf16.gmra.mrb[0].mxu0 %v775
      %v910 = vpop.f32.mrb[0].mxu0
      %v911 = vadd.f32 0.0, %v910
      %v912 = vpop.f32.mrb[0].mxu0
      %v913 = vpop.f32.mrb[0].mxu0
      %v914 = vadd.f32 0.0, %v913
      %v915 = vpop.f32.mrb[0].mxu0
      %916 = vmatprep.mubr.bf16.mxu0 0
      %917 = vmatmul.mubr.bf16.gmra.mrb[0].mxu0 %v778
      %v918 = vpop.f32.mrb[0].mxu0
      %v919 = vadd.f32 0.0, %v918
      %v920 = vpop.f32.mrb[0].mxu0
      %v921 = vpop.f32.mrb[0].mxu0
      %v922 = vadd.f32 0.0, %v921
      %v923 = vpop.f32.mrb[0].mxu0
      %924 = vmatprep.mubr.bf16.mxu0 0
      %925 = vmatmul.mubr.bf16.gmra.mrb[0].mxu0 %v781
      %v926 = vpop.f32.mrb[0].mxu0
      %v927 = vadd.f32 0.0, %v926
      %v928 = vpop.f32.mrb[0].mxu0
      %v929 = vpop.f32.mrb[0].mxu0
      %v930 = vadd.f32 0.0, %v929
      %v931 = vpop.f32.mrb[0].mxu0
      %932 = vmatprep.mubr.bf16.mxu0 0
      %933 = vmatmul.mubr.bf16.gmra.mrb[0].mxu0 %v784
      %v934 = vpop.f32.mrb[0].mxu0
      %v935 = vadd.f32 0.0, %v934
      %v936 = vpop.f32.mrb[0].mxu0
      %v937 = vpop.f32.mrb[0].mxu0
      %v938 = vadd.f32 0.0, %v937
      %v939 = vpop.f32.mrb[0].mxu0
      %940 = vmatprep.mubr.bf16.mxu0 0
      %941 = vmatmul.mubr.bf16.gmra.mrb[0].mxu0 %v787
      %v942 = vpop.f32.mrb[0].mxu0
      %v943 = vadd.f32 0.0, %v942
      %v944 = vpop.f32.mrb[0].mxu0
      %v945 = vpop.f32.mrb[0].mxu0
      %v946 = vadd.f32 0.0, %v945
      %v947 = vpop.f32.mrb[0].mxu0
      %948 = vmatprep.mubr.bf16.mxu0 0
      %949 = vmatmul.mubr.bf16.gmra.mrb[0].mxu0 %v790
      %v950 = vpop.f32.mrb[0].mxu0
      %v951 = vadd.f32 0.0, %v950
      %v952 = vpop.f32.mrb[0].mxu0
      %v953 = vpop.f32.mrb[0].mxu0
      %v954 = vadd.f32 0.0, %v953
      %v955 = vpop.f32.mrb[0].mxu0
      %956 = vdwg.mxu0
      %v957 = vsel %vm237, %v516, 0
      %v959 = vsel %vm237, %v518, 0
      %v961 = vsel %vm237, %v520, 0
      %v963 = vsel %vm237, %v522, 0
      %v965 = vsel %vm237, %v524, 0
      %v967 = vsel %vm237, %v526, 0
      %v969 = vsel %vm237, %v528, 0
      %v971 = vsel %vm237, %v530, 0
      %v973 = vsel %vm237, %v532, 0
      %v975 = vsel %vm237, %v534, 0
      %v977 = vsel %vm237, %v536, 0
      %v979 = vsel %vm237, %v538, 0
      %v981 = vsel %vm237, %v540, 0
      %v983 = vsel %vm237, %v542, 0
      %v985 = vsel %vm237, %v544, 0
      %v987 = vsel %vm237, %v546, 0
      %v990 = vsel %vm792, %v548, 0
      %992 = vmatprep.subr.bf16.mxu0 0
      %993 = vmatpush1.bf16.msra.mxu0 %v990
      %994 = vmatprep.subr.bf16.mxu0 0
      %995 = vmatpush1.bf16.msra.mxu0 0
      %996 = vmatprep.subr.bf16.mxu0 0
      %997 = vmatpush1.bf16.msra.mxu0 0
      %998 = vmatprep.subr.bf16.mxu0 0
      %999 = vmatpush1.bf16.msra.mxu0 0
      %1000 = vmatprep.subr.bf16.mxu0 0
      %1001 = vmatpush1.bf16.msra.mxu0 0
      %1002 = vmatprep.subr.bf16.mxu0 0
      %1003 = vmatpush1.bf16.msra.mxu0 0
      %1004 = vmatprep.subr.bf16.mxu0 0
      %1005 = vmatpush1.bf16.msra.mxu0 0
      %1006 = vmatprep.subr.bf16.mxu0 0
      %1007 = vmatpush1.bf16.msra.mxu0 0
      %1008 = vmatprep.subr.bf16.mxu0 0
      %1009 = vmatpush1.bf16.msra.mxu0 0
      %1010 = vmatprep.subr.bf16.mxu0 0
      %1011 = vmatpush1.bf16.msra.mxu0 0
      %1012 = vmatprep.subr.bf16.mxu0 0
      %1013 = vmatpush1.bf16.msra.mxu0 0
      %1014 = vmatprep.subr.bf16.mxu0 0
      %1015 = vmatpush1.bf16.msra.mxu0 0
      %1016 = vmatprep.subr.bf16.mxu0 0
      %1017 = vmatpush1.bf16.msra.mxu0 0
      %1018 = vmatprep.subr.bf16.mxu0 0
      %1019 = vmatpush1.bf16.msra.mxu0 0
      %1020 = vmatprep.subr.bf16.mxu0 0
      %1021 = vmatpush1.bf16.msra.mxu0 0
      %1022 = vmatprep.subr.bf16.mxu0 0
      %1023 = vmatpush1.bf16.msra.mxu0 0
      %1024 = vmatprep.mubr.bf16.mxu0 0
      %1025 = vmatmul.mubr.bf16.gmra.mrb[0].mxu0 %v957
      %v1026 = vpop.f32.mrb[0].mxu0
      %v1027 = vadd.f32 %v831, %v1026
      %v1028 = vpop.f32.mrb[0].mxu0
      %v1029 = vpop.f32.mrb[0].mxu0
      %v1030 = vadd.f32 %v834, %v1029
      %v1031 = vpop.f32.mrb[0].mxu0
      %1032 = vmatprep.mubr.bf16.mxu0 0
      %1033 = vmatmul.mubr.bf16.gmra.mrb[0].mxu0 %v959
      %v1034 = vpop.f32.mrb[0].mxu0
      %v1035 = vadd.f32 %v839, %v1034
      %v1036 = vpop.f32.mrb[0].mxu0
      %v1037 = vpop.f32.mrb[0].mxu0
      %v1038 = vadd.f32 %v842, %v1037
      %v1039 = vpop.f32.mrb[0].mxu0
      %1040 = vmatprep.mubr.bf16.mxu0 0
      %1041 = vmatmul.mubr.bf16.gmra.mrb[0].mxu0 %v961
      %v1042 = vpop.f32.mrb[0].mxu0
      %v1043 = vadd.f32 %v847, %v1042
      %v1044 = vpop.f32.mrb[0].mxu0
      %v1045 = vpop.f32.mrb[0].mxu0
      %v1046 = vadd.f32 %v850, %v1045
      %v1047 = vpop.f32.mrb[0].mxu0
      %1048 = vmatprep.mubr.bf16.mxu0 0
      %1049 = vmatmul.mubr.bf16.gmra.mrb[0].mxu0 %v963
      %v1050 = vpop.f32.mrb[0].mxu0
      %v1051 = vadd.f32 %v855, %v1050
      %v1052 = vpop.f32.mrb[0].mxu0
      %v1053 = vpop.f32.mrb[0].mxu0
      %v1054 = vadd.f32 %v858, %v1053
      %v1055 = vpop.f32.mrb[0].mxu0
      %1056 = vmatprep.mubr.bf16.mxu0 0
      %1057 = vmatmul.mubr.bf16.gmra.mrb[0].mxu0 %v965
      %v1058 = vpop.f32.mrb[0].mxu0
      %v1059 = vadd.f32 %v863, %v1058
      %v1060 = vpop.f32.mrb[0].mxu0
      %v1061 = vpop.f32.mrb[0].mxu0
      %v1062 = vadd.f32 %v866, %v1061
      %v1063 = vpop.f32.mrb[0].mxu0
      %1064 = vmatprep.mubr.bf16.mxu0 0
      %1065 = vmatmul.mubr.bf16.gmra.mrb[0].mxu0 %v967
      %v1066 = vpop.f32.mrb[0].mxu0
      %v1067 = vadd.f32 %v871, %v1066
      %v1068 = vpop.f32.mrb[0].mxu0
      %v1069 = vpop.f32.mrb[0].mxu0
      %v1070 = vadd.f32 %v874, %v1069
      %v1071 = vpop.f32.mrb[0].mxu0
      %1072 = vmatprep.mubr.bf16.mxu0 0
      %1073 = vmatmul.mubr.bf16.gmra.mrb[0].mxu0 %v969
      %v1074 = vpop.f32.mrb[0].mxu0
      %v1075 = vadd.f32 %v879, %v1074
      %v1076 = vpop.f32.mrb[0].mxu0
      %v1077 = vpop.f32.mrb[0].mxu0
      %v1078 = vadd.f32 %v882, %v1077
      %v1079 = vpop.f32.mrb[0].mxu0
      %1080 = vmatprep.mubr.bf16.mxu0 0
      %1081 = vmatmul.mubr.bf16.gmra.mrb[0].mxu0 %v971
      %v1082 = vpop.f32.mrb[0].mxu0
      %v1083 = vadd.f32 %v887, %v1082
      %v1084 = vpop.f32.mrb[0].mxu0
      %v1085 = vpop.f32.mrb[0].mxu0
      %v1086 = vadd.f32 %v890, %v1085
      %v1087 = vpop.f32.mrb[0].mxu0
      %1088 = vmatprep.mubr.bf16.mxu0 0
      %1089 = vmatmul.mubr.bf16.gmra.mrb[0].mxu0 %v973
      %v1090 = vpop.f32.mrb[0].mxu0
      %v1091 = vadd.f32 %v895, %v1090
      %v1092 = vpop.f32.mrb[0].mxu0
      %v1093 = vpop.f32.mrb[0].mxu0
      %v1094 = vadd.f32 %v898, %v1093
      %v1095 = vpop.f32.mrb[0].mxu0
      %1096 = vmatprep.mubr.bf16.mxu0 0
      %1097 = vmatmul.mubr.bf16.gmra.mrb[0].mxu0 %v975
      %v1098 = vpop.f32.mrb[0].mxu0
      %v1099 = vadd.f32 %v903, %v1098
      %v1100 = vpop.f32.mrb[0].mxu0
      %v1101 = vpop.f32.mrb[0].mxu0
      %v1102 = vadd.f32 %v906, %v1101
      %v1103 = vpop.f32.mrb[0].mxu0
      %1104 = vmatprep.mubr.bf16.mxu0 0
      %1105 = vmatmul.mubr.bf16.gmra.mrb[0].mxu0 %v977
      %v1106 = vpop.f32.mrb[0].mxu0
      %v1107 = vadd.f32 %v911, %v1106
      %v1108 = vpop.f32.mrb[0].mxu0
      %v1109 = vpop.f32.mrb[0].mxu0
      %v1110 = vadd.f32 %v914, %v1109
      %v1111 = vpop.f32.mrb[0].mxu0
      %1112 = vmatprep.mubr.bf16.mxu0 0
      %1113 = vmatmul.mubr.bf16.gmra.mrb[0].mxu0 %v979
      %v1114 = vpop.f32.mrb[0].mxu0
      %v1115 = vadd.f32 %v919, %v1114
      %v1116 = vpop.f32.mrb[0].mxu0
      %v1117 = vpop.f32.mrb[0].mxu0
      %v1118 = vadd.f32 %v922, %v1117
      %v1119 = vpop.f32.mrb[0].mxu0
      %1120 = vmatprep.mubr.bf16.mxu0 0
      %1121 = vmatmul.mubr.bf16.gmra.mrb[0].mxu0 %v981
      %v1122 = vpop.f32.mrb[0].mxu0
      %v1123 = vadd.f32 %v927, %v1122
      %v1124 = vpop.f32.mrb[0].mxu0
      %v1125 = vpop.f32.mrb[0].mxu0
      %v1126 = vadd.f32 %v930, %v1125
      %v1127 = vpop.f32.mrb[0].mxu0
      %1128 = vmatprep.mubr.bf16.mxu0 0
      %1129 = vmatmul.mubr.bf16.gmra.mrb[0].mxu0 %v983
      %v1130 = vpop.f32.mrb[0].mxu0
      %v1131 = vadd.f32 %v935, %v1130
      %v1132 = vpop.f32.mrb[0].mxu0
      %v1133 = vpop.f32.mrb[0].mxu0
      %v1134 = vadd.f32 %v938, %v1133
      %v1135 = vpop.f32.mrb[0].mxu0
      %1136 = vmatprep.mubr.bf16.mxu0 0
      %1137 = vmatmul.mubr.bf16.gmra.mrb[0].mxu0 %v985
      %v1138 = vpop.f32.mrb[0].mxu0
      %v1139 = vadd.f32 %v943, %v1138
      %v1140 = vpop.f32.mrb[0].mxu0
      %v1141 = vpop.f32.mrb[0].mxu0
      %v1142 = vadd.f32 %v946, %v1141
      %v1143 = vpop.f32.mrb[0].mxu0
      %1144 = vmatprep.mubr.bf16.mxu0 0
      %1145 = vmatmul.mubr.bf16.gmra.mrb[0].mxu0 %v987
      %v1146 = vpop.f32.mrb[0].mxu0
      %v1147 = vadd.f32 %v951, %v1146
      %v1148 = vpop.f32.mrb[0].mxu0
      %v1149 = vpop.f32.mrb[0].mxu0
      %v1150 = vadd.f32 %v954, %v1149
      %v1151 = vpop.f32.mrb[0].mxu0
      %1152 = vdwg.mxu0
      %vm1185 = vcmask 1046528
      %v1186 = vrot.slane %v516, 1
      %v1187 = vrot.slane %v517, 1
      %v1188 = vsel %vm1185, %v1186, %v1187
      %v1189 = vrot.slane %v518, 1
      %v1190 = vrot.slane %v519, 1
      %v1191 = vsel %vm1185, %v1189, %v1190
      %v1192 = vrot.slane %v520, 1
      %v1193 = vrot.slane %v521, 1
      %v1194 = vsel %vm1185, %v1192, %v1193
      %v1195 = vrot.slane %v522, 1
      %v1196 = vrot.slane %v523, 1
      %v1197 = vsel %vm1185, %v1195, %v1196
      %v1198 = vrot.slane %v524, 1
      %v1199 = vrot.slane %v525, 1
      %v1200 = vsel %vm1185, %v1198, %v1199
      %v1201 = vrot.slane %v526, 1
      %v1202 = vrot.slane %v527, 1
      %v1203 = vsel %vm1185, %v1201, %v1202
      %v1204 = vrot.slane %v528, 1
      %v1205 = vrot.slane %v529, 1
      %v1206 = vsel %vm1185, %v1204, %v1205
      %v1207 = vrot.slane %v530, 1
      %v1208 = vrot.slane %v531, 1
      %v1209 = vsel %vm1185, %v1207, %v1208
      %v1210 = vrot.slane %v532, 1
      %v1211 = vrot.slane %v533, 1
      %v1212 = vsel %vm1185, %v1210, %v1211
      %v1213 = vrot.slane %v534, 1
      %v1214 = vrot.slane %v535, 1
      %v1215 = vsel %vm1185, %v1213, %v1214
      %v1216 = vrot.slane %v536, 1
      %v1217 = vrot.slane %v537, 1
      %v1218 = vsel %vm1185, %v1216, %v1217
      %v1219 = vrot.slane %v538, 1
      %v1220 = vrot.slane %v539, 1
      %v1221 = vsel %vm1185, %v1219, %v1220
      %v1222 = vrot.slane %v540, 1
      %v1223 = vrot.slane %v541, 1
      %v1224 = vsel %vm1185, %v1222, %v1223
      %v1225 = vrot.slane %v542, 1
      %v1226 = vrot.slane %v543, 1
      %v1227 = vsel %vm1185, %v1225, %v1226
      %v1228 = vrot.slane %v544, 1
      %v1229 = vrot.slane %v545, 1
      %v1230 = vsel %vm1185, %v1228, %v1229
      %v1231 = vrot.slane %v546, 1
      %v1232 = vrot.slane %v547, 1
      %v1233 = vsel %vm1185, %v1231, %v1232
      %s1234 = scalar_lea.vmem %s3, 8
      %v1235 = vld [vmem:[%s1234] sm:$0xf]
      %v1237 = vsel %vm237, %v1188, 0
      %v1240 = vsel %vm237, %v1191, 0
      %v1243 = vsel %vm237, %v1194, 0
      %v1246 = vsel %vm237, %v1197, 0
      %v1249 = vsel %vm237, %v1200, 0
      %v1252 = vsel %vm237, %v1203, 0
      %v1255 = vsel %vm237, %v1206, 0
      %v1258 = vsel %vm237, %v1209, 0
      %v1261 = vsel %vm237, %v1212, 0
      %v1264 = vsel %vm237, %v1215, 0
      %v1267 = vsel %vm237, %v1218, 0
      %v1270 = vsel %vm237, %v1221, 0
      %v1273 = vsel %vm237, %v1224, 0
      %v1276 = vsel %vm237, %v1227, 0
      %v1279 = vsel %vm237, %v1230, 0
      %v1282 = vsel %vm237, %v1233, 0
      %v1285 = vsel %vm792, %v1235, 0
      %1287 = vmatprep.subr.bf16.mxu0 0
      %1288 = vmatpush1.bf16.msra.mxu0 %v1285
      %1289 = vmatprep.subr.bf16.mxu0 0
      %1290 = vmatpush1.bf16.msra.mxu0 0
      %1291 = vmatprep.subr.bf16.mxu0 0
      %1292 = vmatpush1.bf16.msra.mxu0 0
      %1293 = vmatprep.subr.bf16.mxu0 0
      %1294 = vmatpush1.bf16.msra.mxu0 0
      %1295 = vmatprep.subr.bf16.mxu0 0
      %1296 = vmatpush1.bf16.msra.mxu0 0
      %1297 = vmatprep.subr.bf16.mxu0 0
      %1298 = vmatpush1.bf16.msra.mxu0 0
      %1299 = vmatprep.subr.bf16.mxu0 0
      %1300 = vmatpush1.bf16.msra.mxu0 0
      %1301 = vmatprep.subr.bf16.mxu0 0
      %1302 = vmatpush1.bf16.msra.mxu0 0
      %1303 = vmatprep.subr.bf16.mxu0 0
      %1304 = vmatpush1.bf16.msra.mxu0 0
      %1305 = vmatprep.subr.bf16.mxu0 0
      %1306 = vmatpush1.bf16.msra.mxu0 0
      %1307 = vmatprep.subr.bf16.mxu0 0
      %1308 = vmatpush1.bf16.msra.mxu0 0
      %1309 = vmatprep.subr.bf16.mxu0 0
      %1310 = vmatpush1.bf16.msra.mxu0 0
      %1311 = vmatprep.subr.bf16.mxu0 0
      %1312 = vmatpush1.bf16.msra.mxu0 0
      %1313 = vmatprep.subr.bf16.mxu0 0
      %1314 = vmatpush1.bf16.msra.mxu0 0
      %1315 = vmatprep.subr.bf16.mxu0 0
      %1316 = vmatpush1.bf16.msra.mxu0 0
      %1317 = vmatprep.subr.bf16.mxu0 0
      %1318 = vmatpush1.bf16.msra.mxu0 0
      %1319 = vmatprep.mubr.bf16.mxu0 0
      %1320 = vmatmul.mubr.bf16.gmra.mrb[0].mxu0 %v1237
      %v1321 = vpop.f32.mrb[0].mxu0
      %v1322 = vadd.f32 0.0, %v1321
      %v1323 = vpop.f32.mrb[0].mxu0
      %v1324 = vpop.f32.mrb[0].mxu0
      %v1325 = vadd.f32 0.0, %v1324
      %v1326 = vpop.f32.mrb[0].mxu0
      %1327 = vmatprep.mubr.bf16.mxu0 0
      %1328 = vmatmul.mubr.bf16.gmra.mrb[0].mxu0 %v1240
      %v1329 = vpop.f32.mrb[0].mxu0
      %v1330 = vadd.f32 0.0, %v1329
      %v1331 = vpop.f32.mrb[0].mxu0
      %v1332 = vpop.f32.mrb[0].mxu0
      %v1333 = vadd.f32 0.0, %v1332
      %v1334 = vpop.f32.mrb[0].mxu0
      %1335 = vmatprep.mubr.bf16.mxu0 0
      %1336 = vmatmul.mubr.bf16.gmra.mrb[0].mxu0 %v1243
      %v1337 = vpop.f32.mrb[0].mxu0
      %v1338 = vadd.f32 0.0, %v1337
      %v1339 = vpop.f32.mrb[0].mxu0
      %v1340 = vpop.f32.mrb[0].mxu0
      %v1341 = vadd.f32 0.0, %v1340
      %v1342 = vpop.f32.mrb[0].mxu0
      %1343 = vmatprep.mubr.bf16.mxu0 0
      %1344 = vmatmul.mubr.bf16.gmra.mrb[0].mxu0 %v1246
      %v1345 = vpop.f32.mrb[0].mxu0
      %v1346 = vadd.f32 0.0, %v1345
      %v1347 = vpop.f32.mrb[0].mxu0
      %v1348 = vpop.f32.mrb[0].mxu0
      %v1349 = vadd.f32 0.0, %v1348
      %v1350 = vpop.f32.mrb[0].mxu0
      %1351 = vmatprep.mubr.bf16.mxu0 0
      %1352 = vmatmul.mubr.bf16.gmra.mrb[0].mxu0 %v1249
      %v1353 = vpop.f32.mrb[0].mxu0
      %v1354 = vadd.f32 0.0, %v1353
      %v1355 = vpop.f32.mrb[0].mxu0
      %v1356 = vpop.f32.mrb[0].mxu0
      %v1357 = vadd.f32 0.0, %v1356
      %v1358 = vpop.f32.mrb[0].mxu0
      %1359 = vmatprep.mubr.bf16.mxu0 0
      %1360 = vmatmul.mubr.bf16.gmra.mrb[0].mxu0 %v1252
      %v1361 = vpop.f32.mrb[0].mxu0
      %v1362 = vadd.f32 0.0, %v1361
      %v1363 = vpop.f32.mrb[0].mxu0
      %v1364 = vpop.f32.mrb[0].mxu0
      %v1365 = vadd.f32 0.0, %v1364
      %v1366 = vpop.f32.mrb[0].mxu0
      %1367 = vmatprep.mubr.bf16.mxu0 0
      %1368 = vmatmul.mubr.bf16.gmra.mrb[0].mxu0 %v1255
      %v1369 = vpop.f32.mrb[0].mxu0
      %v1370 = vadd.f32 0.0, %v1369
      %v1371 = vpop.f32.mrb[0].mxu0
      %v1372 = vpop.f32.mrb[0].mxu0
      %v1373 = vadd.f32 0.0, %v1372
      %v1374 = vpop.f32.mrb[0].mxu0
      %1375 = vmatprep.mubr.bf16.mxu0 0
      %1376 = vmatmul.mubr.bf16.gmra.mrb[0].mxu0 %v1258
      %v1377 = vpop.f32.mrb[0].mxu0
      %v1378 = vadd.f32 0.0, %v1377
      %v1379 = vpop.f32.mrb[0].mxu0
      %v1380 = vpop.f32.mrb[0].mxu0
      %v1381 = vadd.f32 0.0, %v1380
      %v1382 = vpop.f32.mrb[0].mxu0
      %1383 = vmatprep.mubr.bf16.mxu0 0
      %1384 = vmatmul.mubr.bf16.gmra.mrb[0].mxu0 %v1261
      %v1385 = vpop.f32.mrb[0].mxu0
      %v1386 = vadd.f32 0.0, %v1385
      %v1387 = vpop.f32.mrb[0].mxu0
      %v1388 = vpop.f32.mrb[0].mxu0
      %v1389 = vadd.f32 0.0, %v1388
      %v1390 = vpop.f32.mrb[0].mxu0
      %1391 = vmatprep.mubr.bf16.mxu0 0
      %1392 = vmatmul.mubr.bf16.gmra.mrb[0].mxu0 %v1264
      %v1393 = vpop.f32.mrb[0].mxu0
      %v1394 = vadd.f32 0.0, %v1393
      %v1395 = vpop.f32.mrb[0].mxu0
      %v1396 = vpop.f32.mrb[0].mxu0
      %v1397 = vadd.f32 0.0, %v1396
      %v1398 = vpop.f32.mrb[0].mxu0
      %1399 = vmatprep.mubr.bf16.mxu0 0
      %1400 = vmatmul.mubr.bf16.gmra.mrb[0].mxu0 %v1267
      %v1401 = vpop.f32.mrb[0].mxu0
      %v1402 = vadd.f32 0.0, %v1401
      %v1403 = vpop.f32.mrb[0].mxu0
      %v1404 = vpop.f32.mrb[0].mxu0
      %v1405 = vadd.f32 0.0, %v1404
      %v1406 = vpop.f32.mrb[0].mxu0
      %1407 = vmatprep.mubr.bf16.mxu0 0
      %1408 = vmatmul.mubr.bf16.gmra.mrb[0].mxu0 %v1270
      %v1409 = vpop.f32.mrb[0].mxu0
      %v1410 = vadd.f32 0.0, %v1409
      %v1411 = vpop.f32.mrb[0].mxu0
      %v1412 = vpop.f32.mrb[0].mxu0
      %v1413 = vadd.f32 0.0, %v1412
      %v1414 = vpop.f32.mrb[0].mxu0
      %1415 = vmatprep.mubr.bf16.mxu0 0
      %1416 = vmatmul.mubr.bf16.gmra.mrb[0].mxu0 %v1273
      %v1417 = vpop.f32.mrb[0].mxu0
      %v1418 = vadd.f32 0.0, %v1417
      %v1419 = vpop.f32.mrb[0].mxu0
      %v1420 = vpop.f32.mrb[0].mxu0
      %v1421 = vadd.f32 0.0, %v1420
      %v1422 = vpop.f32.mrb[0].mxu0
      %1423 = vmatprep.mubr.bf16.mxu0 0
      %1424 = vmatmul.mubr.bf16.gmra.mrb[0].mxu0 %v1276
      %v1425 = vpop.f32.mrb[0].mxu0
      %v1426 = vadd.f32 0.0, %v1425
      %v1427 = vpop.f32.mrb[0].mxu0
      %v1428 = vpop.f32.mrb[0].mxu0
      %v1429 = vadd.f32 0.0, %v1428
      %v1430 = vpop.f32.mrb[0].mxu0
      %1431 = vmatprep.mubr.bf16.mxu0 0
      %1432 = vmatmul.mubr.bf16.gmra.mrb[0].mxu0 %v1279
      %v1433 = vpop.f32.mrb[0].mxu0
      %v1434 = vadd.f32 0.0, %v1433
      %v1435 = vpop.f32.mrb[0].mxu0
      %v1436 = vpop.f32.mrb[0].mxu0
      %v1437 = vadd.f32 0.0, %v1436
      %v1438 = vpop.f32.mrb[0].mxu0
      %1439 = vmatprep.mubr.bf16.mxu0 0
      %1440 = vmatmul.mubr.bf16.gmra.mrb[0].mxu0 %v1282
      %v1441 = vpop.f32.mrb[0].mxu0
      %v1442 = vadd.f32 0.0, %v1441
      %v1443 = vpop.f32.mrb[0].mxu0
      %v1444 = vpop.f32.mrb[0].mxu0
      %v1445 = vadd.f32 0.0, %v1444
      %v1446 = vpop.f32.mrb[0].mxu0
      %1447 = vdwg.mxu0
      %v1448 = vadd.f32 %v1027, %v1322
      %v1449 = vadd.f32 %v1030, %v1325
      %v1450 = vadd.f32 %v1035, %v1330
      %v1451 = vadd.f32 %v1038, %v1333
      %v1452 = vadd.f32 %v1043, %v1338
      %v1453 = vadd.f32 %v1046, %v1341
      %v1454 = vadd.f32 %v1051, %v1346
      %v1455 = vadd.f32 %v1054, %v1349
      %v1456 = vadd.f32 %v1059, %v1354
      %v1457 = vadd.f32 %v1062, %v1357
      %v1458 = vadd.f32 %v1067, %v1362
      %v1459 = vadd.f32 %v1070, %v1365
      %v1460 = vadd.f32 %v1075, %v1370
      %v1461 = vadd.f32 %v1078, %v1373
      %v1462 = vadd.f32 %v1083, %v1378
      %v1463 = vadd.f32 %v1086, %v1381
      %v1464 = vadd.f32 %v1091, %v1386
      %v1465 = vadd.f32 %v1094, %v1389
      %v1466 = vadd.f32 %v1099, %v1394
      %v1467 = vadd.f32 %v1102, %v1397
      %v1468 = vadd.f32 %v1107, %v1402
      %v1469 = vadd.f32 %v1110, %v1405
      %v1470 = vadd.f32 %v1115, %v1410
      %v1471 = vadd.f32 %v1118, %v1413
      %v1472 = vadd.f32 %v1123, %v1418
      %v1473 = vadd.f32 %v1126, %v1421
      %v1474 = vadd.f32 %v1131, %v1426
      %v1475 = vadd.f32 %v1134, %v1429
      %v1476 = vadd.f32 %v1139, %v1434
      %v1477 = vadd.f32 %v1142, %v1437
      %v1478 = vadd.f32 %v1147, %v1442
      %v1479 = vadd.f32 %v1150, %v1445
      %v1480 = vld [vmem:[%s435] sm:$0xff]
      %v1481 = vld [vmem:[%s435 + $0x8] sm:$0xff]
      %v1482 = vld [vmem:[%s435 + $0x10] sm:$0x3]
      %v1483 = vld [vmem:[%s435 + $0x18] sm:$0xff]
      %v1484 = vld [vmem:[%s435 + $0x20] sm:$0xff]
      %v1485 = vld [vmem:[%s435 + $0x28] sm:$0x3]
      %v1486 = vld [vmem:[%s435 + $0x30] sm:$0xff]
      %v1487 = vld [vmem:[%s435 + $0x38] sm:$0xff]
      %v1488 = vld [vmem:[%s435 + $0x40] sm:$0x3]
      %v1489 = vld [vmem:[%s435 + $0x48] sm:$0xff]
      %v1490 = vld [vmem:[%s435 + $0x50] sm:$0xff]
      %v1491 = vld [vmem:[%s435 + $0x58] sm:$0x3]
      %v1492 = vld [vmem:[%s435 + $0x60] sm:$0xff]
      %v1493 = vld [vmem:[%s435 + $0x68] sm:$0xff]
      %v1494 = vld [vmem:[%s435 + $0x70] sm:$0x3]
      %v1495 = vld [vmem:[%s435 + $0x78] sm:$0xff]
      %v1496 = vld [vmem:[%s435 + $0x80] sm:$0xff]
      %v1497 = vld [vmem:[%s435 + $0x88] sm:$0x3]
      %v1498 = vld [vmem:[%s435 + $0x90] sm:$0xff]
      %v1499 = vld [vmem:[%s435 + $0x98] sm:$0xff]
      %v1500 = vld [vmem:[%s435 + $0xa0] sm:$0x3]
      %v1501 = vld [vmem:[%s435 + $0xa8] sm:$0xff]
      %v1502 = vld [vmem:[%s435 + $0xb0] sm:$0xff]
      %v1503 = vld [vmem:[%s435 + $0xb8] sm:$0x3]
      %v1504 = vld [vmem:[%s435 + $0xc0] sm:$0xff]
      %v1505 = vld [vmem:[%s435 + $0xc8] sm:$0xff]
      %v1506 = vld [vmem:[%s435 + $0xd0] sm:$0x3]
      %v1507 = vld [vmem:[%s435 + $0xd8] sm:$0xff]
      %v1508 = vld [vmem:[%s435 + $0xe0] sm:$0xff]
      %v1509 = vld [vmem:[%s435 + $0xe8] sm:$0x3]
      %v1510 = vld [vmem:[%s435 + $0xf0] sm:$0xff]
      %v1511 = vld [vmem:[%s435 + $0xf8] sm:$0xff]
      %v1512 = vld [vmem:[%s435 + $0x100] sm:$0x3]
      %v1513 = vld [vmem:[%s435 + $0x108] sm:$0xff]
      %v1514 = vld [vmem:[%s435 + $0x110] sm:$0xff]
      %v1515 = vld [vmem:[%s435 + $0x118] sm:$0x3]
      %v1516 = vld [vmem:[%s435 + $0x120] sm:$0xff]
      %v1517 = vld [vmem:[%s435 + $0x128] sm:$0xff]
      %v1518 = vld [vmem:[%s435 + $0x130] sm:$0x3]
      %v1519 = vld [vmem:[%s435 + $0x138] sm:$0xff]
      %v1520 = vld [vmem:[%s435 + $0x140] sm:$0xff]
      %v1521 = vld [vmem:[%s435 + $0x148] sm:$0x3]
      %v1522 = vld [vmem:[%s435 + $0x150] sm:$0xff]
      %v1523 = vld [vmem:[%s435 + $0x158] sm:$0xff]
      %v1524 = vld [vmem:[%s435 + $0x160] sm:$0x3]
      %v1525 = vld [vmem:[%s435 + $0x168] sm:$0xff]
      %v1526 = vld [vmem:[%s435 + $0x170] sm:$0xff]
      %v1527 = vld [vmem:[%s435 + $0x178] sm:$0x3]
      %v1528 = vpack.c.bf16 %v1481, %v1480
      %v1529 = vpack.c.bf16 %v1482, %v1482
      %v1530 = vpack.c.bf16 %v1484, %v1483
      %v1531 = vpack.c.bf16 %v1485, %v1485
      %v1532 = vpack.c.bf16 %v1487, %v1486
      %v1533 = vpack.c.bf16 %v1488, %v1488
      %v1534 = vpack.c.bf16 %v1490, %v1489
      %v1535 = vpack.c.bf16 %v1491, %v1491
      %v1536 = vpack.c.bf16 %v1493, %v1492
      %v1537 = vpack.c.bf16 %v1494, %v1494
      %v1538 = vpack.c.bf16 %v1496, %v1495
      %v1539 = vpack.c.bf16 %v1497, %v1497
      %v1540 = vpack.c.bf16 %v1499, %v1498
      %v1541 = vpack.c.bf16 %v1500, %v1500
      %v1542 = vpack.c.bf16 %v1502, %v1501
      %v1543 = vpack.c.bf16 %v1503, %v1503
      %v1544 = vpack.c.bf16 %v1505, %v1504
      %v1545 = vpack.c.bf16 %v1506, %v1506
      %v1546 = vpack.c.bf16 %v1508, %v1507
      %v1547 = vpack.c.bf16 %v1509, %v1509
      %v1548 = vpack.c.bf16 %v1511, %v1510
      %v1549 = vpack.c.bf16 %v1512, %v1512
      %v1550 = vpack.c.bf16 %v1514, %v1513
      %v1551 = vpack.c.bf16 %v1515, %v1515
      %v1552 = vpack.c.bf16 %v1517, %v1516
      %v1553 = vpack.c.bf16 %v1518, %v1518
      %v1554 = vpack.c.bf16 %v1520, %v1519
      %v1555 = vpack.c.bf16 %v1521, %v1521
      %v1556 = vpack.c.bf16 %v1523, %v1522
      %v1557 = vpack.c.bf16 %v1524, %v1524
      %v1558 = vpack.c.bf16 %v1526, %v1525
      %v1559 = vpack.c.bf16 %v1527, %v1527
      %s1560 = scalar_lea.vmem %s3, 12
      %v1561 = vld [vmem:[%s1560] sm:$0xf]
      %v1563 = vsel %vm237, %v1528, 0
      %v1566 = vsel %vm237, %v1530, 0
      %v1569 = vsel %vm237, %v1532, 0
      %v1572 = vsel %vm237, %v1534, 0
      %v1575 = vsel %vm237, %v1536, 0
      %v1578 = vsel %vm237, %v1538, 0
      %v1581 = vsel %vm237, %v1540, 0
      %v1584 = vsel %vm237, %v1542, 0
      %v1587 = vsel %vm237, %v1544, 0
      %v1590 = vsel %vm237, %v1546, 0
      %v1593 = vsel %vm237, %v1548, 0
      %v1596 = vsel %vm237, %v1550, 0
      %v1599 = vsel %vm237, %v1552, 0
      %v1602 = vsel %vm237, %v1554, 0
      %v1605 = vsel %vm237, %v1556, 0
      %v1608 = vsel %vm237, %v1558, 0
      %v1611 = vsel %vm792, %v1561, 0
      %1613 = vmatprep.subr.bf16.mxu0 0
      %1614 = vmatpush1.bf16.msra.mxu0 %v1611
      %1615 = vmatprep.subr.bf16.mxu0 0
      %1616 = vmatpush1.bf16.msra.mxu0 0
      %1617 = vmatprep.subr.bf16.mxu0 0
      %1618 = vmatpush1.bf16.msra.mxu0 0
      %1619 = vmatprep.subr.bf16.mxu0 0
      %1620 = vmatpush1.bf16.msra.mxu0 0
      %1621 = vmatprep.subr.bf16.mxu0 0
      %1622 = vmatpush1.bf16.msra.mxu0 0
      %1623 = vmatprep.subr.bf16.mxu0 0
      %1624 = vmatpush1.bf16.msra.mxu0 0
      %1625 = vmatprep.subr.bf16.mxu0 0
      %1626 = vmatpush1.bf16.msra.mxu0 0
      %1627 = vmatprep.subr.bf16.mxu0 0
      %1628 = vmatpush1.bf16.msra.mxu0 0
      %1629 = vmatprep.subr.bf16.mxu0 0
      %1630 = vmatpush1.bf16.msra.mxu0 0
      %1631 = vmatprep.subr.bf16.mxu0 0
      %1632 = vmatpush1.bf16.msra.mxu0 0
      %1633 = vmatprep.subr.bf16.mxu0 0
      %1634 = vmatpush1.bf16.msra.mxu0 0
      %1635 = vmatprep.subr.bf16.mxu0 0
      %1636 = vmatpush1.bf16.msra.mxu0 0
      %1637 = vmatprep.subr.bf16.mxu0 0
      %1638 = vmatpush1.bf16.msra.mxu0 0
      %1639 = vmatprep.subr.bf16.mxu0 0
      %1640 = vmatpush1.bf16.msra.mxu0 0
      %1641 = vmatprep.subr.bf16.mxu0 0
      %1642 = vmatpush1.bf16.msra.mxu0 0
      %1643 = vmatprep.subr.bf16.mxu0 0
      %1644 = vmatpush1.bf16.msra.mxu0 0
      %1645 = vmatprep.mubr.bf16.mxu0 0
      %1646 = vmatmul.mubr.bf16.gmra.mrb[0].mxu0 %v1563
      %v1647 = vpop.f32.mrb[0].mxu0
      %v1648 = vadd.f32 0.0, %v1647
      %v1649 = vpop.f32.mrb[0].mxu0
      %v1650 = vpop.f32.mrb[0].mxu0
      %v1651 = vadd.f32 0.0, %v1650
      %v1652 = vpop.f32.mrb[0].mxu0
      %1653 = vmatprep.mubr.bf16.mxu0 0
      %1654 = vmatmul.mubr.bf16.gmra.mrb[0].mxu0 %v1566
      %v1655 = vpop.f32.mrb[0].mxu0
      %v1656 = vadd.f32 0.0, %v1655
      %v1657 = vpop.f32.mrb[0].mxu0
      %v1658 = vpop.f32.mrb[0].mxu0
      %v1659 = vadd.f32 0.0, %v1658
      %v1660 = vpop.f32.mrb[0].mxu0
      %1661 = vmatprep.mubr.bf16.mxu0 0
      %1662 = vmatmul.mubr.bf16.gmra.mrb[0].mxu0 %v1569
      %v1663 = vpop.f32.mrb[0].mxu0
      %v1664 = vadd.f32 0.0, %v1663
      %v1665 = vpop.f32.mrb[0].mxu0
      %v1666 = vpop.f32.mrb[0].mxu0
      %v1667 = vadd.f32 0.0, %v1666
      %v1668 = vpop.f32.mrb[0].mxu0
      %1669 = vmatprep.mubr.bf16.mxu0 0
      %1670 = vmatmul.mubr.bf16.gmra.mrb[0].mxu0 %v1572
      %v1671 = vpop.f32.mrb[0].mxu0
      %v1672 = vadd.f32 0.0, %v1671
      %v1673 = vpop.f32.mrb[0].mxu0
      %v1674 = vpop.f32.mrb[0].mxu0
      %v1675 = vadd.f32 0.0, %v1674
      %v1676 = vpop.f32.mrb[0].mxu0
      %1677 = vmatprep.mubr.bf16.mxu0 0
      %1678 = vmatmul.mubr.bf16.gmra.mrb[0].mxu0 %v1575
      %v1679 = vpop.f32.mrb[0].mxu0
      %v1680 = vadd.f32 0.0, %v1679
      %v1681 = vpop.f32.mrb[0].mxu0
      %v1682 = vpop.f32.mrb[0].mxu0
      %v1683 = vadd.f32 0.0, %v1682
      %v1684 = vpop.f32.mrb[0].mxu0
      %1685 = vmatprep.mubr.bf16.mxu0 0
      %1686 = vmatmul.mubr.bf16.gmra.mrb[0].mxu0 %v1578
      %v1687 = vpop.f32.mrb[0].mxu0
      %v1688 = vadd.f32 0.0, %v1687
      %v1689 = vpop.f32.mrb[0].mxu0
      %v1690 = vpop.f32.mrb[0].mxu0
      %v1691 = vadd.f32 0.0, %v1690
      %v1692 = vpop.f32.mrb[0].mxu0
      %1693 = vmatprep.mubr.bf16.mxu0 0
      %1694 = vmatmul.mubr.bf16.gmra.mrb[0].mxu0 %v1581
      %v1695 = vpop.f32.mrb[0].mxu0
      %v1696 = vadd.f32 0.0, %v1695
      %v1697 = vpop.f32.mrb[0].mxu0
      %v1698 = vpop.f32.mrb[0].mxu0
      %v1699 = vadd.f32 0.0, %v1698
      %v1700 = vpop.f32.mrb[0].mxu0
      %1701 = vmatprep.mubr.bf16.mxu0 0
      %1702 = vmatmul.mubr.bf16.gmra.mrb[0].mxu0 %v1584
      %v1703 = vpop.f32.mrb[0].mxu0
      %v1704 = vadd.f32 0.0, %v1703
      %v1705 = vpop.f32.mrb[0].mxu0
      %v1706 = vpop.f32.mrb[0].mxu0
      %v1707 = vadd.f32 0.0, %v1706
      %v1708 = vpop.f32.mrb[0].mxu0
      %1709 = vmatprep.mubr.bf16.mxu0 0
      %1710 = vmatmul.mubr.bf16.gmra.mrb[0].mxu0 %v1587
      %v1711 = vpop.f32.mrb[0].mxu0
      %v1712 = vadd.f32 0.0, %v1711
      %v1713 = vpop.f32.mrb[0].mxu0
      %v1714 = vpop.f32.mrb[0].mxu0
      %v1715 = vadd.f32 0.0, %v1714
      %v1716 = vpop.f32.mrb[0].mxu0
      %1717 = vmatprep.mubr.bf16.mxu0 0
      %1718 = vmatmul.mubr.bf16.gmra.mrb[0].mxu0 %v1590
      %v1719 = vpop.f32.mrb[0].mxu0
      %v1720 = vadd.f32 0.0, %v1719
      %v1721 = vpop.f32.mrb[0].mxu0
      %v1722 = vpop.f32.mrb[0].mxu0
      %v1723 = vadd.f32 0.0, %v1722
      %v1724 = vpop.f32.mrb[0].mxu0
      %1725 = vmatprep.mubr.bf16.mxu0 0
      %1726 = vmatmul.mubr.bf16.gmra.mrb[0].mxu0 %v1593
      %v1727 = vpop.f32.mrb[0].mxu0
      %v1728 = vadd.f32 0.0, %v1727
      %v1729 = vpop.f32.mrb[0].mxu0
      %v1730 = vpop.f32.mrb[0].mxu0
      %v1731 = vadd.f32 0.0, %v1730
      %v1732 = vpop.f32.mrb[0].mxu0
      %1733 = vmatprep.mubr.bf16.mxu0 0
      %1734 = vmatmul.mubr.bf16.gmra.mrb[0].mxu0 %v1596
      %v1735 = vpop.f32.mrb[0].mxu0
      %v1736 = vadd.f32 0.0, %v1735
      %v1737 = vpop.f32.mrb[0].mxu0
      %v1738 = vpop.f32.mrb[0].mxu0
      %v1739 = vadd.f32 0.0, %v1738
      %v1740 = vpop.f32.mrb[0].mxu0
      %1741 = vmatprep.mubr.bf16.mxu0 0
      %1742 = vmatmul.mubr.bf16.gmra.mrb[0].mxu0 %v1599
      %v1743 = vpop.f32.mrb[0].mxu0
      %v1744 = vadd.f32 0.0, %v1743
      %v1745 = vpop.f32.mrb[0].mxu0
      %v1746 = vpop.f32.mrb[0].mxu0
      %v1747 = vadd.f32 0.0, %v1746
      %v1748 = vpop.f32.mrb[0].mxu0
      %1749 = vmatprep.mubr.bf16.mxu0 0
      %1750 = vmatmul.mubr.bf16.gmra.mrb[0].mxu0 %v1602
      %v1751 = vpop.f32.mrb[0].mxu0
      %v1752 = vadd.f32 0.0, %v1751
      %v1753 = vpop.f32.mrb[0].mxu0
      %v1754 = vpop.f32.mrb[0].mxu0
      %v1755 = vadd.f32 0.0, %v1754
      %v1756 = vpop.f32.mrb[0].mxu0
      %1757 = vmatprep.mubr.bf16.mxu0 0
      %1758 = vmatmul.mubr.bf16.gmra.mrb[0].mxu0 %v1605
      %v1759 = vpop.f32.mrb[0].mxu0
      %v1760 = vadd.f32 0.0, %v1759
      %v1761 = vpop.f32.mrb[0].mxu0
      %v1762 = vpop.f32.mrb[0].mxu0
      %v1763 = vadd.f32 0.0, %v1762
      %v1764 = vpop.f32.mrb[0].mxu0
      %1765 = vmatprep.mubr.bf16.mxu0 0
      %1766 = vmatmul.mubr.bf16.gmra.mrb[0].mxu0 %v1608
      %v1767 = vpop.f32.mrb[0].mxu0
      %v1768 = vadd.f32 0.0, %v1767
      %v1769 = vpop.f32.mrb[0].mxu0
      %v1770 = vpop.f32.mrb[0].mxu0
      %v1771 = vadd.f32 0.0, %v1770
      %v1772 = vpop.f32.mrb[0].mxu0
      %1773 = vdwg.mxu0
      %v1774 = vadd.f32 %v1448, %v1648
      %v1775 = vadd.f32 %v1449, %v1651
      %v1776 = vadd.f32 %v1450, %v1656
      %v1777 = vadd.f32 %v1451, %v1659
      %v1778 = vadd.f32 %v1452, %v1664
      %v1779 = vadd.f32 %v1453, %v1667
      %v1780 = vadd.f32 %v1454, %v1672
      %v1781 = vadd.f32 %v1455, %v1675
      %v1782 = vadd.f32 %v1456, %v1680
      %v1783 = vadd.f32 %v1457, %v1683
      %v1784 = vadd.f32 %v1458, %v1688
      %v1785 = vadd.f32 %v1459, %v1691
      %v1786 = vadd.f32 %v1460, %v1696
      %v1787 = vadd.f32 %v1461, %v1699
      %v1788 = vadd.f32 %v1462, %v1704
      %v1789 = vadd.f32 %v1463, %v1707
      %v1790 = vadd.f32 %v1464, %v1712
      %v1791 = vadd.f32 %v1465, %v1715
      %v1792 = vadd.f32 %v1466, %v1720
      %v1793 = vadd.f32 %v1467, %v1723
      %v1794 = vadd.f32 %v1468, %v1728
      %v1795 = vadd.f32 %v1469, %v1731
      %v1796 = vadd.f32 %v1470, %v1736
      %v1797 = vadd.f32 %v1471, %v1739
      %v1798 = vadd.f32 %v1472, %v1744
      %v1799 = vadd.f32 %v1473, %v1747
      %v1800 = vadd.f32 %v1474, %v1752
      %v1801 = vadd.f32 %v1475, %v1755
      %v1802 = vadd.f32 %v1476, %v1760
      %v1803 = vadd.f32 %v1477, %v1763
      %v1804 = vadd.f32 %v1478, %v1768
      %v1805 = vadd.f32 %v1479, %v1771
      %v1806 = vshrl.u32 %v1528, 16
      %v1808 = vshll.u32 %v1528, 16
      %v1810 = vrot.slane %v1808, 1
      %v1811 = vor.u32 %v1806, %v1810
      %v1813 = vshll.u32 %v1529, 16
      %v1815 = vrot.slane %v1813, 1
      %v1816 = vsel %vm549, %v1811, %v1815
      %v1817 = vshrl.u32 %v1530, 16
      %v1819 = vshll.u32 %v1530, 16
      %v1821 = vrot.slane %v1819, 1
      %v1822 = vor.u32 %v1817, %v1821
      %v1824 = vshll.u32 %v1531, 16
      %v1826 = vrot.slane %v1824, 1
      %v1827 = vsel %vm549, %v1822, %v1826
      %v1828 = vshrl.u32 %v1532, 16
      %v1830 = vshll.u32 %v1532, 16
      %v1832 = vrot.slane %v1830, 1
      %v1833 = vor.u32 %v1828, %v1832
      %v1835 = vshll.u32 %v1533, 16
      %v1837 = vrot.slane %v1835, 1
      %v1838 = vsel %vm549, %v1833, %v1837
      %v1839 = vshrl.u32 %v1534, 16
      %v1841 = vshll.u32 %v1534, 16
      %v1843 = vrot.slane %v1841, 1
      %v1844 = vor.u32 %v1839, %v1843
      %v1846 = vshll.u32 %v1535, 16
      %v1848 = vrot.slane %v1846, 1
      %v1849 = vsel %vm549, %v1844, %v1848
      %v1850 = vshrl.u32 %v1536, 16
      %v1852 = vshll.u32 %v1536, 16
      %v1854 = vrot.slane %v1852, 1
      %v1855 = vor.u32 %v1850, %v1854
      %v1857 = vshll.u32 %v1537, 16
      %v1859 = vrot.slane %v1857, 1
      %v1860 = vsel %vm549, %v1855, %v1859
      %v1861 = vshrl.u32 %v1538, 16
      %v1863 = vshll.u32 %v1538, 16
      %v1865 = vrot.slane %v1863, 1
      %v1866 = vor.u32 %v1861, %v1865
      %v1868 = vshll.u32 %v1539, 16
      %v1870 = vrot.slane %v1868, 1
      %v1871 = vsel %vm549, %v1866, %v1870
      %v1872 = vshrl.u32 %v1540, 16
      %v1874 = vshll.u32 %v1540, 16
      %v1876 = vrot.slane %v1874, 1
      %v1877 = vor.u32 %v1872, %v1876
      %v1879 = vshll.u32 %v1541, 16
      %v1881 = vrot.slane %v1879, 1
      %v1882 = vsel %vm549, %v1877, %v1881
      %v1883 = vshrl.u32 %v1542, 16
      %v1885 = vshll.u32 %v1542, 16
      %v1887 = vrot.slane %v1885, 1
      %v1888 = vor.u32 %v1883, %v1887
      %v1890 = vshll.u32 %v1543, 16
      %v1892 = vrot.slane %v1890, 1
      %v1893 = vsel %vm549, %v1888, %v1892
      %v1894 = vshrl.u32 %v1544, 16
      %v1896 = vshll.u32 %v1544, 16
      %v1898 = vrot.slane %v1896, 1
      %v1899 = vor.u32 %v1894, %v1898
      %v1901 = vshll.u32 %v1545, 16
      %v1903 = vrot.slane %v1901, 1
      %v1904 = vsel %vm549, %v1899, %v1903
      %v1905 = vshrl.u32 %v1546, 16
      %v1907 = vshll.u32 %v1546, 16
      %v1909 = vrot.slane %v1907, 1
      %v1910 = vor.u32 %v1905, %v1909
      %v1912 = vshll.u32 %v1547, 16
      %v1914 = vrot.slane %v1912, 1
      %v1915 = vsel %vm549, %v1910, %v1914
      %v1916 = vshrl.u32 %v1548, 16
      %v1918 = vshll.u32 %v1548, 16
      %v1920 = vrot.slane %v1918, 1
      %v1921 = vor.u32 %v1916, %v1920
      %v1923 = vshll.u32 %v1549, 16
      %v1925 = vrot.slane %v1923, 1
      %v1926 = vsel %vm549, %v1921, %v1925
      %v1927 = vshrl.u32 %v1550, 16
      %v1929 = vshll.u32 %v1550, 16
      %v1931 = vrot.slane %v1929, 1
      %v1932 = vor.u32 %v1927, %v1931
      %v1934 = vshll.u32 %v1551, 16
      %v1936 = vrot.slane %v1934, 1
      %v1937 = vsel %vm549, %v1932, %v1936
      %v1938 = vshrl.u32 %v1552, 16
      %v1940 = vshll.u32 %v1552, 16
      %v1942 = vrot.slane %v1940, 1
      %v1943 = vor.u32 %v1938, %v1942
      %v1945 = vshll.u32 %v1553, 16
      %v1947 = vrot.slane %v1945, 1
      %v1948 = vsel %vm549, %v1943, %v1947
      %v1949 = vshrl.u32 %v1554, 16
      %v1951 = vshll.u32 %v1554, 16
      %v1953 = vrot.slane %v1951, 1
      %v1954 = vor.u32 %v1949, %v1953
      %v1956 = vshll.u32 %v1555, 16
      %v1958 = vrot.slane %v1956, 1
      %v1959 = vsel %vm549, %v1954, %v1958
      %v1960 = vshrl.u32 %v1556, 16
      %v1962 = vshll.u32 %v1556, 16
      %v1964 = vrot.slane %v1962, 1
      %v1965 = vor.u32 %v1960, %v1964
      %v1967 = vshll.u32 %v1557, 16
      %v1969 = vrot.slane %v1967, 1
      %v1970 = vsel %vm549, %v1965, %v1969
      %v1971 = vshrl.u32 %v1558, 16
      %v1973 = vshll.u32 %v1558, 16
      %v1975 = vrot.slane %v1973, 1
      %v1976 = vor.u32 %v1971, %v1975
      %v1978 = vshll.u32 %v1559, 16
      %v1980 = vrot.slane %v1978, 1
      %v1981 = vsel %vm549, %v1976, %v1980
      %s1982 = scalar_lea.vmem %s3, 16
      %v1983 = vld [vmem:[%s1982] sm:$0xf]
      %v1985 = vsel %vm237, %v1816, 0
      %v1988 = vsel %vm237, %v1827, 0
      %v1991 = vsel %vm237, %v1838, 0
      %v1994 = vsel %vm237, %v1849, 0
      %v1997 = vsel %vm237, %v1860, 0
      %v2000 = vsel %vm237, %v1871, 0
      %v2003 = vsel %vm237, %v1882, 0
      %v2006 = vsel %vm237, %v1893, 0
      %v2009 = vsel %vm237, %v1904, 0
      %v2012 = vsel %vm237, %v1915, 0
      %v2015 = vsel %vm237, %v1926, 0
      %v2018 = vsel %vm237, %v1937, 0
      %v2021 = vsel %vm237, %v1948, 0
      %v2024 = vsel %vm237, %v1959, 0
      %v2027 = vsel %vm237, %v1970, 0
      %v2030 = vsel %vm237, %v1981, 0
      %v2033 = vsel %vm792, %v1983, 0
      %2035 = vmatprep.subr.bf16.mxu0 0
      %2036 = vmatpush1.bf16.msra.mxu0 %v2033
      %2037 = vmatprep.subr.bf16.mxu0 0
      %2038 = vmatpush1.bf16.msra.mxu0 0
      %2039 = vmatprep.subr.bf16.mxu0 0
      %2040 = vmatpush1.bf16.msra.mxu0 0
      %2041 = vmatprep.subr.bf16.mxu0 0
      %2042 = vmatpush1.bf16.msra.mxu0 0
      %2043 = vmatprep.subr.bf16.mxu0 0
      %2044 = vmatpush1.bf16.msra.mxu0 0
      %2045 = vmatprep.subr.bf16.mxu0 0
      %2046 = vmatpush1.bf16.msra.mxu0 0
      %2047 = vmatprep.subr.bf16.mxu0 0
      %2048 = vmatpush1.bf16.msra.mxu0 0
      %2049 = vmatprep.subr.bf16.mxu0 0
      %2050 = vmatpush1.bf16.msra.mxu0 0
      %2051 = vmatprep.subr.bf16.mxu0 0
      %2052 = vmatpush1.bf16.msra.mxu0 0
      %2053 = vmatprep.subr.bf16.mxu0 0
      %2054 = vmatpush1.bf16.msra.mxu0 0
      %2055 = vmatprep.subr.bf16.mxu0 0
      %2056 = vmatpush1.bf16.msra.mxu0 0
      %2057 = vmatprep.subr.bf16.mxu0 0
      %2058 = vmatpush1.bf16.msra.mxu0 0
      %2059 = vmatprep.subr.bf16.mxu0 0
      %2060 = vmatpush1.bf16.msra.mxu0 0
      %2061 = vmatprep.subr.bf16.mxu0 0
      %2062 = vmatpush1.bf16.msra.mxu0 0
      %2063 = vmatprep.subr.bf16.mxu0 0
      %2064 = vmatpush1.bf16.msra.mxu0 0
      %2065 = vmatprep.subr.bf16.mxu0 0
      %2066 = vmatpush1.bf16.msra.mxu0 0
      %2067 = vmatprep.mubr.bf16.mxu0 0
      %2068 = vmatmul.mubr.bf16.gmra.mrb[0].mxu0 %v1985
      %v2069 = vpop.f32.mrb[0].mxu0
      %v2070 = vadd.f32 0.0, %v2069
      %v2071 = vpop.f32.mrb[0].mxu0
      %v2072 = vpop.f32.mrb[0].mxu0
      %v2073 = vadd.f32 0.0, %v2072
      %v2074 = vpop.f32.mrb[0].mxu0
      %2075 = vmatprep.mubr.bf16.mxu0 0
      %2076 = vmatmul.mubr.bf16.gmra.mrb[0].mxu0 %v1988
      %v2077 = vpop.f32.mrb[0].mxu0
      %v2078 = vadd.f32 0.0, %v2077
      %v2079 = vpop.f32.mrb[0].mxu0
      %v2080 = vpop.f32.mrb[0].mxu0
      %v2081 = vadd.f32 0.0, %v2080
      %v2082 = vpop.f32.mrb[0].mxu0
      %2083 = vmatprep.mubr.bf16.mxu0 0
      %2084 = vmatmul.mubr.bf16.gmra.mrb[0].mxu0 %v1991
      %v2085 = vpop.f32.mrb[0].mxu0
      %v2086 = vadd.f32 0.0, %v2085
      %v2087 = vpop.f32.mrb[0].mxu0
      %v2088 = vpop.f32.mrb[0].mxu0
      %v2089 = vadd.f32 0.0, %v2088
      %v2090 = vpop.f32.mrb[0].mxu0
      %2091 = vmatprep.mubr.bf16.mxu0 0
      %2092 = vmatmul.mubr.bf16.gmra.mrb[0].mxu0 %v1994
      %v2093 = vpop.f32.mrb[0].mxu0
      %v2094 = vadd.f32 0.0, %v2093
      %v2095 = vpop.f32.mrb[0].mxu0
      %v2096 = vpop.f32.mrb[0].mxu0
      %v2097 = vadd.f32 0.0, %v2096
      %v2098 = vpop.f32.mrb[0].mxu0
      %2099 = vmatprep.mubr.bf16.mxu0 0
      %2100 = vmatmul.mubr.bf16.gmra.mrb[0].mxu0 %v1997
      %v2101 = vpop.f32.mrb[0].mxu0
      %v2102 = vadd.f32 0.0, %v2101
      %v2103 = vpop.f32.mrb[0].mxu0
      %v2104 = vpop.f32.mrb[0].mxu0
      %v2105 = vadd.f32 0.0, %v2104
      %v2106 = vpop.f32.mrb[0].mxu0
      %2107 = vmatprep.mubr.bf16.mxu0 0
      %2108 = vmatmul.mubr.bf16.gmra.mrb[0].mxu0 %v2000
      %v2109 = vpop.f32.mrb[0].mxu0
      %v2110 = vadd.f32 0.0, %v2109
      %v2111 = vpop.f32.mrb[0].mxu0
      %v2112 = vpop.f32.mrb[0].mxu0
      %v2113 = vadd.f32 0.0, %v2112
      %v2114 = vpop.f32.mrb[0].mxu0
      %2115 = vmatprep.mubr.bf16.mxu0 0
      %2116 = vmatmul.mubr.bf16.gmra.mrb[0].mxu0 %v2003
      %v2117 = vpop.f32.mrb[0].mxu0
      %v2118 = vadd.f32 0.0, %v2117
      %v2119 = vpop.f32.mrb[0].mxu0
      %v2120 = vpop.f32.mrb[0].mxu0
      %v2121 = vadd.f32 0.0, %v2120
      %v2122 = vpop.f32.mrb[0].mxu0
      %2123 = vmatprep.mubr.bf16.mxu0 0
      %2124 = vmatmul.mubr.bf16.gmra.mrb[0].mxu0 %v2006
      %v2125 = vpop.f32.mrb[0].mxu0
      %v2126 = vadd.f32 0.0, %v2125
      %v2127 = vpop.f32.mrb[0].mxu0
      %v2128 = vpop.f32.mrb[0].mxu0
      %v2129 = vadd.f32 0.0, %v2128
      %v2130 = vpop.f32.mrb[0].mxu0
      %2131 = vmatprep.mubr.bf16.mxu0 0
      %2132 = vmatmul.mubr.bf16.gmra.mrb[0].mxu0 %v2009
      %v2133 = vpop.f32.mrb[0].mxu0
      %v2134 = vadd.f32 0.0, %v2133
      %v2135 = vpop.f32.mrb[0].mxu0
      %v2136 = vpop.f32.mrb[0].mxu0
      %v2137 = vadd.f32 0.0, %v2136
      %v2138 = vpop.f32.mrb[0].mxu0
      %2139 = vmatprep.mubr.bf16.mxu0 0
      %2140 = vmatmul.mubr.bf16.gmra.mrb[0].mxu0 %v2012
      %v2141 = vpop.f32.mrb[0].mxu0
      %v2142 = vadd.f32 0.0, %v2141
      %v2143 = vpop.f32.mrb[0].mxu0
      %v2144 = vpop.f32.mrb[0].mxu0
      %v2145 = vadd.f32 0.0, %v2144
      %v2146 = vpop.f32.mrb[0].mxu0
      %2147 = vmatprep.mubr.bf16.mxu0 0
      %2148 = vmatmul.mubr.bf16.gmra.mrb[0].mxu0 %v2015
      %v2149 = vpop.f32.mrb[0].mxu0
      %v2150 = vadd.f32 0.0, %v2149
      %v2151 = vpop.f32.mrb[0].mxu0
      %v2152 = vpop.f32.mrb[0].mxu0
      %v2153 = vadd.f32 0.0, %v2152
      %v2154 = vpop.f32.mrb[0].mxu0
      %2155 = vmatprep.mubr.bf16.mxu0 0
      %2156 = vmatmul.mubr.bf16.gmra.mrb[0].mxu0 %v2018
      %v2157 = vpop.f32.mrb[0].mxu0
      %v2158 = vadd.f32 0.0, %v2157
      %v2159 = vpop.f32.mrb[0].mxu0
      %v2160 = vpop.f32.mrb[0].mxu0
      %v2161 = vadd.f32 0.0, %v2160
      %v2162 = vpop.f32.mrb[0].mxu0
      %2163 = vmatprep.mubr.bf16.mxu0 0
      %2164 = vmatmul.mubr.bf16.gmra.mrb[0].mxu0 %v2021
      %v2165 = vpop.f32.mrb[0].mxu0
      %v2166 = vadd.f32 0.0, %v2165
      %v2167 = vpop.f32.mrb[0].mxu0
      %v2168 = vpop.f32.mrb[0].mxu0
      %v2169 = vadd.f32 0.0, %v2168
      %v2170 = vpop.f32.mrb[0].mxu0
      %2171 = vmatprep.mubr.bf16.mxu0 0
      %2172 = vmatmul.mubr.bf16.gmra.mrb[0].mxu0 %v2024
      %v2173 = vpop.f32.mrb[0].mxu0
      %v2174 = vadd.f32 0.0, %v2173
      %v2175 = vpop.f32.mrb[0].mxu0
      %v2176 = vpop.f32.mrb[0].mxu0
      %v2177 = vadd.f32 0.0, %v2176
      %v2178 = vpop.f32.mrb[0].mxu0
      %2179 = vmatprep.mubr.bf16.mxu0 0
      %2180 = vmatmul.mubr.bf16.gmra.mrb[0].mxu0 %v2027
      %v2181 = vpop.f32.mrb[0].mxu0
      %v2182 = vadd.f32 0.0, %v2181
      %v2183 = vpop.f32.mrb[0].mxu0
      %v2184 = vpop.f32.mrb[0].mxu0
      %v2185 = vadd.f32 0.0, %v2184
      %v2186 = vpop.f32.mrb[0].mxu0
      %2187 = vmatprep.mubr.bf16.mxu0 0
      %2188 = vmatmul.mubr.bf16.gmra.mrb[0].mxu0 %v2030
      %v2189 = vpop.f32.mrb[0].mxu0
      %v2190 = vadd.f32 0.0, %v2189
      %v2191 = vpop.f32.mrb[0].mxu0
      %v2192 = vpop.f32.mrb[0].mxu0
      %v2193 = vadd.f32 0.0, %v2192
      %v2194 = vpop.f32.mrb[0].mxu0
      %2195 = vdwg.mxu0
      %v2196 = vadd.f32 %v1774, %v2070
      %v2197 = vadd.f32 %v1775, %v2073
      %v2198 = vadd.f32 %v1776, %v2078
      %v2199 = vadd.f32 %v1777, %v2081
      %v2200 = vadd.f32 %v1778, %v2086
      %v2201 = vadd.f32 %v1779, %v2089
      %v2202 = vadd.f32 %v1780, %v2094
      %v2203 = vadd.f32 %v1781, %v2097
      %v2204 = vadd.f32 %v1782, %v2102
      %v2205 = vadd.f32 %v1783, %v2105
      %v2206 = vadd.f32 %v1784, %v2110
      %v2207 = vadd.f32 %v1785, %v2113
      %v2208 = vadd.f32 %v1786, %v2118
      %v2209 = vadd.f32 %v1787, %v2121
      %v2210 = vadd.f32 %v1788, %v2126
      %v2211 = vadd.f32 %v1789, %v2129
      %v2212 = vadd.f32 %v1790, %v2134
      %v2213 = vadd.f32 %v1791, %v2137
      %v2214 = vadd.f32 %v1792, %v2142
      %v2215 = vadd.f32 %v1793, %v2145
      %v2216 = vadd.f32 %v1794, %v2150
      %v2217 = vadd.f32 %v1795, %v2153
      %v2218 = vadd.f32 %v1796, %v2158
      %v2219 = vadd.f32 %v1797, %v2161
      %v2220 = vadd.f32 %v1798, %v2166
      %v2221 = vadd.f32 %v1799, %v2169
      %v2222 = vadd.f32 %v1800, %v2174
      %v2223 = vadd.f32 %v1801, %v2177
      %v2224 = vadd.f32 %v1802, %v2182
      %v2225 = vadd.f32 %v1803, %v2185
      %v2226 = vadd.f32 %v1804, %v2190
      %v2227 = vadd.f32 %v1805, %v2193
      %v2260 = vrot.slane %v1528, 1
      %v2261 = vrot.slane %v1529, 1
      %v2262 = vsel %vm1185, %v2260, %v2261
      %v2263 = vrot.slane %v1530, 1
      %v2264 = vrot.slane %v1531, 1
      %v2265 = vsel %vm1185, %v2263, %v2264
      %v2266 = vrot.slane %v1532, 1
      %v2267 = vrot.slane %v1533, 1
      %v2268 = vsel %vm1185, %v2266, %v2267
      %v2269 = vrot.slane %v1534, 1
      %v2270 = vrot.slane %v1535, 1
      %v2271 = vsel %vm1185, %v2269, %v2270
      %v2272 = vrot.slane %v1536, 1
      %v2273 = vrot.slane %v1537, 1
      %v2274 = vsel %vm1185, %v2272, %v2273
      %v2275 = vrot.slane %v1538, 1
      %v2276 = vrot.slane %v1539, 1
      %v2277 = vsel %vm1185, %v2275, %v2276
      %v2278 = vrot.slane %v1540, 1
      %v2279 = vrot.slane %v1541, 1
      %v2280 = vsel %vm1185, %v2278, %v2279
      %v2281 = vrot.slane %v1542, 1
      %v2282 = vrot.slane %v1543, 1
      %v2283 = vsel %vm1185, %v2281, %v2282
      %v2284 = vrot.slane %v1544, 1
      %v2285 = vrot.slane %v1545, 1
      %v2286 = vsel %vm1185, %v2284, %v2285
      %v2287 = vrot.slane %v1546, 1
      %v2288 = vrot.slane %v1547, 1
      %v2289 = vsel %vm1185, %v2287, %v2288
      %v2290 = vrot.slane %v1548, 1
      %v2291 = vrot.slane %v1549, 1
      %v2292 = vsel %vm1185, %v2290, %v2291
      %v2293 = vrot.slane %v1550, 1
      %v2294 = vrot.slane %v1551, 1
      %v2295 = vsel %vm1185, %v2293, %v2294
      %v2296 = vrot.slane %v1552, 1
      %v2297 = vrot.slane %v1553, 1
      %v2298 = vsel %vm1185, %v2296, %v2297
      %v2299 = vrot.slane %v1554, 1
      %v2300 = vrot.slane %v1555, 1
      %v2301 = vsel %vm1185, %v2299, %v2300
      %v2302 = vrot.slane %v1556, 1
      %v2303 = vrot.slane %v1557, 1
      %v2304 = vsel %vm1185, %v2302, %v2303
      %v2305 = vrot.slane %v1558, 1
      %v2306 = vrot.slane %v1559, 1
      %v2307 = vsel %vm1185, %v2305, %v2306
      %s2308 = scalar_lea.vmem %s3, 20
      %v2309 = vld [vmem:[%s2308] sm:$0xf]
      %v2311 = vsel %vm237, %v2262, 0
      %v2314 = vsel %vm237, %v2265, 0
      %v2317 = vsel %vm237, %v2268, 0
      %v2320 = vsel %vm237, %v2271, 0
      %v2323 = vsel %vm237, %v2274, 0
      %v2326 = vsel %vm237, %v2277, 0
      %v2329 = vsel %vm237, %v2280, 0
      %v2332 = vsel %vm237, %v2283, 0
      %v2335 = vsel %vm237, %v2286, 0
      %v2338 = vsel %vm237, %v2289, 0
      %v2341 = vsel %vm237, %v2292, 0
      %v2344 = vsel %vm237, %v2295, 0
      %v2347 = vsel %vm237, %v2298, 0
      %v2350 = vsel %vm237, %v2301, 0
      %v2353 = vsel %vm237, %v2304, 0
      %v2356 = vsel %vm237, %v2307, 0
      %v2359 = vsel %vm792, %v2309, 0
      %2361 = vmatprep.subr.bf16.mxu0 0
      %2362 = vmatpush1.bf16.msra.mxu0 %v2359
      %2363 = vmatprep.subr.bf16.mxu0 0
      %2364 = vmatpush1.bf16.msra.mxu0 0
      %2365 = vmatprep.subr.bf16.mxu0 0
      %2366 = vmatpush1.bf16.msra.mxu0 0
      %2367 = vmatprep.subr.bf16.mxu0 0
      %2368 = vmatpush1.bf16.msra.mxu0 0
      %2369 = vmatprep.subr.bf16.mxu0 0
      %2370 = vmatpush1.bf16.msra.mxu0 0
      %2371 = vmatprep.subr.bf16.mxu0 0
      %2372 = vmatpush1.bf16.msra.mxu0 0
      %2373 = vmatprep.subr.bf16.mxu0 0
      %2374 = vmatpush1.bf16.msra.mxu0 0
      %2375 = vmatprep.subr.bf16.mxu0 0
      %2376 = vmatpush1.bf16.msra.mxu0 0
      %2377 = vmatprep.subr.bf16.mxu0 0
      %2378 = vmatpush1.bf16.msra.mxu0 0
      %2379 = vmatprep.subr.bf16.mxu0 0
      %2380 = vmatpush1.bf16.msra.mxu0 0
      %2381 = vmatprep.subr.bf16.mxu0 0
      %2382 = vmatpush1.bf16.msra.mxu0 0
      %2383 = vmatprep.subr.bf16.mxu0 0
      %2384 = vmatpush1.bf16.msra.mxu0 0
      %2385 = vmatprep.subr.bf16.mxu0 0
      %2386 = vmatpush1.bf16.msra.mxu0 0
      %2387 = vmatprep.subr.bf16.mxu0 0
      %2388 = vmatpush1.bf16.msra.mxu0 0
      %2389 = vmatprep.subr.bf16.mxu0 0
      %2390 = vmatpush1.bf16.msra.mxu0 0
      %2391 = vmatprep.subr.bf16.mxu0 0
      %2392 = vmatpush1.bf16.msra.mxu0 0
      %2393 = vmatprep.mubr.bf16.mxu0 0
      %2394 = vmatmul.mubr.bf16.gmra.mrb[0].mxu0 %v2311
      %v2395 = vpop.f32.mrb[0].mxu0
      %v2396 = vadd.f32 0.0, %v2395
      %v2397 = vpop.f32.mrb[0].mxu0
      %v2398 = vpop.f32.mrb[0].mxu0
      %v2399 = vadd.f32 0.0, %v2398
      %v2400 = vpop.f32.mrb[0].mxu0
      %2401 = vmatprep.mubr.bf16.mxu0 0
      %2402 = vmatmul.mubr.bf16.gmra.mrb[0].mxu0 %v2314
      %v2403 = vpop.f32.mrb[0].mxu0
      %v2404 = vadd.f32 0.0, %v2403
      %v2405 = vpop.f32.mrb[0].mxu0
      %v2406 = vpop.f32.mrb[0].mxu0
      %v2407 = vadd.f32 0.0, %v2406
      %v2408 = vpop.f32.mrb[0].mxu0
      %2409 = vmatprep.mubr.bf16.mxu0 0
      %2410 = vmatmul.mubr.bf16.gmra.mrb[0].mxu0 %v2317
      %v2411 = vpop.f32.mrb[0].mxu0
      %v2412 = vadd.f32 0.0, %v2411
      %v2413 = vpop.f32.mrb[0].mxu0
      %v2414 = vpop.f32.mrb[0].mxu0
      %v2415 = vadd.f32 0.0, %v2414
      %v2416 = vpop.f32.mrb[0].mxu0
      %2417 = vmatprep.mubr.bf16.mxu0 0
      %2418 = vmatmul.mubr.bf16.gmra.mrb[0].mxu0 %v2320
      %v2419 = vpop.f32.mrb[0].mxu0
      %v2420 = vadd.f32 0.0, %v2419
      %v2421 = vpop.f32.mrb[0].mxu0
      %v2422 = vpop.f32.mrb[0].mxu0
      %v2423 = vadd.f32 0.0, %v2422
      %v2424 = vpop.f32.mrb[0].mxu0
      %2425 = vmatprep.mubr.bf16.mxu0 0
      %2426 = vmatmul.mubr.bf16.gmra.mrb[0].mxu0 %v2323
      %v2427 = vpop.f32.mrb[0].mxu0
      %v2428 = vadd.f32 0.0, %v2427
      %v2429 = vpop.f32.mrb[0].mxu0
      %v2430 = vpop.f32.mrb[0].mxu0
      %v2431 = vadd.f32 0.0, %v2430
      %v2432 = vpop.f32.mrb[0].mxu0
      %2433 = vmatprep.mubr.bf16.mxu0 0
      %2434 = vmatmul.mubr.bf16.gmra.mrb[0].mxu0 %v2326
      %v2435 = vpop.f32.mrb[0].mxu0
      %v2436 = vadd.f32 0.0, %v2435
      %v2437 = vpop.f32.mrb[0].mxu0
      %v2438 = vpop.f32.mrb[0].mxu0
      %v2439 = vadd.f32 0.0, %v2438
      %v2440 = vpop.f32.mrb[0].mxu0
      %2441 = vmatprep.mubr.bf16.mxu0 0
      %2442 = vmatmul.mubr.bf16.gmra.mrb[0].mxu0 %v2329
      %v2443 = vpop.f32.mrb[0].mxu0
      %v2444 = vadd.f32 0.0, %v2443
      %v2445 = vpop.f32.mrb[0].mxu0
      %v2446 = vpop.f32.mrb[0].mxu0
      %v2447 = vadd.f32 0.0, %v2446
      %v2448 = vpop.f32.mrb[0].mxu0
      %2449 = vmatprep.mubr.bf16.mxu0 0
      %2450 = vmatmul.mubr.bf16.gmra.mrb[0].mxu0 %v2332
      %v2451 = vpop.f32.mrb[0].mxu0
      %v2452 = vadd.f32 0.0, %v2451
      %v2453 = vpop.f32.mrb[0].mxu0
      %v2454 = vpop.f32.mrb[0].mxu0
      %v2455 = vadd.f32 0.0, %v2454
      %v2456 = vpop.f32.mrb[0].mxu0
      %2457 = vmatprep.mubr.bf16.mxu0 0
      %2458 = vmatmul.mubr.bf16.gmra.mrb[0].mxu0 %v2335
      %v2459 = vpop.f32.mrb[0].mxu0
      %v2460 = vadd.f32 0.0, %v2459
      %v2461 = vpop.f32.mrb[0].mxu0
      %v2462 = vpop.f32.mrb[0].mxu0
      %v2463 = vadd.f32 0.0, %v2462
      %v2464 = vpop.f32.mrb[0].mxu0
      %2465 = vmatprep.mubr.bf16.mxu0 0
      %2466 = vmatmul.mubr.bf16.gmra.mrb[0].mxu0 %v2338
      %v2467 = vpop.f32.mrb[0].mxu0
      %v2468 = vadd.f32 0.0, %v2467
      %v2469 = vpop.f32.mrb[0].mxu0
      %v2470 = vpop.f32.mrb[0].mxu0
      %v2471 = vadd.f32 0.0, %v2470
      %v2472 = vpop.f32.mrb[0].mxu0
      %2473 = vmatprep.mubr.bf16.mxu0 0
      %2474 = vmatmul.mubr.bf16.gmra.mrb[0].mxu0 %v2341
      %v2475 = vpop.f32.mrb[0].mxu0
      %v2476 = vadd.f32 0.0, %v2475
      %v2477 = vpop.f32.mrb[0].mxu0
      %v2478 = vpop.f32.mrb[0].mxu0
      %v2479 = vadd.f32 0.0, %v2478
      %v2480 = vpop.f32.mrb[0].mxu0
      %2481 = vmatprep.mubr.bf16.mxu0 0
      %2482 = vmatmul.mubr.bf16.gmra.mrb[0].mxu0 %v2344
      %v2483 = vpop.f32.mrb[0].mxu0
      %v2484 = vadd.f32 0.0, %v2483
      %v2485 = vpop.f32.mrb[0].mxu0
      %v2486 = vpop.f32.mrb[0].mxu0
      %v2487 = vadd.f32 0.0, %v2486
      %v2488 = vpop.f32.mrb[0].mxu0
      %2489 = vmatprep.mubr.bf16.mxu0 0
      %2490 = vmatmul.mubr.bf16.gmra.mrb[0].mxu0 %v2347
      %v2491 = vpop.f32.mrb[0].mxu0
      %v2492 = vadd.f32 0.0, %v2491
      %v2493 = vpop.f32.mrb[0].mxu0
      %v2494 = vpop.f32.mrb[0].mxu0
      %v2495 = vadd.f32 0.0, %v2494
      %v2496 = vpop.f32.mrb[0].mxu0
      %2497 = vmatprep.mubr.bf16.mxu0 0
      %2498 = vmatmul.mubr.bf16.gmra.mrb[0].mxu0 %v2350
      %v2499 = vpop.f32.mrb[0].mxu0
      %v2500 = vadd.f32 0.0, %v2499
      %v2501 = vpop.f32.mrb[0].mxu0
      %v2502 = vpop.f32.mrb[0].mxu0
      %v2503 = vadd.f32 0.0, %v2502
      %v2504 = vpop.f32.mrb[0].mxu0
      %2505 = vmatprep.mubr.bf16.mxu0 0
      %2506 = vmatmul.mubr.bf16.gmra.mrb[0].mxu0 %v2353
      %v2507 = vpop.f32.mrb[0].mxu0
      %v2508 = vadd.f32 0.0, %v2507
      %v2509 = vpop.f32.mrb[0].mxu0
      %v2510 = vpop.f32.mrb[0].mxu0
      %v2511 = vadd.f32 0.0, %v2510
      %v2512 = vpop.f32.mrb[0].mxu0
      %2513 = vmatprep.mubr.bf16.mxu0 0
      %2514 = vmatmul.mubr.bf16.gmra.mrb[0].mxu0 %v2356
      %v2515 = vpop.f32.mrb[0].mxu0
      %v2516 = vadd.f32 0.0, %v2515
      %v2517 = vpop.f32.mrb[0].mxu0
      %v2518 = vpop.f32.mrb[0].mxu0
      %v2519 = vadd.f32 0.0, %v2518
      %v2520 = vpop.f32.mrb[0].mxu0
      %2521 = vdwg.mxu0
      %v2522 = vadd.f32 %v2196, %v2396
      %v2523 = vadd.f32 %v2197, %v2399
      %v2524 = vadd.f32 %v2198, %v2404
      %v2525 = vadd.f32 %v2199, %v2407
      %v2526 = vadd.f32 %v2200, %v2412
      %v2527 = vadd.f32 %v2201, %v2415
      %v2528 = vadd.f32 %v2202, %v2420
      %v2529 = vadd.f32 %v2203, %v2423
      %v2530 = vadd.f32 %v2204, %v2428
      %v2531 = vadd.f32 %v2205, %v2431
      %v2532 = vadd.f32 %v2206, %v2436
      %v2533 = vadd.f32 %v2207, %v2439
      %v2534 = vadd.f32 %v2208, %v2444
      %v2535 = vadd.f32 %v2209, %v2447
      %v2536 = vadd.f32 %v2210, %v2452
      %v2537 = vadd.f32 %v2211, %v2455
      %v2538 = vadd.f32 %v2212, %v2460
      %v2539 = vadd.f32 %v2213, %v2463
      %v2540 = vadd.f32 %v2214, %v2468
      %v2541 = vadd.f32 %v2215, %v2471
      %v2542 = vadd.f32 %v2216, %v2476
      %v2543 = vadd.f32 %v2217, %v2479
      %v2544 = vadd.f32 %v2218, %v2484
      %v2545 = vadd.f32 %v2219, %v2487
      %v2546 = vadd.f32 %v2220, %v2492
      %v2547 = vadd.f32 %v2221, %v2495
      %v2548 = vadd.f32 %v2222, %v2500
      %v2549 = vadd.f32 %v2223, %v2503
      %v2550 = vadd.f32 %v2224, %v2508
      %v2551 = vadd.f32 %v2225, %v2511
      %v2552 = vadd.f32 %v2226, %v2516
      %v2553 = vadd.f32 %v2227, %v2519
      %s2554 = scalar_lea.vmem [#allocation2], 48
      %v2555 = vld [vmem:[%s2554] sm:$0xff]
      %v2556 = vld [vmem:[%s2554 + $0x8] sm:$0xff]
      %v2557 = vld [vmem:[%s2554 + $0x10] sm:$0x3]
      %v2558 = vld [vmem:[%s2554 + $0x18] sm:$0xff]
      %v2559 = vld [vmem:[%s2554 + $0x20] sm:$0xff]
      %v2560 = vld [vmem:[%s2554 + $0x28] sm:$0x3]
      %v2561 = vld [vmem:[%s2554 + $0x30] sm:$0xff]
      %v2562 = vld [vmem:[%s2554 + $0x38] sm:$0xff]
      %v2563 = vld [vmem:[%s2554 + $0x40] sm:$0x3]
      %v2564 = vld [vmem:[%s2554 + $0x48] sm:$0xff]
      %v2565 = vld [vmem:[%s2554 + $0x50] sm:$0xff]
      %v2566 = vld [vmem:[%s2554 + $0x58] sm:$0x3]
      %v2567 = vld [vmem:[%s2554 + $0x60] sm:$0xff]
      %v2568 = vld [vmem:[%s2554 + $0x68] sm:$0xff]
      %v2569 = vld [vmem:[%s2554 + $0x70] sm:$0x3]
      %v2570 = vld [vmem:[%s2554 + $0x78] sm:$0xff]
      %v2571 = vld [vmem:[%s2554 + $0x80] sm:$0xff]
      %v2572 = vld [vmem:[%s2554 + $0x88] sm:$0x3]
      %v2573 = vld [vmem:[%s2554 + $0x90] sm:$0xff]
      %v2574 = vld [vmem:[%s2554 + $0x98] sm:$0xff]
      %v2575 = vld [vmem:[%s2554 + $0xa0] sm:$0x3]
      %v2576 = vld [vmem:[%s2554 + $0xa8] sm:$0xff]
      %v2577 = vld [vmem:[%s2554 + $0xb0] sm:$0xff]
      %v2578 = vld [vmem:[%s2554 + $0xb8] sm:$0x3]
      %v2579 = vld [vmem:[%s2554 + $0xc0] sm:$0xff]
      %v2580 = vld [vmem:[%s2554 + $0xc8] sm:$0xff]
      %v2581 = vld [vmem:[%s2554 + $0xd0] sm:$0x3]
      %v2582 = vld [vmem:[%s2554 + $0xd8] sm:$0xff]
      %v2583 = vld [vmem:[%s2554 + $0xe0] sm:$0xff]
      %v2584 = vld [vmem:[%s2554 + $0xe8] sm:$0x3]
      %v2585 = vld [vmem:[%s2554 + $0xf0] sm:$0xff]
      %v2586 = vld [vmem:[%s2554 + $0xf8] sm:$0xff]
      %v2587 = vld [vmem:[%s2554 + $0x100] sm:$0x3]
      %v2588 = vld [vmem:[%s2554 + $0x108] sm:$0xff]
      %v2589 = vld [vmem:[%s2554 + $0x110] sm:$0xff]
      %v2590 = vld [vmem:[%s2554 + $0x118] sm:$0x3]
      %v2591 = vld [vmem:[%s2554 + $0x120] sm:$0xff]
      %v2592 = vld [vmem:[%s2554 + $0x128] sm:$0xff]
      %v2593 = vld [vmem:[%s2554 + $0x130] sm:$0x3]
      %v2594 = vld [vmem:[%s2554 + $0x138] sm:$0xff]
      %v2595 = vld [vmem:[%s2554 + $0x140] sm:$0xff]
      %v2596 = vld [vmem:[%s2554 + $0x148] sm:$0x3]
      %v2597 = vld [vmem:[%s2554 + $0x150] sm:$0xff]
      %v2598 = vld [vmem:[%s2554 + $0x158] sm:$0xff]
      %v2599 = vld [vmem:[%s2554 + $0x160] sm:$0x3]
      %v2600 = vld [vmem:[%s2554 + $0x168] sm:$0xff]
      %v2601 = vld [vmem:[%s2554 + $0x170] sm:$0xff]
      %v2602 = vld [vmem:[%s2554 + $0x178] sm:$0x3]
      %v2603 = vpack.c.bf16 %v2556, %v2555
      %v2604 = vpack.c.bf16 %v2557, %v2557
      %v2605 = vpack.c.bf16 %v2559, %v2558
      %v2606 = vpack.c.bf16 %v2560, %v2560
      %v2607 = vpack.c.bf16 %v2562, %v2561
      %v2608 = vpack.c.bf16 %v2563, %v2563
      %v2609 = vpack.c.bf16 %v2565, %v2564
      %v2610 = vpack.c.bf16 %v2566, %v2566
      %v2611 = vpack.c.bf16 %v2568, %v2567
      %v2612 = vpack.c.bf16 %v2569, %v2569
      %v2613 = vpack.c.bf16 %v2571, %v2570
      %v2614 = vpack.c.bf16 %v2572, %v2572
      %v2615 = vpack.c.bf16 %v2574, %v2573
      %v2616 = vpack.c.bf16 %v2575, %v2575
      %v2617 = vpack.c.bf16 %v2577, %v2576
      %v2618 = vpack.c.bf16 %v2578, %v2578
      %v2619 = vpack.c.bf16 %v2580, %v2579
      %v2620 = vpack.c.bf16 %v2581, %v2581
      %v2621 = vpack.c.bf16 %v2583, %v2582
      %v2622 = vpack.c.bf16 %v2584, %v2584
      %v2623 = vpack.c.bf16 %v2586, %v2585
      %v2624 = vpack.c.bf16 %v2587, %v2587
      %v2625 = vpack.c.bf16 %v2589, %v2588
      %v2626 = vpack.c.bf16 %v2590, %v2590
      %v2627 = vpack.c.bf16 %v2592, %v2591
      %v2628 = vpack.c.bf16 %v2593, %v2593
      %v2629 = vpack.c.bf16 %v2595, %v2594
      %v2630 = vpack.c.bf16 %v2596, %v2596
      %v2631 = vpack.c.bf16 %v2598, %v2597
      %v2632 = vpack.c.bf16 %v2599, %v2599
      %v2633 = vpack.c.bf16 %v2601, %v2600
      %v2634 = vpack.c.bf16 %v2602, %v2602
      %s2635 = scalar_lea.vmem %s3, 24
      %v2636 = vld [vmem:[%s2635] sm:$0xf]
      %v2638 = vsel %vm237, %v2603, 0
      %v2641 = vsel %vm237, %v2605, 0
      %v2644 = vsel %vm237, %v2607, 0
      %v2647 = vsel %vm237, %v2609, 0
      %v2650 = vsel %vm237, %v2611, 0
      %v2653 = vsel %vm237, %v2613, 0
      %v2656 = vsel %vm237, %v2615, 0
      %v2659 = vsel %vm237, %v2617, 0
      %v2662 = vsel %vm237, %v2619, 0
      %v2665 = vsel %vm237, %v2621, 0
      %v2668 = vsel %vm237, %v2623, 0
      %v2671 = vsel %vm237, %v2625, 0
      %v2674 = vsel %vm237, %v2627, 0
      %v2677 = vsel %vm237, %v2629, 0
      %v2680 = vsel %vm237, %v2631, 0
      %v2683 = vsel %vm237, %v2633, 0
      %v2686 = vsel %vm792, %v2636, 0
      %2688 = vmatprep.subr.bf16.mxu0 0
      %2689 = vmatpush1.bf16.msra.mxu0 %v2686
      %2690 = vmatprep.subr.bf16.mxu0 0
      %2691 = vmatpush1.bf16.msra.mxu0 0
      %2692 = vmatprep.subr.bf16.mxu0 0
      %2693 = vmatpush1.bf16.msra.mxu0 0
      %2694 = vmatprep.subr.bf16.mxu0 0
      %2695 = vmatpush1.bf16.msra.mxu0 0
      %2696 = vmatprep.subr.bf16.mxu0 0
      %2697 = vmatpush1.bf16.msra.mxu0 0
      %2698 = vmatprep.subr.bf16.mxu0 0
      %2699 = vmatpush1.bf16.msra.mxu0 0
      %2700 = vmatprep.subr.bf16.mxu0 0
      %2701 = vmatpush1.bf16.msra.mxu0 0
      %2702 = vmatprep.subr.bf16.mxu0 0
      %2703 = vmatpush1.bf16.msra.mxu0 0
      %2704 = vmatprep.subr.bf16.mxu0 0
      %2705 = vmatpush1.bf16.msra.mxu0 0
      %2706 = vmatprep.subr.bf16.mxu0 0
      %2707 = vmatpush1.bf16.msra.mxu0 0
      %2708 = vmatprep.subr.bf16.mxu0 0
      %2709 = vmatpush1.bf16.msra.mxu0 0
      %2710 = vmatprep.subr.bf16.mxu0 0
      %2711 = vmatpush1.bf16.msra.mxu0 0
      %2712 = vmatprep.subr.bf16.mxu0 0
      %2713 = vmatpush1.bf16.msra.mxu0 0
      %2714 = vmatprep.subr.bf16.mxu0 0
      %2715 = vmatpush1.bf16.msra.mxu0 0
      %2716 = vmatprep.subr.bf16.mxu0 0
      %2717 = vmatpush1.bf16.msra.mxu0 0
      %2718 = vmatprep.subr.bf16.mxu0 0
      %2719 = vmatpush1.bf16.msra.mxu0 0
      %2720 = vmatprep.mubr.bf16.mxu0 0
      %2721 = vmatmul.mubr.bf16.gmra.mrb[0].mxu0 %v2638
      %v2722 = vpop.f32.mrb[0].mxu0
      %v2723 = vadd.f32 0.0, %v2722
      %v2724 = vpop.f32.mrb[0].mxu0
      %v2725 = vpop.f32.mrb[0].mxu0
      %v2726 = vadd.f32 0.0, %v2725
      %v2727 = vpop.f32.mrb[0].mxu0
      %2728 = vmatprep.mubr.bf16.mxu0 0
      %2729 = vmatmul.mubr.bf16.gmra.mrb[0].mxu0 %v2641
      %v2730 = vpop.f32.mrb[0].mxu0
      %v2731 = vadd.f32 0.0, %v2730
      %v2732 = vpop.f32.mrb[0].mxu0
      %v2733 = vpop.f32.mrb[0].mxu0
      %v2734 = vadd.f32 0.0, %v2733
      %v2735 = vpop.f32.mrb[0].mxu0
      %2736 = vmatprep.mubr.bf16.mxu0 0
      %2737 = vmatmul.mubr.bf16.gmra.mrb[0].mxu0 %v2644
      %v2738 = vpop.f32.mrb[0].mxu0
      %v2739 = vadd.f32 0.0, %v2738
      %v2740 = vpop.f32.mrb[0].mxu0
      %v2741 = vpop.f32.mrb[0].mxu0
      %v2742 = vadd.f32 0.0, %v2741
      %v2743 = vpop.f32.mrb[0].mxu0
      %2744 = vmatprep.mubr.bf16.mxu0 0
      %2745 = vmatmul.mubr.bf16.gmra.mrb[0].mxu0 %v2647
      %v2746 = vpop.f32.mrb[0].mxu0
      %v2747 = vadd.f32 0.0, %v2746
      %v2748 = vpop.f32.mrb[0].mxu0
      %v2749 = vpop.f32.mrb[0].mxu0
      %v2750 = vadd.f32 0.0, %v2749
      %v2751 = vpop.f32.mrb[0].mxu0
      %2752 = vmatprep.mubr.bf16.mxu0 0
      %2753 = vmatmul.mubr.bf16.gmra.mrb[0].mxu0 %v2650
      %v2754 = vpop.f32.mrb[0].mxu0
      %v2755 = vadd.f32 0.0, %v2754
      %v2756 = vpop.f32.mrb[0].mxu0
      %v2757 = vpop.f32.mrb[0].mxu0
      %v2758 = vadd.f32 0.0, %v2757
      %v2759 = vpop.f32.mrb[0].mxu0
      %2760 = vmatprep.mubr.bf16.mxu0 0
      %2761 = vmatmul.mubr.bf16.gmra.mrb[0].mxu0 %v2653
      %v2762 = vpop.f32.mrb[0].mxu0
      %v2763 = vadd.f32 0.0, %v2762
      %v2764 = vpop.f32.mrb[0].mxu0
      %v2765 = vpop.f32.mrb[0].mxu0
      %v2766 = vadd.f32 0.0, %v2765
      %v2767 = vpop.f32.mrb[0].mxu0
      %2768 = vmatprep.mubr.bf16.mxu0 0
      %2769 = vmatmul.mubr.bf16.gmra.mrb[0].mxu0 %v2656
      %v2770 = vpop.f32.mrb[0].mxu0
      %v2771 = vadd.f32 0.0, %v2770
      %v2772 = vpop.f32.mrb[0].mxu0
      %v2773 = vpop.f32.mrb[0].mxu0
      %v2774 = vadd.f32 0.0, %v2773
      %v2775 = vpop.f32.mrb[0].mxu0
      %2776 = vmatprep.mubr.bf16.mxu0 0
      %2777 = vmatmul.mubr.bf16.gmra.mrb[0].mxu0 %v2659
      %v2778 = vpop.f32.mrb[0].mxu0
      %v2779 = vadd.f32 0.0, %v2778
      %v2780 = vpop.f32.mrb[0].mxu0
      %v2781 = vpop.f32.mrb[0].mxu0
      %v2782 = vadd.f32 0.0, %v2781
      %v2783 = vpop.f32.mrb[0].mxu0
      %2784 = vmatprep.mubr.bf16.mxu0 0
      %2785 = vmatmul.mubr.bf16.gmra.mrb[0].mxu0 %v2662
      %v2786 = vpop.f32.mrb[0].mxu0
      %v2787 = vadd.f32 0.0, %v2786
      %v2788 = vpop.f32.mrb[0].mxu0
      %v2789 = vpop.f32.mrb[0].mxu0
      %v2790 = vadd.f32 0.0, %v2789
      %v2791 = vpop.f32.mrb[0].mxu0
      %2792 = vmatprep.mubr.bf16.mxu0 0
      %2793 = vmatmul.mubr.bf16.gmra.mrb[0].mxu0 %v2665
      %v2794 = vpop.f32.mrb[0].mxu0
      %v2795 = vadd.f32 0.0, %v2794
      %v2796 = vpop.f32.mrb[0].mxu0
      %v2797 = vpop.f32.mrb[0].mxu0
      %v2798 = vadd.f32 0.0, %v2797
      %v2799 = vpop.f32.mrb[0].mxu0
      %2800 = vmatprep.mubr.bf16.mxu0 0
      %2801 = vmatmul.mubr.bf16.gmra.mrb[0].mxu0 %v2668
      %v2802 = vpop.f32.mrb[0].mxu0
      %v2803 = vadd.f32 0.0, %v2802
      %v2804 = vpop.f32.mrb[0].mxu0
      %v2805 = vpop.f32.mrb[0].mxu0
      %v2806 = vadd.f32 0.0, %v2805
      %v2807 = vpop.f32.mrb[0].mxu0
      %2808 = vmatprep.mubr.bf16.mxu0 0
      %2809 = vmatmul.mubr.bf16.gmra.mrb[0].mxu0 %v2671
      %v2810 = vpop.f32.mrb[0].mxu0
      %v2811 = vadd.f32 0.0, %v2810
      %v2812 = vpop.f32.mrb[0].mxu0
      %v2813 = vpop.f32.mrb[0].mxu0
      %v2814 = vadd.f32 0.0, %v2813
      %v2815 = vpop.f32.mrb[0].mxu0
      %2816 = vmatprep.mubr.bf16.mxu0 0
      %2817 = vmatmul.mubr.bf16.gmra.mrb[0].mxu0 %v2674
      %v2818 = vpop.f32.mrb[0].mxu0
      %v2819 = vadd.f32 0.0, %v2818
      %v2820 = vpop.f32.mrb[0].mxu0
      %v2821 = vpop.f32.mrb[0].mxu0
      %v2822 = vadd.f32 0.0, %v2821
      %v2823 = vpop.f32.mrb[0].mxu0
      %2824 = vmatprep.mubr.bf16.mxu0 0
      %2825 = vmatmul.mubr.bf16.gmra.mrb[0].mxu0 %v2677
      %v2826 = vpop.f32.mrb[0].mxu0
      %v2827 = vadd.f32 0.0, %v2826
      %v2828 = vpop.f32.mrb[0].mxu0
      %v2829 = vpop.f32.mrb[0].mxu0
      %v2830 = vadd.f32 0.0, %v2829
      %v2831 = vpop.f32.mrb[0].mxu0
      %2832 = vmatprep.mubr.bf16.mxu0 0
      %2833 = vmatmul.mubr.bf16.gmra.mrb[0].mxu0 %v2680
      %v2834 = vpop.f32.mrb[0].mxu0
      %v2835 = vadd.f32 0.0, %v2834
      %v2836 = vpop.f32.mrb[0].mxu0
      %v2837 = vpop.f32.mrb[0].mxu0
      %v2838 = vadd.f32 0.0, %v2837
      %v2839 = vpop.f32.mrb[0].mxu0
      %2840 = vmatprep.mubr.bf16.mxu0 0
      %2841 = vmatmul.mubr.bf16.gmra.mrb[0].mxu0 %v2683
      %v2842 = vpop.f32.mrb[0].mxu0
      %v2843 = vadd.f32 0.0, %v2842
      %v2844 = vpop.f32.mrb[0].mxu0
      %v2845 = vpop.f32.mrb[0].mxu0
      %v2846 = vadd.f32 0.0, %v2845
      %v2847 = vpop.f32.mrb[0].mxu0
      %2848 = vdwg.mxu0
      %v2849 = vadd.f32 %v2522, %v2723
      %v2850 = vadd.f32 %v2523, %v2726
      %v2851 = vadd.f32 %v2524, %v2731
      %v2852 = vadd.f32 %v2525, %v2734
      %v2853 = vadd.f32 %v2526, %v2739
      %v2854 = vadd.f32 %v2527, %v2742
      %v2855 = vadd.f32 %v2528, %v2747
      %v2856 = vadd.f32 %v2529, %v2750
      %v2857 = vadd.f32 %v2530, %v2755
      %v2858 = vadd.f32 %v2531, %v2758
      %v2859 = vadd.f32 %v2532, %v2763
      %v2860 = vadd.f32 %v2533, %v2766
      %v2861 = vadd.f32 %v2534, %v2771
      %v2862 = vadd.f32 %v2535, %v2774
      %v2863 = vadd.f32 %v2536, %v2779
      %v2864 = vadd.f32 %v2537, %v2782
      %v2865 = vadd.f32 %v2538, %v2787
      %v2866 = vadd.f32 %v2539, %v2790
      %v2867 = vadd.f32 %v2540, %v2795
      %v2868 = vadd.f32 %v2541, %v2798
      %v2869 = vadd.f32 %v2542, %v2803
      %v2870 = vadd.f32 %v2543, %v2806
      %v2871 = vadd.f32 %v2544, %v2811
      %v2872 = vadd.f32 %v2545, %v2814
      %v2873 = vadd.f32 %v2546, %v2819
      %v2874 = vadd.f32 %v2547, %v2822
      %v2875 = vadd.f32 %v2548, %v2827
      %v2876 = vadd.f32 %v2549, %v2830
      %v2877 = vadd.f32 %v2550, %v2835
      %v2878 = vadd.f32 %v2551, %v2838
      %v2879 = vadd.f32 %v2552, %v2843
      %v2880 = vadd.f32 %v2553, %v2846
      %v2881 = vshrl.u32 %v2603, 16
      %v2883 = vshll.u32 %v2603, 16
      %v2885 = vrot.slane %v2883, 1
      %v2886 = vor.u32 %v2881, %v2885
      %v2888 = vshll.u32 %v2604, 16
      %v2890 = vrot.slane %v2888, 1
      %v2891 = vsel %vm549, %v2886, %v2890
      %v2892 = vshrl.u32 %v2605, 16
      %v2894 = vshll.u32 %v2605, 16
      %v2896 = vrot.slane %v2894, 1
      %v2897 = vor.u32 %v2892, %v2896
      %v2899 = vshll.u32 %v2606, 16
      %v2901 = vrot.slane %v2899, 1
      %v2902 = vsel %vm549, %v2897, %v2901
      %v2903 = vshrl.u32 %v2607, 16
      %v2905 = vshll.u32 %v2607, 16
      %v2907 = vrot.slane %v2905, 1
      %v2908 = vor.u32 %v2903, %v2907
      %v2910 = vshll.u32 %v2608, 16
      %v2912 = vrot.slane %v2910, 1
      %v2913 = vsel %vm549, %v2908, %v2912
      %v2914 = vshrl.u32 %v2609, 16
      %v2916 = vshll.u32 %v2609, 16
      %v2918 = vrot.slane %v2916, 1
      %v2919 = vor.u32 %v2914, %v2918
      %v2921 = vshll.u32 %v2610, 16
      %v2923 = vrot.slane %v2921, 1
      %v2924 = vsel %vm549, %v2919, %v2923
      %v2925 = vshrl.u32 %v2611, 16
      %v2927 = vshll.u32 %v2611, 16
      %v2929 = vrot.slane %v2927, 1
      %v2930 = vor.u32 %v2925, %v2929
      %v2932 = vshll.u32 %v2612, 16
      %v2934 = vrot.slane %v2932, 1
      %v2935 = vsel %vm549, %v2930, %v2934
      %v2936 = vshrl.u32 %v2613, 16
      %v2938 = vshll.u32 %v2613, 16
      %v2940 = vrot.slane %v2938, 1
      %v2941 = vor.u32 %v2936, %v2940
      %v2943 = vshll.u32 %v2614, 16
      %v2945 = vrot.slane %v2943, 1
      %v2946 = vsel %vm549, %v2941, %v2945
      %v2947 = vshrl.u32 %v2615, 16
      %v2949 = vshll.u32 %v2615, 16
      %v2951 = vrot.slane %v2949, 1
      %v2952 = vor.u32 %v2947, %v2951
      %v2954 = vshll.u32 %v2616, 16
      %v2956 = vrot.slane %v2954, 1
      %v2957 = vsel %vm549, %v2952, %v2956
      %v2958 = vshrl.u32 %v2617, 16
      %v2960 = vshll.u32 %v2617, 16
      %v2962 = vrot.slane %v2960, 1
      %v2963 = vor.u32 %v2958, %v2962
      %v2965 = vshll.u32 %v2618, 16
      %v2967 = vrot.slane %v2965, 1
      %v2968 = vsel %vm549, %v2963, %v2967
      %v2969 = vshrl.u32 %v2619, 16
      %v2971 = vshll.u32 %v2619, 16
      %v2973 = vrot.slane %v2971, 1
      %v2974 = vor.u32 %v2969, %v2973
      %v2976 = vshll.u32 %v2620, 16
      %v2978 = vrot.slane %v2976, 1
      %v2979 = vsel %vm549, %v2974, %v2978
      %v2980 = vshrl.u32 %v2621, 16
      %v2982 = vshll.u32 %v2621, 16
      %v2984 = vrot.slane %v2982, 1
      %v2985 = vor.u32 %v2980, %v2984
      %v2987 = vshll.u32 %v2622, 16
      %v2989 = vrot.slane %v2987, 1
      %v2990 = vsel %vm549, %v2985, %v2989
      %v2991 = vshrl.u32 %v2623, 16
      %v2993 = vshll.u32 %v2623, 16
      %v2995 = vrot.slane %v2993, 1
      %v2996 = vor.u32 %v2991, %v2995
      %v2998 = vshll.u32 %v2624, 16
      %v3000 = vrot.slane %v2998, 1
      %v3001 = vsel %vm549, %v2996, %v3000
      %v3002 = vshrl.u32 %v2625, 16
      %v3004 = vshll.u32 %v2625, 16
      %v3006 = vrot.slane %v3004, 1
      %v3007 = vor.u32 %v3002, %v3006
      %v3009 = vshll.u32 %v2626, 16
      %v3011 = vrot.slane %v3009, 1
      %v3012 = vsel %vm549, %v3007, %v3011
      %v3013 = vshrl.u32 %v2627, 16
      %v3015 = vshll.u32 %v2627, 16
      %v3017 = vrot.slane %v3015, 1
      %v3018 = vor.u32 %v3013, %v3017
      %v3020 = vshll.u32 %v2628, 16
      %v3022 = vrot.slane %v3020, 1
      %v3023 = vsel %vm549, %v3018, %v3022
      %v3024 = vshrl.u32 %v2629, 16
      %v3026 = vshll.u32 %v2629, 16
      %v3028 = vrot.slane %v3026, 1
      %v3029 = vor.u32 %v3024, %v3028
      %v3031 = vshll.u32 %v2630, 16
      %v3033 = vrot.slane %v3031, 1
      %v3034 = vsel %vm549, %v3029, %v3033
      %v3035 = vshrl.u32 %v2631, 16
      %v3037 = vshll.u32 %v2631, 16
      %v3039 = vrot.slane %v3037, 1
      %v3040 = vor.u32 %v3035, %v3039
      %v3042 = vshll.u32 %v2632, 16
      %v3044 = vrot.slane %v3042, 1
      %v3045 = vsel %vm549, %v3040, %v3044
      %v3046 = vshrl.u32 %v2633, 16
      %v3048 = vshll.u32 %v2633, 16
      %v3050 = vrot.slane %v3048, 1
      %v3051 = vor.u32 %v3046, %v3050
      %v3053 = vshll.u32 %v2634, 16
      %v3055 = vrot.slane %v3053, 1
      %v3056 = vsel %vm549, %v3051, %v3055
      %s3057 = scalar_lea.vmem %s3, 28
      %v3058 = vld [vmem:[%s3057] sm:$0xf]
      %v3060 = vsel %vm237, %v2891, 0
      %v3063 = vsel %vm237, %v2902, 0
      %v3066 = vsel %vm237, %v2913, 0
      %v3069 = vsel %vm237, %v2924, 0
      %v3072 = vsel %vm237, %v2935, 0
      %v3075 = vsel %vm237, %v2946, 0
      %v3078 = vsel %vm237, %v2957, 0
      %v3081 = vsel %vm237, %v2968, 0
      %v3084 = vsel %vm237, %v2979, 0
      %v3087 = vsel %vm237, %v2990, 0
      %v3090 = vsel %vm237, %v3001, 0
      %v3093 = vsel %vm237, %v3012, 0
      %v3096 = vsel %vm237, %v3023, 0
      %v3099 = vsel %vm237, %v3034, 0
      %v3102 = vsel %vm237, %v3045, 0
      %v3105 = vsel %vm237, %v3056, 0
      %v3108 = vsel %vm792, %v3058, 0
      %3110 = vmatprep.subr.bf16.mxu0 0
      %3111 = vmatpush1.bf16.msra.mxu0 %v3108
      %3112 = vmatprep.subr.bf16.mxu0 0
      %3113 = vmatpush1.bf16.msra.mxu0 0
      %3114 = vmatprep.subr.bf16.mxu0 0
      %3115 = vmatpush1.bf16.msra.mxu0 0
      %3116 = vmatprep.subr.bf16.mxu0 0
      %3117 = vmatpush1.bf16.msra.mxu0 0
      %3118 = vmatprep.subr.bf16.mxu0 0
      %3119 = vmatpush1.bf16.msra.mxu0 0
      %3120 = vmatprep.subr.bf16.mxu0 0
      %3121 = vmatpush1.bf16.msra.mxu0 0
      %3122 = vmatprep.subr.bf16.mxu0 0
      %3123 = vmatpush1.bf16.msra.mxu0 0
      %3124 = vmatprep.subr.bf16.mxu0 0
      %3125 = vmatpush1.bf16.msra.mxu0 0
      %3126 = vmatprep.subr.bf16.mxu0 0
      %3127 = vmatpush1.bf16.msra.mxu0 0
      %3128 = vmatprep.subr.bf16.mxu0 0
      %3129 = vmatpush1.bf16.msra.mxu0 0
      %3130 = vmatprep.subr.bf16.mxu0 0
      %3131 = vmatpush1.bf16.msra.mxu0 0
      %3132 = vmatprep.subr.bf16.mxu0 0
      %3133 = vmatpush1.bf16.msra.mxu0 0
      %3134 = vmatprep.subr.bf16.mxu0 0
      %3135 = vmatpush1.bf16.msra.mxu0 0
      %3136 = vmatprep.subr.bf16.mxu0 0
      %3137 = vmatpush1.bf16.msra.mxu0 0
      %3138 = vmatprep.subr.bf16.mxu0 0
      %3139 = vmatpush1.bf16.msra.mxu0 0
      %3140 = vmatprep.subr.bf16.mxu0 0
      %3141 = vmatpush1.bf16.msra.mxu0 0
      %3142 = vmatprep.mubr.bf16.mxu0 0
      %3143 = vmatmul.mubr.bf16.gmra.mrb[0].mxu0 %v3060
      %v3144 = vpop.f32.mrb[0].mxu0
      %v3145 = vadd.f32 0.0, %v3144
      %v3146 = vpop.f32.mrb[0].mxu0
      %v3147 = vpop.f32.mrb[0].mxu0
      %v3148 = vadd.f32 0.0, %v3147
      %v3149 = vpop.f32.mrb[0].mxu0
      %3150 = vmatprep.mubr.bf16.mxu0 0
      %3151 = vmatmul.mubr.bf16.gmra.mrb[0].mxu0 %v3063
      %v3152 = vpop.f32.mrb[0].mxu0
      %v3153 = vadd.f32 0.0, %v3152
      %v3154 = vpop.f32.mrb[0].mxu0
      %v3155 = vpop.f32.mrb[0].mxu0
      %v3156 = vadd.f32 0.0, %v3155
      %v3157 = vpop.f32.mrb[0].mxu0
      %3158 = vmatprep.mubr.bf16.mxu0 0
      %3159 = vmatmul.mubr.bf16.gmra.mrb[0].mxu0 %v3066
      %v3160 = vpop.f32.mrb[0].mxu0
      %v3161 = vadd.f32 0.0, %v3160
      %v3162 = vpop.f32.mrb[0].mxu0
      %v3163 = vpop.f32.mrb[0].mxu0
      %v3164 = vadd.f32 0.0, %v3163
      %v3165 = vpop.f32.mrb[0].mxu0
      %3166 = vmatprep.mubr.bf16.mxu0 0
      %3167 = vmatmul.mubr.bf16.gmra.mrb[0].mxu0 %v3069
      %v3168 = vpop.f32.mrb[0].mxu0
      %v3169 = vadd.f32 0.0, %v3168
      %v3170 = vpop.f32.mrb[0].mxu0
      %v3171 = vpop.f32.mrb[0].mxu0
      %v3172 = vadd.f32 0.0, %v3171
      %v3173 = vpop.f32.mrb[0].mxu0
      %3174 = vmatprep.mubr.bf16.mxu0 0
      %3175 = vmatmul.mubr.bf16.gmra.mrb[0].mxu0 %v3072
      %v3176 = vpop.f32.mrb[0].mxu0
      %v3177 = vadd.f32 0.0, %v3176
      %v3178 = vpop.f32.mrb[0].mxu0
      %v3179 = vpop.f32.mrb[0].mxu0
      %v3180 = vadd.f32 0.0, %v3179
      %v3181 = vpop.f32.mrb[0].mxu0
      %3182 = vmatprep.mubr.bf16.mxu0 0
      %3183 = vmatmul.mubr.bf16.gmra.mrb[0].mxu0 %v3075
      %v3184 = vpop.f32.mrb[0].mxu0
      %v3185 = vadd.f32 0.0, %v3184
      %v3186 = vpop.f32.mrb[0].mxu0
      %v3187 = vpop.f32.mrb[0].mxu0
      %v3188 = vadd.f32 0.0, %v3187
      %v3189 = vpop.f32.mrb[0].mxu0
      %3190 = vmatprep.mubr.bf16.mxu0 0
      %3191 = vmatmul.mubr.bf16.gmra.mrb[0].mxu0 %v3078
      %v3192 = vpop.f32.mrb[0].mxu0
      %v3193 = vadd.f32 0.0, %v3192
      %v3194 = vpop.f32.mrb[0].mxu0
      %v3195 = vpop.f32.mrb[0].mxu0
      %v3196 = vadd.f32 0.0, %v3195
      %v3197 = vpop.f32.mrb[0].mxu0
      %3198 = vmatprep.mubr.bf16.mxu0 0
      %3199 = vmatmul.mubr.bf16.gmra.mrb[0].mxu0 %v3081
      %v3200 = vpop.f32.mrb[0].mxu0
      %v3201 = vadd.f32 0.0, %v3200
      %v3202 = vpop.f32.mrb[0].mxu0
      %v3203 = vpop.f32.mrb[0].mxu0
      %v3204 = vadd.f32 0.0, %v3203
      %v3205 = vpop.f32.mrb[0].mxu0
      %3206 = vmatprep.mubr.bf16.mxu0 0
      %3207 = vmatmul.mubr.bf16.gmra.mrb[0].mxu0 %v3084
      %v3208 = vpop.f32.mrb[0].mxu0
      %v3209 = vadd.f32 0.0, %v3208
      %v3210 = vpop.f32.mrb[0].mxu0
      %v3211 = vpop.f32.mrb[0].mxu0
      %v3212 = vadd.f32 0.0, %v3211
      %v3213 = vpop.f32.mrb[0].mxu0
      %3214 = vmatprep.mubr.bf16.mxu0 0
      %3215 = vmatmul.mubr.bf16.gmra.mrb[0].mxu0 %v3087
      %v3216 = vpop.f32.mrb[0].mxu0
      %v3217 = vadd.f32 0.0, %v3216
      %v3218 = vpop.f32.mrb[0].mxu0
      %v3219 = vpop.f32.mrb[0].mxu0
      %v3220 = vadd.f32 0.0, %v3219
      %v3221 = vpop.f32.mrb[0].mxu0
      %3222 = vmatprep.mubr.bf16.mxu0 0
      %3223 = vmatmul.mubr.bf16.gmra.mrb[0].mxu0 %v3090
      %v3224 = vpop.f32.mrb[0].mxu0
      %v3225 = vadd.f32 0.0, %v3224
      %v3226 = vpop.f32.mrb[0].mxu0
      %v3227 = vpop.f32.mrb[0].mxu0
      %v3228 = vadd.f32 0.0, %v3227
      %v3229 = vpop.f32.mrb[0].mxu0
      %3230 = vmatprep.mubr.bf16.mxu0 0
      %3231 = vmatmul.mubr.bf16.gmra.mrb[0].mxu0 %v3093
      %v3232 = vpop.f32.mrb[0].mxu0
      %v3233 = vadd.f32 0.0, %v3232
      %v3234 = vpop.f32.mrb[0].mxu0
      %v3235 = vpop.f32.mrb[0].mxu0
      %v3236 = vadd.f32 0.0, %v3235
      %v3237 = vpop.f32.mrb[0].mxu0
      %3238 = vmatprep.mubr.bf16.mxu0 0
      %3239 = vmatmul.mubr.bf16.gmra.mrb[0].mxu0 %v3096
      %v3240 = vpop.f32.mrb[0].mxu0
      %v3241 = vadd.f32 0.0, %v3240
      %v3242 = vpop.f32.mrb[0].mxu0
      %v3243 = vpop.f32.mrb[0].mxu0
      %v3244 = vadd.f32 0.0, %v3243
      %v3245 = vpop.f32.mrb[0].mxu0
      %3246 = vmatprep.mubr.bf16.mxu0 0
      %3247 = vmatmul.mubr.bf16.gmra.mrb[0].mxu0 %v3099
      %v3248 = vpop.f32.mrb[0].mxu0
      %v3249 = vadd.f32 0.0, %v3248
      %v3250 = vpop.f32.mrb[0].mxu0
      %v3251 = vpop.f32.mrb[0].mxu0
      %v3252 = vadd.f32 0.0, %v3251
      %v3253 = vpop.f32.mrb[0].mxu0
      %3254 = vmatprep.mubr.bf16.mxu0 0
      %3255 = vmatmul.mubr.bf16.gmra.mrb[0].mxu0 %v3102
      %v3256 = vpop.f32.mrb[0].mxu0
      %v3257 = vadd.f32 0.0, %v3256
      %v3258 = vpop.f32.mrb[0].mxu0
      %v3259 = vpop.f32.mrb[0].mxu0
      %v3260 = vadd.f32 0.0, %v3259
      %v3261 = vpop.f32.mrb[0].mxu0
      %3262 = vmatprep.mubr.bf16.mxu0 0
      %3263 = vmatmul.mubr.bf16.gmra.mrb[0].mxu0 %v3105
      %v3264 = vpop.f32.mrb[0].mxu0
      %v3265 = vadd.f32 0.0, %v3264
      %v3266 = vpop.f32.mrb[0].mxu0
      %v3267 = vpop.f32.mrb[0].mxu0
      %v3268 = vadd.f32 0.0, %v3267
      %v3269 = vpop.f32.mrb[0].mxu0
      %3270 = vdwg.mxu0
      %v3271 = vadd.f32 %v2849, %v3145
      %v3272 = vadd.f32 %v2850, %v3148
      %v3273 = vadd.f32 %v2851, %v3153
      %v3274 = vadd.f32 %v2852, %v3156
      %v3275 = vadd.f32 %v2853, %v3161
      %v3276 = vadd.f32 %v2854, %v3164
      %v3277 = vadd.f32 %v2855, %v3169
      %v3278 = vadd.f32 %v2856, %v3172
      %v3279 = vadd.f32 %v2857, %v3177
      %v3280 = vadd.f32 %v2858, %v3180
      %v3281 = vadd.f32 %v2859, %v3185
      %v3282 = vadd.f32 %v2860, %v3188
      %v3283 = vadd.f32 %v2861, %v3193
      %v3284 = vadd.f32 %v2862, %v3196
      %v3285 = vadd.f32 %v2863, %v3201
      %v3286 = vadd.f32 %v2864, %v3204
      %v3287 = vadd.f32 %v2865, %v3209
      %v3288 = vadd.f32 %v2866, %v3212
      %v3289 = vadd.f32 %v2867, %v3217
      %v3290 = vadd.f32 %v2868, %v3220
      %v3291 = vadd.f32 %v2869, %v3225
      %v3292 = vadd.f32 %v2870, %v3228
      %v3293 = vadd.f32 %v2871, %v3233
      %v3294 = vadd.f32 %v2872, %v3236
      %v3295 = vadd.f32 %v2873, %v3241
      %v3296 = vadd.f32 %v2874, %v3244
      %v3297 = vadd.f32 %v2875, %v3249
      %v3298 = vadd.f32 %v2876, %v3252
      %v3299 = vadd.f32 %v2877, %v3257
      %v3300 = vadd.f32 %v2878, %v3260
      %v3301 = vadd.f32 %v2879, %v3265
      %v3302 = vadd.f32 %v2880, %v3268
      %v3335 = vrot.slane %v2603, 1
      %v3336 = vrot.slane %v2604, 1
      %v3337 = vsel %vm1185, %v3335, %v3336
      %v3338 = vrot.slane %v2605, 1
      %v3339 = vrot.slane %v2606, 1
      %v3340 = vsel %vm1185, %v3338, %v3339
      %v3341 = vrot.slane %v2607, 1
      %v3342 = vrot.slane %v2608, 1
      %v3343 = vsel %vm1185, %v3341, %v3342
      %v3344 = vrot.slane %v2609, 1
      %v3345 = vrot.slane %v2610, 1
      %v3346 = vsel %vm1185, %v3344, %v3345
      %v3347 = vrot.slane %v2611, 1
      %v3348 = vrot.slane %v2612, 1
      %v3349 = vsel %vm1185, %v3347, %v3348
      %v3350 = vrot.slane %v2613, 1
      %v3351 = vrot.slane %v2614, 1
      %v3352 = vsel %vm1185, %v3350, %v3351
      %v3353 = vrot.slane %v2615, 1
      %v3354 = vrot.slane %v2616, 1
      %v3355 = vsel %vm1185, %v3353, %v3354
      %v3356 = vrot.slane %v2617, 1
      %v3357 = vrot.slane %v2618, 1
      %v3358 = vsel %vm1185, %v3356, %v3357
      %v3359 = vrot.slane %v2619, 1
      %v3360 = vrot.slane %v2620, 1
      %v3361 = vsel %vm1185, %v3359, %v3360
      %v3362 = vrot.slane %v2621, 1
      %v3363 = vrot.slane %v2622, 1
      %v3364 = vsel %vm1185, %v3362, %v3363
      %v3365 = vrot.slane %v2623, 1
      %v3366 = vrot.slane %v2624, 1
      %v3367 = vsel %vm1185, %v3365, %v3366
      %v3368 = vrot.slane %v2625, 1
      %v3369 = vrot.slane %v2626, 1
      %v3370 = vsel %vm1185, %v3368, %v3369
      %v3371 = vrot.slane %v2627, 1
      %v3372 = vrot.slane %v2628, 1
      %v3373 = vsel %vm1185, %v3371, %v3372
      %v3374 = vrot.slane %v2629, 1
      %v3375 = vrot.slane %v2630, 1
      %v3376 = vsel %vm1185, %v3374, %v3375
      %v3377 = vrot.slane %v2631, 1
      %v3378 = vrot.slane %v2632, 1
      %v3379 = vsel %vm1185, %v3377, %v3378
      %v3380 = vrot.slane %v2633, 1
      %v3381 = vrot.slane %v2634, 1
      %v3382 = vsel %vm1185, %v3380, %v3381
      %s3383 = scalar_lea.vmem %s3, 32
      %v3384 = vld [vmem:[%s3383] sm:$0xf]
      %v3386 = vsel %vm237, %v3337, 0
      %v3389 = vsel %vm237, %v3340, 0
      %v3392 = vsel %vm237, %v3343, 0
      %v3395 = vsel %vm237, %v3346, 0
      %v3398 = vsel %vm237, %v3349, 0
      %v3401 = vsel %vm237, %v3352, 0
      %v3404 = vsel %vm237, %v3355, 0
      %v3407 = vsel %vm237, %v3358, 0
      %v3410 = vsel %vm237, %v3361, 0
      %v3413 = vsel %vm237, %v3364, 0
      %v3416 = vsel %vm237, %v3367, 0
      %v3419 = vsel %vm237, %v3370, 0
      %v3422 = vsel %vm237, %v3373, 0
      %v3425 = vsel %vm237, %v3376, 0
      %v3428 = vsel %vm237, %v3379, 0
      %v3431 = vsel %vm237, %v3382, 0
      %v3434 = vsel %vm792, %v3384, 0
      %3436 = vmatprep.subr.bf16.mxu0 0
      %3437 = vmatpush1.bf16.msra.mxu0 %v3434
      %3438 = vmatprep.subr.bf16.mxu0 0
      %3439 = vmatpush1.bf16.msra.mxu0 0
      %3440 = vmatprep.subr.bf16.mxu0 0
      %3441 = vmatpush1.bf16.msra.mxu0 0
      %3442 = vmatprep.subr.bf16.mxu0 0
      %3443 = vmatpush1.bf16.msra.mxu0 0
      %3444 = vmatprep.subr.bf16.mxu0 0
      %3445 = vmatpush1.bf16.msra.mxu0 0
      %3446 = vmatprep.subr.bf16.mxu0 0
      %3447 = vmatpush1.bf16.msra.mxu0 0
      %3448 = vmatprep.subr.bf16.mxu0 0
      %3449 = vmatpush1.bf16.msra.mxu0 0
      %3450 = vmatprep.subr.bf16.mxu0 0
      %3451 = vmatpush1.bf16.msra.mxu0 0
      %3452 = vmatprep.subr.bf16.mxu0 0
      %3453 = vmatpush1.bf16.msra.mxu0 0
      %3454 = vmatprep.subr.bf16.mxu0 0
      %3455 = vmatpush1.bf16.msra.mxu0 0
      %3456 = vmatprep.subr.bf16.mxu0 0
      %3457 = vmatpush1.bf16.msra.mxu0 0
      %3458 = vmatprep.subr.bf16.mxu0 0
      %3459 = vmatpush1.bf16.msra.mxu0 0
      %3460 = vmatprep.subr.bf16.mxu0 0
      %3461 = vmatpush1.bf16.msra.mxu0 0
      %3462 = vmatprep.subr.bf16.mxu0 0
      %3463 = vmatpush1.bf16.msra.mxu0 0
      %3464 = vmatprep.subr.bf16.mxu0 0
      %3465 = vmatpush1.bf16.msra.mxu0 0
      %3466 = vmatprep.subr.bf16.mxu0 0
      %3467 = vmatpush1.bf16.msra.mxu0 0
      %3468 = vmatprep.mubr.bf16.mxu0 0
      %3469 = vmatmul.mubr.bf16.gmra.mrb[0].mxu0 %v3386
      %v3470 = vpop.f32.mrb[0].mxu0
      %v3471 = vadd.f32 0.0, %v3470
      %v3472 = vpop.f32.mrb[0].mxu0
      %v3473 = vpop.f32.mrb[0].mxu0
      %v3474 = vadd.f32 0.0, %v3473
      %v3475 = vpop.f32.mrb[0].mxu0
      %3476 = vmatprep.mubr.bf16.mxu0 0
      %3477 = vmatmul.mubr.bf16.gmra.mrb[0].mxu0 %v3389
      %v3478 = vpop.f32.mrb[0].mxu0
      %v3479 = vadd.f32 0.0, %v3478
      %v3480 = vpop.f32.mrb[0].mxu0
      %v3481 = vpop.f32.mrb[0].mxu0
      %v3482 = vadd.f32 0.0, %v3481
      %v3483 = vpop.f32.mrb[0].mxu0
      %3484 = vmatprep.mubr.bf16.mxu0 0
      %3485 = vmatmul.mubr.bf16.gmra.mrb[0].mxu0 %v3392
      %v3486 = vpop.f32.mrb[0].mxu0
      %v3487 = vadd.f32 0.0, %v3486
      %v3488 = vpop.f32.mrb[0].mxu0
      %v3489 = vpop.f32.mrb[0].mxu0
      %v3490 = vadd.f32 0.0, %v3489
      %v3491 = vpop.f32.mrb[0].mxu0
      %3492 = vmatprep.mubr.bf16.mxu0 0
      %3493 = vmatmul.mubr.bf16.gmra.mrb[0].mxu0 %v3395
      %v3494 = vpop.f32.mrb[0].mxu0
      %v3495 = vadd.f32 0.0, %v3494
      %v3496 = vpop.f32.mrb[0].mxu0
      %v3497 = vpop.f32.mrb[0].mxu0
      %v3498 = vadd.f32 0.0, %v3497
      %v3499 = vpop.f32.mrb[0].mxu0
      %3500 = vmatprep.mubr.bf16.mxu0 0
      %3501 = vmatmul.mubr.bf16.gmra.mrb[0].mxu0 %v3398
      %v3502 = vpop.f32.mrb[0].mxu0
      %v3503 = vadd.f32 0.0, %v3502
      %v3504 = vpop.f32.mrb[0].mxu0
      %v3505 = vpop.f32.mrb[0].mxu0
      %v3506 = vadd.f32 0.0, %v3505
      %v3507 = vpop.f32.mrb[0].mxu0
      %3508 = vmatprep.mubr.bf16.mxu0 0
      %3509 = vmatmul.mubr.bf16.gmra.mrb[0].mxu0 %v3401
      %v3510 = vpop.f32.mrb[0].mxu0
      %v3511 = vadd.f32 0.0, %v3510
      %v3512 = vpop.f32.mrb[0].mxu0
      %v3513 = vpop.f32.mrb[0].mxu0
      %v3514 = vadd.f32 0.0, %v3513
      %v3515 = vpop.f32.mrb[0].mxu0
      %3516 = vmatprep.mubr.bf16.mxu0 0
      %3517 = vmatmul.mubr.bf16.gmra.mrb[0].mxu0 %v3404
      %v3518 = vpop.f32.mrb[0].mxu0
      %v3519 = vadd.f32 0.0, %v3518
      %v3520 = vpop.f32.mrb[0].mxu0
      %v3521 = vpop.f32.mrb[0].mxu0
      %v3522 = vadd.f32 0.0, %v3521
      %v3523 = vpop.f32.mrb[0].mxu0
      %3524 = vmatprep.mubr.bf16.mxu0 0
      %3525 = vmatmul.mubr.bf16.gmra.mrb[0].mxu0 %v3407
      %v3526 = vpop.f32.mrb[0].mxu0
      %v3527 = vadd.f32 0.0, %v3526
      %v3528 = vpop.f32.mrb[0].mxu0
      %v3529 = vpop.f32.mrb[0].mxu0
      %v3530 = vadd.f32 0.0, %v3529
      %v3531 = vpop.f32.mrb[0].mxu0
      %3532 = vmatprep.mubr.bf16.mxu0 0
      %3533 = vmatmul.mubr.bf16.gmra.mrb[0].mxu0 %v3410
      %v3534 = vpop.f32.mrb[0].mxu0
      %v3535 = vadd.f32 0.0, %v3534
      %v3536 = vpop.f32.mrb[0].mxu0
      %v3537 = vpop.f32.mrb[0].mxu0
      %v3538 = vadd.f32 0.0, %v3537
      %v3539 = vpop.f32.mrb[0].mxu0
      %3540 = vmatprep.mubr.bf16.mxu0 0
      %3541 = vmatmul.mubr.bf16.gmra.mrb[0].mxu0 %v3413
      %v3542 = vpop.f32.mrb[0].mxu0
      %v3543 = vadd.f32 0.0, %v3542
      %v3544 = vpop.f32.mrb[0].mxu0
      %v3545 = vpop.f32.mrb[0].mxu0
      %v3546 = vadd.f32 0.0, %v3545
      %v3547 = vpop.f32.mrb[0].mxu0
      %3548 = vmatprep.mubr.bf16.mxu0 0
      %3549 = vmatmul.mubr.bf16.gmra.mrb[0].mxu0 %v3416
      %v3550 = vpop.f32.mrb[0].mxu0
      %v3551 = vadd.f32 0.0, %v3550
      %v3552 = vpop.f32.mrb[0].mxu0
      %v3553 = vpop.f32.mrb[0].mxu0
      %v3554 = vadd.f32 0.0, %v3553
      %v3555 = vpop.f32.mrb[0].mxu0
      %3556 = vmatprep.mubr.bf16.mxu0 0
      %3557 = vmatmul.mubr.bf16.gmra.mrb[0].mxu0 %v3419
      %v3558 = vpop.f32.mrb[0].mxu0
      %v3559 = vadd.f32 0.0, %v3558
      %v3560 = vpop.f32.mrb[0].mxu0
      %v3561 = vpop.f32.mrb[0].mxu0
      %v3562 = vadd.f32 0.0, %v3561
      %v3563 = vpop.f32.mrb[0].mxu0
      %3564 = vmatprep.mubr.bf16.mxu0 0
      %3565 = vmatmul.mubr.bf16.gmra.mrb[0].mxu0 %v3422
      %v3566 = vpop.f32.mrb[0].mxu0
      %v3567 = vadd.f32 0.0, %v3566
      %v3568 = vpop.f32.mrb[0].mxu0
      %v3569 = vpop.f32.mrb[0].mxu0
      %v3570 = vadd.f32 0.0, %v3569
      %v3571 = vpop.f32.mrb[0].mxu0
      %3572 = vmatprep.mubr.bf16.mxu0 0
      %3573 = vmatmul.mubr.bf16.gmra.mrb[0].mxu0 %v3425
      %v3574 = vpop.f32.mrb[0].mxu0
      %v3575 = vadd.f32 0.0, %v3574
      %v3576 = vpop.f32.mrb[0].mxu0
      %v3577 = vpop.f32.mrb[0].mxu0
      %v3578 = vadd.f32 0.0, %v3577
      %v3579 = vpop.f32.mrb[0].mxu0
      %3580 = vmatprep.mubr.bf16.mxu0 0
      %3581 = vmatmul.mubr.bf16.gmra.mrb[0].mxu0 %v3428
      %v3582 = vpop.f32.mrb[0].mxu0
      %v3583 = vadd.f32 0.0, %v3582
      %v3584 = vpop.f32.mrb[0].mxu0
      %v3585 = vpop.f32.mrb[0].mxu0
      %v3586 = vadd.f32 0.0, %v3585
      %v3587 = vpop.f32.mrb[0].mxu0
      %3588 = vmatprep.mubr.bf16.mxu0 0
      %3589 = vmatmul.mubr.bf16.gmra.mrb[0].mxu0 %v3431
      %v3590 = vpop.f32.mrb[0].mxu0
      %v3591 = vadd.f32 0.0, %v3590
      %v3592 = vpop.f32.mrb[0].mxu0
      %v3593 = vpop.f32.mrb[0].mxu0
      %v3594 = vadd.f32 0.0, %v3593
      %v3595 = vpop.f32.mrb[0].mxu0
      %3596 = vdwg.mxu0
      %v3597 = vadd.f32 %v3271, %v3471
      %v3598 = vadd.f32 %v3272, %v3474
      %v3599 = vadd.f32 %v3273, %v3479
      %v3600 = vadd.f32 %v3274, %v3482
      %v3601 = vadd.f32 %v3275, %v3487
      %v3602 = vadd.f32 %v3276, %v3490
      %v3603 = vadd.f32 %v3277, %v3495
      %v3604 = vadd.f32 %v3278, %v3498
      %v3605 = vadd.f32 %v3279, %v3503
      %v3606 = vadd.f32 %v3280, %v3506
      %v3607 = vadd.f32 %v3281, %v3511
      %v3608 = vadd.f32 %v3282, %v3514
      %v3609 = vadd.f32 %v3283, %v3519
      %v3610 = vadd.f32 %v3284, %v3522
      %v3611 = vadd.f32 %v3285, %v3527
      %v3612 = vadd.f32 %v3286, %v3530
      %v3613 = vadd.f32 %v3287, %v3535
      %v3614 = vadd.f32 %v3288, %v3538
      %v3615 = vadd.f32 %v3289, %v3543
      %v3616 = vadd.f32 %v3290, %v3546
      %v3617 = vadd.f32 %v3291, %v3551
      %v3618 = vadd.f32 %v3292, %v3554
      %v3619 = vadd.f32 %v3293, %v3559
      %v3620 = vadd.f32 %v3294, %v3562
      %v3621 = vadd.f32 %v3295, %v3567
      %v3622 = vadd.f32 %v3296, %v3570
      %v3623 = vadd.f32 %v3297, %v3575
      %v3624 = vadd.f32 %v3298, %v3578
      %v3625 = vadd.f32 %v3299, %v3583
      %v3626 = vadd.f32 %v3300, %v3586
      %v3627 = vadd.f32 %v3301, %v3591
      %v3628 = vadd.f32 %v3302, %v3594
      %3629 = vst.msk [vmem:[%s231] sm:$0xff] %vm237, %v3597
      %3630 = vst.msk [vmem:[%s231 + $0x8] sm:$0xff] %vm237, %v3598
      %3631 = vst.msk [vmem:[%s231 + $0x10] sm:$0xff] %vm237, %v3599
      %3632 = vst.msk [vmem:[%s231 + $0x18] sm:$0xff] %vm237, %v3600
      %3633 = vst.msk [vmem:[%s231 + $0x20] sm:$0xff] %vm237, %v3601
      %3634 = vst.msk [vmem:[%s231 + $0x28] sm:$0xff] %vm237, %v3602
      %3635 = vst.msk [vmem:[%s231 + $0x30] sm:$0xff] %vm237, %v3603
      %3636 = vst.msk [vmem:[%s231 + $0x38] sm:$0xff] %vm237, %v3604
      %3637 = vst.msk [vmem:[%s231 + $0x40] sm:$0xff] %vm237, %v3605
      %3638 = vst.msk [vmem:[%s231 + $0x48] sm:$0xff] %vm237, %v3606
      %3639 = vst.msk [vmem:[%s231 + $0x50] sm:$0xff] %vm237, %v3607
      %3640 = vst.msk [vmem:[%s231 + $0x58] sm:$0xff] %vm237, %v3608
      %3641 = vst.msk [vmem:[%s231 + $0x60] sm:$0xff] %vm237, %v3609
      %3642 = vst.msk [vmem:[%s231 + $0x68] sm:$0xff] %vm237, %v3610
      %3643 = vst.msk [vmem:[%s231 + $0x70] sm:$0xff] %vm237, %v3611
      %3644 = vst.msk [vmem:[%s231 + $0x78] sm:$0xff] %vm237, %v3612
      %3645 = vst.msk [vmem:[%s231 + $0x80] sm:$0xff] %vm237, %v3613
      %3646 = vst.msk [vmem:[%s231 + $0x88] sm:$0xff] %vm237, %v3614
      %3647 = vst.msk [vmem:[%s231 + $0x90] sm:$0xff] %vm237, %v3615
      %3648 = vst.msk [vmem:[%s231 + $0x98] sm:$0xff] %vm237, %v3616
      %3649 = vst.msk [vmem:[%s231 + $0xa0] sm:$0xff] %vm237, %v3617
      %3650 = vst.msk [vmem:[%s231 + $0xa8] sm:$0xff] %vm237, %v3618
      %3651 = vst.msk [vmem:[%s231 + $0xb0] sm:$0xff] %vm237, %v3619
      %3652 = vst.msk [vmem:[%s231 + $0xb8] sm:$0xff] %vm237, %v3620
      %3653 = vst.msk [vmem:[%s231 + $0xc0] sm:$0xff] %vm237, %v3621
      %3654 = vst.msk [vmem:[%s231 + $0xc8] sm:$0xff] %vm237, %v3622
      %3655 = vst.msk [vmem:[%s231 + $0xd0] sm:$0xff] %vm237, %v3623
      %3656 = vst.msk [vmem:[%s231 + $0xd8] sm:$0xff] %vm237, %v3624
      %3657 = vst.msk [vmem:[%s231 + $0xe0] sm:$0xff] %vm237, %v3625
      %3658 = vst.msk [vmem:[%s231 + $0xe8] sm:$0xff] %vm237, %v3626
      %3659 = vst.msk [vmem:[%s231 + $0xf0] sm:$0xff] %vm237, %v3627
      %3660 = vst.msk [vmem:[%s231 + $0xf8] sm:$0xff] %vm237, %v3628
      %v3661 = vsel %vm237, %v3597, 0.0
      %v3662 = vsel %vm237, %v3598, 0.0
      %v3663 = vadd.f32 %v3661, %v3662
      %v3664 = vsel %vm237, %v3599, 0.0
      %v3665 = vadd.f32 %v3663, %v3664
      %v3666 = vsel %vm237, %v3600, 0.0
      %v3667 = vadd.f32 %v3665, %v3666
      %v3668 = vsel %vm237, %v3601, 0.0
      %v3669 = vadd.f32 %v3667, %v3668
      %v3670 = vsel %vm237, %v3602, 0.0
      %v3671 = vadd.f32 %v3669, %v3670
      %v3672 = vsel %vm237, %v3603, 0.0
      %v3673 = vadd.f32 %v3671, %v3672
      %v3674 = vsel %vm237, %v3604, 0.0
      %v3675 = vadd.f32 %v3673, %v3674
      %v3676 = vsel %vm237, %v3605, 0.0
      %v3677 = vadd.f32 %v3675, %v3676
      %v3678 = vsel %vm237, %v3606, 0.0
      %v3679 = vadd.f32 %v3677, %v3678
      %v3680 = vsel %vm237, %v3607, 0.0
      %v3681 = vadd.f32 %v3679, %v3680
      %v3682 = vsel %vm237, %v3608, 0.0
      %v3683 = vadd.f32 %v3681, %v3682
      %v3684 = vsel %vm237, %v3609, 0.0
      %v3685 = vadd.f32 %v3683, %v3684
      %v3686 = vsel %vm237, %v3610, 0.0
      %v3687 = vadd.f32 %v3685, %v3686
      %v3688 = vsel %vm237, %v3611, 0.0
      %v3689 = vadd.f32 %v3687, %v3688
      %v3690 = vsel %vm237, %v3612, 0.0
      %v3691 = vadd.f32 %v3689, %v3690
      %v3692 = vsel %vm237, %v3613, 0.0
      %v3693 = vadd.f32 %v3691, %v3692
      %v3694 = vsel %vm237, %v3614, 0.0
      %v3695 = vadd.f32 %v3693, %v3694
      %v3696 = vsel %vm237, %v3615, 0.0
      %v3697 = vadd.f32 %v3695, %v3696
      %v3698 = vsel %vm237, %v3616, 0.0
      %v3699 = vadd.f32 %v3697, %v3698
      %v3700 = vsel %vm237, %v3617, 0.0
      %v3701 = vadd.f32 %v3699, %v3700
      %v3702 = vsel %vm237, %v3618, 0.0
      %v3703 = vadd.f32 %v3701, %v3702
      %v3704 = vsel %vm237, %v3619, 0.0
      %v3705 = vadd.f32 %v3703, %v3704
      %v3706 = vsel %vm237, %v3620, 0.0
      %v3707 = vadd.f32 %v3705, %v3706
      %v3708 = vsel %vm237, %v3621, 0.0
      %v3709 = vadd.f32 %v3707, %v3708
      %v3710 = vsel %vm237, %v3622, 0.0
      %v3711 = vadd.f32 %v3709, %v3710
      %v3712 = vsel %vm237, %v3623, 0.0
      %v3713 = vadd.f32 %v3711, %v3712
      %v3714 = vsel %vm237, %v3624, 0.0
      %v3715 = vadd.f32 %v3713, %v3714
      %v3716 = vsel %vm237, %v3625, 0.0
      %v3717 = vadd.f32 %v3715, %v3716
      %v3718 = vsel %vm237, %v3626, 0.0
      %v3719 = vadd.f32 %v3717, %v3718
      %v3720 = vsel %vm237, %v3627, 0.0
      %v3721 = vadd.f32 %v3719, %v3720
      %v3722 = vsel %vm237, %v3628, 0.0
      %v3723 = vadd.f32 %v3721, %v3722
      %v3724 = vrot.slane %v3723, 4
      %v3725 = vadd.f32 %v3723, %v3724
      %v3726 = vrot.slane %v3725, 2
      %v3727 = vadd.f32 %v3725, %v3726
      %v3728 = vrot.slane %v3727, 1
      %v3729 = vadd.f32 %v3727, %v3728
      %v3730 = vmul.f32 %v3597, %v3597
      %v3731 = vmul.f32 %v3598, %v3598
      %v3732 = vmul.f32 %v3599, %v3599
      %v3733 = vmul.f32 %v3600, %v3600
      %v3734 = vmul.f32 %v3601, %v3601
      %v3735 = vmul.f32 %v3602, %v3602
      %v3736 = vmul.f32 %v3603, %v3603
      %v3737 = vmul.f32 %v3604, %v3604
      %v3738 = vmul.f32 %v3605, %v3605
      %v3739 = vmul.f32 %v3606, %v3606
      %v3740 = vmul.f32 %v3607, %v3607
      %v3741 = vmul.f32 %v3608, %v3608
      %v3742 = vmul.f32 %v3609, %v3609
      %v3743 = vmul.f32 %v3610, %v3610
      %v3744 = vmul.f32 %v3611, %v3611
      %v3745 = vmul.f32 %v3612, %v3612
      %v3746 = vmul.f32 %v3613, %v3613
      %v3747 = vmul.f32 %v3614, %v3614
      %v3748 = vmul.f32 %v3615, %v3615
      %v3749 = vmul.f32 %v3616, %v3616
      %v3750 = vmul.f32 %v3617, %v3617
      %v3751 = vmul.f32 %v3618, %v3618
      %v3752 = vmul.f32 %v3619, %v3619
      %v3753 = vmul.f32 %v3620, %v3620
      %v3754 = vmul.f32 %v3621, %v3621
      %v3755 = vmul.f32 %v3622, %v3622
      %v3756 = vmul.f32 %v3623, %v3623
      %v3757 = vmul.f32 %v3624, %v3624
      %v3758 = vmul.f32 %v3625, %v3625
      %v3759 = vmul.f32 %v3626, %v3626
      %v3760 = vmul.f32 %v3627, %v3627
      %v3761 = vmul.f32 %v3628, %v3628
      %v3762 = vsel %vm237, %v3730, 0.0
      %v3763 = vsel %vm237, %v3731, 0.0
      %v3764 = vadd.f32 %v3762, %v3763
      %v3765 = vsel %vm237, %v3732, 0.0
      %v3766 = vadd.f32 %v3764, %v3765
      %v3767 = vsel %vm237, %v3733, 0.0
      %v3768 = vadd.f32 %v3766, %v3767
      %v3769 = vsel %vm237, %v3734, 0.0
      %v3770 = vadd.f32 %v3768, %v3769
      %v3771 = vsel %vm237, %v3735, 0.0
      %v3772 = vadd.f32 %v3770, %v3771
      %v3773 = vsel %vm237, %v3736, 0.0
      %v3774 = vadd.f32 %v3772, %v3773
      %v3775 = vsel %vm237, %v3737, 0.0
      %v3776 = vadd.f32 %v3774, %v3775
      %v3777 = vsel %vm237, %v3738, 0.0
      %v3778 = vadd.f32 %v3776, %v3777
      %v3779 = vsel %vm237, %v3739, 0.0
      %v3780 = vadd.f32 %v3778, %v3779
      %v3781 = vsel %vm237, %v3740, 0.0
      %v3782 = vadd.f32 %v3780, %v3781
      %v3783 = vsel %vm237, %v3741, 0.0
      %v3784 = vadd.f32 %v3782, %v3783
      %v3785 = vsel %vm237, %v3742, 0.0
      %v3786 = vadd.f32 %v3784, %v3785
      %v3787 = vsel %vm237, %v3743, 0.0
      %v3788 = vadd.f32 %v3786, %v3787
      %v3789 = vsel %vm237, %v3744, 0.0
      %v3790 = vadd.f32 %v3788, %v3789
      %v3791 = vsel %vm237, %v3745, 0.0
      %v3792 = vadd.f32 %v3790, %v3791
      %v3793 = vsel %vm237, %v3746, 0.0
      %v3794 = vadd.f32 %v3792, %v3793
      %v3795 = vsel %vm237, %v3747, 0.0
      %v3796 = vadd.f32 %v3794, %v3795
      %v3797 = vsel %vm237, %v3748, 0.0
      %v3798 = vadd.f32 %v3796, %v3797
      %v3799 = vsel %vm237, %v3749, 0.0
      %v3800 = vadd.f32 %v3798, %v3799
      %v3801 = vsel %vm237, %v3750, 0.0
      %v3802 = vadd.f32 %v3800, %v3801
      %v3803 = vsel %vm237, %v3751, 0.0
      %v3804 = vadd.f32 %v3802, %v3803
      %v3805 = vsel %vm237, %v3752, 0.0
      %v3806 = vadd.f32 %v3804, %v3805
      %v3807 = vsel %vm237, %v3753, 0.0
      %v3808 = vadd.f32 %v3806, %v3807
      %v3809 = vsel %vm237, %v3754, 0.0
      %v3810 = vadd.f32 %v3808, %v3809
      %v3811 = vsel %vm237, %v3755, 0.0
      %v3812 = vadd.f32 %v3810, %v3811
      %v3813 = vsel %vm237, %v3756, 0.0
      %v3814 = vadd.f32 %v3812, %v3813
      %v3815 = vsel %vm237, %v3757, 0.0
      %v3816 = vadd.f32 %v3814, %v3815
      %v3817 = vsel %vm237, %v3758, 0.0
      %v3818 = vadd.f32 %v3816, %v3817
      %v3819 = vsel %vm237, %v3759, 0.0
      %v3820 = vadd.f32 %v3818, %v3819
      %v3821 = vsel %vm237, %v3760, 0.0
      %v3822 = vadd.f32 %v3820, %v3821
      %v3823 = vsel %vm237, %v3761, 0.0
      %v3824 = vadd.f32 %v3822, %v3823
      %v3825 = vrot.slane %v3824, 4
      %v3826 = vadd.f32 %v3824, %v3825
      %v3827 = vrot.slane %v3826, 2
      %v3828 = vadd.f32 %v3826, %v3827
      %v3829 = vrot.slane %v3828, 1
      %v3830 = vadd.f32 %v3828, %v3829
      %vm3831 = vcmask 1040384
      %v3832 = vsel %vm3831, %v3729, %v3830
      %3833 = vst.msk [vmem:[%s235] sm:$0x3] %vm240, %v3832
      %p3834 = scmp.lt.s32.totalorder %s17, 1
      %s3835 = scalar_select %p3834, %s17, 1
      %s3836 = smul.addr %s3835, 32
      %s3837 = smul.addr %s3836, 8
      %s3838 = scalar_lea.vmem %s4, %s3837
      %p3839 = scmp.lt.s32.totalorder %s17, 1
      %s3840 = scalar_select %p3839, %s17, 1
      %s3841 = smul.addr %s3840, 2
      %s3842 = scalar_lea.vmem %s5, %s3841
      // Predicated region
      $region37: #{block_forward.4} parent=35 // pred_check
        %p3843 = pneg %p124
      $region38: #{block_forward.4} parent=35 // pred_check_branch
        %3845 = sbr.rel (%p3843) target = $region40
      $region39: #{block_forward.4} parent=35 // pred_region
        _
      $region40: #{block_forward.4} parent=35 // pred_fallthru
        _
      // Predicated region
      $region41: #{block_forward.4} parent=35 // pred_check
        %p3846 = pneg %p150
      $region42: #{block_forward.4} parent=35 // pred_check_branch
        %3848 = sbr.rel (%p3846) target = $region44
      $region43: #{block_forward.4} parent=35 // pred_region
        _
      $region44: #{block_forward.4} parent=35 // pred_fallthru
        _
    $region36: #{block_forward.4} parent=5 // pred_fallthru
      _
    %p3849 = scmp.le.s32.totalorder 2, %s12
    // Predicated region
    $region45: #{block_forward.4} parent=5 // pred_check
      %p3850 = pneg %p3849
    $region46: #{block_forward.4} parent=5 // pred_check_branch
      %3852 = sbr.rel (%p3850) target = $region48
    $region47: #{block_forward.4} parent=5 // pred_region
      %s3853 = ssub.s32 %s12, 2
      // Predicated region
      $region49: #{block_forward.4} parent=47 // pred_check
        %p3854 = pneg %p130
      $region50: #{block_forward.4} parent=47 // pred_check_branch
        %3856 = sbr.rel (%p3854) target = $region52
      $region51: #{block_forward.4} parent=47 // pred_region
        %p3857 = scmp.lt.s32.totalorder %s18, 1
        %s3858 = scalar_select %p3857, %s18, 1
        %s3859 = smul.addr %s3858, 32
        %s3860 = smul.addr %s3859, 8
        %s3861 = scalar_lea.vmem %s4, %s3860
      $region52: #{block_forward.4} parent=47 // pred_fallthru
        _
      // Predicated region
      $region53: #{block_forward.4} parent=47 // pred_check
        %p3862 = pneg %p156
      $region54: #{block_forward.4} parent=47 // pred_check_branch
        %3864 = sbr.rel (%p3862) target = $region56
      $region55: #{block_forward.4} parent=47 // pred_region
        %p3865 = scmp.lt.s32.totalorder %s18, 1
        %s3866 = scalar_select %p3865, %s18, 1
        %s3867 = smul.addr %s3866, 2
        %s3868 = scalar_lea.vmem %s5, %s3867
      $region56: #{block_forward.4} parent=47 // pred_fallthru
        _
    $region48: #{block_forward.4} parent=5 // pred_fallthru
      _
  $region6: #{block_forward.4} parent=0 // loop_footer
    %s16 = sadd.s32 1, %s12
  $region7: #{block_forward.4} parent=0 // loop_footer_branch
    %11 = sbr.rel target = $region3
  $region8: #{block_forward.4} parent=0 // loop_exit
    _

// kernel: block_forward.3
$region0: #{block_forward.3}
  #allocation0 [shape = 'u32[]', space=smem, size = 0x4, offset = 0x4, fixed_abs, tag = 'smem constant byte address 0x4 - core index']
  #allocation1 [shape = 'u32[144,128]{1,0:T(1,128)}', space=vmem, size = 0x12000, scoped, tag = 'internal scratch']
  #allocation2 [shape = 'f32[18,18,4]{2,1,0:T(8,128)}', space=vmem, size = 0x36000, scoped, tag = 'scratch operand']
  %s0 = inlined_call_operand.vmem [shape: f32[2,16,16,4], index: 0, kind: input, shape index: {}]
  %s1 = inlined_call_operand.vmem [shape: bf16[3,3,4,8], index: 1, kind: input, shape index: {}]
  %s2 = inlined_call_operand.vmem [shape: bf16[4,8], index: 2, kind: input, shape index: {}]
  %s3 = inlined_call_operand.vmem [shape: f32[2,16,16,8], index: 3, kind: output, shape index: {0}]
  %s4 = inlined_call_operand.vmem [shape: f32[2,16,16,8], index: 4, kind: output, shape index: {1}]
  %s5 = inlined_call_operand.vmem [shape: f32[2,4,8], index: 5, kind: output, shape index: {2}]
  %6 = xla_tuple %s3, %s4, %s5
  %s7 = sld [smem:[#allocation0]]
  $region61: #{block_forward.3} parent=0
    _
  %s9 = ssub.s32 1, %s7
  %s10 = scalar_select 0, %s9, %s7
  loop: start=0, step=1, limit=4
  $region2: #{block_forward.3} parent=0 // loop_pre_header
    _
  $region3: #{block_forward.3} parent=0 // loop_header
    %s12 = sphi 0, %s16
    %p13 = scmp.ge.s32.totalorder %s12, 4
    %s22 = sphi 0, %s24
    %s25 = sphi 0, %s22
    %s26 = sphi 0, %s25
    %s42 = sphi 0, %s26
    %s46 = sphi 0, %s46
    %s48 = sphi 0, %s46
    %s49 = sphi 0, %s48
    %s63 = sphi 0, %s49
    %s67 = sphi 0, %s67
    %s69 = sphi 0, %s67
    %s70 = sphi 0, %s69
    %s84 = sphi 0, %s70
    %s90 = sphi 0, %s92
    %s93 = sphi 0, %s90
    %s94 = sphi 0, %s93
    %s110 = sphi 0, %s94
    %s116 = sphi 0, %s118
    %s119 = sphi 0, %s116
    %s120 = sphi 0, %s119
    %s136 = sphi 0, %s120
    %s142 = sphi 0, %s144
    %s145 = sphi 0, %s142
    %s146 = sphi 0, %s145
    %s162 = sphi 0, %s146
  $region4: #{block_forward.3} parent=0 // loop_header_branch
    %15 = sbr.rel (%p13) target = $region8
  $region5: #{block_forward.3} parent=0 // loop_body
    %s17 = ssub.s32 %s12, 1
    %s18 = ssub.s32 %s12, 2
    %s19 = sadd.s32 %s12, 1
    %s20 = ssub.s32 %s12, %s19
    %p21 = scmp.eq.s32.totalorder %s20, 0
    %s23 = sadd.s32 %s22, 1
    %s24 = scalar_select %p21, %s22, %s23
    %p27 = pneg %p21
    %p28 = scmp.eq.s32.totalorder %s12, 1
    %p29 = por %p27, %p28
    %p30 = scmp.ne.s32.totalorder %s22, %s25
    %p31 = scmp.eq.s32.totalorder %s12, 0
    %p32 = por %p30, %p31
    %p33 = scmp.ne.s32.totalorder %s22, %s25
    %p34 = scmp.eq.s32.totalorder %s17, 1
    %p35 = por %p33, %p34
    %p36 = scmp.ne.s32.totalorder %s25, %s26
    %p37 = scmp.eq.s32.totalorder %s17, 0
    %p38 = por %p36, %p37
    %p39 = scmp.ne.s32.totalorder %s25, %s26
    %p40 = scmp.eq.s32.totalorder %s18, 1
    %p41 = por %p39, %p40
    %p43 = scmp.ne.s32.totalorder %s26, %s42
    %p44 = scmp.eq.s32.totalorder %s18, 0
    %p45 = por %p43, %p44
    %s47 = sadd.s32 %s46, 1
    %p50 = scmp.eq.s32.totalorder %s12, 1
    %p51 = scmp.ne.s32.totalorder %s46, %s48
    %p52 = scmp.eq.s32.totalorder %s12, 0
    %p53 = por %p51, %p52
    %p54 = scmp.ne.s32.totalorder %s46, %s48
    %p55 = scmp.eq.s32.totalorder %s17, 1
    %p56 = por %p54, %p55
    %p57 = scmp.ne.s32.totalorder %s48, %s49
    %p58 = scmp.eq.s32.totalorder %s17, 0
    %p59 = por %p57, %p58
    %p60 = scmp.ne.s32.totalorder %s48, %s49
    %p61 = scmp.eq.s32.totalorder %s18, 1
    %p62 = por %p60, %p61
    %p64 = scmp.ne.s32.totalorder %s49, %s63
    %p65 = scmp.eq.s32.totalorder %s18, 0
    %p66 = por %p64, %p65
    %s68 = sadd.s32 %s67, 1
    %p71 = scmp.eq.s32.totalorder %s12, 1
    %p72 = scmp.ne.s32.totalorder %s67, %s69
    %p73 = scmp.eq.s32.totalorder %s12, 0
    %p74 = por %p72, %p73
    %p75 = scmp.ne.s32.totalorder %s67, %s69
    %p76 = scmp.eq.s32.totalorder %s17, 1
    %p77 = por %p75, %p76
    %p78 = scmp.ne.s32.totalorder %s69, %s70
    %p79 = scmp.eq.s32.totalorder %s17, 0
    %p80 = por %p78, %p79
    %p81 = scmp.ne.s32.totalorder %s69, %s70
    %p82 = scmp.eq.s32.totalorder %s18, 1
    %p83 = por %p81, %p82
    %p85 = scmp.ne.s32.totalorder %s70, %s84
    %p86 = scmp.eq.s32.totalorder %s18, 0
    %p87 = por %p85, %p86
    %s88 = ssub.s32 %s12, %s19
    %p89 = scmp.eq.s32.totalorder %s88, 0
    %s91 = sadd.s32 %s90, 1
    %s92 = scalar_select %p89, %s90, %s91
    %p95 = pneg %p89
    %p96 = scmp.eq.s32.totalorder %s12, 1
    %p97 = por %p95, %p96
    %p98 = scmp.ne.s32.totalorder %s90, %s93
    %p99 = scmp.eq.s32.totalorder %s12, 0
    %p100 = por %p98, %p99
    %p101 = scmp.ne.s32.totalorder %s90, %s93
    %p102 = scmp.eq.s32.totalorder %s17, 1
    %p103 = por %p101, %p102
    %p104 = scmp.ne.s32.totalorder %s93, %s94
    %p105 = scmp.eq.s32.totalorder %s17, 0
    %p106 = por %p104, %p105
    %p107 = scmp.ne.s32.totalorder %s93, %s94
    %p108 = scmp.eq.s32.totalorder %s18, 1
    %p109 = por %p107, %p108
    %p111 = scmp.ne.s32.totalorder %s94, %s110
    %p112 = scmp.eq.s32.totalorder %s18, 0
    %p113 = por %p111, %p112
    %s114 = ssub.s32 %s12, %s19
    %p115 = scmp.eq.s32.totalorder %s114, 0
    %s117 = sadd.s32 %s116, 1
    %s118 = scalar_select %p115, %s116, %s117
    %p121 = pneg %p115
    %p122 = scmp.eq.s32.totalorder %s12, 1
    %p123 = por %p121, %p122
    %p124 = scmp.ne.s32.totalorder %s116, %s119
    %p125 = scmp.eq.s32.totalorder %s12, 0
    %p126 = por %p124, %p125
    %p127 = scmp.ne.s32.totalorder %s116, %s119
    %p128 = scmp.eq.s32.totalorder %s17, 1
    %p129 = por %p127, %p128
    %p130 = scmp.ne.s32.totalorder %s119, %s120
    %p131 = scmp.eq.s32.totalorder %s17, 0
    %p132 = por %p130, %p131
    %p133 = scmp.ne.s32.totalorder %s119, %s120
    %p134 = scmp.eq.s32.totalorder %s18, 1
    %p135 = por %p133, %p134
    %p137 = scmp.ne.s32.totalorder %s120, %s136
    %p138 = scmp.eq.s32.totalorder %s18, 0
    %p139 = por %p137, %p138
    %s140 = ssub.s32 %s12, %s19
    %p141 = scmp.eq.s32.totalorder %s140, 0
    %s143 = sadd.s32 %s142, 1
    %s144 = scalar_select %p141, %s142, %s143
    %p147 = pneg %p141
    %p148 = scmp.eq.s32.totalorder %s12, 1
    %p149 = por %p147, %p148
    %p150 = scmp.ne.s32.totalorder %s142, %s145
    %p151 = scmp.eq.s32.totalorder %s12, 0
    %p152 = por %p150, %p151
    %p153 = scmp.ne.s32.totalorder %s142, %s145
    %p154 = scmp.eq.s32.totalorder %s17, 1
    %p155 = por %p153, %p154
    %p156 = scmp.ne.s32.totalorder %s145, %s146
    %p157 = scmp.eq.s32.totalorder %s17, 0
    %p158 = por %p156, %p157
    %p159 = scmp.ne.s32.totalorder %s145, %s146
    %p160 = scmp.eq.s32.totalorder %s18, 1
    %p161 = por %p159, %p160
    %p163 = scmp.ne.s32.totalorder %s146, %s162
    %p164 = scmp.eq.s32.totalorder %s18, 0
    %p165 = por %p163, %p164
    %p166 = scmp.le.s32.totalorder 1, %s12
    %p167 = scmp.lt.s32.totalorder %s12, 3
    %p168 = pnand %p166, %p167
    %p169 = pneg %p168
    // Predicated region
    $region9: #{block_forward.3} parent=5 // pred_check
      _
    $region10: #{block_forward.3} parent=5 // pred_check_branch
      %171 = sbr.rel (%p168) target = $region12
    $region11: #{block_forward.3} parent=5 // pred_region
      %s172 = ssub.s32 %s12, 1
      // Predicated region
      $region13: #{block_forward.3} parent=11 // pred_check
        %p173 = pneg %p59
      $region14: #{block_forward.3} parent=11 // pred_check_branch
        %175 = sbr.rel (%p173) target = $region16
      $region15: #{block_forward.3} parent=11 // pred_region
        _
      $region16: #{block_forward.3} parent=11 // pred_fallthru
        _
      // Predicated region
      $region17: #{block_forward.3} parent=11 // pred_check
        %p176 = pneg %p80
      $region18: #{block_forward.3} parent=11 // pred_check_branch
        %178 = sbr.rel (%p176) target = $region20
      $region19: #{block_forward.3} parent=11 // pred_region
        _
      $region20: #{block_forward.3} parent=11 // pred_fallthru
        _
    $region12: #{block_forward.3} parent=5 // pred_fallthru
      _
    %p179 = scmp.lt.s32.totalorder %s12, 2
    // Predicated region
    $region21: #{block_forward.3} parent=5 // pred_check
      %p180 = pneg %p179
    $region22: #{block_forward.3} parent=5 // pred_check_branch
      %182 = sbr.rel (%p180) target = $region24
    $region23: #{block_forward.3} parent=5 // pred_region
      // Predicated region
      $region25: #{block_forward.3} parent=23 // pred_check
        %p183 = pneg %p32
      $region26: #{block_forward.3} parent=23 // pred_check_branch
        %185 = sbr.rel (%p183) target = $region28
      $region27: #{block_forward.3} parent=23 // pred_region
        %p186 = scmp.lt.s32.totalorder %s12, 1
        %s187 = scalar_select %p186, %s12, 1
        %s188 = smul.addr %s187, 32
        %s189 = smul.addr %s188, 8
        %s190 = scalar_lea.vmem %s0, %s189
      $region28: #{block_forward.3} parent=23 // pred_fallthru
        _
    $region24: #{block_forward.3} parent=5 // pred_fallthru
      _
    %p191 = scmp.le.s32.totalorder 1, %s12
    %p192 = scmp.lt.s32.totalorder %s12, 3
    %p193 = pnand %p191, %p192
    %p194 = pneg %p193
    // Predicated region
    $region29: #{block_forward.3} parent=5 // pred_check
      _
    $region30: #{block_forward.3} parent=5 // pred_check_branch
      %196 = sbr.rel (%p193) target = $region32
    $region31: #{block_forward.3} parent=5 // pred_region
      %s197 = ssub.s32 %s12, 1
      %p198 = scmp.lt.s32.totalorder %s17, 1
      %s199 = scalar_select %p198, %s17, 1
      %s200 = smul.addr %s199, 32
      %s201 = smul.addr %s200, 8
      %s202 = scalar_lea.vmem %s0, %s201
      %p203 = pneg %p38
      %p204 = pneg %p35
      %p205 = pneg %p59
      %p206 = pneg %p56
      %p207 = pneg %p80
      %p208 = pneg %p77
      %p209 = pneg %p106
      %p210 = pneg %p103
      %p211 = scmp.lt.s32.totalorder %s17, 1
      %s212 = scalar_select %p211, %s17, 1
      %s213 = smul.addr %s212, 32
      %s214 = smul.addr %s213, 8
      %s215 = scalar_lea.vmem %s3, %s214
      %p216 = pneg %p132
      %p217 = pneg %p129
      %p218 = scmp.lt.s32.totalorder %s17, 1
      %s219 = scalar_select %p218, %s17, 1
      %s220 = smul.addr %s219, 32
      %s221 = smul.addr %s220, 8
      %s222 = scalar_lea.vmem %s4, %s221
      %p223 = pneg %p158
      %p224 = pneg %p155
      %p225 = scmp.lt.s32.totalorder %s17, 1
      %s226 = scalar_select %p225, %s17, 1
      %s227 = smul.addr %s226, 4
      %s228 = scalar_lea.vmem %s5, %s227
      %p229 = scmp.lt.s32.totalorder %s17, 1
      %s230 = scalar_select %p229, %s17, 1
      %s231 = smul.addr %s230, 32
      %s232 = smul.addr %s231, 8
      %s233 = scalar_lea.vmem %s0, %s232
      %p234 = scmp.lt.s32.totalorder %s17, 1
      %s235 = scalar_select %p234, %s17, 1
      %s236 = smul.addr %s235, 32
      %s237 = smul.addr %s236, 8
      %s238 = scalar_lea.vmem %s3, %s237
      %p239 = scmp.lt.s32.totalorder %s17, 1
      %s240 = scalar_select %p239, %s17, 1
      %s241 = smul.addr %s240, 32
      %s242 = smul.addr %s241, 8
      %s243 = scalar_lea.vmem %s4, %s242
      %p244 = scmp.lt.s32.totalorder %s17, 1
      %s245 = scalar_select %p244, %s17, 1
      %s246 = smul.addr %s245, 4
      %s247 = scalar_lea.vmem %s5, %s246
      %vm249 = vcmask 31744
      %250 = vst.msk [vmem:[#allocation2] sm:$0xff] %vm249, 0.0
      %251 = vst.msk [vmem:[#allocation2 + $0x8] sm:$0xff] %vm249, 0.0
      %vm252 = vcmask 25600
      %253 = vst.msk [vmem:[#allocation2 + $0x10] sm:$0x3] %vm252, 0.0
      %254 = vst.msk [vmem:[#allocation2 + $0x18] sm:$0xff] %vm249, 0.0
      %255 = vst.msk [vmem:[#allocation2 + $0x20] sm:$0xff] %vm249, 0.0
      %256 = vst.msk [vmem:[#allocation2 + $0x28] sm:$0x3] %vm252, 0.0
      %257 = vst.msk [vmem:[#allocation2 + $0x30] sm:$0xff] %vm249, 0.0
      %258 = vst.msk [vmem:[#allocation2 + $0x38] sm:$0xff] %vm249, 0.0
      %259 = vst.msk [vmem:[#allocation2 + $0x40] sm:$0x3] %vm252, 0.0
      %260 = vst.msk [vmem:[#allocation2 + $0x48] sm:$0xff] %vm249, 0.0
      %261 = vst.msk [vmem:[#allocation2 + $0x50] sm:$0xff] %vm249, 0.0
      %262 = vst.msk [vmem:[#allocation2 + $0x58] sm:$0x3] %vm252, 0.0
      %263 = vst.msk [vmem:[#allocation2 + $0x60] sm:$0xff] %vm249, 0.0
      %264 = vst.msk [vmem:[#allocation2 + $0x68] sm:$0xff] %vm249, 0.0
      %265 = vst.msk [vmem:[#allocation2 + $0x70] sm:$0x3] %vm252, 0.0
      %266 = vst.msk [vmem:[#allocation2 + $0x78] sm:$0xff] %vm249, 0.0
      %267 = vst.msk [vmem:[#allocation2 + $0x80] sm:$0xff] %vm249, 0.0
      %268 = vst.msk [vmem:[#allocation2 + $0x88] sm:$0x3] %vm252, 0.0
      %269 = vst.msk [vmem:[#allocation2 + $0x90] sm:$0xff] %vm249, 0.0
      %270 = vst.msk [vmem:[#allocation2 + $0x98] sm:$0xff] %vm249, 0.0
      %271 = vst.msk [vmem:[#allocation2 + $0xa0] sm:$0x3] %vm252, 0.0
      %272 = vst.msk [vmem:[#allocation2 + $0xa8] sm:$0xff] %vm249, 0.0
      %273 = vst.msk [vmem:[#allocation2 + $0xb0] sm:$0xff] %vm249, 0.0
      %274 = vst.msk [vmem:[#allocation2 + $0xb8] sm:$0x3] %vm252, 0.0
      %275 = vst.msk [vmem:[#allocation2 + $0xc0] sm:$0xff] %vm249, 0.0
      %276 = vst.msk [vmem:[#allocation2 + $0xc8] sm:$0xff] %vm249, 0.0
      %277 = vst.msk [vmem:[#allocation2 + $0xd0] sm:$0x3] %vm252, 0.0
      %278 = vst.msk [vmem:[#allocation2 + $0xd8] sm:$0xff] %vm249, 0.0
      %279 = vst.msk [vmem:[#allocation2 + $0xe0] sm:$0xff] %vm249, 0.0
      %280 = vst.msk [vmem:[#allocation2 + $0xe8] sm:$0x3] %vm252, 0.0
      %281 = vst.msk [vmem:[#allocation2 + $0xf0] sm:$0xff] %vm249, 0.0
      %282 = vst.msk [vmem:[#allocation2 + $0xf8] sm:$0xff] %vm249, 0.0
      %283 = vst.msk [vmem:[#allocation2 + $0x100] sm:$0x3] %vm252, 0.0
      %284 = vst.msk [vmem:[#allocation2 + $0x108] sm:$0xff] %vm249, 0.0
      %285 = vst.msk [vmem:[#allocation2 + $0x110] sm:$0xff] %vm249, 0.0
      %286 = vst.msk [vmem:[#allocation2 + $0x118] sm:$0x3] %vm252, 0.0
      %287 = vst.msk [vmem:[#allocation2 + $0x120] sm:$0xff] %vm249, 0.0
      %288 = vst.msk [vmem:[#allocation2 + $0x128] sm:$0xff] %vm249, 0.0
      %289 = vst.msk [vmem:[#allocation2 + $0x130] sm:$0x3] %vm252, 0.0
      %290 = vst.msk [vmem:[#allocation2 + $0x138] sm:$0xff] %vm249, 0.0
      %291 = vst.msk [vmem:[#allocation2 + $0x140] sm:$0xff] %vm249, 0.0
      %292 = vst.msk [vmem:[#allocation2 + $0x148] sm:$0x3] %vm252, 0.0
      %293 = vst.msk [vmem:[#allocation2 + $0x150] sm:$0xff] %vm249, 0.0
      %294 = vst.msk [vmem:[#allocation2 + $0x158] sm:$0xff] %vm249, 0.0
      %295 = vst.msk [vmem:[#allocation2 + $0x160] sm:$0x3] %vm252, 0.0
      %296 = vst.msk [vmem:[#allocation2 + $0x168] sm:$0xff] %vm249, 0.0
      %297 = vst.msk [vmem:[#allocation2 + $0x170] sm:$0xff] %vm249, 0.0
      %298 = vst.msk [vmem:[#allocation2 + $0x178] sm:$0x3] %vm252, 0.0
      %299 = vst.msk [vmem:[#allocation2 + $0x180] sm:$0xff] %vm249, 0.0
      %300 = vst.msk [vmem:[#allocation2 + $0x188] sm:$0xff] %vm249, 0.0
      %301 = vst.msk [vmem:[#allocation2 + $0x190] sm:$0x3] %vm252, 0.0
      %302 = vst.msk [vmem:[#allocation2 + $0x198] sm:$0xff] %vm249, 0.0
      %303 = vst.msk [vmem:[#allocation2 + $0x1a0] sm:$0xff] %vm249, 0.0
      %304 = vst.msk [vmem:[#allocation2 + $0x1a8] sm:$0x3] %vm252, 0.0
      %v305 = vld [vmem:[%s233] sm:$0xff]
      %v306 = vld [vmem:[%s233 + $0x8] sm:$0xff]
      %v307 = vld [vmem:[%s233 + $0x10] sm:$0xff]
      %v308 = vld [vmem:[%s233 + $0x18] sm:$0xff]
      %v309 = vld [vmem:[%s233 + $0x20] sm:$0xff]
      %v310 = vld [vmem:[%s233 + $0x28] sm:$0xff]
      %v311 = vld [vmem:[%s233 + $0x30] sm:$0xff]
      %v312 = vld [vmem:[%s233 + $0x38] sm:$0xff]
      %v313 = vld [vmem:[%s233 + $0x40] sm:$0xff]
      %v314 = vld [vmem:[%s233 + $0x48] sm:$0xff]
      %v315 = vld [vmem:[%s233 + $0x50] sm:$0xff]
      %v316 = vld [vmem:[%s233 + $0x58] sm:$0xff]
      %v317 = vld [vmem:[%s233 + $0x60] sm:$0xff]
      %v318 = vld [vmem:[%s233 + $0x68] sm:$0xff]
      %v319 = vld [vmem:[%s233 + $0x70] sm:$0xff]
      %v320 = vld [vmem:[%s233 + $0x78] sm:$0xff]
      %v321 = vld [vmem:[%s233 + $0x80] sm:$0xff]
      %v322 = vld [vmem:[%s233 + $0x88] sm:$0xff]
      %v323 = vld [vmem:[%s233 + $0x90] sm:$0xff]
      %v324 = vld [vmem:[%s233 + $0x98] sm:$0xff]
      %v325 = vld [vmem:[%s233 + $0xa0] sm:$0xff]
      %v326 = vld [vmem:[%s233 + $0xa8] sm:$0xff]
      %v327 = vld [vmem:[%s233 + $0xb0] sm:$0xff]
      %v328 = vld [vmem:[%s233 + $0xb8] sm:$0xff]
      %v329 = vld [vmem:[%s233 + $0xc0] sm:$0xff]
      %v330 = vld [vmem:[%s233 + $0xc8] sm:$0xff]
      %v331 = vld [vmem:[%s233 + $0xd0] sm:$0xff]
      %v332 = vld [vmem:[%s233 + $0xd8] sm:$0xff]
      %v333 = vld [vmem:[%s233 + $0xe0] sm:$0xff]
      %v334 = vld [vmem:[%s233 + $0xe8] sm:$0xff]
      %v335 = vld [vmem:[%s233 + $0xf0] sm:$0xff]
      %v336 = vld [vmem:[%s233 + $0xf8] sm:$0xff]
      %s337 = scalar_lea.vmem [#allocation2], 24
      %338 = vst.msk [vmem:[%s337 + $0x1] sm:$0xff] %vm249, %v305
      %339 = vst.msk [vmem:[%s337 + $0x9] sm:$0xff] %vm249, %v306
      %340 = vst.msk [vmem:[%s337 + $0x19] sm:$0xff] %vm249, %v307
      %341 = vst.msk [vmem:[%s337 + $0x21] sm:$0xff] %vm249, %v308
      %342 = vst.msk [vmem:[%s337 + $0x31] sm:$0xff] %vm249, %v309
      %343 = vst.msk [vmem:[%s337 + $0x39] sm:$0xff] %vm249, %v310
      %344 = vst.msk [vmem:[%s337 + $0x49] sm:$0xff] %vm249, %v311
      %345 = vst.msk [vmem:[%s337 + $0x51] sm:$0xff] %vm249, %v312
      %346 = vst.msk [vmem:[%s337 + $0x61] sm:$0xff] %vm249, %v313
      %347 = vst.msk [vmem:[%s337 + $0x69] sm:$0xff] %vm249, %v314
      %348 = vst.msk [vmem:[%s337 + $0x79] sm:$0xff] %vm249, %v315
      %349 = vst.msk [vmem:[%s337 + $0x81] sm:$0xff] %vm249, %v316
      %350 = vst.msk [vmem:[%s337 + $0x91] sm:$0xff] %vm249, %v317
      %351 = vst.msk [vmem:[%s337 + $0x99] sm:$0xff] %vm249, %v318
      %352 = vst.msk [vmem:[%s337 + $0xa9] sm:$0xff] %vm249, %v319
      %353 = vst.msk [vmem:[%s337 + $0xb1] sm:$0xff] %vm249, %v320
      %354 = vst.msk [vmem:[%s337 + $0xc1] sm:$0xff] %vm249, %v321
      %355 = vst.msk [vmem:[%s337 + $0xc9] sm:$0xff] %vm249, %v322
      %356 = vst.msk [vmem:[%s337 + $0xd9] sm:$0xff] %vm249, %v323
      %357 = vst.msk [vmem:[%s337 + $0xe1] sm:$0xff] %vm249, %v324
      %358 = vst.msk [vmem:[%s337 + $0xf1] sm:$0xff] %vm249, %v325
      %359 = vst.msk [vmem:[%s337 + $0xf9] sm:$0xff] %vm249, %v326
      %360 = vst.msk [vmem:[%s337 + $0x109] sm:$0xff] %vm249, %v327
      %361 = vst.msk [vmem:[%s337 + $0x111] sm:$0xff] %vm249, %v328
      %362 = vst.msk [vmem:[%s337 + $0x121] sm:$0xff] %vm249, %v329
      %363 = vst.msk [vmem:[%s337 + $0x129] sm:$0xff] %vm249, %v330
      %364 = vst.msk [vmem:[%s337 + $0x139] sm:$0xff] %vm249, %v331
      %365 = vst.msk [vmem:[%s337 + $0x141] sm:$0xff] %vm249, %v332
      %366 = vst.msk [vmem:[%s337 + $0x151] sm:$0xff] %vm249, %v333
      %367 = vst.msk [vmem:[%s337 + $0x159] sm:$0xff] %vm249, %v334
      %368 = vst.msk [vmem:[%s337 + $0x169] sm:$0xff] %vm249, %v335
      %369 = vst.msk [vmem:[%s337 + $0x171] sm:$0xff] %vm249, %v336
      %v370 = vld [vmem:[%s233] sm:$0xff]
      %v371 = vld [vmem:[%s233 + $0x8] sm:$0xff]
      %v372 = vld [vmem:[%s233 + $0x10] sm:$0xff]
      %v373 = vld [vmem:[%s233 + $0x18] sm:$0xff]
      %v374 = vld [vmem:[%s233 + $0x20] sm:$0xff]
      %v375 = vld [vmem:[%s233 + $0x28] sm:$0xff]
      %v376 = vld [vmem:[%s233 + $0x30] sm:$0xff]
      %v377 = vld [vmem:[%s233 + $0x38] sm:$0xff]
      %v378 = vld [vmem:[%s233 + $0x40] sm:$0xff]
      %v379 = vld [vmem:[%s233 + $0x48] sm:$0xff]
      %v380 = vld [vmem:[%s233 + $0x50] sm:$0xff]
      %v381 = vld [vmem:[%s233 + $0x58] sm:$0xff]
      %v382 = vld [vmem:[%s233 + $0x60] sm:$0xff]
      %v383 = vld [vmem:[%s233 + $0x68] sm:$0xff]
      %v384 = vld [vmem:[%s233 + $0x70] sm:$0xff]
      %v385 = vld [vmem:[%s233 + $0x78] sm:$0xff]
      %v386 = vld [vmem:[%s233 + $0x80] sm:$0xff]
      %v387 = vld [vmem:[%s233 + $0x88] sm:$0xff]
      %v388 = vld [vmem:[%s233 + $0x90] sm:$0xff]
      %v389 = vld [vmem:[%s233 + $0x98] sm:$0xff]
      %v390 = vld [vmem:[%s233 + $0xa0] sm:$0xff]
      %v391 = vld [vmem:[%s233 + $0xa8] sm:$0xff]
      %v392 = vld [vmem:[%s233 + $0xb0] sm:$0xff]
      %v393 = vld [vmem:[%s233 + $0xb8] sm:$0xff]
      %v394 = vld [vmem:[%s233 + $0xc0] sm:$0xff]
      %v395 = vld [vmem:[%s233 + $0xc8] sm:$0xff]
      %v396 = vld [vmem:[%s233 + $0xd0] sm:$0xff]
      %v397 = vld [vmem:[%s233 + $0xd8] sm:$0xff]
      %v398 = vld [vmem:[%s233 + $0xe0] sm:$0xff]
      %v399 = vld [vmem:[%s233 + $0xe8] sm:$0xff]
      %v400 = vld [vmem:[%s233 + $0xf0] sm:$0xff]
      %v401 = vld [vmem:[%s233 + $0xf8] sm:$0xff]
      %v402 = vpack.c.bf16 %v371, %v370
      %v403 = vpack.c.bf16 %v373, %v372
      %v404 = vpack.c.bf16 %v375, %v374
      %v405 = vpack.c.bf16 %v377, %v376
      %v406 = vpack.c.bf16 %v379, %v378
      %v407 = vpack.c.bf16 %v381, %v380
      %v408 = vpack.c.bf16 %v383, %v382
      %v409 = vpack.c.bf16 %v385, %v384
      %v410 = vpack.c.bf16 %v387, %v386
      %v411 = vpack.c.bf16 %v389, %v388
      %v412 = vpack.c.bf16 %v391, %v390
      %v413 = vpack.c.bf16 %v393, %v392
      %v414 = vpack.c.bf16 %v395, %v394
      %v415 = vpack.c.bf16 %v397, %v396
      %v416 = vpack.c.bf16 %v399, %v398
      %v417 = vpack.c.bf16 %v401, %v400
      %v418 = vld [vmem:[%s2] sm:$0x3]
      %v420 = vsel %vm249, %v402, 0
      %v423 = vsel %vm249, %v403, 0
      %v426 = vsel %vm249, %v404, 0
      %v429 = vsel %vm249, %v405, 0
      %v432 = vsel %vm249, %v406, 0
      %v435 = vsel %vm249, %v407, 0
      %v438 = vsel %vm249, %v408, 0
      %v441 = vsel %vm249, %v409, 0
      %v444 = vsel %vm249, %v410, 0
      %v447 = vsel %vm249, %v411, 0
      %v450 = vsel %vm249, %v412, 0
      %v453 = vsel %vm249, %v413, 0
      %v456 = vsel %vm249, %v414, 0
      %v459 = vsel %vm249, %v415, 0
      %v462 = vsel %vm249, %v416, 0
      %v465 = vsel %vm249, %v417, 0
      %vm467 = vcmask 1041408
      %v469 = vsel %vm467, %v418, 0
      %471 = vmatprep.subr.bf16.mxu0 0
      %472 = vmatpush1.bf16.msra.mxu0 %v469
      %473 = vmatprep.subr.bf16.mxu0 0
      %474 = vmatpush1.bf16.msra.mxu0 0
      %475 = vmatprep.subr.bf16.mxu0 0
      %476 = vmatpush1.bf16.msra.mxu0 0
      %477 = vmatprep.subr.bf16.mxu0 0
      %478 = vmatpush1.bf16.msra.mxu0 0
      %479 = vmatprep.subr.bf16.mxu0 0
      %480 = vmatpush1.bf16.msra.mxu0 0
      %481 = vmatprep.subr.bf16.mxu0 0
      %482 = vmatpush1.bf16.msra.mxu0 0
      %483 = vmatprep.subr.bf16.mxu0 0
      %484 = vmatpush1.bf16.msra.mxu0 0
      %485 = vmatprep.subr.bf16.mxu0 0
      %486 = vmatpush1.bf16.msra.mxu0 0
      %487 = vmatprep.subr.bf16.mxu0 0
      %488 = vmatpush1.bf16.msra.mxu0 0
      %489 = vmatprep.subr.bf16.mxu0 0
      %490 = vmatpush1.bf16.msra.mxu0 0
      %491 = vmatprep.subr.bf16.mxu0 0
      %492 = vmatpush1.bf16.msra.mxu0 0
      %493 = vmatprep.subr.bf16.mxu0 0
      %494 = vmatpush1.bf16.msra.mxu0 0
      %495 = vmatprep.subr.bf16.mxu0 0
      %496 = vmatpush1.bf16.msra.mxu0 0
      %497 = vmatprep.subr.bf16.mxu0 0
      %498 = vmatpush1.bf16.msra.mxu0 0
      %499 = vmatprep.subr.bf16.mxu0 0
      %500 = vmatpush1.bf16.msra.mxu0 0
      %501 = vmatprep.subr.bf16.mxu0 0
      %502 = vmatpush1.bf16.msra.mxu0 0
      %503 = vmatprep.mubr.bf16.mxu0 0
      %504 = vmatmul.mubr.bf16.gmra.mrb[0].mxu0 %v420
      %v505 = vpop.f32.mrb[0].mxu0
      %v506 = vadd.f32 0.0, %v505
      %v507 = vpop.f32.mrb[0].mxu0
      %v508 = vpop.f32.mrb[0].mxu0
      %v509 = vadd.f32 0.0, %v508
      %v510 = vpop.f32.mrb[0].mxu0
      %511 = vmatprep.mubr.bf16.mxu0 0
      %512 = vmatmul.mubr.bf16.gmra.mrb[0].mxu0 %v423
      %v513 = vpop.f32.mrb[0].mxu0
      %v514 = vadd.f32 0.0, %v513
      %v515 = vpop.f32.mrb[0].mxu0
      %v516 = vpop.f32.mrb[0].mxu0
      %v517 = vadd.f32 0.0, %v516
      %v518 = vpop.f32.mrb[0].mxu0
      %519 = vmatprep.mubr.bf16.mxu0 0
      %520 = vmatmul.mubr.bf16.gmra.mrb[0].mxu0 %v426
      %v521 = vpop.f32.mrb[0].mxu0
      %v522 = vadd.f32 0.0, %v521
      %v523 = vpop.f32.mrb[0].mxu0
      %v524 = vpop.f32.mrb[0].mxu0
      %v525 = vadd.f32 0.0, %v524
      %v526 = vpop.f32.mrb[0].mxu0
      %527 = vmatprep.mubr.bf16.mxu0 0
      %528 = vmatmul.mubr.bf16.gmra.mrb[0].mxu0 %v429
      %v529 = vpop.f32.mrb[0].mxu0
      %v530 = vadd.f32 0.0, %v529
      %v531 = vpop.f32.mrb[0].mxu0
      %v532 = vpop.f32.mrb[0].mxu0
      %v533 = vadd.f32 0.0, %v532
      %v534 = vpop.f32.mrb[0].mxu0
      %535 = vmatprep.mubr.bf16.mxu0 0
      %536 = vmatmul.mubr.bf16.gmra.mrb[0].mxu0 %v432
      %v537 = vpop.f32.mrb[0].mxu0
      %v538 = vadd.f32 0.0, %v537
      %v539 = vpop.f32.mrb[0].mxu0
      %v540 = vpop.f32.mrb[0].mxu0
      %v541 = vadd.f32 0.0, %v540
      %v542 = vpop.f32.mrb[0].mxu0
      %543 = vmatprep.mubr.bf16.mxu0 0
      %544 = vmatmul.mubr.bf16.gmra.mrb[0].mxu0 %v435
      %v545 = vpop.f32.mrb[0].mxu0
      %v546 = vadd.f32 0.0, %v545
      %v547 = vpop.f32.mrb[0].mxu0
      %v548 = vpop.f32.mrb[0].mxu0
      %v549 = vadd.f32 0.0, %v548
      %v550 = vpop.f32.mrb[0].mxu0
      %551 = vmatprep.mubr.bf16.mxu0 0
      %552 = vmatmul.mubr.bf16.gmra.mrb[0].mxu0 %v438
      %v553 = vpop.f32.mrb[0].mxu0
      %v554 = vadd.f32 0.0, %v553
      %v555 = vpop.f32.mrb[0].mxu0
      %v556 = vpop.f32.mrb[0].mxu0
      %v557 = vadd.f32 0.0, %v556
      %v558 = vpop.f32.mrb[0].mxu0
      %559 = vmatprep.mubr.bf16.mxu0 0
      %560 = vmatmul.mubr.bf16.gmra.mrb[0].mxu0 %v441
      %v561 = vpop.f32.mrb[0].mxu0
      %v562 = vadd.f32 0.0, %v561
      %v563 = vpop.f32.mrb[0].mxu0
      %v564 = vpop.f32.mrb[0].mxu0
      %v565 = vadd.f32 0.0, %v564
      %v566 = vpop.f32.mrb[0].mxu0
      %567 = vmatprep.mubr.bf16.mxu0 0
      %568 = vmatmul.mubr.bf16.gmra.mrb[0].mxu0 %v444
      %v569 = vpop.f32.mrb[0].mxu0
      %v570 = vadd.f32 0.0, %v569
      %v571 = vpop.f32.mrb[0].mxu0
      %v572 = vpop.f32.mrb[0].mxu0
      %v573 = vadd.f32 0.0, %v572
      %v574 = vpop.f32.mrb[0].mxu0
      %575 = vmatprep.mubr.bf16.mxu0 0
      %576 = vmatmul.mubr.bf16.gmra.mrb[0].mxu0 %v447
      %v577 = vpop.f32.mrb[0].mxu0
      %v578 = vadd.f32 0.0, %v577
      %v579 = vpop.f32.mrb[0].mxu0
      %v580 = vpop.f32.mrb[0].mxu0
      %v581 = vadd.f32 0.0, %v580
      %v582 = vpop.f32.mrb[0].mxu0
      %583 = vmatprep.mubr.bf16.mxu0 0
      %584 = vmatmul.mubr.bf16.gmra.mrb[0].mxu0 %v450
      %v585 = vpop.f32.mrb[0].mxu0
      %v586 = vadd.f32 0.0, %v585
      %v587 = vpop.f32.mrb[0].mxu0
      %v588 = vpop.f32.mrb[0].mxu0
      %v589 = vadd.f32 0.0, %v588
      %v590 = vpop.f32.mrb[0].mxu0
      %591 = vmatprep.mubr.bf16.mxu0 0
      %592 = vmatmul.mubr.bf16.gmra.mrb[0].mxu0 %v453
      %v593 = vpop.f32.mrb[0].mxu0
      %v594 = vadd.f32 0.0, %v593
      %v595 = vpop.f32.mrb[0].mxu0
      %v596 = vpop.f32.mrb[0].mxu0
      %v597 = vadd.f32 0.0, %v596
      %v598 = vpop.f32.mrb[0].mxu0
      %599 = vmatprep.mubr.bf16.mxu0 0
      %600 = vmatmul.mubr.bf16.gmra.mrb[0].mxu0 %v456
      %v601 = vpop.f32.mrb[0].mxu0
      %v602 = vadd.f32 0.0, %v601
      %v603 = vpop.f32.mrb[0].mxu0
      %v604 = vpop.f32.mrb[0].mxu0
      %v605 = vadd.f32 0.0, %v604
      %v606 = vpop.f32.mrb[0].mxu0
      %607 = vmatprep.mubr.bf16.mxu0 0
      %608 = vmatmul.mubr.bf16.gmra.mrb[0].mxu0 %v459
      %v609 = vpop.f32.mrb[0].mxu0
      %v610 = vadd.f32 0.0, %v609
      %v611 = vpop.f32.mrb[0].mxu0
      %v612 = vpop.f32.mrb[0].mxu0
      %v613 = vadd.f32 0.0, %v612
      %v614 = vpop.f32.mrb[0].mxu0
      %615 = vmatprep.mubr.bf16.mxu0 0
      %616 = vmatmul.mubr.bf16.gmra.mrb[0].mxu0 %v462
      %v617 = vpop.f32.mrb[0].mxu0
      %v618 = vadd.f32 0.0, %v617
      %v619 = vpop.f32.mrb[0].mxu0
      %v620 = vpop.f32.mrb[0].mxu0
      %v621 = vadd.f32 0.0, %v620
      %v622 = vpop.f32.mrb[0].mxu0
      %623 = vmatprep.mubr.bf16.mxu0 0
      %624 = vmatmul.mubr.bf16.gmra.mrb[0].mxu0 %v465
      %v625 = vpop.f32.mrb[0].mxu0
      %v626 = vadd.f32 0.0, %v625
      %v627 = vpop.f32.mrb[0].mxu0
      %v628 = vpop.f32.mrb[0].mxu0
      %v629 = vadd.f32 0.0, %v628
      %v630 = vpop.f32.mrb[0].mxu0
      %631 = vdwg.mxu0
      %v632 = vld [vmem:[#allocation2] sm:$0xff]
      %v633 = vld [vmem:[#allocation2 + $0x8] sm:$0xff]
      %v634 = vld [vmem:[#allocation2 + $0x10] sm:$0x3]
      %v635 = vld [vmem:[#allocation2 + $0x18] sm:$0xff]
      %v636 = vld [vmem:[#allocation2 + $0x20] sm:$0xff]
      %v637 = vld [vmem:[#allocation2 + $0x28] sm:$0x3]
      %v638 = vld [vmem:[#allocation2 + $0x30] sm:$0xff]
      %v639 = vld [vmem:[#allocation2 + $0x38] sm:$0xff]
      %v640 = vld [vmem:[#allocation2 + $0x40] sm:$0x3]
      %v641 = vld [vmem:[#allocation2 + $0x48] sm:$0xff]
      %v642 = vld [vmem:[#allocation2 + $0x50] sm:$0xff]
      %v643 = vld [vmem:[#allocation2 + $0x58] sm:$0x3]
      %v644 = vld [vmem:[#allocation2 + $0x60] sm:$0xff]
      %v645 = vld [vmem:[#allocation2 + $0x68] sm:$0xff]
      %v646 = vld [vmem:[#allocation2 + $0x70] sm:$0x3]
      %v647 = vld [vmem:[#allocation2 + $0x78] sm:$0xff]
      %v648 = vld [vmem:[#allocation2 + $0x80] sm:$0xff]
      %v649 = vld [vmem:[#allocation2 + $0x88] sm:$0x3]
      %v650 = vld [vmem:[#allocation2 + $0x90] sm:$0xff]
      %v651 = vld [vmem:[#allocation2 + $0x98] sm:$0xff]
      %v652 = vld [vmem:[#allocation2 + $0xa0] sm:$0x3]
      %v653 = vld [vmem:[#allocation2 + $0xa8] sm:$0xff]
      %v654 = vld [vmem:[#allocation2 + $0xb0] sm:$0xff]
      %v655 = vld [vmem:[#allocation2 + $0xb8] sm:$0x3]
      %v656 = vld [vmem:[#allocation2 + $0xc0] sm:$0xff]
      %v657 = vld [vmem:[#allocation2 + $0xc8] sm:$0xff]
      %v658 = vld [vmem:[#allocation2 + $0xd0] sm:$0x3]
      %v659 = vld [vmem:[#allocation2 + $0xd8] sm:$0xff]
      %v660 = vld [vmem:[#allocation2 + $0xe0] sm:$0xff]
      %v661 = vld [vmem:[#allocation2 + $0xe8] sm:$0x3]
      %v662 = vld [vmem:[#allocation2 + $0xf0] sm:$0xff]
      %v663 = vld [vmem:[#allocation2 + $0xf8] sm:$0xff]
      %v664 = vld [vmem:[#allocation2 + $0x100] sm:$0x3]
      %v665 = vld [vmem:[#allocation2 + $0x108] sm:$0xff]
      %v666 = vld [vmem:[#allocation2 + $0x110] sm:$0xff]
      %v667 = vld [vmem:[#allocation2 + $0x118] sm:$0x3]
      %v668 = vld [vmem:[#allocation2 + $0x120] sm:$0xff]
      %v669 = vld [vmem:[#allocation2 + $0x128] sm:$0xff]
      %v670 = vld [vmem:[#allocation2 + $0x130] sm:$0x3]
      %v671 = vld [vmem:[#allocation2 + $0x138] sm:$0xff]
      %v672 = vld [vmem:[#allocation2 + $0x140] sm:$0xff]
      %v673 = vld [vmem:[#allocation2 + $0x148] sm:$0x3]
      %v674 = vld [vmem:[#allocation2 + $0x150] sm:$0xff]
      %v675 = vld [vmem:[#allocation2 + $0x158] sm:$0xff]
      %v676 = vld [vmem:[#allocation2 + $0x160] sm:$0x3]
      %v677 = vld [vmem:[#allocation2 + $0x168] sm:$0xff]
      %v678 = vld [vmem:[#allocation2 + $0x170] sm:$0xff]
      %v679 = vld [vmem:[#allocation2 + $0x178] sm:$0x3]
      %v680 = vpack.c.bf16 %v633, %v632
      %v681 = vpack.c.bf16 %v634, %v634
      %v682 = vpack.c.bf16 %v636, %v635
      %v683 = vpack.c.bf16 %v637, %v637
      %v684 = vpack.c.bf16 %v639, %v638
      %v685 = vpack.c.bf16 %v640, %v640
      %v686 = vpack.c.bf16 %v642, %v641
      %v687 = vpack.c.bf16 %v643, %v643
      %v688 = vpack.c.bf16 %v645, %v644
      %v689 = vpack.c.bf16 %v646, %v646
      %v690 = vpack.c.bf16 %v648, %v647
      %v691 = vpack.c.bf16 %v649, %v649
      %v692 = vpack.c.bf16 %v651, %v650
      %v693 = vpack.c.bf16 %v652, %v652
      %v694 = vpack.c.bf16 %v654, %v653
      %v695 = vpack.c.bf16 %v655, %v655
      %v696 = vpack.c.bf16 %v657, %v656
      %v697 = vpack.c.bf16 %v658, %v658
      %v698 = vpack.c.bf16 %v660, %v659
      %v699 = vpack.c.bf16 %v661, %v661
      %v700 = vpack.c.bf16 %v663, %v662
      %v701 = vpack.c.bf16 %v664, %v664
      %v702 = vpack.c.bf16 %v666, %v665
      %v703 = vpack.c.bf16 %v667, %v667
      %v704 = vpack.c.bf16 %v669, %v668
      %v705 = vpack.c.bf16 %v670, %v670
      %v706 = vpack.c.bf16 %v672, %v671
      %v707 = vpack.c.bf16 %v673, %v673
      %v708 = vpack.c.bf16 %v675, %v674
      %v709 = vpack.c.bf16 %v676, %v676
      %v710 = vpack.c.bf16 %v678, %v677
      %v711 = vpack.c.bf16 %v679, %v679
      %v712 = vld [vmem:[%s1] sm:$0x3]
      %vm713 = vsmask.f32 7424
      %v715 = vshrl.u32 %v680, 16
      %v717 = vshll.u32 %v680, 16
      %v719 = vrot.slane %v717, 1
      %v720 = vor.u32 %v715, %v719
      %v722 = vshll.u32 %v681, 16
      %v724 = vrot.slane %v722, 1
      %v725 = vsel %vm713, %v720, %v724
      %v727 = vshrl.u32 %v682, 16
      %v729 = vshll.u32 %v682, 16
      %v731 = vrot.slane %v729, 1
      %v732 = vor.u32 %v727, %v731
      %v734 = vshll.u32 %v683, 16
      %v736 = vrot.slane %v734, 1
      %v737 = vsel %vm713, %v732, %v736
      %v739 = vshrl.u32 %v684, 16
      %v741 = vshll.u32 %v684, 16
      %v743 = vrot.slane %v741, 1
      %v744 = vor.u32 %v739, %v743
      %v746 = vshll.u32 %v685, 16
      %v748 = vrot.slane %v746, 1
      %v749 = vsel %vm713, %v744, %v748
      %v751 = vshrl.u32 %v686, 16
      %v753 = vshll.u32 %v686, 16
      %v755 = vrot.slane %v753, 1
      %v756 = vor.u32 %v751, %v755
      %v758 = vshll.u32 %v687, 16
      %v760 = vrot.slane %v758, 1
      %v761 = vsel %vm713, %v756, %v760
      %v763 = vshrl.u32 %v688, 16
      %v765 = vshll.u32 %v688, 16
      %v767 = vrot.slane %v765, 1
      %v768 = vor.u32 %v763, %v767
      %v770 = vshll.u32 %v689, 16
      %v772 = vrot.slane %v770, 1
      %v773 = vsel %vm713, %v768, %v772
      %v775 = vshrl.u32 %v690, 16
      %v777 = vshll.u32 %v690, 16
      %v779 = vrot.slane %v777, 1
      %v780 = vor.u32 %v775, %v779
      %v782 = vshll.u32 %v691, 16
      %v784 = vrot.slane %v782, 1
      %v785 = vsel %vm713, %v780, %v784
      %v787 = vshrl.u32 %v692, 16
      %v789 = vshll.u32 %v692, 16
      %v791 = vrot.slane %v789, 1
      %v792 = vor.u32 %v787, %v791
      %v794 = vshll.u32 %v693, 16
      %v796 = vrot.slane %v794, 1
      %v797 = vsel %vm713, %v792, %v796
      %v799 = vshrl.u32 %v694, 16
      %v801 = vshll.u32 %v694, 16
      %v803 = vrot.slane %v801, 1
      %v804 = vor.u32 %v799, %v803
      %v806 = vshll.u32 %v695, 16
      %v808 = vrot.slane %v806, 1
      %v809 = vsel %vm713, %v804, %v808
      %v811 = vshrl.u32 %v696, 16
      %v813 = vshll.u32 %v696, 16
      %v815 = vrot.slane %v813, 1
      %v816 = vor.u32 %v811, %v815
      %v818 = vshll.u32 %v697, 16
      %v820 = vrot.slane %v818, 1
      %v821 = vsel %vm713, %v816, %v820
      %v823 = vshrl.u32 %v698, 16
      %v825 = vshll.u32 %v698, 16
      %v827 = vrot.slane %v825, 1
      %v828 = vor.u32 %v823, %v827
      %v830 = vshll.u32 %v699, 16
      %v832 = vrot.slane %v830, 1
      %v833 = vsel %vm713, %v828, %v832
      %v835 = vshrl.u32 %v700, 16
      %v837 = vshll.u32 %v700, 16
      %v839 = vrot.slane %v837, 1
      %v840 = vor.u32 %v835, %v839
      %v842 = vshll.u32 %v701, 16
      %v844 = vrot.slane %v842, 1
      %v845 = vsel %vm713, %v840, %v844
      %v847 = vshrl.u32 %v702, 16
      %v849 = vshll.u32 %v702, 16
      %v851 = vrot.slane %v849, 1
      %v852 = vor.u32 %v847, %v851
      %v854 = vshll.u32 %v703, 16
      %v856 = vrot.slane %v854, 1
      %v857 = vsel %vm713, %v852, %v856
      %v859 = vshrl.u32 %v704, 16
      %v861 = vshll.u32 %v704, 16
      %v863 = vrot.slane %v861, 1
      %v864 = vor.u32 %v859, %v863
      %v866 = vshll.u32 %v705, 16
      %v868 = vrot.slane %v866, 1
      %v869 = vsel %vm713, %v864, %v868
      %v871 = vshrl.u32 %v706, 16
      %v873 = vshll.u32 %v706, 16
      %v875 = vrot.slane %v873, 1
      %v876 = vor.u32 %v871, %v875
      %v878 = vshll.u32 %v707, 16
      %v880 = vrot.slane %v878, 1
      %v881 = vsel %vm713, %v876, %v880
      %v883 = vshrl.u32 %v708, 16
      %v885 = vshll.u32 %v708, 16
      %v887 = vrot.slane %v885, 1
      %v888 = vor.u32 %v883, %v887
      %v890 = vshll.u32 %v709, 16
      %v892 = vrot.slane %v890, 1
      %v893 = vsel %vm713, %v888, %v892
      %v895 = vshrl.u32 %v710, 16
      %v897 = vshll.u32 %v710, 16
      %v899 = vrot.slane %v897, 1
      %v900 = vor.u32 %v895, %v899
      %v902 = vshll.u32 %v711, 16
      %v904 = vrot.slane %v902, 1
      %v905 = vsel %vm713, %v900, %v904
      %s906 = scalar_lea.vmem %s1, 2
      %v907 = vld [vmem:[%s906] sm:$0x3]
      %v909 = vsel %vm249, %v725, 0
      %v912 = vsel %vm249, %v737, 0
      %v915 = vsel %vm249, %v749, 0
      %v918 = vsel %vm249, %v761, 0
      %v921 = vsel %vm249, %v773, 0
      %v924 = vsel %vm249, %v785, 0
      %v927 = vsel %vm249, %v797, 0
      %v930 = vsel %vm249, %v809, 0
      %v933 = vsel %vm249, %v821, 0
      %v936 = vsel %vm249, %v833, 0
      %v939 = vsel %vm249, %v845, 0
      %v942 = vsel %vm249, %v857, 0
      %v945 = vsel %vm249, %v869, 0
      %v948 = vsel %vm249, %v881, 0
      %v951 = vsel %vm249, %v893, 0
      %v954 = vsel %vm249, %v905, 0
      %v957 = vsel %vm467, %v907, 0
      %959 = vmatprep.subr.bf16.mxu0 0
      %960 = vmatpush1.bf16.msra.mxu0 %v957
      %961 = vmatprep.subr.bf16.mxu0 0
      %962 = vmatpush1.bf16.msra.mxu0 0
      %963 = vmatprep.subr.bf16.mxu0 0
      %964 = vmatpush1.bf16.msra.mxu0 0
      %965 = vmatprep.subr.bf16.mxu0 0
      %966 = vmatpush1.bf16.msra.mxu0 0
      %967 = vmatprep.subr.bf16.mxu0 0
      %968 = vmatpush1.bf16.msra.mxu0 0
      %969 = vmatprep.subr.bf16.mxu0 0
      %970 = vmatpush1.bf16.msra.mxu0 0
      %971 = vmatprep.subr.bf16.mxu0 0
      %972 = vmatpush1.bf16.msra.mxu0 0
      %973 = vmatprep.subr.bf16.mxu0 0
      %974 = vmatpush1.bf16.msra.mxu0 0
      %975 = vmatprep.subr.bf16.mxu0 0
      %976 = vmatpush1.bf16.msra.mxu0 0
      %977 = vmatprep.subr.bf16.mxu0 0
      %978 = vmatpush1.bf16.msra.mxu0 0
      %979 = vmatprep.subr.bf16.mxu0 0
      %980 = vmatpush1.bf16.msra.mxu0 0
      %981 = vmatprep.subr.bf16.mxu0 0
      %982 = vmatpush1.bf16.msra.mxu0 0
      %983 = vmatprep.subr.bf16.mxu0 0
      %984 = vmatpush1.bf16.msra.mxu0 0
      %985 = vmatprep.subr.bf16.mxu0 0
      %986 = vmatpush1.bf16.msra.mxu0 0
      %987 = vmatprep.subr.bf16.mxu0 0
      %988 = vmatpush1.bf16.msra.mxu0 0
      %989 = vmatprep.subr.bf16.mxu0 0
      %990 = vmatpush1.bf16.msra.mxu0 0
      %991 = vmatprep.mubr.bf16.mxu0 0
      %992 = vmatmul.mubr.bf16.gmra.mrb[0].mxu0 %v909
      %v993 = vpop.f32.mrb[0].mxu0
      %v994 = vadd.f32 0.0, %v993
      %v995 = vpop.f32.mrb[0].mxu0
      %v996 = vpop.f32.mrb[0].mxu0
      %v997 = vadd.f32 0.0, %v996
      %v998 = vpop.f32.mrb[0].mxu0
      %999 = vmatprep.mubr.bf16.mxu0 0
      %1000 = vmatmul.mubr.bf16.gmra.mrb[0].mxu0 %v912
      %v1001 = vpop.f32.mrb[0].mxu0
      %v1002 = vadd.f32 0.0, %v1001
      %v1003 = vpop.f32.mrb[0].mxu0
      %v1004 = vpop.f32.mrb[0].mxu0
      %v1005 = vadd.f32 0.0, %v1004
      %v1006 = vpop.f32.mrb[0].mxu0
      %1007 = vmatprep.mubr.bf16.mxu0 0
      %1008 = vmatmul.mubr.bf16.gmra.mrb[0].mxu0 %v915
      %v1009 = vpop.f32.mrb[0].mxu0
      %v1010 = vadd.f32 0.0, %v1009
      %v1011 = vpop.f32.mrb[0].mxu0
      %v1012 = vpop.f32.mrb[0].mxu0
      %v1013 = vadd.f32 0.0, %v1012
      %v1014 = vpop.f32.mrb[0].mxu0
      %1015 = vmatprep.mubr.bf16.mxu0 0
      %1016 = vmatmul.mubr.bf16.gmra.mrb[0].mxu0 %v918
      %v1017 = vpop.f32.mrb[0].mxu0
      %v1018 = vadd.f32 0.0, %v1017
      %v1019 = vpop.f32.mrb[0].mxu0
      %v1020 = vpop.f32.mrb[0].mxu0
      %v1021 = vadd.f32 0.0, %v1020
      %v1022 = vpop.f32.mrb[0].mxu0
      %1023 = vmatprep.mubr.bf16.mxu0 0
      %1024 = vmatmul.mubr.bf16.gmra.mrb[0].mxu0 %v921
      %v1025 = vpop.f32.mrb[0].mxu0
      %v1026 = vadd.f32 0.0, %v1025
      %v1027 = vpop.f32.mrb[0].mxu0
      %v1028 = vpop.f32.mrb[0].mxu0
      %v1029 = vadd.f32 0.0, %v1028
      %v1030 = vpop.f32.mrb[0].mxu0
      %1031 = vmatprep.mubr.bf16.mxu0 0
      %1032 = vmatmul.mubr.bf16.gmra.mrb[0].mxu0 %v924
      %v1033 = vpop.f32.mrb[0].mxu0
      %v1034 = vadd.f32 0.0, %v1033
      %v1035 = vpop.f32.mrb[0].mxu0
      %v1036 = vpop.f32.mrb[0].mxu0
      %v1037 = vadd.f32 0.0, %v1036
      %v1038 = vpop.f32.mrb[0].mxu0
      %1039 = vmatprep.mubr.bf16.mxu0 0
      %1040 = vmatmul.mubr.bf16.gmra.mrb[0].mxu0 %v927
      %v1041 = vpop.f32.mrb[0].mxu0
      %v1042 = vadd.f32 0.0, %v1041
      %v1043 = vpop.f32.mrb[0].mxu0
      %v1044 = vpop.f32.mrb[0].mxu0
      %v1045 = vadd.f32 0.0, %v1044
      %v1046 = vpop.f32.mrb[0].mxu0
      %1047 = vmatprep.mubr.bf16.mxu0 0
      %1048 = vmatmul.mubr.bf16.gmra.mrb[0].mxu0 %v930
      %v1049 = vpop.f32.mrb[0].mxu0
      %v1050 = vadd.f32 0.0, %v1049
      %v1051 = vpop.f32.mrb[0].mxu0
      %v1052 = vpop.f32.mrb[0].mxu0
      %v1053 = vadd.f32 0.0, %v1052
      %v1054 = vpop.f32.mrb[0].mxu0
      %1055 = vmatprep.mubr.bf16.mxu0 0
      %1056 = vmatmul.mubr.bf16.gmra.mrb[0].mxu0 %v933
      %v1057 = vpop.f32.mrb[0].mxu0
      %v1058 = vadd.f32 0.0, %v1057
      %v1059 = vpop.f32.mrb[0].mxu0
      %v1060 = vpop.f32.mrb[0].mxu0
      %v1061 = vadd.f32 0.0, %v1060
      %v1062 = vpop.f32.mrb[0].mxu0
      %1063 = vmatprep.mubr.bf16.mxu0 0
      %1064 = vmatmul.mubr.bf16.gmra.mrb[0].mxu0 %v936
      %v1065 = vpop.f32.mrb[0].mxu0
      %v1066 = vadd.f32 0.0, %v1065
      %v1067 = vpop.f32.mrb[0].mxu0
      %v1068 = vpop.f32.mrb[0].mxu0
      %v1069 = vadd.f32 0.0, %v1068
      %v1070 = vpop.f32.mrb[0].mxu0
      %1071 = vmatprep.mubr.bf16.mxu0 0
      %1072 = vmatmul.mubr.bf16.gmra.mrb[0].mxu0 %v939
      %v1073 = vpop.f32.mrb[0].mxu0
      %v1074 = vadd.f32 0.0, %v1073
      %v1075 = vpop.f32.mrb[0].mxu0
      %v1076 = vpop.f32.mrb[0].mxu0
      %v1077 = vadd.f32 0.0, %v1076
      %v1078 = vpop.f32.mrb[0].mxu0
      %1079 = vmatprep.mubr.bf16.mxu0 0
      %1080 = vmatmul.mubr.bf16.gmra.mrb[0].mxu0 %v942
      %v1081 = vpop.f32.mrb[0].mxu0
      %v1082 = vadd.f32 0.0, %v1081
      %v1083 = vpop.f32.mrb[0].mxu0
      %v1084 = vpop.f32.mrb[0].mxu0
      %v1085 = vadd.f32 0.0, %v1084
      %v1086 = vpop.f32.mrb[0].mxu0
      %1087 = vmatprep.mubr.bf16.mxu0 0
      %1088 = vmatmul.mubr.bf16.gmra.mrb[0].mxu0 %v945
      %v1089 = vpop.f32.mrb[0].mxu0
      %v1090 = vadd.f32 0.0, %v1089
      %v1091 = vpop.f32.mrb[0].mxu0
      %v1092 = vpop.f32.mrb[0].mxu0
      %v1093 = vadd.f32 0.0, %v1092
      %v1094 = vpop.f32.mrb[0].mxu0
      %1095 = vmatprep.mubr.bf16.mxu0 0
      %1096 = vmatmul.mubr.bf16.gmra.mrb[0].mxu0 %v948
      %v1097 = vpop.f32.mrb[0].mxu0
      %v1098 = vadd.f32 0.0, %v1097
      %v1099 = vpop.f32.mrb[0].mxu0
      %v1100 = vpop.f32.mrb[0].mxu0
      %v1101 = vadd.f32 0.0, %v1100
      %v1102 = vpop.f32.mrb[0].mxu0
      %1103 = vmatprep.mubr.bf16.mxu0 0
      %1104 = vmatmul.mubr.bf16.gmra.mrb[0].mxu0 %v951
      %v1105 = vpop.f32.mrb[0].mxu0
      %v1106 = vadd.f32 0.0, %v1105
      %v1107 = vpop.f32.mrb[0].mxu0
      %v1108 = vpop.f32.mrb[0].mxu0
      %v1109 = vadd.f32 0.0, %v1108
      %v1110 = vpop.f32.mrb[0].mxu0
      %1111 = vmatprep.mubr.bf16.mxu0 0
      %1112 = vmatmul.mubr.bf16.gmra.mrb[0].mxu0 %v954
      %v1113 = vpop.f32.mrb[0].mxu0
      %v1114 = vadd.f32 0.0, %v1113
      %v1115 = vpop.f32.mrb[0].mxu0
      %v1116 = vpop.f32.mrb[0].mxu0
      %v1117 = vadd.f32 0.0, %v1116
      %v1118 = vpop.f32.mrb[0].mxu0
      %1119 = vdwg.mxu0
      %v1120 = vsel %vm249, %v680, 0
      %v1122 = vsel %vm249, %v682, 0
      %v1124 = vsel %vm249, %v684, 0
      %v1126 = vsel %vm249, %v686, 0
      %v1128 = vsel %vm249, %v688, 0
      %v1130 = vsel %vm249, %v690, 0
      %v1132 = vsel %vm249, %v692, 0
      %v1134 = vsel %vm249, %v694, 0
      %v1136 = vsel %vm249, %v696, 0
      %v1138 = vsel %vm249, %v698, 0
      %v1140 = vsel %vm249, %v700, 0
      %v1142 = vsel %vm249, %v702, 0
      %v1144 = vsel %vm249, %v704, 0
      %v1146 = vsel %vm249, %v706, 0
      %v1148 = vsel %vm249, %v708, 0
      %v1150 = vsel %vm249, %v710, 0
      %v1153 = vsel %vm467, %v712, 0
      %1155 = vmatprep.subr.bf16.mxu0 0
      %1156 = vmatpush1.bf16.msra.mxu0 %v1153
      %1157 = vmatprep.subr.bf16.mxu0 0
      %1158 = vmatpush1.bf16.msra.mxu0 0
      %1159 = vmatprep.subr.bf16.mxu0 0
      %1160 = vmatpush1.bf16.msra.mxu0 0
      %1161 = vmatprep.subr.bf16.mxu0 0
      %1162 = vmatpush1.bf16.msra.mxu0 0
      %1163 = vmatprep.subr.bf16.mxu0 0
      %1164 = vmatpush1.bf16.msra.mxu0 0
      %1165 = vmatprep.subr.bf16.mxu0 0
      %1166 = vmatpush1.bf16.msra.mxu0 0
      %1167 = vmatprep.subr.bf16.mxu0 0
      %1168 = vmatpush1.bf16.msra.mxu0 0
      %1169 = vmatprep.subr.bf16.mxu0 0
      %1170 = vmatpush1.bf16.msra.mxu0 0
      %1171 = vmatprep.subr.bf16.mxu0 0
      %1172 = vmatpush1.bf16.msra.mxu0 0
      %1173 = vmatprep.subr.bf16.mxu0 0
      %1174 = vmatpush1.bf16.msra.mxu0 0
      %1175 = vmatprep.subr.bf16.mxu0 0
      %1176 = vmatpush1.bf16.msra.mxu0 0
      %1177 = vmatprep.subr.bf16.mxu0 0
      %1178 = vmatpush1.bf16.msra.mxu0 0
      %1179 = vmatprep.subr.bf16.mxu0 0
      %1180 = vmatpush1.bf16.msra.mxu0 0
      %1181 = vmatprep.subr.bf16.mxu0 0
      %1182 = vmatpush1.bf16.msra.mxu0 0
      %1183 = vmatprep.subr.bf16.mxu0 0
      %1184 = vmatpush1.bf16.msra.mxu0 0
      %1185 = vmatprep.subr.bf16.mxu0 0
      %1186 = vmatpush1.bf16.msra.mxu0 0
      %1187 = vmatprep.mubr.bf16.mxu0 0
      %1188 = vmatmul.mubr.bf16.gmra.mrb[0].mxu0 %v1120
      %v1189 = vpop.f32.mrb[0].mxu0
      %v1190 = vadd.f32 %v994, %v1189
      %v1191 = vpop.f32.mrb[0].mxu0
      %v1192 = vpop.f32.mrb[0].mxu0
      %v1193 = vadd.f32 %v997, %v1192
      %v1194 = vpop.f32.mrb[0].mxu0
      %1195 = vmatprep.mubr.bf16.mxu0 0
      %1196 = vmatmul.mubr.bf16.gmra.mrb[0].mxu0 %v1122
      %v1197 = vpop.f32.mrb[0].mxu0
      %v1198 = vadd.f32 %v1002, %v1197
      %v1199 = vpop.f32.mrb[0].mxu0
      %v1200 = vpop.f32.mrb[0].mxu0
      %v1201 = vadd.f32 %v1005, %v1200
      %v1202 = vpop.f32.mrb[0].mxu0
      %1203 = vmatprep.mubr.bf16.mxu0 0
      %1204 = vmatmul.mubr.bf16.gmra.mrb[0].mxu0 %v1124
      %v1205 = vpop.f32.mrb[0].mxu0
      %v1206 = vadd.f32 %v1010, %v1205
      %v1207 = vpop.f32.mrb[0].mxu0
      %v1208 = vpop.f32.mrb[0].mxu0
      %v1209 = vadd.f32 %v1013, %v1208
      %v1210 = vpop.f32.mrb[0].mxu0
      %1211 = vmatprep.mubr.bf16.mxu0 0
      %1212 = vmatmul.mubr.bf16.gmra.mrb[0].mxu0 %v1126
      %v1213 = vpop.f32.mrb[0].mxu0
      %v1214 = vadd.f32 %v1018, %v1213
      %v1215 = vpop.f32.mrb[0].mxu0
      %v1216 = vpop.f32.mrb[0].mxu0
      %v1217 = vadd.f32 %v1021, %v1216
      %v1218 = vpop.f32.mrb[0].mxu0
      %1219 = vmatprep.mubr.bf16.mxu0 0
      %1220 = vmatmul.mubr.bf16.gmra.mrb[0].mxu0 %v1128
      %v1221 = vpop.f32.mrb[0].mxu0
      %v1222 = vadd.f32 %v1026, %v1221
      %v1223 = vpop.f32.mrb[0].mxu0
      %v1224 = vpop.f32.mrb[0].mxu0
      %v1225 = vadd.f32 %v1029, %v1224
      %v1226 = vpop.f32.mrb[0].mxu0
      %1227 = vmatprep.mubr.bf16.mxu0 0
      %1228 = vmatmul.mubr.bf16.gmra.mrb[0].mxu0 %v1130
      %v1229 = vpop.f32.mrb[0].mxu0
      %v1230 = vadd.f32 %v1034, %v1229
      %v1231 = vpop.f32.mrb[0].mxu0
      %v1232 = vpop.f32.mrb[0].mxu0
      %v1233 = vadd.f32 %v1037, %v1232
      %v1234 = vpop.f32.mrb[0].mxu0
      %1235 = vmatprep.mubr.bf16.mxu0 0
      %1236 = vmatmul.mubr.bf16.gmra.mrb[0].mxu0 %v1132
      %v1237 = vpop.f32.mrb[0].mxu0
      %v1238 = vadd.f32 %v1042, %v1237
      %v1239 = vpop.f32.mrb[0].mxu0
      %v1240 = vpop.f32.mrb[0].mxu0
      %v1241 = vadd.f32 %v1045, %v1240
      %v1242 = vpop.f32.mrb[0].mxu0
      %1243 = vmatprep.mubr.bf16.mxu0 0
      %1244 = vmatmul.mubr.bf16.gmra.mrb[0].mxu0 %v1134
      %v1245 = vpop.f32.mrb[0].mxu0
      %v1246 = vadd.f32 %v1050, %v1245
      %v1247 = vpop.f32.mrb[0].mxu0
      %v1248 = vpop.f32.mrb[0].mxu0
      %v1249 = vadd.f32 %v1053, %v1248
      %v1250 = vpop.f32.mrb[0].mxu0
      %1251 = vmatprep.mubr.bf16.mxu0 0
      %1252 = vmatmul.mubr.bf16.gmra.mrb[0].mxu0 %v1136
      %v1253 = vpop.f32.mrb[0].mxu0
      %v1254 = vadd.f32 %v1058, %v1253
      %v1255 = vpop.f32.mrb[0].mxu0
      %v1256 = vpop.f32.mrb[0].mxu0
      %v1257 = vadd.f32 %v1061, %v1256
      %v1258 = vpop.f32.mrb[0].mxu0
      %1259 = vmatprep.mubr.bf16.mxu0 0
      %1260 = vmatmul.mubr.bf16.gmra.mrb[0].mxu0 %v1138
      %v1261 = vpop.f32.mrb[0].mxu0
      %v1262 = vadd.f32 %v1066, %v1261
      %v1263 = vpop.f32.mrb[0].mxu0
      %v1264 = vpop.f32.mrb[0].mxu0
      %v1265 = vadd.f32 %v1069, %v1264
      %v1266 = vpop.f32.mrb[0].mxu0
      %1267 = vmatprep.mubr.bf16.mxu0 0
      %1268 = vmatmul.mubr.bf16.gmra.mrb[0].mxu0 %v1140
      %v1269 = vpop.f32.mrb[0].mxu0
      %v1270 = vadd.f32 %v1074, %v1269
      %v1271 = vpop.f32.mrb[0].mxu0
      %v1272 = vpop.f32.mrb[0].mxu0
      %v1273 = vadd.f32 %v1077, %v1272
      %v1274 = vpop.f32.mrb[0].mxu0
      %1275 = vmatprep.mubr.bf16.mxu0 0
      %1276 = vmatmul.mubr.bf16.gmra.mrb[0].mxu0 %v1142
      %v1277 = vpop.f32.mrb[0].mxu0
      %v1278 = vadd.f32 %v1082, %v1277
      %v1279 = vpop.f32.mrb[0].mxu0
      %v1280 = vpop.f32.mrb[0].mxu0
      %v1281 = vadd.f32 %v1085, %v1280
      %v1282 = vpop.f32.mrb[0].mxu0
      %1283 = vmatprep.mubr.bf16.mxu0 0
      %1284 = vmatmul.mubr.bf16.gmra.mrb[0].mxu0 %v1144
      %v1285 = vpop.f32.mrb[0].mxu0
      %v1286 = vadd.f32 %v1090, %v1285
      %v1287 = vpop.f32.mrb[0].mxu0
      %v1288 = vpop.f32.mrb[0].mxu0
      %v1289 = vadd.f32 %v1093, %v1288
      %v1290 = vpop.f32.mrb[0].mxu0
      %1291 = vmatprep.mubr.bf16.mxu0 0
      %1292 = vmatmul.mubr.bf16.gmra.mrb[0].mxu0 %v1146
      %v1293 = vpop.f32.mrb[0].mxu0
      %v1294 = vadd.f32 %v1098, %v1293
      %v1295 = vpop.f32.mrb[0].mxu0
      %v1296 = vpop.f32.mrb[0].mxu0
      %v1297 = vadd.f32 %v1101, %v1296
      %v1298 = vpop.f32.mrb[0].mxu0
      %1299 = vmatprep.mubr.bf16.mxu0 0
      %1300 = vmatmul.mubr.bf16.gmra.mrb[0].mxu0 %v1148
      %v1301 = vpop.f32.mrb[0].mxu0
      %v1302 = vadd.f32 %v1106, %v1301
      %v1303 = vpop.f32.mrb[0].mxu0
      %v1304 = vpop.f32.mrb[0].mxu0
      %v1305 = vadd.f32 %v1109, %v1304
      %v1306 = vpop.f32.mrb[0].mxu0
      %1307 = vmatprep.mubr.bf16.mxu0 0
      %1308 = vmatmul.mubr.bf16.gmra.mrb[0].mxu0 %v1150
      %v1309 = vpop.f32.mrb[0].mxu0
      %v1310 = vadd.f32 %v1114, %v1309
      %v1311 = vpop.f32.mrb[0].mxu0
      %v1312 = vpop.f32.mrb[0].mxu0
      %v1313 = vadd.f32 %v1117, %v1312
      %v1314 = vpop.f32.mrb[0].mxu0
      %1315 = vdwg.mxu0
      %vm1348 = vcmask 1046528
      %v1349 = vrot.slane %v680, 1
      %v1350 = vrot.slane %v681, 1
      %v1351 = vsel %vm1348, %v1349, %v1350
      %v1352 = vrot.slane %v682, 1
      %v1353 = vrot.slane %v683, 1
      %v1354 = vsel %vm1348, %v1352, %v1353
      %v1355 = vrot.slane %v684, 1
      %v1356 = vrot.slane %v685, 1
      %v1357 = vsel %vm1348, %v1355, %v1356
      %v1358 = vrot.slane %v686, 1
      %v1359 = vrot.slane %v687, 1
      %v1360 = vsel %vm1348, %v1358, %v1359
      %v1361 = vrot.slane %v688, 1
      %v1362 = vrot.slane %v689, 1
      %v1363 = vsel %vm1348, %v1361, %v1362
      %v1364 = vrot.slane %v690, 1
      %v1365 = vrot.slane %v691, 1
      %v1366 = vsel %vm1348, %v1364, %v1365
      %v1367 = vrot.slane %v692, 1
      %v1368 = vrot.slane %v693, 1
      %v1369 = vsel %vm1348, %v1367, %v1368
      %v1370 = vrot.slane %v694, 1
      %v1371 = vrot.slane %v695, 1
      %v1372 = vsel %vm1348, %v1370, %v1371
      %v1373 = vrot.slane %v696, 1
      %v1374 = vrot.slane %v697, 1
      %v1375 = vsel %vm1348, %v1373, %v1374
      %v1376 = vrot.slane %v698, 1
      %v1377 = vrot.slane %v699, 1
      %v1378 = vsel %vm1348, %v1376, %v1377
      %v1379 = vrot.slane %v700, 1
      %v1380 = vrot.slane %v701, 1
      %v1381 = vsel %vm1348, %v1379, %v1380
      %v1382 = vrot.slane %v702, 1
      %v1383 = vrot.slane %v703, 1
      %v1384 = vsel %vm1348, %v1382, %v1383
      %v1385 = vrot.slane %v704, 1
      %v1386 = vrot.slane %v705, 1
      %v1387 = vsel %vm1348, %v1385, %v1386
      %v1388 = vrot.slane %v706, 1
      %v1389 = vrot.slane %v707, 1
      %v1390 = vsel %vm1348, %v1388, %v1389
      %v1391 = vrot.slane %v708, 1
      %v1392 = vrot.slane %v709, 1
      %v1393 = vsel %vm1348, %v1391, %v1392
      %v1394 = vrot.slane %v710, 1
      %v1395 = vrot.slane %v711, 1
      %v1396 = vsel %vm1348, %v1394, %v1395
      %s1397 = scalar_lea.vmem %s1, 4
      %v1398 = vld [vmem:[%s1397] sm:$0x3]
      %v1400 = vsel %vm249, %v1351, 0
      %v1403 = vsel %vm249, %v1354, 0
      %v1406 = vsel %vm249, %v1357, 0
      %v1409 = vsel %vm249, %v1360, 0
      %v1412 = vsel %vm249, %v1363, 0
      %v1415 = vsel %vm249, %v1366, 0
      %v1418 = vsel %vm249, %v1369, 0
      %v1421 = vsel %vm249, %v1372, 0
      %v1424 = vsel %vm249, %v1375, 0
      %v1427 = vsel %vm249, %v1378, 0
      %v1430 = vsel %vm249, %v1381, 0
      %v1433 = vsel %vm249, %v1384, 0
      %v1436 = vsel %vm249, %v1387, 0
      %v1439 = vsel %vm249, %v1390, 0
      %v1442 = vsel %vm249, %v1393, 0
      %v1445 = vsel %vm249, %v1396, 0
      %v1448 = vsel %vm467, %v1398, 0
      %1450 = vmatprep.subr.bf16.mxu0 0
      %1451 = vmatpush1.bf16.msra.mxu0 %v1448
      %1452 = vmatprep.subr.bf16.mxu0 0
      %1453 = vmatpush1.bf16.msra.mxu0 0
      %1454 = vmatprep.subr.bf16.mxu0 0
      %1455 = vmatpush1.bf16.msra.mxu0 0
      %1456 = vmatprep.subr.bf16.mxu0 0
      %1457 = vmatpush1.bf16.msra.mxu0 0
      %1458 = vmatprep.subr.bf16.mxu0 0
      %1459 = vmatpush1.bf16.msra.mxu0 0
      %1460 = vmatprep.subr.bf16.mxu0 0
      %1461 = vmatpush1.bf16.msra.mxu0 0
      %1462 = vmatprep.subr.bf16.mxu0 0
      %1463 = vmatpush1.bf16.msra.mxu0 0
      %1464 = vmatprep.subr.bf16.mxu0 0
      %1465 = vmatpush1.bf16.msra.mxu0 0
      %1466 = vmatprep.subr.bf16.mxu0 0
      %1467 = vmatpush1.bf16.msra.mxu0 0
      %1468 = vmatprep.subr.bf16.mxu0 0
      %1469 = vmatpush1.bf16.msra.mxu0 0
      %1470 = vmatprep.subr.bf16.mxu0 0
      %1471 = vmatpush1.bf16.msra.mxu0 0
      %1472 = vmatprep.subr.bf16.mxu0 0
      %1473 = vmatpush1.bf16.msra.mxu0 0
      %1474 = vmatprep.subr.bf16.mxu0 0
      %1475 = vmatpush1.bf16.msra.mxu0 0
      %1476 = vmatprep.subr.bf16.mxu0 0
      %1477 = vmatpush1.bf16.msra.mxu0 0
      %1478 = vmatprep.subr.bf16.mxu0 0
      %1479 = vmatpush1.bf16.msra.mxu0 0
      %1480 = vmatprep.subr.bf16.mxu0 0
      %1481 = vmatpush1.bf16.msra.mxu0 0
      %1482 = vmatprep.mubr.bf16.mxu0 0
      %1483 = vmatmul.mubr.bf16.gmra.mrb[0].mxu0 %v1400
      %v1484 = vpop.f32.mrb[0].mxu0
      %v1485 = vadd.f32 0.0, %v1484
      %v1486 = vpop.f32.mrb[0].mxu0
      %v1487 = vpop.f32.mrb[0].mxu0
      %v1488 = vadd.f32 0.0, %v1487
      %v1489 = vpop.f32.mrb[0].mxu0
      %1490 = vmatprep.mubr.bf16.mxu0 0
      %1491 = vmatmul.mubr.bf16.gmra.mrb[0].mxu0 %v1403
      %v1492 = vpop.f32.mrb[0].mxu0
      %v1493 = vadd.f32 0.0, %v1492
      %v1494 = vpop.f32.mrb[0].mxu0
      %v1495 = vpop.f32.mrb[0].mxu0
      %v1496 = vadd.f32 0.0, %v1495
      %v1497 = vpop.f32.mrb[0].mxu0
      %1498 = vmatprep.mubr.bf16.mxu0 0
      %1499 = vmatmul.mubr.bf16.gmra.mrb[0].mxu0 %v1406
      %v1500 = vpop.f32.mrb[0].mxu0
      %v1501 = vadd.f32 0.0, %v1500
      %v1502 = vpop.f32.mrb[0].mxu0
      %v1503 = vpop.f32.mrb[0].mxu0
      %v1504 = vadd.f32 0.0, %v1503
      %v1505 = vpop.f32.mrb[0].mxu0
      %1506 = vmatprep.mubr.bf16.mxu0 0
      %1507 = vmatmul.mubr.bf16.gmra.mrb[0].mxu0 %v1409
      %v1508 = vpop.f32.mrb[0].mxu0
      %v1509 = vadd.f32 0.0, %v1508
      %v1510 = vpop.f32.mrb[0].mxu0
      %v1511 = vpop.f32.mrb[0].mxu0
      %v1512 = vadd.f32 0.0, %v1511
      %v1513 = vpop.f32.mrb[0].mxu0
      %1514 = vmatprep.mubr.bf16.mxu0 0
      %1515 = vmatmul.mubr.bf16.gmra.mrb[0].mxu0 %v1412
      %v1516 = vpop.f32.mrb[0].mxu0
      %v1517 = vadd.f32 0.0, %v1516
      %v1518 = vpop.f32.mrb[0].mxu0
      %v1519 = vpop.f32.mrb[0].mxu0
      %v1520 = vadd.f32 0.0, %v1519
      %v1521 = vpop.f32.mrb[0].mxu0
      %1522 = vmatprep.mubr.bf16.mxu0 0
      %1523 = vmatmul.mubr.bf16.gmra.mrb[0].mxu0 %v1415
      %v1524 = vpop.f32.mrb[0].mxu0
      %v1525 = vadd.f32 0.0, %v1524
      %v1526 = vpop.f32.mrb[0].mxu0
      %v1527 = vpop.f32.mrb[0].mxu0
      %v1528 = vadd.f32 0.0, %v1527
      %v1529 = vpop.f32.mrb[0].mxu0
      %1530 = vmatprep.mubr.bf16.mxu0 0
      %1531 = vmatmul.mubr.bf16.gmra.mrb[0].mxu0 %v1418
      %v1532 = vpop.f32.mrb[0].mxu0
      %v1533 = vadd.f32 0.0, %v1532
      %v1534 = vpop.f32.mrb[0].mxu0
      %v1535 = vpop.f32.mrb[0].mxu0
      %v1536 = vadd.f32 0.0, %v1535
      %v1537 = vpop.f32.mrb[0].mxu0
      %1538 = vmatprep.mubr.bf16.mxu0 0
      %1539 = vmatmul.mubr.bf16.gmra.mrb[0].mxu0 %v1421
      %v1540 = vpop.f32.mrb[0].mxu0
      %v1541 = vadd.f32 0.0, %v1540
      %v1542 = vpop.f32.mrb[0].mxu0
      %v1543 = vpop.f32.mrb[0].mxu0
      %v1544 = vadd.f32 0.0, %v1543
      %v1545 = vpop.f32.mrb[0].mxu0
      %1546 = vmatprep.mubr.bf16.mxu0 0
      %1547 = vmatmul.mubr.bf16.gmra.mrb[0].mxu0 %v1424
      %v1548 = vpop.f32.mrb[0].mxu0
      %v1549 = vadd.f32 0.0, %v1548
      %v1550 = vpop.f32.mrb[0].mxu0
      %v1551 = vpop.f32.mrb[0].mxu0
      %v1552 = vadd.f32 0.0, %v1551
      %v1553 = vpop.f32.mrb[0].mxu0
      %1554 = vmatprep.mubr.bf16.mxu0 0
      %1555 = vmatmul.mubr.bf16.gmra.mrb[0].mxu0 %v1427
      %v1556 = vpop.f32.mrb[0].mxu0
      %v1557 = vadd.f32 0.0, %v1556
      %v1558 = vpop.f32.mrb[0].mxu0
      %v1559 = vpop.f32.mrb[0].mxu0
      %v1560 = vadd.f32 0.0, %v1559
      %v1561 = vpop.f32.mrb[0].mxu0
      %1562 = vmatprep.mubr.bf16.mxu0 0
      %1563 = vmatmul.mubr.bf16.gmra.mrb[0].mxu0 %v1430
      %v1564 = vpop.f32.mrb[0].mxu0
      %v1565 = vadd.f32 0.0, %v1564
      %v1566 = vpop.f32.mrb[0].mxu0
      %v1567 = vpop.f32.mrb[0].mxu0
      %v1568 = vadd.f32 0.0, %v1567
      %v1569 = vpop.f32.mrb[0].mxu0
      %1570 = vmatprep.mubr.bf16.mxu0 0
      %1571 = vmatmul.mubr.bf16.gmra.mrb[0].mxu0 %v1433
      %v1572 = vpop.f32.mrb[0].mxu0
      %v1573 = vadd.f32 0.0, %v1572
      %v1574 = vpop.f32.mrb[0].mxu0
      %v1575 = vpop.f32.mrb[0].mxu0
      %v1576 = vadd.f32 0.0, %v1575
      %v1577 = vpop.f32.mrb[0].mxu0
      %1578 = vmatprep.mubr.bf16.mxu0 0
      %1579 = vmatmul.mubr.bf16.gmra.mrb[0].mxu0 %v1436
      %v1580 = vpop.f32.mrb[0].mxu0
      %v1581 = vadd.f32 0.0, %v1580
      %v1582 = vpop.f32.mrb[0].mxu0
      %v1583 = vpop.f32.mrb[0].mxu0
      %v1584 = vadd.f32 0.0, %v1583
      %v1585 = vpop.f32.mrb[0].mxu0
      %1586 = vmatprep.mubr.bf16.mxu0 0
      %1587 = vmatmul.mubr.bf16.gmra.mrb[0].mxu0 %v1439
      %v1588 = vpop.f32.mrb[0].mxu0
      %v1589 = vadd.f32 0.0, %v1588
      %v1590 = vpop.f32.mrb[0].mxu0
      %v1591 = vpop.f32.mrb[0].mxu0
      %v1592 = vadd.f32 0.0, %v1591
      %v1593 = vpop.f32.mrb[0].mxu0
      %1594 = vmatprep.mubr.bf16.mxu0 0
      %1595 = vmatmul.mubr.bf16.gmra.mrb[0].mxu0 %v1442
      %v1596 = vpop.f32.mrb[0].mxu0
      %v1597 = vadd.f32 0.0, %v1596
      %v1598 = vpop.f32.mrb[0].mxu0
      %v1599 = vpop.f32.mrb[0].mxu0
      %v1600 = vadd.f32 0.0, %v1599
      %v1601 = vpop.f32.mrb[0].mxu0
      %1602 = vmatprep.mubr.bf16.mxu0 0
      %1603 = vmatmul.mubr.bf16.gmra.mrb[0].mxu0 %v1445
      %v1604 = vpop.f32.mrb[0].mxu0
      %v1605 = vadd.f32 0.0, %v1604
      %v1606 = vpop.f32.mrb[0].mxu0
      %v1607 = vpop.f32.mrb[0].mxu0
      %v1608 = vadd.f32 0.0, %v1607
      %v1609 = vpop.f32.mrb[0].mxu0
      %1610 = vdwg.mxu0
      %v1611 = vadd.f32 %v1190, %v1485
      %v1612 = vadd.f32 %v1193, %v1488
      %v1613 = vadd.f32 %v1198, %v1493
      %v1614 = vadd.f32 %v1201, %v1496
      %v1615 = vadd.f32 %v1206, %v1501
      %v1616 = vadd.f32 %v1209, %v1504
      %v1617 = vadd.f32 %v1214, %v1509
      %v1618 = vadd.f32 %v1217, %v1512
      %v1619 = vadd.f32 %v1222, %v1517
      %v1620 = vadd.f32 %v1225, %v1520
      %v1621 = vadd.f32 %v1230, %v1525
      %v1622 = vadd.f32 %v1233, %v1528
      %v1623 = vadd.f32 %v1238, %v1533
      %v1624 = vadd.f32 %v1241, %v1536
      %v1625 = vadd.f32 %v1246, %v1541
      %v1626 = vadd.f32 %v1249, %v1544
      %v1627 = vadd.f32 %v1254, %v1549
      %v1628 = vadd.f32 %v1257, %v1552
      %v1629 = vadd.f32 %v1262, %v1557
      %v1630 = vadd.f32 %v1265, %v1560
      %v1631 = vadd.f32 %v1270, %v1565
      %v1632 = vadd.f32 %v1273, %v1568
      %v1633 = vadd.f32 %v1278, %v1573
      %v1634 = vadd.f32 %v1281, %v1576
      %v1635 = vadd.f32 %v1286, %v1581
      %v1636 = vadd.f32 %v1289, %v1584
      %v1637 = vadd.f32 %v1294, %v1589
      %v1638 = vadd.f32 %v1297, %v1592
      %v1639 = vadd.f32 %v1302, %v1597
      %v1640 = vadd.f32 %v1305, %v1600
      %v1641 = vadd.f32 %v1310, %v1605
      %v1642 = vadd.f32 %v1313, %v1608
      %v1643 = vld [vmem:[%s337] sm:$0xff]
      %v1644 = vld [vmem:[%s337 + $0x8] sm:$0xff]
      %v1645 = vld [vmem:[%s337 + $0x10] sm:$0x3]
      %v1646 = vld [vmem:[%s337 + $0x18] sm:$0xff]
      %v1647 = vld [vmem:[%s337 + $0x20] sm:$0xff]
      %v1648 = vld [vmem:[%s337 + $0x28] sm:$0x3]
      %v1649 = vld [vmem:[%s337 + $0x30] sm:$0xff]
      %v1650 = vld [vmem:[%s337 + $0x38] sm:$0xff]
      %v1651 = vld [vmem:[%s337 + $0x40] sm:$0x3]
      %v1652 = vld [vmem:[%s337 + $0x48] sm:$0xff]
      %v1653 = vld [vmem:[%s337 + $0x50] sm:$0xff]
      %v1654 = vld [vmem:[%s337 + $0x58] sm:$0x3]
      %v1655 = vld [vmem:[%s337 + $0x60] sm:$0xff]
      %v1656 = vld [vmem:[%s337 + $0x68] sm:$0xff]
      %v1657 = vld [vmem:[%s337 + $0x70] sm:$0x3]
      %v1658 = vld [vmem:[%s337 + $0x78] sm:$0xff]
      %v1659 = vld [vmem:[%s337 + $0x80] sm:$0xff]
      %v1660 = vld [vmem:[%s337 + $0x88] sm:$0x3]
      %v1661 = vld [vmem:[%s337 + $0x90] sm:$0xff]
      %v1662 = vld [vmem:[%s337 + $0x98] sm:$0xff]
      %v1663 = vld [vmem:[%s337 + $0xa0] sm:$0x3]
      %v1664 = vld [vmem:[%s337 + $0xa8] sm:$0xff]
      %v1665 = vld [vmem:[%s337 + $0xb0] sm:$0xff]
      %v1666 = vld [vmem:[%s337 + $0xb8] sm:$0x3]
      %v1667 = vld [vmem:[%s337 + $0xc0] sm:$0xff]
      %v1668 = vld [vmem:[%s337 + $0xc8] sm:$0xff]
      %v1669 = vld [vmem:[%s337 + $0xd0] sm:$0x3]
      %v1670 = vld [vmem:[%s337 + $0xd8] sm:$0xff]
      %v1671 = vld [vmem:[%s337 + $0xe0] sm:$0xff]
      %v1672 = vld [vmem:[%s337 + $0xe8] sm:$0x3]
      %v1673 = vld [vmem:[%s337 + $0xf0] sm:$0xff]
      %v1674 = vld [vmem:[%s337 + $0xf8] sm:$0xff]
      %v1675 = vld [vmem:[%s337 + $0x100] sm:$0x3]
      %v1676 = vld [vmem:[%s337 + $0x108] sm:$0xff]
      %v1677 = vld [vmem:[%s337 + $0x110] sm:$0xff]
      %v1678 = vld [vmem:[%s337 + $0x118] sm:$0x3]
      %v1679 = vld [vmem:[%s337 + $0x120] sm:$0xff]
      %v1680 = vld [vmem:[%s337 + $0x128] sm:$0xff]
      %v1681 = vld [vmem:[%s337 + $0x130] sm:$0x3]
      %v1682 = vld [vmem:[%s337 + $0x138] sm:$0xff]
      %v1683 = vld [vmem:[%s337 + $0x140] sm:$0xff]
      %v1684 = vld [vmem:[%s337 + $0x148] sm:$0x3]
      %v1685 = vld [vmem:[%s337 + $0x150] sm:$0xff]
      %v1686 = vld [vmem:[%s337 + $0x158] sm:$0xff]
      %v1687 = vld [vmem:[%s337 + $0x160] sm:$0x3]
      %v1688 = vld [vmem:[%s337 + $0x168] sm:$0xff]
      %v1689 = vld [vmem:[%s337 + $0x170] sm:$0xff]
      %v1690 = vld [vmem:[%s337 + $0x178] sm:$0x3]
      %v1691 = vpack.c.bf16 %v1644, %v1643
      %v1692 = vpack.c.bf16 %v1645, %v1645
      %v1693 = vpack.c.bf16 %v1647, %v1646
      %v1694 = vpack.c.bf16 %v1648, %v1648
      %v1695 = vpack.c.bf16 %v1650, %v1649
      %v1696 = vpack.c.bf16 %v1651, %v1651
      %v1697 = vpack.c.bf16 %v1653, %v1652
      %v1698 = vpack.c.bf16 %v1654, %v1654
      %v1699 = vpack.c.bf16 %v1656, %v1655
      %v1700 = vpack.c.bf16 %v1657, %v1657
      %v1701 = vpack.c.bf16 %v1659, %v1658
      %v1702 = vpack.c.bf16 %v1660, %v1660
      %v1703 = vpack.c.bf16 %v1662, %v1661
      %v1704 = vpack.c.bf16 %v1663, %v1663
      %v1705 = vpack.c.bf16 %v1665, %v1664
      %v1706 = vpack.c.bf16 %v1666, %v1666
      %v1707 = vpack.c.bf16 %v1668, %v1667
      %v1708 = vpack.c.bf16 %v1669, %v1669
      %v1709 = vpack.c.bf16 %v1671, %v1670
      %v1710 = vpack.c.bf16 %v1672, %v1672
      %v1711 = vpack.c.bf16 %v1674, %v1673
      %v1712 = vpack.c.bf16 %v1675, %v1675
      %v1713 = vpack.c.bf16 %v1677, %v1676
      %v1714 = vpack.c.bf16 %v1678, %v1678
      %v1715 = vpack.c.bf16 %v1680, %v1679
      %v1716 = vpack.c.bf16 %v1681, %v1681
      %v1717 = vpack.c.bf16 %v1683, %v1682
      %v1718 = vpack.c.bf16 %v1684, %v1684
      %v1719 = vpack.c.bf16 %v1686, %v1685
      %v1720 = vpack.c.bf16 %v1687, %v1687
      %v1721 = vpack.c.bf16 %v1689, %v1688
      %v1722 = vpack.c.bf16 %v1690, %v1690
      %s1723 = scalar_lea.vmem %s1, 6
      %v1724 = vld [vmem:[%s1723] sm:$0x3]
      %v1726 = vsel %vm249, %v1691, 0
      %v1729 = vsel %vm249, %v1693, 0
      %v1732 = vsel %vm249, %v1695, 0
      %v1735 = vsel %vm249, %v1697, 0
      %v1738 = vsel %vm249, %v1699, 0
      %v1741 = vsel %vm249, %v1701, 0
      %v1744 = vsel %vm249, %v1703, 0
      %v1747 = vsel %vm249, %v1705, 0
      %v1750 = vsel %vm249, %v1707, 0
      %v1753 = vsel %vm249, %v1709, 0
      %v1756 = vsel %vm249, %v1711, 0
      %v1759 = vsel %vm249, %v1713, 0
      %v1762 = vsel %vm249, %v1715, 0
      %v1765 = vsel %vm249, %v1717, 0
      %v1768 = vsel %vm249, %v1719, 0
      %v1771 = vsel %vm249, %v1721, 0
      %v1774 = vsel %vm467, %v1724, 0
      %1776 = vmatprep.subr.bf16.mxu0 0
      %1777 = vmatpush1.bf16.msra.mxu0 %v1774
      %1778 = vmatprep.subr.bf16.mxu0 0
      %1779 = vmatpush1.bf16.msra.mxu0 0
      %1780 = vmatprep.subr.bf16.mxu0 0
      %1781 = vmatpush1.bf16.msra.mxu0 0
      %1782 = vmatprep.subr.bf16.mxu0 0
      %1783 = vmatpush1.bf16.msra.mxu0 0
      %1784 = vmatprep.subr.bf16.mxu0 0
      %1785 = vmatpush1.bf16.msra.mxu0 0
      %1786 = vmatprep.subr.bf16.mxu0 0
      %1787 = vmatpush1.bf16.msra.mxu0 0
      %1788 = vmatprep.subr.bf16.mxu0 0
      %1789 = vmatpush1.bf16.msra.mxu0 0
      %1790 = vmatprep.subr.bf16.mxu0 0
      %1791 = vmatpush1.bf16.msra.mxu0 0
      %1792 = vmatprep.subr.bf16.mxu0 0
      %1793 = vmatpush1.bf16.msra.mxu0 0
      %1794 = vmatprep.subr.bf16.mxu0 0
      %1795 = vmatpush1.bf16.msra.mxu0 0
      %1796 = vmatprep.subr.bf16.mxu0 0
      %1797 = vmatpush1.bf16.msra.mxu0 0
      %1798 = vmatprep.subr.bf16.mxu0 0
      %1799 = vmatpush1.bf16.msra.mxu0 0
      %1800 = vmatprep.subr.bf16.mxu0 0
      %1801 = vmatpush1.bf16.msra.mxu0 0
      %1802 = vmatprep.subr.bf16.mxu0 0
      %1803 = vmatpush1.bf16.msra.mxu0 0
      %1804 = vmatprep.subr.bf16.mxu0 0
      %1805 = vmatpush1.bf16.msra.mxu0 0
      %1806 = vmatprep.subr.bf16.mxu0 0
      %1807 = vmatpush1.bf16.msra.mxu0 0
      %1808 = vmatprep.mubr.bf16.mxu0 0
      %1809 = vmatmul.mubr.bf16.gmra.mrb[0].mxu0 %v1726
      %v1810 = vpop.f32.mrb[0].mxu0
      %v1811 = vadd.f32 0.0, %v1810
      %v1812 = vpop.f32.mrb[0].mxu0
      %v1813 = vpop.f32.mrb[0].mxu0
      %v1814 = vadd.f32 0.0, %v1813
      %v1815 = vpop.f32.mrb[0].mxu0
      %1816 = vmatprep.mubr.bf16.mxu0 0
      %1817 = vmatmul.mubr.bf16.gmra.mrb[0].mxu0 %v1729
      %v1818 = vpop.f32.mrb[0].mxu0
      %v1819 = vadd.f32 0.0, %v1818
      %v1820 = vpop.f32.mrb[0].mxu0
      %v1821 = vpop.f32.mrb[0].mxu0
      %v1822 = vadd.f32 0.0, %v1821
      %v1823 = vpop.f32.mrb[0].mxu0
      %1824 = vmatprep.mubr.bf16.mxu0 0
      %1825 = vmatmul.mubr.bf16.gmra.mrb[0].mxu0 %v1732
      %v1826 = vpop.f32.mrb[0].mxu0
      %v1827 = vadd.f32 0.0, %v1826
      %v1828 = vpop.f32.mrb[0].mxu0
      %v1829 = vpop.f32.mrb[0].mxu0
      %v1830 = vadd.f32 0.0, %v1829
      %v1831 = vpop.f32.mrb[0].mxu0
      %1832 = vmatprep.mubr.bf16.mxu0 0
      %1833 = vmatmul.mubr.bf16.gmra.mrb[0].mxu0 %v1735
      %v1834 = vpop.f32.mrb[0].mxu0
      %v1835 = vadd.f32 0.0, %v1834
      %v1836 = vpop.f32.mrb[0].mxu0
      %v1837 = vpop.f32.mrb[0].mxu0
      %v1838 = vadd.f32 0.0, %v1837
      %v1839 = vpop.f32.mrb[0].mxu0
      %1840 = vmatprep.mubr.bf16.mxu0 0
      %1841 = vmatmul.mubr.bf16.gmra.mrb[0].mxu0 %v1738
      %v1842 = vpop.f32.mrb[0].mxu0
      %v1843 = vadd.f32 0.0, %v1842
      %v1844 = vpop.f32.mrb[0].mxu0
      %v1845 = vpop.f32.mrb[0].mxu0
      %v1846 = vadd.f32 0.0, %v1845
      %v1847 = vpop.f32.mrb[0].mxu0
      %1848 = vmatprep.mubr.bf16.mxu0 0
      %1849 = vmatmul.mubr.bf16.gmra.mrb[0].mxu0 %v1741
      %v1850 = vpop.f32.mrb[0].mxu0
      %v1851 = vadd.f32 0.0, %v1850
      %v1852 = vpop.f32.mrb[0].mxu0
      %v1853 = vpop.f32.mrb[0].mxu0
      %v1854 = vadd.f32 0.0, %v1853
      %v1855 = vpop.f32.mrb[0].mxu0
      %1856 = vmatprep.mubr.bf16.mxu0 0
      %1857 = vmatmul.mubr.bf16.gmra.mrb[0].mxu0 %v1744
      %v1858 = vpop.f32.mrb[0].mxu0
      %v1859 = vadd.f32 0.0, %v1858
      %v1860 = vpop.f32.mrb[0].mxu0
      %v1861 = vpop.f32.mrb[0].mxu0
      %v1862 = vadd.f32 0.0, %v1861
      %v1863 = vpop.f32.mrb[0].mxu0
      %1864 = vmatprep.mubr.bf16.mxu0 0
      %1865 = vmatmul.mubr.bf16.gmra.mrb[0].mxu0 %v1747
      %v1866 = vpop.f32.mrb[0].mxu0
      %v1867 = vadd.f32 0.0, %v1866
      %v1868 = vpop.f32.mrb[0].mxu0
      %v1869 = vpop.f32.mrb[0].mxu0
      %v1870 = vadd.f32 0.0, %v1869
      %v1871 = vpop.f32.mrb[0].mxu0
      %1872 = vmatprep.mubr.bf16.mxu0 0
      %1873 = vmatmul.mubr.bf16.gmra.mrb[0].mxu0 %v1750
      %v1874 = vpop.f32.mrb[0].mxu0
      %v1875 = vadd.f32 0.0, %v1874
      %v1876 = vpop.f32.mrb[0].mxu0
      %v1877 = vpop.f32.mrb[0].mxu0
      %v1878 = vadd.f32 0.0, %v1877
      %v1879 = vpop.f32.mrb[0].mxu0
      %1880 = vmatprep.mubr.bf16.mxu0 0
      %1881 = vmatmul.mubr.bf16.gmra.mrb[0].mxu0 %v1753
      %v1882 = vpop.f32.mrb[0].mxu0
      %v1883 = vadd.f32 0.0, %v1882
      %v1884 = vpop.f32.mrb[0].mxu0
      %v1885 = vpop.f32.mrb[0].mxu0
      %v1886 = vadd.f32 0.0, %v1885
      %v1887 = vpop.f32.mrb[0].mxu0
      %1888 = vmatprep.mubr.bf16.mxu0 0
      %1889 = vmatmul.mubr.bf16.gmra.mrb[0].mxu0 %v1756
      %v1890 = vpop.f32.mrb[0].mxu0
      %v1891 = vadd.f32 0.0, %v1890
      %v1892 = vpop.f32.mrb[0].mxu0
      %v1893 = vpop.f32.mrb[0].mxu0
      %v1894 = vadd.f32 0.0, %v1893
      %v1895 = vpop.f32.mrb[0].mxu0
      %1896 = vmatprep.mubr.bf16.mxu0 0
      %1897 = vmatmul.mubr.bf16.gmra.mrb[0].mxu0 %v1759
      %v1898 = vpop.f32.mrb[0].mxu0
      %v1899 = vadd.f32 0.0, %v1898
      %v1900 = vpop.f32.mrb[0].mxu0
      %v1901 = vpop.f32.mrb[0].mxu0
      %v1902 = vadd.f32 0.0, %v1901
      %v1903 = vpop.f32.mrb[0].mxu0
      %1904 = vmatprep.mubr.bf16.mxu0 0
      %1905 = vmatmul.mubr.bf16.gmra.mrb[0].mxu0 %v1762
      %v1906 = vpop.f32.mrb[0].mxu0
      %v1907 = vadd.f32 0.0, %v1906
      %v1908 = vpop.f32.mrb[0].mxu0
      %v1909 = vpop.f32.mrb[0].mxu0
      %v1910 = vadd.f32 0.0, %v1909
      %v1911 = vpop.f32.mrb[0].mxu0
      %1912 = vmatprep.mubr.bf16.mxu0 0
      %1913 = vmatmul.mubr.bf16.gmra.mrb[0].mxu0 %v1765
      %v1914 = vpop.f32.mrb[0].mxu0
      %v1915 = vadd.f32 0.0, %v1914
      %v1916 = vpop.f32.mrb[0].mxu0
      %v1917 = vpop.f32.mrb[0].mxu0
      %v1918 = vadd.f32 0.0, %v1917
      %v1919 = vpop.f32.mrb[0].mxu0
      %1920 = vmatprep.mubr.bf16.mxu0 0
      %1921 = vmatmul.mubr.bf16.gmra.mrb[0].mxu0 %v1768
      %v1922 = vpop.f32.mrb[0].mxu0
      %v1923 = vadd.f32 0.0, %v1922
      %v1924 = vpop.f32.mrb[0].mxu0
      %v1925 = vpop.f32.mrb[0].mxu0
      %v1926 = vadd.f32 0.0, %v1925
      %v1927 = vpop.f32.mrb[0].mxu0
      %1928 = vmatprep.mubr.bf16.mxu0 0
      %1929 = vmatmul.mubr.bf16.gmra.mrb[0].mxu0 %v1771
      %v1930 = vpop.f32.mrb[0].mxu0
      %v1931 = vadd.f32 0.0, %v1930
      %v1932 = vpop.f32.mrb[0].mxu0
      %v1933 = vpop.f32.mrb[0].mxu0
      %v1934 = vadd.f32 0.0, %v1933
      %v1935 = vpop.f32.mrb[0].mxu0
      %1936 = vdwg.mxu0
      %v1937 = vadd.f32 %v1611, %v1811
      %v1938 = vadd.f32 %v1612, %v1814
      %v1939 = vadd.f32 %v1613, %v1819
      %v1940 = vadd.f32 %v1614, %v1822
      %v1941 = vadd.f32 %v1615, %v1827
      %v1942 = vadd.f32 %v1616, %v1830
      %v1943 = vadd.f32 %v1617, %v1835
      %v1944 = vadd.f32 %v1618, %v1838
      %v1945 = vadd.f32 %v1619, %v1843
      %v1946 = vadd.f32 %v1620, %v1846
      %v1947 = vadd.f32 %v1621, %v1851
      %v1948 = vadd.f32 %v1622, %v1854
      %v1949 = vadd.f32 %v1623, %v1859
      %v1950 = vadd.f32 %v1624, %v1862
      %v1951 = vadd.f32 %v1625, %v1867
      %v1952 = vadd.f32 %v1626, %v1870
      %v1953 = vadd.f32 %v1627, %v1875
      %v1954 = vadd.f32 %v1628, %v1878
      %v1955 = vadd.f32 %v1629, %v1883
      %v1956 = vadd.f32 %v1630, %v1886
      %v1957 = vadd.f32 %v1631, %v1891
      %v1958 = vadd.f32 %v1632, %v1894
      %v1959 = vadd.f32 %v1633, %v1899
      %v1960 = vadd.f32 %v1634, %v1902
      %v1961 = vadd.f32 %v1635, %v1907
      %v1962 = vadd.f32 %v1636, %v1910
      %v1963 = vadd.f32 %v1637, %v1915
      %v1964 = vadd.f32 %v1638, %v1918
      %v1965 = vadd.f32 %v1639, %v1923
      %v1966 = vadd.f32 %v1640, %v1926
      %v1967 = vadd.f32 %v1641, %v1931
      %v1968 = vadd.f32 %v1642, %v1934
      %v1969 = vshrl.u32 %v1691, 16
      %v1971 = vshll.u32 %v1691, 16
      %v1973 = vrot.slane %v1971, 1
      %v1974 = vor.u32 %v1969, %v1973
      %v1976 = vshll.u32 %v1692, 16
      %v1978 = vrot.slane %v1976, 1
      %v1979 = vsel %vm713, %v1974, %v1978
      %v1980 = vshrl.u32 %v1693, 16
      %v1982 = vshll.u32 %v1693, 16
      %v1984 = vrot.slane %v1982, 1
      %v1985 = vor.u32 %v1980, %v1984
      %v1987 = vshll.u32 %v1694, 16
      %v1989 = vrot.slane %v1987, 1
      %v1990 = vsel %vm713, %v1985, %v1989
      %v1991 = vshrl.u32 %v1695, 16
      %v1993 = vshll.u32 %v1695, 16
      %v1995 = vrot.slane %v1993, 1
      %v1996 = vor.u32 %v1991, %v1995
      %v1998 = vshll.u32 %v1696, 16
      %v2000 = vrot.slane %v1998, 1
      %v2001 = vsel %vm713, %v1996, %v2000
      %v2002 = vshrl.u32 %v1697, 16
      %v2004 = vshll.u32 %v1697, 16
      %v2006 = vrot.slane %v2004, 1
      %v2007 = vor.u32 %v2002, %v2006
      %v2009 = vshll.u32 %v1698, 16
      %v2011 = vrot.slane %v2009, 1
      %v2012 = vsel %vm713, %v2007, %v2011
      %v2013 = vshrl.u32 %v1699, 16
      %v2015 = vshll.u32 %v1699, 16
      %v2017 = vrot.slane %v2015, 1
      %v2018 = vor.u32 %v2013, %v2017
      %v2020 = vshll.u32 %v1700, 16
      %v2022 = vrot.slane %v2020, 1
      %v2023 = vsel %vm713, %v2018, %v2022
      %v2024 = vshrl.u32 %v1701, 16
      %v2026 = vshll.u32 %v1701, 16
      %v2028 = vrot.slane %v2026, 1
      %v2029 = vor.u32 %v2024, %v2028
      %v2031 = vshll.u32 %v1702, 16
      %v2033 = vrot.slane %v2031, 1
      %v2034 = vsel %vm713, %v2029, %v2033
      %v2035 = vshrl.u32 %v1703, 16
      %v2037 = vshll.u32 %v1703, 16
      %v2039 = vrot.slane %v2037, 1
      %v2040 = vor.u32 %v2035, %v2039
      %v2042 = vshll.u32 %v1704, 16
      %v2044 = vrot.slane %v2042, 1
      %v2045 = vsel %vm713, %v2040, %v2044
      %v2046 = vshrl.u32 %v1705, 16
      %v2048 = vshll.u32 %v1705, 16
      %v2050 = vrot.slane %v2048, 1
      %v2051 = vor.u32 %v2046, %v2050
      %v2053 = vshll.u32 %v1706, 16
      %v2055 = vrot.slane %v2053, 1
      %v2056 = vsel %vm713, %v2051, %v2055
      %v2057 = vshrl.u32 %v1707, 16
      %v2059 = vshll.u32 %v1707, 16
      %v2061 = vrot.slane %v2059, 1
      %v2062 = vor.u32 %v2057, %v2061
      %v2064 = vshll.u32 %v1708, 16
      %v2066 = vrot.slane %v2064, 1
      %v2067 = vsel %vm713, %v2062, %v2066
      %v2068 = vshrl.u32 %v1709, 16
      %v2070 = vshll.u32 %v1709, 16
      %v2072 = vrot.slane %v2070, 1
      %v2073 = vor.u32 %v2068, %v2072
      %v2075 = vshll.u32 %v1710, 16
      %v2077 = vrot.slane %v2075, 1
      %v2078 = vsel %vm713, %v2073, %v2077
      %v2079 = vshrl.u32 %v1711, 16
      %v2081 = vshll.u32 %v1711, 16
      %v2083 = vrot.slane %v2081, 1
      %v2084 = vor.u32 %v2079, %v2083
      %v2086 = vshll.u32 %v1712, 16
      %v2088 = vrot.slane %v2086, 1
      %v2089 = vsel %vm713, %v2084, %v2088
      %v2090 = vshrl.u32 %v1713, 16
      %v2092 = vshll.u32 %v1713, 16
      %v2094 = vrot.slane %v2092, 1
      %v2095 = vor.u32 %v2090, %v2094
      %v2097 = vshll.u32 %v1714, 16
      %v2099 = vrot.slane %v2097, 1
      %v2100 = vsel %vm713, %v2095, %v2099
      %v2101 = vshrl.u32 %v1715, 16
      %v2103 = vshll.u32 %v1715, 16
      %v2105 = vrot.slane %v2103, 1
      %v2106 = vor.u32 %v2101, %v2105
      %v2108 = vshll.u32 %v1716, 16
      %v2110 = vrot.slane %v2108, 1
      %v2111 = vsel %vm713, %v2106, %v2110
      %v2112 = vshrl.u32 %v1717, 16
      %v2114 = vshll.u32 %v1717, 16
      %v2116 = vrot.slane %v2114, 1
      %v2117 = vor.u32 %v2112, %v2116
      %v2119 = vshll.u32 %v1718, 16
      %v2121 = vrot.slane %v2119, 1
      %v2122 = vsel %vm713, %v2117, %v2121
      %v2123 = vshrl.u32 %v1719, 16
      %v2125 = vshll.u32 %v1719, 16
      %v2127 = vrot.slane %v2125, 1
      %v2128 = vor.u32 %v2123, %v2127
      %v2130 = vshll.u32 %v1720, 16
      %v2132 = vrot.slane %v2130, 1
      %v2133 = vsel %vm713, %v2128, %v2132
      %v2134 = vshrl.u32 %v1721, 16
      %v2136 = vshll.u32 %v1721, 16
      %v2138 = vrot.slane %v2136, 1
      %v2139 = vor.u32 %v2134, %v2138
      %v2141 = vshll.u32 %v1722, 16
      %v2143 = vrot.slane %v2141, 1
      %v2144 = vsel %vm713, %v2139, %v2143
      %s2145 = scalar_lea.vmem %s1, 8
      %v2146 = vld [vmem:[%s2145] sm:$0x3]
      %v2148 = vsel %vm249, %v1979, 0
      %v2151 = vsel %vm249, %v1990, 0
      %v2154 = vsel %vm249, %v2001, 0
      %v2157 = vsel %vm249, %v2012, 0
      %v2160 = vsel %vm249, %v2023, 0
      %v2163 = vsel %vm249, %v2034, 0
      %v2166 = vsel %vm249, %v2045, 0
      %v2169 = vsel %vm249, %v2056, 0
      %v2172 = vsel %vm249, %v2067, 0
      %v2175 = vsel %vm249, %v2078, 0
      %v2178 = vsel %vm249, %v2089, 0
      %v2181 = vsel %vm249, %v2100, 0
      %v2184 = vsel %vm249, %v2111, 0
      %v2187 = vsel %vm249, %v2122, 0
      %v2190 = vsel %vm249, %v2133, 0
      %v2193 = vsel %vm249, %v2144, 0
      %v2196 = vsel %vm467, %v2146, 0
      %2198 = vmatprep.subr.bf16.mxu0 0
      %2199 = vmatpush1.bf16.msra.mxu0 %v2196
      %2200 = vmatprep.subr.bf16.mxu0 0
      %2201 = vmatpush1.bf16.msra.mxu0 0
      %2202 = vmatprep.subr.bf16.mxu0 0
      %2203 = vmatpush1.bf16.msra.mxu0 0
      %2204 = vmatprep.subr.bf16.mxu0 0
      %2205 = vmatpush1.bf16.msra.mxu0 0
      %2206 = vmatprep.subr.bf16.mxu0 0
      %2207 = vmatpush1.bf16.msra.mxu0 0
      %2208 = vmatprep.subr.bf16.mxu0 0
      %2209 = vmatpush1.bf16.msra.mxu0 0
      %2210 = vmatprep.subr.bf16.mxu0 0
      %2211 = vmatpush1.bf16.msra.mxu0 0
      %2212 = vmatprep.subr.bf16.mxu0 0
      %2213 = vmatpush1.bf16.msra.mxu0 0
      %2214 = vmatprep.subr.bf16.mxu0 0
      %2215 = vmatpush1.bf16.msra.mxu0 0
      %2216 = vmatprep.subr.bf16.mxu0 0
      %2217 = vmatpush1.bf16.msra.mxu0 0
      %2218 = vmatprep.subr.bf16.mxu0 0
      %2219 = vmatpush1.bf16.msra.mxu0 0
      %2220 = vmatprep.subr.bf16.mxu0 0
      %2221 = vmatpush1.bf16.msra.mxu0 0
      %2222 = vmatprep.subr.bf16.mxu0 0
      %2223 = vmatpush1.bf16.msra.mxu0 0
      %2224 = vmatprep.subr.bf16.mxu0 0
      %2225 = vmatpush1.bf16.msra.mxu0 0
      %2226 = vmatprep.subr.bf16.mxu0 0
      %2227 = vmatpush1.bf16.msra.mxu0 0
      %2228 = vmatprep.subr.bf16.mxu0 0
      %2229 = vmatpush1.bf16.msra.mxu0 0
      %2230 = vmatprep.mubr.bf16.mxu0 0
      %2231 = vmatmul.mubr.bf16.gmra.mrb[0].mxu0 %v2148
      %v2232 = vpop.f32.mrb[0].mxu0
      %v2233 = vadd.f32 0.0, %v2232
      %v2234 = vpop.f32.mrb[0].mxu0
      %v2235 = vpop.f32.mrb[0].mxu0
      %v2236 = vadd.f32 0.0, %v2235
      %v2237 = vpop.f32.mrb[0].mxu0
      %2238 = vmatprep.mubr.bf16.mxu0 0
      %2239 = vmatmul.mubr.bf16.gmra.mrb[0].mxu0 %v2151
      %v2240 = vpop.f32.mrb[0].mxu0
      %v2241 = vadd.f32 0.0, %v2240
      %v2242 = vpop.f32.mrb[0].mxu0
      %v2243 = vpop.f32.mrb[0].mxu0
      %v2244 = vadd.f32 0.0, %v2243
      %v2245 = vpop.f32.mrb[0].mxu0
      %2246 = vmatprep.mubr.bf16.mxu0 0
      %2247 = vmatmul.mubr.bf16.gmra.mrb[0].mxu0 %v2154
      %v2248 = vpop.f32.mrb[0].mxu0
      %v2249 = vadd.f32 0.0, %v2248
      %v2250 = vpop.f32.mrb[0].mxu0
      %v2251 = vpop.f32.mrb[0].mxu0
      %v2252 = vadd.f32 0.0, %v2251
      %v2253 = vpop.f32.mrb[0].mxu0
      %2254 = vmatprep.mubr.bf16.mxu0 0
      %2255 = vmatmul.mubr.bf16.gmra.mrb[0].mxu0 %v2157
      %v2256 = vpop.f32.mrb[0].mxu0
      %v2257 = vadd.f32 0.0, %v2256
      %v2258 = vpop.f32.mrb[0].mxu0
      %v2259 = vpop.f32.mrb[0].mxu0
      %v2260 = vadd.f32 0.0, %v2259
      %v2261 = vpop.f32.mrb[0].mxu0
      %2262 = vmatprep.mubr.bf16.mxu0 0
      %2263 = vmatmul.mubr.bf16.gmra.mrb[0].mxu0 %v2160
      %v2264 = vpop.f32.mrb[0].mxu0
      %v2265 = vadd.f32 0.0, %v2264
      %v2266 = vpop.f32.mrb[0].mxu0
      %v2267 = vpop.f32.mrb[0].mxu0
      %v2268 = vadd.f32 0.0, %v2267
      %v2269 = vpop.f32.mrb[0].mxu0
      %2270 = vmatprep.mubr.bf16.mxu0 0
      %2271 = vmatmul.mubr.bf16.gmra.mrb[0].mxu0 %v2163
      %v2272 = vpop.f32.mrb[0].mxu0
      %v2273 = vadd.f32 0.0, %v2272
      %v2274 = vpop.f32.mrb[0].mxu0
      %v2275 = vpop.f32.mrb[0].mxu0
      %v2276 = vadd.f32 0.0, %v2275
      %v2277 = vpop.f32.mrb[0].mxu0
      %2278 = vmatprep.mubr.bf16.mxu0 0
      %2279 = vmatmul.mubr.bf16.gmra.mrb[0].mxu0 %v2166
      %v2280 = vpop.f32.mrb[0].mxu0
      %v2281 = vadd.f32 0.0, %v2280
      %v2282 = vpop.f32.mrb[0].mxu0
      %v2283 = vpop.f32.mrb[0].mxu0
      %v2284 = vadd.f32 0.0, %v2283
      %v2285 = vpop.f32.mrb[0].mxu0
      %2286 = vmatprep.mubr.bf16.mxu0 0
      %2287 = vmatmul.mubr.bf16.gmra.mrb[0].mxu0 %v2169
      %v2288 = vpop.f32.mrb[0].mxu0
      %v2289 = vadd.f32 0.0, %v2288
      %v2290 = vpop.f32.mrb[0].mxu0
      %v2291 = vpop.f32.mrb[0].mxu0
      %v2292 = vadd.f32 0.0, %v2291
      %v2293 = vpop.f32.mrb[0].mxu0
      %2294 = vmatprep.mubr.bf16.mxu0 0
      %2295 = vmatmul.mubr.bf16.gmra.mrb[0].mxu0 %v2172
      %v2296 = vpop.f32.mrb[0].mxu0
      %v2297 = vadd.f32 0.0, %v2296
      %v2298 = vpop.f32.mrb[0].mxu0
      %v2299 = vpop.f32.mrb[0].mxu0
      %v2300 = vadd.f32 0.0, %v2299
      %v2301 = vpop.f32.mrb[0].mxu0
      %2302 = vmatprep.mubr.bf16.mxu0 0
      %2303 = vmatmul.mubr.bf16.gmra.mrb[0].mxu0 %v2175
      %v2304 = vpop.f32.mrb[0].mxu0
      %v2305 = vadd.f32 0.0, %v2304
      %v2306 = vpop.f32.mrb[0].mxu0
      %v2307 = vpop.f32.mrb[0].mxu0
      %v2308 = vadd.f32 0.0, %v2307
      %v2309 = vpop.f32.mrb[0].mxu0
      %2310 = vmatprep.mubr.bf16.mxu0 0
      %2311 = vmatmul.mubr.bf16.gmra.mrb[0].mxu0 %v2178
      %v2312 = vpop.f32.mrb[0].mxu0
      %v2313 = vadd.f32 0.0, %v2312
      %v2314 = vpop.f32.mrb[0].mxu0
      %v2315 = vpop.f32.mrb[0].mxu0
      %v2316 = vadd.f32 0.0, %v2315
      %v2317 = vpop.f32.mrb[0].mxu0
      %2318 = vmatprep.mubr.bf16.mxu0 0
      %2319 = vmatmul.mubr.bf16.gmra.mrb[0].mxu0 %v2181
      %v2320 = vpop.f32.mrb[0].mxu0
      %v2321 = vadd.f32 0.0, %v2320
      %v2322 = vpop.f32.mrb[0].mxu0
      %v2323 = vpop.f32.mrb[0].mxu0
      %v2324 = vadd.f32 0.0, %v2323
      %v2325 = vpop.f32.mrb[0].mxu0
      %2326 = vmatprep.mubr.bf16.mxu0 0
      %2327 = vmatmul.mubr.bf16.gmra.mrb[0].mxu0 %v2184
      %v2328 = vpop.f32.mrb[0].mxu0
      %v2329 = vadd.f32 0.0, %v2328
      %v2330 = vpop.f32.mrb[0].mxu0
      %v2331 = vpop.f32.mrb[0].mxu0
      %v2332 = vadd.f32 0.0, %v2331
      %v2333 = vpop.f32.mrb[0].mxu0
      %2334 = vmatprep.mubr.bf16.mxu0 0
      %2335 = vmatmul.mubr.bf16.gmra.mrb[0].mxu0 %v2187
      %v2336 = vpop.f32.mrb[0].mxu0
      %v2337 = vadd.f32 0.0, %v2336
      %v2338 = vpop.f32.mrb[0].mxu0
      %v2339 = vpop.f32.mrb[0].mxu0
      %v2340 = vadd.f32 0.0, %v2339
      %v2341 = vpop.f32.mrb[0].mxu0
      %2342 = vmatprep.mubr.bf16.mxu0 0
      %2343 = vmatmul.mubr.bf16.gmra.mrb[0].mxu0 %v2190
      %v2344 = vpop.f32.mrb[0].mxu0
      %v2345 = vadd.f32 0.0, %v2344
      %v2346 = vpop.f32.mrb[0].mxu0
      %v2347 = vpop.f32.mrb[0].mxu0
      %v2348 = vadd.f32 0.0, %v2347
      %v2349 = vpop.f32.mrb[0].mxu0
      %2350 = vmatprep.mubr.bf16.mxu0 0
      %2351 = vmatmul.mubr.bf16.gmra.mrb[0].mxu0 %v2193
      %v2352 = vpop.f32.mrb[0].mxu0
      %v2353 = vadd.f32 0.0, %v2352
      %v2354 = vpop.f32.mrb[0].mxu0
      %v2355 = vpop.f32.mrb[0].mxu0
      %v2356 = vadd.f32 0.0, %v2355
      %v2357 = vpop.f32.mrb[0].mxu0
      %2358 = vdwg.mxu0
      %v2359 = vadd.f32 %v1937, %v2233
      %v2360 = vadd.f32 %v1938, %v2236
      %v2361 = vadd.f32 %v1939, %v2241
      %v2362 = vadd.f32 %v1940, %v2244
      %v2363 = vadd.f32 %v1941, %v2249
      %v2364 = vadd.f32 %v1942, %v2252
      %v2365 = vadd.f32 %v1943, %v2257
      %v2366 = vadd.f32 %v1944, %v2260
      %v2367 = vadd.f32 %v1945, %v2265
      %v2368 = vadd.f32 %v1946, %v2268
      %v2369 = vadd.f32 %v1947, %v2273
      %v2370 = vadd.f32 %v1948, %v2276
      %v2371 = vadd.f32 %v1949, %v2281
      %v2372 = vadd.f32 %v1950, %v2284
      %v2373 = vadd.f32 %v1951, %v2289
      %v2374 = vadd.f32 %v1952, %v2292
      %v2375 = vadd.f32 %v1953, %v2297
      %v2376 = vadd.f32 %v1954, %v2300
      %v2377 = vadd.f32 %v1955, %v2305
      %v2378 = vadd.f32 %v1956, %v2308
      %v2379 = vadd.f32 %v1957, %v2313
      %v2380 = vadd.f32 %v1958, %v2316
      %v2381 = vadd.f32 %v1959, %v2321
      %v2382 = vadd.f32 %v1960, %v2324
      %v2383 = vadd.f32 %v1961, %v2329
      %v2384 = vadd.f32 %v1962, %v2332
      %v2385 = vadd.f32 %v1963, %v2337
      %v2386 = vadd.f32 %v1964, %v2340
      %v2387 = vadd.f32 %v1965, %v2345
      %v2388 = vadd.f32 %v1966, %v2348
      %v2389 = vadd.f32 %v1967, %v2353
      %v2390 = vadd.f32 %v1968, %v2356
      %v2423 = vrot.slane %v1691, 1
      %v2424 = vrot.slane %v1692, 1
      %v2425 = vsel %vm1348, %v2423, %v2424
      %v2426 = vrot.slane %v1693, 1
      %v2427 = vrot.slane %v1694, 1
      %v2428 = vsel %vm1348, %v2426, %v2427
      %v2429 = vrot.slane %v1695, 1
      %v2430 = vrot.slane %v1696, 1
      %v2431 = vsel %vm1348, %v2429, %v2430
      %v2432 = vrot.slane %v1697, 1
      %v2433 = vrot.slane %v1698, 1
      %v2434 = vsel %vm1348, %v2432, %v2433
      %v2435 = vrot.slane %v1699, 1
      %v2436 = vrot.slane %v1700, 1
      %v2437 = vsel %vm1348, %v2435, %v2436
      %v2438 = vrot.slane %v1701, 1
      %v2439 = vrot.slane %v1702, 1
      %v2440 = vsel %vm1348, %v2438, %v2439
      %v2441 = vrot.slane %v1703, 1
      %v2442 = vrot.slane %v1704, 1
      %v2443 = vsel %vm1348, %v2441, %v2442
      %v2444 = vrot.slane %v1705, 1
      %v2445 = vrot.slane %v1706, 1
      %v2446 = vsel %vm1348, %v2444, %v2445
      %v2447 = vrot.slane %v1707, 1
      %v2448 = vrot.slane %v1708, 1
      %v2449 = vsel %vm1348, %v2447, %v2448
      %v2450 = vrot.slane %v1709, 1
      %v2451 = vrot.slane %v1710, 1
      %v2452 = vsel %vm1348, %v2450, %v2451
      %v2453 = vrot.slane %v1711, 1
      %v2454 = vrot.slane %v1712, 1
      %v2455 = vsel %vm1348, %v2453, %v2454
      %v2456 = vrot.slane %v1713, 1
      %v2457 = vrot.slane %v1714, 1
      %v2458 = vsel %vm1348, %v2456, %v2457
      %v2459 = vrot.slane %v1715, 1
      %v2460 = vrot.slane %v1716, 1
      %v2461 = vsel %vm1348, %v2459, %v2460
      %v2462 = vrot.slane %v1717, 1
      %v2463 = vrot.slane %v1718, 1
      %v2464 = vsel %vm1348, %v2462, %v2463
      %v2465 = vrot.slane %v1719, 1
      %v2466 = vrot.slane %v1720, 1
      %v2467 = vsel %vm1348, %v2465, %v2466
      %v2468 = vrot.slane %v1721, 1
      %v2469 = vrot.slane %v1722, 1
      %v2470 = vsel %vm1348, %v2468, %v2469
      %s2471 = scalar_lea.vmem %s1, 10
      %v2472 = vld [vmem:[%s2471] sm:$0x3]
      %v2474 = vsel %vm249, %v2425, 0
      %v2477 = vsel %vm249, %v2428, 0
      %v2480 = vsel %vm249, %v2431, 0
      %v2483 = vsel %vm249, %v2434, 0
      %v2486 = vsel %vm249, %v2437, 0
      %v2489 = vsel %vm249, %v2440, 0
      %v2492 = vsel %vm249, %v2443, 0
      %v2495 = vsel %vm249, %v2446, 0
      %v2498 = vsel %vm249, %v2449, 0
      %v2501 = vsel %vm249, %v2452, 0
      %v2504 = vsel %vm249, %v2455, 0
      %v2507 = vsel %vm249, %v2458, 0
      %v2510 = vsel %vm249, %v2461, 0
      %v2513 = vsel %vm249, %v2464, 0
      %v2516 = vsel %vm249, %v2467, 0
      %v2519 = vsel %vm249, %v2470, 0
      %v2522 = vsel %vm467, %v2472, 0
      %2524 = vmatprep.subr.bf16.mxu0 0
      %2525 = vmatpush1.bf16.msra.mxu0 %v2522
      %2526 = vmatprep.subr.bf16.mxu0 0
      %2527 = vmatpush1.bf16.msra.mxu0 0
      %2528 = vmatprep.subr.bf16.mxu0 0
      %2529 = vmatpush1.bf16.msra.mxu0 0
      %2530 = vmatprep.subr.bf16.mxu0 0
      %2531 = vmatpush1.bf16.msra.mxu0 0
      %2532 = vmatprep.subr.bf16.mxu0 0
      %2533 = vmatpush1.bf16.msra.mxu0 0
      %2534 = vmatprep.subr.bf16.mxu0 0
      %2535 = vmatpush1.bf16.msra.mxu0 0
      %2536 = vmatprep.subr.bf16.mxu0 0
      %2537 = vmatpush1.bf16.msra.mxu0 0
      %2538 = vmatprep.subr.bf16.mxu0 0
      %2539 = vmatpush1.bf16.msra.mxu0 0
      %2540 = vmatprep.subr.bf16.mxu0 0
      %2541 = vmatpush1.bf16.msra.mxu0 0
      %2542 = vmatprep.subr.bf16.mxu0 0
      %2543 = vmatpush1.bf16.msra.mxu0 0
      %2544 = vmatprep.subr.bf16.mxu0 0
      %2545 = vmatpush1.bf16.msra.mxu0 0
      %2546 = vmatprep.subr.bf16.mxu0 0
      %2547 = vmatpush1.bf16.msra.mxu0 0
      %2548 = vmatprep.subr.bf16.mxu0 0
      %2549 = vmatpush1.bf16.msra.mxu0 0
      %2550 = vmatprep.subr.bf16.mxu0 0
      %2551 = vmatpush1.bf16.msra.mxu0 0
      %2552 = vmatprep.subr.bf16.mxu0 0
      %2553 = vmatpush1.bf16.msra.mxu0 0
      %2554 = vmatprep.subr.bf16.mxu0 0
      %2555 = vmatpush1.bf16.msra.mxu0 0
      %2556 = vmatprep.mubr.bf16.mxu0 0
      %2557 = vmatmul.mubr.bf16.gmra.mrb[0].mxu0 %v2474
      %v2558 = vpop.f32.mrb[0].mxu0
      %v2559 = vadd.f32 0.0, %v2558
      %v2560 = vpop.f32.mrb[0].mxu0
      %v2561 = vpop.f32.mrb[0].mxu0
      %v2562 = vadd.f32 0.0, %v2561
      %v2563 = vpop.f32.mrb[0].mxu0
      %2564 = vmatprep.mubr.bf16.mxu0 0
      %2565 = vmatmul.mubr.bf16.gmra.mrb[0].mxu0 %v2477
      %v2566 = vpop.f32.mrb[0].mxu0
      %v2567 = vadd.f32 0.0, %v2566
      %v2568 = vpop.f32.mrb[0].mxu0
      %v2569 = vpop.f32.mrb[0].mxu0
      %v2570 = vadd.f32 0.0, %v2569
      %v2571 = vpop.f32.mrb[0].mxu0
      %2572 = vmatprep.mubr.bf16.mxu0 0
      %2573 = vmatmul.mubr.bf16.gmra.mrb[0].mxu0 %v2480
      %v2574 = vpop.f32.mrb[0].mxu0
      %v2575 = vadd.f32 0.0, %v2574
      %v2576 = vpop.f32.mrb[0].mxu0
      %v2577 = vpop.f32.mrb[0].mxu0
      %v2578 = vadd.f32 0.0, %v2577
      %v2579 = vpop.f32.mrb[0].mxu0
      %2580 = vmatprep.mubr.bf16.mxu0 0
      %2581 = vmatmul.mubr.bf16.gmra.mrb[0].mxu0 %v2483
      %v2582 = vpop.f32.mrb[0].mxu0
      %v2583 = vadd.f32 0.0, %v2582
      %v2584 = vpop.f32.mrb[0].mxu0
      %v2585 = vpop.f32.mrb[0].mxu0
      %v2586 = vadd.f32 0.0, %v2585
      %v2587 = vpop.f32.mrb[0].mxu0
      %2588 = vmatprep.mubr.bf16.mxu0 0
      %2589 = vmatmul.mubr.bf16.gmra.mrb[0].mxu0 %v2486
      %v2590 = vpop.f32.mrb[0].mxu0
      %v2591 = vadd.f32 0.0, %v2590
      %v2592 = vpop.f32.mrb[0].mxu0
      %v2593 = vpop.f32.mrb[0].mxu0
      %v2594 = vadd.f32 0.0, %v2593
      %v2595 = vpop.f32.mrb[0].mxu0
      %2596 = vmatprep.mubr.bf16.mxu0 0
      %2597 = vmatmul.mubr.bf16.gmra.mrb[0].mxu0 %v2489
      %v2598 = vpop.f32.mrb[0].mxu0
      %v2599 = vadd.f32 0.0, %v2598
      %v2600 = vpop.f32.mrb[0].mxu0
      %v2601 = vpop.f32.mrb[0].mxu0
      %v2602 = vadd.f32 0.0, %v2601
      %v2603 = vpop.f32.mrb[0].mxu0
      %2604 = vmatprep.mubr.bf16.mxu0 0
      %2605 = vmatmul.mubr.bf16.gmra.mrb[0].mxu0 %v2492
      %v2606 = vpop.f32.mrb[0].mxu0
      %v2607 = vadd.f32 0.0, %v2606
      %v2608 = vpop.f32.mrb[0].mxu0
      %v2609 = vpop.f32.mrb[0].mxu0
      %v2610 = vadd.f32 0.0, %v2609
      %v2611 = vpop.f32.mrb[0].mxu0
      %2612 = vmatprep.mubr.bf16.mxu0 0
      %2613 = vmatmul.mubr.bf16.gmra.mrb[0].mxu0 %v2495
      %v2614 = vpop.f32.mrb[0].mxu0
      %v2615 = vadd.f32 0.0, %v2614
      %v2616 = vpop.f32.mrb[0].mxu0
      %v2617 = vpop.f32.mrb[0].mxu0
      %v2618 = vadd.f32 0.0, %v2617
      %v2619 = vpop.f32.mrb[0].mxu0
      %2620 = vmatprep.mubr.bf16.mxu0 0
      %2621 = vmatmul.mubr.bf16.gmra.mrb[0].mxu0 %v2498
      %v2622 = vpop.f32.mrb[0].mxu0
      %v2623 = vadd.f32 0.0, %v2622
      %v2624 = vpop.f32.mrb[0].mxu0
      %v2625 = vpop.f32.mrb[0].mxu0
      %v2626 = vadd.f32 0.0, %v2625
      %v2627 = vpop.f32.mrb[0].mxu0
      %2628 = vmatprep.mubr.bf16.mxu0 0
      %2629 = vmatmul.mubr.bf16.gmra.mrb[0].mxu0 %v2501
      %v2630 = vpop.f32.mrb[0].mxu0
      %v2631 = vadd.f32 0.0, %v2630
      %v2632 = vpop.f32.mrb[0].mxu0
      %v2633 = vpop.f32.mrb[0].mxu0
      %v2634 = vadd.f32 0.0, %v2633
      %v2635 = vpop.f32.mrb[0].mxu0
      %2636 = vmatprep.mubr.bf16.mxu0 0
      %2637 = vmatmul.mubr.bf16.gmra.mrb[0].mxu0 %v2504
      %v2638 = vpop.f32.mrb[0].mxu0
      %v2639 = vadd.f32 0.0, %v2638
      %v2640 = vpop.f32.mrb[0].mxu0
      %v2641 = vpop.f32.mrb[0].mxu0
      %v2642 = vadd.f32 0.0, %v2641
      %v2643 = vpop.f32.mrb[0].mxu0
      %2644 = vmatprep.mubr.bf16.mxu0 0
      %2645 = vmatmul.mubr.bf16.gmra.mrb[0].mxu0 %v2507
      %v2646 = vpop.f32.mrb[0].mxu0
      %v2647 = vadd.f32 0.0, %v2646
      %v2648 = vpop.f32.mrb[0].mxu0
      %v2649 = vpop.f32.mrb[0].mxu0
      %v2650 = vadd.f32 0.0, %v2649
      %v2651 = vpop.f32.mrb[0].mxu0
      %2652 = vmatprep.mubr.bf16.mxu0 0
      %2653 = vmatmul.mubr.bf16.gmra.mrb[0].mxu0 %v2510
      %v2654 = vpop.f32.mrb[0].mxu0
      %v2655 = vadd.f32 0.0, %v2654
      %v2656 = vpop.f32.mrb[0].mxu0
      %v2657 = vpop.f32.mrb[0].mxu0
      %v2658 = vadd.f32 0.0, %v2657
      %v2659 = vpop.f32.mrb[0].mxu0
      %2660 = vmatprep.mubr.bf16.mxu0 0
      %2661 = vmatmul.mubr.bf16.gmra.mrb[0].mxu0 %v2513
      %v2662 = vpop.f32.mrb[0].mxu0
      %v2663 = vadd.f32 0.0, %v2662
      %v2664 = vpop.f32.mrb[0].mxu0
      %v2665 = vpop.f32.mrb[0].mxu0
      %v2666 = vadd.f32 0.0, %v2665
      %v2667 = vpop.f32.mrb[0].mxu0
      %2668 = vmatprep.mubr.bf16.mxu0 0
      %2669 = vmatmul.mubr.bf16.gmra.mrb[0].mxu0 %v2516
      %v2670 = vpop.f32.mrb[0].mxu0
      %v2671 = vadd.f32 0.0, %v2670
      %v2672 = vpop.f32.mrb[0].mxu0
      %v2673 = vpop.f32.mrb[0].mxu0
      %v2674 = vadd.f32 0.0, %v2673
      %v2675 = vpop.f32.mrb[0].mxu0
      %2676 = vmatprep.mubr.bf16.mxu0 0
      %2677 = vmatmul.mubr.bf16.gmra.mrb[0].mxu0 %v2519
      %v2678 = vpop.f32.mrb[0].mxu0
      %v2679 = vadd.f32 0.0, %v2678
      %v2680 = vpop.f32.mrb[0].mxu0
      %v2681 = vpop.f32.mrb[0].mxu0
      %v2682 = vadd.f32 0.0, %v2681
      %v2683 = vpop.f32.mrb[0].mxu0
      %2684 = vdwg.mxu0
      %v2685 = vadd.f32 %v2359, %v2559
      %v2686 = vadd.f32 %v2360, %v2562
      %v2687 = vadd.f32 %v2361, %v2567
      %v2688 = vadd.f32 %v2362, %v2570
      %v2689 = vadd.f32 %v2363, %v2575
      %v2690 = vadd.f32 %v2364, %v2578
      %v2691 = vadd.f32 %v2365, %v2583
      %v2692 = vadd.f32 %v2366, %v2586
      %v2693 = vadd.f32 %v2367, %v2591
      %v2694 = vadd.f32 %v2368, %v2594
      %v2695 = vadd.f32 %v2369, %v2599
      %v2696 = vadd.f32 %v2370, %v2602
      %v2697 = vadd.f32 %v2371, %v2607
      %v2698 = vadd.f32 %v2372, %v2610
      %v2699 = vadd.f32 %v2373, %v2615
      %v2700 = vadd.f32 %v2374, %v2618
      %v2701 = vadd.f32 %v2375, %v2623
      %v2702 = vadd.f32 %v2376, %v2626
      %v2703 = vadd.f32 %v2377, %v2631
      %v2704 = vadd.f32 %v2378, %v2634
      %v2705 = vadd.f32 %v2379, %v2639
      %v2706 = vadd.f32 %v2380, %v2642
      %v2707 = vadd.f32 %v2381, %v2647
      %v2708 = vadd.f32 %v2382, %v2650
      %v2709 = vadd.f32 %v2383, %v2655
      %v2710 = vadd.f32 %v2384, %v2658
      %v2711 = vadd.f32 %v2385, %v2663
      %v2712 = vadd.f32 %v2386, %v2666
      %v2713 = vadd.f32 %v2387, %v2671
      %v2714 = vadd.f32 %v2388, %v2674
      %v2715 = vadd.f32 %v2389, %v2679
      %v2716 = vadd.f32 %v2390, %v2682
      %s2717 = scalar_lea.vmem [#allocation2], 48
      %v2718 = vld [vmem:[%s2717] sm:$0xff]
      %v2719 = vld [vmem:[%s2717 + $0x8] sm:$0xff]
      %v2720 = vld [vmem:[%s2717 + $0x10] sm:$0x3]
      %v2721 = vld [vmem:[%s2717 + $0x18] sm:$0xff]
      %v2722 = vld [vmem:[%s2717 + $0x20] sm:$0xff]
      %v2723 = vld [vmem:[%s2717 + $0x28] sm:$0x3]
      %v2724 = vld [vmem:[%s2717 + $0x30] sm:$0xff]
      %v2725 = vld [vmem:[%s2717 + $0x38] sm:$0xff]
      %v2726 = vld [vmem:[%s2717 + $0x40] sm:$0x3]
      %v2727 = vld [vmem:[%s2717 + $0x48] sm:$0xff]
      %v2728 = vld [vmem:[%s2717 + $0x50] sm:$0xff]
      %v2729 = vld [vmem:[%s2717 + $0x58] sm:$0x3]
      %v2730 = vld [vmem:[%s2717 + $0x60] sm:$0xff]
      %v2731 = vld [vmem:[%s2717 + $0x68] sm:$0xff]
      %v2732 = vld [vmem:[%s2717 + $0x70] sm:$0x3]
      %v2733 = vld [vmem:[%s2717 + $0x78] sm:$0xff]
      %v2734 = vld [vmem:[%s2717 + $0x80] sm:$0xff]
      %v2735 = vld [vmem:[%s2717 + $0x88] sm:$0x3]
      %v2736 = vld [vmem:[%s2717 + $0x90] sm:$0xff]
      %v2737 = vld [vmem:[%s2717 + $0x98] sm:$0xff]
      %v2738 = vld [vmem:[%s2717 + $0xa0] sm:$0x3]
      %v2739 = vld [vmem:[%s2717 + $0xa8] sm:$0xff]
      %v2740 = vld [vmem:[%s2717 + $0xb0] sm:$0xff]
      %v2741 = vld [vmem:[%s2717 + $0xb8] sm:$0x3]
      %v2742 = vld [vmem:[%s2717 + $0xc0] sm:$0xff]
      %v2743 = vld [vmem:[%s2717 + $0xc8] sm:$0xff]
      %v2744 = vld [vmem:[%s2717 + $0xd0] sm:$0x3]
      %v2745 = vld [vmem:[%s2717 + $0xd8] sm:$0xff]
      %v2746 = vld [vmem:[%s2717 + $0xe0] sm:$0xff]
      %v2747 = vld [vmem:[%s2717 + $0xe8] sm:$0x3]
      %v2748 = vld [vmem:[%s2717 + $0xf0] sm:$0xff]
      %v2749 = vld [vmem:[%s2717 + $0xf8] sm:$0xff]
      %v2750 = vld [vmem:[%s2717 + $0x100] sm:$0x3]
      %v2751 = vld [vmem:[%s2717 + $0x108] sm:$0xff]
      %v2752 = vld [vmem:[%s2717 + $0x110] sm:$0xff]
      %v2753 = vld [vmem:[%s2717 + $0x118] sm:$0x3]
      %v2754 = vld [vmem:[%s2717 + $0x120] sm:$0xff]
      %v2755 = vld [vmem:[%s2717 + $0x128] sm:$0xff]
      %v2756 = vld [vmem:[%s2717 + $0x130] sm:$0x3]
      %v2757 = vld [vmem:[%s2717 + $0x138] sm:$0xff]
      %v2758 = vld [vmem:[%s2717 + $0x140] sm:$0xff]
      %v2759 = vld [vmem:[%s2717 + $0x148] sm:$0x3]
      %v2760 = vld [vmem:[%s2717 + $0x150] sm:$0xff]
      %v2761 = vld [vmem:[%s2717 + $0x158] sm:$0xff]
      %v2762 = vld [vmem:[%s2717 + $0x160] sm:$0x3]
      %v2763 = vld [vmem:[%s2717 + $0x168] sm:$0xff]
      %v2764 = vld [vmem:[%s2717 + $0x170] sm:$0xff]
      %v2765 = vld [vmem:[%s2717 + $0x178] sm:$0x3]
      %v2766 = vpack.c.bf16 %v2719, %v2718
      %v2767 = vpack.c.bf16 %v2720, %v2720
      %v2768 = vpack.c.bf16 %v2722, %v2721
      %v2769 = vpack.c.bf16 %v2723, %v2723
      %v2770 = vpack.c.bf16 %v2725, %v2724
      %v2771 = vpack.c.bf16 %v2726, %v2726
      %v2772 = vpack.c.bf16 %v2728, %v2727
      %v2773 = vpack.c.bf16 %v2729, %v2729
      %v2774 = vpack.c.bf16 %v2731, %v2730
      %v2775 = vpack.c.bf16 %v2732, %v2732
      %v2776 = vpack.c.bf16 %v2734, %v2733
      %v2777 = vpack.c.bf16 %v2735, %v2735
      %v2778 = vpack.c.bf16 %v2737, %v2736
      %v2779 = vpack.c.bf16 %v2738, %v2738
      %v2780 = vpack.c.bf16 %v2740, %v2739
      %v2781 = vpack.c.bf16 %v2741, %v2741
      %v2782 = vpack.c.bf16 %v2743, %v2742
      %v2783 = vpack.c.bf16 %v2744, %v2744
      %v2784 = vpack.c.bf16 %v2746, %v2745
      %v2785 = vpack.c.bf16 %v2747, %v2747
      %v2786 = vpack.c.bf16 %v2749, %v2748
      %v2787 = vpack.c.bf16 %v2750, %v2750
      %v2788 = vpack.c.bf16 %v2752, %v2751
      %v2789 = vpack.c.bf16 %v2753, %v2753
      %v2790 = vpack.c.bf16 %v2755, %v2754
      %v2791 = vpack.c.bf16 %v2756, %v2756
      %v2792 = vpack.c.bf16 %v2758, %v2757
      %v2793 = vpack.c.bf16 %v2759, %v2759
      %v2794 = vpack.c.bf16 %v2761, %v2760
      %v2795 = vpack.c.bf16 %v2762, %v2762
      %v2796 = vpack.c.bf16 %v2764, %v2763
      %v2797 = vpack.c.bf16 %v2765, %v2765
      %s2798 = scalar_lea.vmem %s1, 12
      %v2799 = vld [vmem:[%s2798] sm:$0x3]
      %v2801 = vsel %vm249, %v2766, 0
      %v2804 = vsel %vm249, %v2768, 0
      %v2807 = vsel %vm249, %v2770, 0
      %v2810 = vsel %vm249, %v2772, 0
      %v2813 = vsel %vm249, %v2774, 0
      %v2816 = vsel %vm249, %v2776, 0
      %v2819 = vsel %vm249, %v2778, 0
      %v2822 = vsel %vm249, %v2780, 0
      %v2825 = vsel %vm249, %v2782, 0
      %v2828 = vsel %vm249, %v2784, 0
      %v2831 = vsel %vm249, %v2786, 0
      %v2834 = vsel %vm249, %v2788, 0
      %v2837 = vsel %vm249, %v2790, 0
      %v2840 = vsel %vm249, %v2792, 0
      %v2843 = vsel %vm249, %v2794, 0
      %v2846 = vsel %vm249, %v2796, 0
      %v2849 = vsel %vm467, %v2799, 0
      %2851 = vmatprep.subr.bf16.mxu0 0
      %2852 = vmatpush1.bf16.msra.mxu0 %v2849
      %2853 = vmatprep.subr.bf16.mxu0 0
      %2854 = vmatpush1.bf16.msra.mxu0 0
      %2855 = vmatprep.subr.bf16.mxu0 0
      %2856 = vmatpush1.bf16.msra.mxu0 0
      %2857 = vmatprep.subr.bf16.mxu0 0
      %2858 = vmatpush1.bf16.msra.mxu0 0
      %2859 = vmatprep.subr.bf16.mxu0 0
      %2860 = vmatpush1.bf16.msra.mxu0 0
      %2861 = vmatprep.subr.bf16.mxu0 0
      %2862 = vmatpush1.bf16.msra.mxu0 0
      %2863 = vmatprep.subr.bf16.mxu0 0
      %2864 = vmatpush1.bf16.msra.mxu0 0
      %2865 = vmatprep.subr.bf16.mxu0 0
      %2866 = vmatpush1.bf16.msra.mxu0 0
      %2867 = vmatprep.subr.bf16.mxu0 0
      %2868 = vmatpush1.bf16.msra.mxu0 0
      %2869 = vmatprep.subr.bf16.mxu0 0
      %2870 = vmatpush1.bf16.msra.mxu0 0
      %2871 = vmatprep.subr.bf16.mxu0 0
      %2872 = vmatpush1.bf16.msra.mxu0 0
      %2873 = vmatprep.subr.bf16.mxu0 0
      %2874 = vmatpush1.bf16.msra.mxu0 0
      %2875 = vmatprep.subr.bf16.mxu0 0
      %2876 = vmatpush1.bf16.msra.mxu0 0
      %2877 = vmatprep.subr.bf16.mxu0 0
      %2878 = vmatpush1.bf16.msra.mxu0 0
      %2879 = vmatprep.subr.bf16.mxu0 0
      %2880 = vmatpush1.bf16.msra.mxu0 0
      %2881 = vmatprep.subr.bf16.mxu0 0
      %2882 = vmatpush1.bf16.msra.mxu0 0
      %2883 = vmatprep.mubr.bf16.mxu0 0
      %2884 = vmatmul.mubr.bf16.gmra.mrb[0].mxu0 %v2801
      %v2885 = vpop.f32.mrb[0].mxu0
      %v2886 = vadd.f32 0.0, %v2885
      %v2887 = vpop.f32.mrb[0].mxu0
      %v2888 = vpop.f32.mrb[0].mxu0
      %v2889 = vadd.f32 0.0, %v2888
      %v2890 = vpop.f32.mrb[0].mxu0
      %2891 = vmatprep.mubr.bf16.mxu0 0
      %2892 = vmatmul.mubr.bf16.gmra.mrb[0].mxu0 %v2804
      %v2893 = vpop.f32.mrb[0].mxu0
      %v2894 = vadd.f32 0.0, %v2893
      %v2895 = vpop.f32.mrb[0].mxu0
      %v2896 = vpop.f32.mrb[0].mxu0
      %v2897 = vadd.f32 0.0, %v2896
      %v2898 = vpop.f32.mrb[0].mxu0
      %2899 = vmatprep.mubr.bf16.mxu0 0
      %2900 = vmatmul.mubr.bf16.gmra.mrb[0].mxu0 %v2807
      %v2901 = vpop.f32.mrb[0].mxu0
      %v2902 = vadd.f32 0.0, %v2901
      %v2903 = vpop.f32.mrb[0].mxu0
      %v2904 = vpop.f32.mrb[0].mxu0
      %v2905 = vadd.f32 0.0, %v2904
      %v2906 = vpop.f32.mrb[0].mxu0
      %2907 = vmatprep.mubr.bf16.mxu0 0
      %2908 = vmatmul.mubr.bf16.gmra.mrb[0].mxu0 %v2810
      %v2909 = vpop.f32.mrb[0].mxu0
      %v2910 = vadd.f32 0.0, %v2909
      %v2911 = vpop.f32.mrb[0].mxu0
      %v2912 = vpop.f32.mrb[0].mxu0
      %v2913 = vadd.f32 0.0, %v2912
      %v2914 = vpop.f32.mrb[0].mxu0
      %2915 = vmatprep.mubr.bf16.mxu0 0
      %2916 = vmatmul.mubr.bf16.gmra.mrb[0].mxu0 %v2813
      %v2917 = vpop.f32.mrb[0].mxu0
      %v2918 = vadd.f32 0.0, %v2917
      %v2919 = vpop.f32.mrb[0].mxu0
      %v2920 = vpop.f32.mrb[0].mxu0
      %v2921 = vadd.f32 0.0, %v2920
      %v2922 = vpop.f32.mrb[0].mxu0
      %2923 = vmatprep.mubr.bf16.mxu0 0
      %2924 = vmatmul.mubr.bf16.gmra.mrb[0].mxu0 %v2816
      %v2925 = vpop.f32.mrb[0].mxu0
      %v2926 = vadd.f32 0.0, %v2925
      %v2927 = vpop.f32.mrb[0].mxu0
      %v2928 = vpop.f32.mrb[0].mxu0
      %v2929 = vadd.f32 0.0, %v2928
      %v2930 = vpop.f32.mrb[0].mxu0
      %2931 = vmatprep.mubr.bf16.mxu0 0
      %2932 = vmatmul.mubr.bf16.gmra.mrb[0].mxu0 %v2819
      %v2933 = vpop.f32.mrb[0].mxu0
      %v2934 = vadd.f32 0.0, %v2933
      %v2935 = vpop.f32.mrb[0].mxu0
      %v2936 = vpop.f32.mrb[0].mxu0
      %v2937 = vadd.f32 0.0, %v2936
      %v2938 = vpop.f32.mrb[0].mxu0
      %2939 = vmatprep.mubr.bf16.mxu0 0
      %2940 = vmatmul.mubr.bf16.gmra.mrb[0].mxu0 %v2822
      %v2941 = vpop.f32.mrb[0].mxu0
      %v2942 = vadd.f32 0.0, %v2941
      %v2943 = vpop.f32.mrb[0].mxu0
      %v2944 = vpop.f32.mrb[0].mxu0
      %v2945 = vadd.f32 0.0, %v2944
      %v2946 = vpop.f32.mrb[0].mxu0
      %2947 = vmatprep.mubr.bf16.mxu0 0
      %2948 = vmatmul.mubr.bf16.gmra.mrb[0].mxu0 %v2825
      %v2949 = vpop.f32.mrb[0].mxu0
      %v2950 = vadd.f32 0.0, %v2949
      %v2951 = vpop.f32.mrb[0].mxu0
      %v2952 = vpop.f32.mrb[0].mxu0
      %v2953 = vadd.f32 0.0, %v2952
      %v2954 = vpop.f32.mrb[0].mxu0
      %2955 = vmatprep.mubr.bf16.mxu0 0
      %2956 = vmatmul.mubr.bf16.gmra.mrb[0].mxu0 %v2828
      %v2957 = vpop.f32.mrb[0].mxu0
      %v2958 = vadd.f32 0.0, %v2957
      %v2959 = vpop.f32.mrb[0].mxu0
      %v2960 = vpop.f32.mrb[0].mxu0
      %v2961 = vadd.f32 0.0, %v2960
      %v2962 = vpop.f32.mrb[0].mxu0
      %2963 = vmatprep.mubr.bf16.mxu0 0
      %2964 = vmatmul.mubr.bf16.gmra.mrb[0].mxu0 %v2831
      %v2965 = vpop.f32.mrb[0].mxu0
      %v2966 = vadd.f32 0.0, %v2965
      %v2967 = vpop.f32.mrb[0].mxu0
      %v2968 = vpop.f32.mrb[0].mxu0
      %v2969 = vadd.f32 0.0, %v2968
      %v2970 = vpop.f32.mrb[0].mxu0
      %2971 = vmatprep.mubr.bf16.mxu0 0
      %2972 = vmatmul.mubr.bf16.gmra.mrb[0].mxu0 %v2834
      %v2973 = vpop.f32.mrb[0].mxu0
      %v2974 = vadd.f32 0.0, %v2973
      %v2975 = vpop.f32.mrb[0].mxu0
      %v2976 = vpop.f32.mrb[0].mxu0
      %v2977 = vadd.f32 0.0, %v2976
      %v2978 = vpop.f32.mrb[0].mxu0
      %2979 = vmatprep.mubr.bf16.mxu0 0
      %2980 = vmatmul.mubr.bf16.gmra.mrb[0].mxu0 %v2837
      %v2981 = vpop.f32.mrb[0].mxu0
      %v2982 = vadd.f32 0.0, %v2981
      %v2983 = vpop.f32.mrb[0].mxu0
      %v2984 = vpop.f32.mrb[0].mxu0
      %v2985 = vadd.f32 0.0, %v2984
      %v2986 = vpop.f32.mrb[0].mxu0
      %2987 = vmatprep.mubr.bf16.mxu0 0
      %2988 = vmatmul.mubr.bf16.gmra.mrb[0].mxu0 %v2840
      %v2989 = vpop.f32.mrb[0].mxu0
      %v2990 = vadd.f32 0.0, %v2989
      %v2991 = vpop.f32.mrb[0].mxu0
      %v2992 = vpop.f32.mrb[0].mxu0
      %v2993 = vadd.f32 0.0, %v2992
      %v2994 = vpop.f32.mrb[0].mxu0
      %2995 = vmatprep.mubr.bf16.mxu0 0
      %2996 = vmatmul.mubr.bf16.gmra.mrb[0].mxu0 %v2843
      %v2997 = vpop.f32.mrb[0].mxu0
      %v2998 = vadd.f32 0.0, %v2997
      %v2999 = vpop.f32.mrb[0].mxu0
      %v3000 = vpop.f32.mrb[0].mxu0
      %v3001 = vadd.f32 0.0, %v3000
      %v3002 = vpop.f32.mrb[0].mxu0
      %3003 = vmatprep.mubr.bf16.mxu0 0
      %3004 = vmatmul.mubr.bf16.gmra.mrb[0].mxu0 %v2846
      %v3005 = vpop.f32.mrb[0].mxu0
      %v3006 = vadd.f32 0.0, %v3005
      %v3007 = vpop.f32.mrb[0].mxu0
      %v3008 = vpop.f32.mrb[0].mxu0
      %v3009 = vadd.f32 0.0, %v3008
      %v3010 = vpop.f32.mrb[0].mxu0
      %3011 = vdwg.mxu0
      %v3012 = vadd.f32 %v2685, %v2886
      %v3013 = vadd.f32 %v2686, %v2889
      %v3014 = vadd.f32 %v2687, %v2894
      %v3015 = vadd.f32 %v2688, %v2897
      %v3016 = vadd.f32 %v2689, %v2902
      %v3017 = vadd.f32 %v2690, %v2905
      %v3018 = vadd.f32 %v2691, %v2910
      %v3019 = vadd.f32 %v2692, %v2913
      %v3020 = vadd.f32 %v2693, %v2918
      %v3021 = vadd.f32 %v2694, %v2921
      %v3022 = vadd.f32 %v2695, %v2926
      %v3023 = vadd.f32 %v2696, %v2929
      %v3024 = vadd.f32 %v2697, %v2934
      %v3025 = vadd.f32 %v2698, %v2937
      %v3026 = vadd.f32 %v2699, %v2942
      %v3027 = vadd.f32 %v2700, %v2945
      %v3028 = vadd.f32 %v2701, %v2950
      %v3029 = vadd.f32 %v2702, %v2953
      %v3030 = vadd.f32 %v2703, %v2958
      %v3031 = vadd.f32 %v2704, %v2961
      %v3032 = vadd.f32 %v2705, %v2966
      %v3033 = vadd.f32 %v2706, %v2969
      %v3034 = vadd.f32 %v2707, %v2974
      %v3035 = vadd.f32 %v2708, %v2977
      %v3036 = vadd.f32 %v2709, %v2982
      %v3037 = vadd.f32 %v2710, %v2985
      %v3038 = vadd.f32 %v2711, %v2990
      %v3039 = vadd.f32 %v2712, %v2993
      %v3040 = vadd.f32 %v2713, %v2998
      %v3041 = vadd.f32 %v2714, %v3001
      %v3042 = vadd.f32 %v2715, %v3006
      %v3043 = vadd.f32 %v2716, %v3009
      %v3044 = vshrl.u32 %v2766, 16
      %v3046 = vshll.u32 %v2766, 16
      %v3048 = vrot.slane %v3046, 1
      %v3049 = vor.u32 %v3044, %v3048
      %v3051 = vshll.u32 %v2767, 16
      %v3053 = vrot.slane %v3051, 1
      %v3054 = vsel %vm713, %v3049, %v3053
      %v3055 = vshrl.u32 %v2768, 16
      %v3057 = vshll.u32 %v2768, 16
      %v3059 = vrot.slane %v3057, 1
      %v3060 = vor.u32 %v3055, %v3059
      %v3062 = vshll.u32 %v2769, 16
      %v3064 = vrot.slane %v3062, 1
      %v3065 = vsel %vm713, %v3060, %v3064
      %v3066 = vshrl.u32 %v2770, 16
      %v3068 = vshll.u32 %v2770, 16
      %v3070 = vrot.slane %v3068, 1
      %v3071 = vor.u32 %v3066, %v3070
      %v3073 = vshll.u32 %v2771, 16
      %v3075 = vrot.slane %v3073, 1
      %v3076 = vsel %vm713, %v3071, %v3075
      %v3077 = vshrl.u32 %v2772, 16
      %v3079 = vshll.u32 %v2772, 16
      %v3081 = vrot.slane %v3079, 1
      %v3082 = vor.u32 %v3077, %v3081
      %v3084 = vshll.u32 %v2773, 16
      %v3086 = vrot.slane %v3084, 1
      %v3087 = vsel %vm713, %v3082, %v3086
      %v3088 = vshrl.u32 %v2774, 16
      %v3090 = vshll.u32 %v2774, 16
      %v3092 = vrot.slane %v3090, 1
      %v3093 = vor.u32 %v3088, %v3092
      %v3095 = vshll.u32 %v2775, 16
      %v3097 = vrot.slane %v3095, 1
      %v3098 = vsel %vm713, %v3093, %v3097
      %v3099 = vshrl.u32 %v2776, 16
      %v3101 = vshll.u32 %v2776, 16
      %v3103 = vrot.slane %v3101, 1
      %v3104 = vor.u32 %v3099, %v3103
      %v3106 = vshll.u32 %v2777, 16
      %v3108 = vrot.slane %v3106, 1
      %v3109 = vsel %vm713, %v3104, %v3108
      %v3110 = vshrl.u32 %v2778, 16
      %v3112 = vshll.u32 %v2778, 16
      %v3114 = vrot.slane %v3112, 1
      %v3115 = vor.u32 %v3110, %v3114
      %v3117 = vshll.u32 %v2779, 16
      %v3119 = vrot.slane %v3117, 1
      %v3120 = vsel %vm713, %v3115, %v3119
      %v3121 = vshrl.u32 %v2780, 16
      %v3123 = vshll.u32 %v2780, 16
      %v3125 = vrot.slane %v3123, 1
      %v3126 = vor.u32 %v3121, %v3125
      %v3128 = vshll.u32 %v2781, 16
      %v3130 = vrot.slane %v3128, 1
      %v3131 = vsel %vm713, %v3126, %v3130
      %v3132 = vshrl.u32 %v2782, 16
      %v3134 = vshll.u32 %v2782, 16
      %v3136 = vrot.slane %v3134, 1
      %v3137 = vor.u32 %v3132, %v3136
      %v3139 = vshll.u32 %v2783, 16
      %v3141 = vrot.slane %v3139, 1
      %v3142 = vsel %vm713, %v3137, %v3141
      %v3143 = vshrl.u32 %v2784, 16
      %v3145 = vshll.u32 %v2784, 16
      %v3147 = vrot.slane %v3145, 1
      %v3148 = vor.u32 %v3143, %v3147
      %v3150 = vshll.u32 %v2785, 16
      %v3152 = vrot.slane %v3150, 1
      %v3153 = vsel %vm713, %v3148, %v3152
      %v3154 = vshrl.u32 %v2786, 16
      %v3156 = vshll.u32 %v2786, 16
      %v3158 = vrot.slane %v3156, 1
      %v3159 = vor.u32 %v3154, %v3158
      %v3161 = vshll.u32 %v2787, 16
      %v3163 = vrot.slane %v3161, 1
      %v3164 = vsel %vm713, %v3159, %v3163
      %v3165 = vshrl.u32 %v2788, 16
      %v3167 = vshll.u32 %v2788, 16
      %v3169 = vrot.slane %v3167, 1
      %v3170 = vor.u32 %v3165, %v3169
      %v3172 = vshll.u32 %v2789, 16
      %v3174 = vrot.slane %v3172, 1
      %v3175 = vsel %vm713, %v3170, %v3174
      %v3176 = vshrl.u32 %v2790, 16
      %v3178 = vshll.u32 %v2790, 16
      %v3180 = vrot.slane %v3178, 1
      %v3181 = vor.u32 %v3176, %v3180
      %v3183 = vshll.u32 %v2791, 16
      %v3185 = vrot.slane %v3183, 1
      %v3186 = vsel %vm713, %v3181, %v3185
      %v3187 = vshrl.u32 %v2792, 16
      %v3189 = vshll.u32 %v2792, 16
      %v3191 = vrot.slane %v3189, 1
      %v3192 = vor.u32 %v3187, %v3191
      %v3194 = vshll.u32 %v2793, 16
      %v3196 = vrot.slane %v3194, 1
      %v3197 = vsel %vm713, %v3192, %v3196
      %v3198 = vshrl.u32 %v2794, 16
      %v3200 = vshll.u32 %v2794, 16
      %v3202 = vrot.slane %v3200, 1
      %v3203 = vor.u32 %v3198, %v3202
      %v3205 = vshll.u32 %v2795, 16
      %v3207 = vrot.slane %v3205, 1
      %v3208 = vsel %vm713, %v3203, %v3207
      %v3209 = vshrl.u32 %v2796, 16
      %v3211 = vshll.u32 %v2796, 16
      %v3213 = vrot.slane %v3211, 1
      %v3214 = vor.u32 %v3209, %v3213
      %v3216 = vshll.u32 %v2797, 16
      %v3218 = vrot.slane %v3216, 1
      %v3219 = vsel %vm713, %v3214, %v3218
      %s3220 = scalar_lea.vmem %s1, 14
      %v3221 = vld [vmem:[%s3220] sm:$0x3]
      %v3223 = vsel %vm249, %v3054, 0
      %v3226 = vsel %vm249, %v3065, 0
      %v3229 = vsel %vm249, %v3076, 0
      %v3232 = vsel %vm249, %v3087, 0
      %v3235 = vsel %vm249, %v3098, 0
      %v3238 = vsel %vm249, %v3109, 0
      %v3241 = vsel %vm249, %v3120, 0
      %v3244 = vsel %vm249, %v3131, 0
      %v3247 = vsel %vm249, %v3142, 0
      %v3250 = vsel %vm249, %v3153, 0
      %v3253 = vsel %vm249, %v3164, 0
      %v3256 = vsel %vm249, %v3175, 0
      %v3259 = vsel %vm249, %v3186, 0
      %v3262 = vsel %vm249, %v3197, 0
      %v3265 = vsel %vm249, %v3208, 0
      %v3268 = vsel %vm249, %v3219, 0
      %v3271 = vsel %vm467, %v3221, 0
      %3273 = vmatprep.subr.bf16.mxu0 0
      %3274 = vmatpush1.bf16.msra.mxu0 %v3271
      %3275 = vmatprep.subr.bf16.mxu0 0
      %3276 = vmatpush1.bf16.msra.mxu0 0
      %3277 = vmatprep.subr.bf16.mxu0 0
      %3278 = vmatpush1.bf16.msra.mxu0 0
      %3279 = vmatprep.subr.bf16.mxu0 0
      %3280 = vmatpush1.bf16.msra.mxu0 0
      %3281 = vmatprep.subr.bf16.mxu0 0
      %3282 = vmatpush1.bf16.msra.mxu0 0
      %3283 = vmatprep.subr.bf16.mxu0 0
      %3284 = vmatpush1.bf16.msra.mxu0 0
      %3285 = vmatprep.subr.bf16.mxu0 0
      %3286 = vmatpush1.bf16.msra.mxu0 0
      %3287 = vmatprep.subr.bf16.mxu0 0
      %3288 = vmatpush1.bf16.msra.mxu0 0
      %3289 = vmatprep.subr.bf16.mxu0 0
      %3290 = vmatpush1.bf16.msra.mxu0 0
      %3291 = vmatprep.subr.bf16.mxu0 0
      %3292 = vmatpush1.bf16.msra.mxu0 0
      %3293 = vmatprep.subr.bf16.mxu0 0
      %3294 = vmatpush1.bf16.msra.mxu0 0
      %3295 = vmatprep.subr.bf16.mxu0 0
      %3296 = vmatpush1.bf16.msra.mxu0 0
      %3297 = vmatprep.subr.bf16.mxu0 0
      %3298 = vmatpush1.bf16.msra.mxu0 0
      %3299 = vmatprep.subr.bf16.mxu0 0
      %3300 = vmatpush1.bf16.msra.mxu0 0
      %3301 = vmatprep.subr.bf16.mxu0 0
      %3302 = vmatpush1.bf16.msra.mxu0 0
      %3303 = vmatprep.subr.bf16.mxu0 0
      %3304 = vmatpush1.bf16.msra.mxu0 0
      %3305 = vmatprep.mubr.bf16.mxu0 0
      %3306 = vmatmul.mubr.bf16.gmra.mrb[0].mxu0 %v3223
      %v3307 = vpop.f32.mrb[0].mxu0
      %v3308 = vadd.f32 0.0, %v3307
      %v3309 = vpop.f32.mrb[0].mxu0
      %v3310 = vpop.f32.mrb[0].mxu0
      %v3311 = vadd.f32 0.0, %v3310
      %v3312 = vpop.f32.mrb[0].mxu0
      %3313 = vmatprep.mubr.bf16.mxu0 0
      %3314 = vmatmul.mubr.bf16.gmra.mrb[0].mxu0 %v3226
      %v3315 = vpop.f32.mrb[0].mxu0
      %v3316 = vadd.f32 0.0, %v3315
      %v3317 = vpop.f32.mrb[0].mxu0
      %v3318 = vpop.f32.mrb[0].mxu0
      %v3319 = vadd.f32 0.0, %v3318
      %v3320 = vpop.f32.mrb[0].mxu0
      %3321 = vmatprep.mubr.bf16.mxu0 0
      %3322 = vmatmul.mubr.bf16.gmra.mrb[0].mxu0 %v3229
      %v3323 = vpop.f32.mrb[0].mxu0
      %v3324 = vadd.f32 0.0, %v3323
      %v3325 = vpop.f32.mrb[0].mxu0
      %v3326 = vpop.f32.mrb[0].mxu0
      %v3327 = vadd.f32 0.0, %v3326
      %v3328 = vpop.f32.mrb[0].mxu0
      %3329 = vmatprep.mubr.bf16.mxu0 0
      %3330 = vmatmul.mubr.bf16.gmra.mrb[0].mxu0 %v3232
      %v3331 = vpop.f32.mrb[0].mxu0
      %v3332 = vadd.f32 0.0, %v3331
      %v3333 = vpop.f32.mrb[0].mxu0
      %v3334 = vpop.f32.mrb[0].mxu0
      %v3335 = vadd.f32 0.0, %v3334
      %v3336 = vpop.f32.mrb[0].mxu0
      %3337 = vmatprep.mubr.bf16.mxu0 0
      %3338 = vmatmul.mubr.bf16.gmra.mrb[0].mxu0 %v3235
      %v3339 = vpop.f32.mrb[0].mxu0
      %v3340 = vadd.f32 0.0, %v3339
      %v3341 = vpop.f32.mrb[0].mxu0
      %v3342 = vpop.f32.mrb[0].mxu0
      %v3343 = vadd.f32 0.0, %v3342
      %v3344 = vpop.f32.mrb[0].mxu0
      %3345 = vmatprep.mubr.bf16.mxu0 0
      %3346 = vmatmul.mubr.bf16.gmra.mrb[0].mxu0 %v3238
      %v3347 = vpop.f32.mrb[0].mxu0
      %v3348 = vadd.f32 0.0, %v3347
      %v3349 = vpop.f32.mrb[0].mxu0
      %v3350 = vpop.f32.mrb[0].mxu0
      %v3351 = vadd.f32 0.0, %v3350
      %v3352 = vpop.f32.mrb[0].mxu0
      %3353 = vmatprep.mubr.bf16.mxu0 0
      %3354 = vmatmul.mubr.bf16.gmra.mrb[0].mxu0 %v3241
      %v3355 = vpop.f32.mrb[0].mxu0
      %v3356 = vadd.f32 0.0, %v3355
      %v3357 = vpop.f32.mrb[0].mxu0
      %v3358 = vpop.f32.mrb[0].mxu0
      %v3359 = vadd.f32 0.0, %v3358
      %v3360 = vpop.f32.mrb[0].mxu0
      %3361 = vmatprep.mubr.bf16.mxu0 0
      %3362 = vmatmul.mubr.bf16.gmra.mrb[0].mxu0 %v3244
      %v3363 = vpop.f32.mrb[0].mxu0
      %v3364 = vadd.f32 0.0, %v3363
      %v3365 = vpop.f32.mrb[0].mxu0
      %v3366 = vpop.f32.mrb[0].mxu0
      %v3367 = vadd.f32 0.0, %v3366
      %v3368 = vpop.f32.mrb[0].mxu0
      %3369 = vmatprep.mubr.bf16.mxu0 0
      %3370 = vmatmul.mubr.bf16.gmra.mrb[0].mxu0 %v3247
      %v3371 = vpop.f32.mrb[0].mxu0
      %v3372 = vadd.f32 0.0, %v3371
      %v3373 = vpop.f32.mrb[0].mxu0
      %v3374 = vpop.f32.mrb[0].mxu0
      %v3375 = vadd.f32 0.0, %v3374
      %v3376 = vpop.f32.mrb[0].mxu0
      %3377 = vmatprep.mubr.bf16.mxu0 0
      %3378 = vmatmul.mubr.bf16.gmra.mrb[0].mxu0 %v3250
      %v3379 = vpop.f32.mrb[0].mxu0
      %v3380 = vadd.f32 0.0, %v3379
      %v3381 = vpop.f32.mrb[0].mxu0
      %v3382 = vpop.f32.mrb[0].mxu0
      %v3383 = vadd.f32 0.0, %v3382
      %v3384 = vpop.f32.mrb[0].mxu0
      %3385 = vmatprep.mubr.bf16.mxu0 0
      %3386 = vmatmul.mubr.bf16.gmra.mrb[0].mxu0 %v3253
      %v3387 = vpop.f32.mrb[0].mxu0
      %v3388 = vadd.f32 0.0, %v3387
      %v3389 = vpop.f32.mrb[0].mxu0
      %v3390 = vpop.f32.mrb[0].mxu0
      %v3391 = vadd.f32 0.0, %v3390
      %v3392 = vpop.f32.mrb[0].mxu0
      %3393 = vmatprep.mubr.bf16.mxu0 0
      %3394 = vmatmul.mubr.bf16.gmra.mrb[0].mxu0 %v3256
      %v3395 = vpop.f32.mrb[0].mxu0
      %v3396 = vadd.f32 0.0, %v3395
      %v3397 = vpop.f32.mrb[0].mxu0
      %v3398 = vpop.f32.mrb[0].mxu0
      %v3399 = vadd.f32 0.0, %v3398
      %v3400 = vpop.f32.mrb[0].mxu0
      %3401 = vmatprep.mubr.bf16.mxu0 0
      %3402 = vmatmul.mubr.bf16.gmra.mrb[0].mxu0 %v3259
      %v3403 = vpop.f32.mrb[0].mxu0
      %v3404 = vadd.f32 0.0, %v3403
      %v3405 = vpop.f32.mrb[0].mxu0
      %v3406 = vpop.f32.mrb[0].mxu0
      %v3407 = vadd.f32 0.0, %v3406
      %v3408 = vpop.f32.mrb[0].mxu0
      %3409 = vmatprep.mubr.bf16.mxu0 0
      %3410 = vmatmul.mubr.bf16.gmra.mrb[0].mxu0 %v3262
      %v3411 = vpop.f32.mrb[0].mxu0
      %v3412 = vadd.f32 0.0, %v3411
      %v3413 = vpop.f32.mrb[0].mxu0
      %v3414 = vpop.f32.mrb[0].mxu0
      %v3415 = vadd.f32 0.0, %v3414
      %v3416 = vpop.f32.mrb[0].mxu0
      %3417 = vmatprep.mubr.bf16.mxu0 0
      %3418 = vmatmul.mubr.bf16.gmra.mrb[0].mxu0 %v3265
      %v3419 = vpop.f32.mrb[0].mxu0
      %v3420 = vadd.f32 0.0, %v3419
      %v3421 = vpop.f32.mrb[0].mxu0
      %v3422 = vpop.f32.mrb[0].mxu0
      %v3423 = vadd.f32 0.0, %v3422
      %v3424 = vpop.f32.mrb[0].mxu0
      %3425 = vmatprep.mubr.bf16.mxu0 0
      %3426 = vmatmul.mubr.bf16.gmra.mrb[0].mxu0 %v3268
      %v3427 = vpop.f32.mrb[0].mxu0
      %v3428 = vadd.f32 0.0, %v3427
      %v3429 = vpop.f32.mrb[0].mxu0
      %v3430 = vpop.f32.mrb[0].mxu0
      %v3431 = vadd.f32 0.0, %v3430
      %v3432 = vpop.f32.mrb[0].mxu0
      %3433 = vdwg.mxu0
      %v3434 = vadd.f32 %v3012, %v3308
      %v3435 = vadd.f32 %v3013, %v3311
      %v3436 = vadd.f32 %v3014, %v3316
      %v3437 = vadd.f32 %v3015, %v3319
      %v3438 = vadd.f32 %v3016, %v3324
      %v3439 = vadd.f32 %v3017, %v3327
      %v3440 = vadd.f32 %v3018, %v3332
      %v3441 = vadd.f32 %v3019, %v3335
      %v3442 = vadd.f32 %v3020, %v3340
      %v3443 = vadd.f32 %v3021, %v3343
      %v3444 = vadd.f32 %v3022, %v3348
      %v3445 = vadd.f32 %v3023, %v3351
      %v3446 = vadd.f32 %v3024, %v3356
      %v3447 = vadd.f32 %v3025, %v3359
      %v3448 = vadd.f32 %v3026, %v3364
      %v3449 = vadd.f32 %v3027, %v3367
      %v3450 = vadd.f32 %v3028, %v3372
      %v3451 = vadd.f32 %v3029, %v3375
      %v3452 = vadd.f32 %v3030, %v3380
      %v3453 = vadd.f32 %v3031, %v3383
      %v3454 = vadd.f32 %v3032, %v3388
      %v3455 = vadd.f32 %v3033, %v3391
      %v3456 = vadd.f32 %v3034, %v3396
      %v3457 = vadd.f32 %v3035, %v3399
      %v3458 = vadd.f32 %v3036, %v3404
      %v3459 = vadd.f32 %v3037, %v3407
      %v3460 = vadd.f32 %v3038, %v3412
      %v3461 = vadd.f32 %v3039, %v3415
      %v3462 = vadd.f32 %v3040, %v3420
      %v3463 = vadd.f32 %v3041, %v3423
      %v3464 = vadd.f32 %v3042, %v3428
      %v3465 = vadd.f32 %v3043, %v3431
      %v3498 = vrot.slane %v2766, 1
      %v3499 = vrot.slane %v2767, 1
      %v3500 = vsel %vm1348, %v3498, %v3499
      %v3501 = vrot.slane %v2768, 1
      %v3502 = vrot.slane %v2769, 1
      %v3503 = vsel %vm1348, %v3501, %v3502
      %v3504 = vrot.slane %v2770, 1
      %v3505 = vrot.slane %v2771, 1
      %v3506 = vsel %vm1348, %v3504, %v3505
      %v3507 = vrot.slane %v2772, 1
      %v3508 = vrot.slane %v2773, 1
      %v3509 = vsel %vm1348, %v3507, %v3508
      %v3510 = vrot.slane %v2774, 1
      %v3511 = vrot.slane %v2775, 1
      %v3512 = vsel %vm1348, %v3510, %v3511
      %v3513 = vrot.slane %v2776, 1
      %v3514 = vrot.slane %v2777, 1
      %v3515 = vsel %vm1348, %v3513, %v3514
      %v3516 = vrot.slane %v2778, 1
      %v3517 = vrot.slane %v2779, 1
      %v3518 = vsel %vm1348, %v3516, %v3517
      %v3519 = vrot.slane %v2780, 1
      %v3520 = vrot.slane %v2781, 1
      %v3521 = vsel %vm1348, %v3519, %v3520
      %v3522 = vrot.slane %v2782, 1
      %v3523 = vrot.slane %v2783, 1
      %v3524 = vsel %vm1348, %v3522, %v3523
      %v3525 = vrot.slane %v2784, 1
      %v3526 = vrot.slane %v2785, 1
      %v3527 = vsel %vm1348, %v3525, %v3526
      %v3528 = vrot.slane %v2786, 1
      %v3529 = vrot.slane %v2787, 1
      %v3530 = vsel %vm1348, %v3528, %v3529
      %v3531 = vrot.slane %v2788, 1
      %v3532 = vrot.slane %v2789, 1
      %v3533 = vsel %vm1348, %v3531, %v3532
      %v3534 = vrot.slane %v2790, 1
      %v3535 = vrot.slane %v2791, 1
      %v3536 = vsel %vm1348, %v3534, %v3535
      %v3537 = vrot.slane %v2792, 1
      %v3538 = vrot.slane %v2793, 1
      %v3539 = vsel %vm1348, %v3537, %v3538
      %v3540 = vrot.slane %v2794, 1
      %v3541 = vrot.slane %v2795, 1
      %v3542 = vsel %vm1348, %v3540, %v3541
      %v3543 = vrot.slane %v2796, 1
      %v3544 = vrot.slane %v2797, 1
      %v3545 = vsel %vm1348, %v3543, %v3544
      %s3546 = scalar_lea.vmem %s1, 16
      %v3547 = vld [vmem:[%s3546] sm:$0x3]
      %v3549 = vsel %vm249, %v3500, 0
      %v3552 = vsel %vm249, %v3503, 0
      %v3555 = vsel %vm249, %v3506, 0
      %v3558 = vsel %vm249, %v3509, 0
      %v3561 = vsel %vm249, %v3512, 0
      %v3564 = vsel %vm249, %v3515, 0
      %v3567 = vsel %vm249, %v3518, 0
      %v3570 = vsel %vm249, %v3521, 0
      %v3573 = vsel %vm249, %v3524, 0
      %v3576 = vsel %vm249, %v3527, 0
      %v3579 = vsel %vm249, %v3530, 0
      %v3582 = vsel %vm249, %v3533, 0
      %v3585 = vsel %vm249, %v3536, 0
      %v3588 = vsel %vm249, %v3539, 0
      %v3591 = vsel %vm249, %v3542, 0
      %v3594 = vsel %vm249, %v3545, 0
      %v3597 = vsel %vm467, %v3547, 0
      %3599 = vmatprep.subr.bf16.mxu0 0
      %3600 = vmatpush1.bf16.msra.mxu0 %v3597
      %3601 = vmatprep.subr.bf16.mxu0 0
      %3602 = vmatpush1.bf16.msra.mxu0 0
      %3603 = vmatprep.subr.bf16.mxu0 0
      %3604 = vmatpush1.bf16.msra.mxu0 0
      %3605 = vmatprep.subr.bf16.mxu0 0
      %3606 = vmatpush1.bf16.msra.mxu0 0
      %3607 = vmatprep.subr.bf16.mxu0 0
      %3608 = vmatpush1.bf16.msra.mxu0 0
      %3609 = vmatprep.subr.bf16.mxu0 0
      %3610 = vmatpush1.bf16.msra.mxu0 0
      %3611 = vmatprep.subr.bf16.mxu0 0
      %3612 = vmatpush1.bf16.msra.mxu0 0
      %3613 = vmatprep.subr.bf16.mxu0 0
      %3614 = vmatpush1.bf16.msra.mxu0 0
      %3615 = vmatprep.subr.bf16.mxu0 0
      %3616 = vmatpush1.bf16.msra.mxu0 0
      %3617 = vmatprep.subr.bf16.mxu0 0
      %3618 = vmatpush1.bf16.msra.mxu0 0
      %3619 = vmatprep.subr.bf16.mxu0 0
      %3620 = vmatpush1.bf16.msra.mxu0 0
      %3621 = vmatprep.subr.bf16.mxu0 0
      %3622 = vmatpush1.bf16.msra.mxu0 0
      %3623 = vmatprep.subr.bf16.mxu0 0
      %3624 = vmatpush1.bf16.msra.mxu0 0
      %3625 = vmatprep.subr.bf16.mxu0 0
      %3626 = vmatpush1.bf16.msra.mxu0 0
      %3627 = vmatprep.subr.bf16.mxu0 0
      %3628 = vmatpush1.bf16.msra.mxu0 0
      %3629 = vmatprep.subr.bf16.mxu0 0
      %3630 = vmatpush1.bf16.msra.mxu0 0
      %3631 = vmatprep.mubr.bf16.mxu0 0
      %3632 = vmatmul.mubr.bf16.gmra.mrb[0].mxu0 %v3549
      %v3633 = vpop.f32.mrb[0].mxu0
      %v3634 = vadd.f32 0.0, %v3633
      %v3635 = vpop.f32.mrb[0].mxu0
      %v3636 = vpop.f32.mrb[0].mxu0
      %v3637 = vadd.f32 0.0, %v3636
      %v3638 = vpop.f32.mrb[0].mxu0
      %3639 = vmatprep.mubr.bf16.mxu0 0
      %3640 = vmatmul.mubr.bf16.gmra.mrb[0].mxu0 %v3552
      %v3641 = vpop.f32.mrb[0].mxu0
      %v3642 = vadd.f32 0.0, %v3641
      %v3643 = vpop.f32.mrb[0].mxu0
      %v3644 = vpop.f32.mrb[0].mxu0
      %v3645 = vadd.f32 0.0, %v3644
      %v3646 = vpop.f32.mrb[0].mxu0
      %3647 = vmatprep.mubr.bf16.mxu0 0
      %3648 = vmatmul.mubr.bf16.gmra.mrb[0].mxu0 %v3555
      %v3649 = vpop.f32.mrb[0].mxu0
      %v3650 = vadd.f32 0.0, %v3649
      %v3651 = vpop.f32.mrb[0].mxu0
      %v3652 = vpop.f32.mrb[0].mxu0
      %v3653 = vadd.f32 0.0, %v3652
      %v3654 = vpop.f32.mrb[0].mxu0
      %3655 = vmatprep.mubr.bf16.mxu0 0
      %3656 = vmatmul.mubr.bf16.gmra.mrb[0].mxu0 %v3558
      %v3657 = vpop.f32.mrb[0].mxu0
      %v3658 = vadd.f32 0.0, %v3657
      %v3659 = vpop.f32.mrb[0].mxu0
      %v3660 = vpop.f32.mrb[0].mxu0
      %v3661 = vadd.f32 0.0, %v3660
      %v3662 = vpop.f32.mrb[0].mxu0
      %3663 = vmatprep.mubr.bf16.mxu0 0
      %3664 = vmatmul.mubr.bf16.gmra.mrb[0].mxu0 %v3561
      %v3665 = vpop.f32.mrb[0].mxu0
      %v3666 = vadd.f32 0.0, %v3665
      %v3667 = vpop.f32.mrb[0].mxu0
      %v3668 = vpop.f32.mrb[0].mxu0
      %v3669 = vadd.f32 0.0, %v3668
      %v3670 = vpop.f32.mrb[0].mxu0
      %3671 = vmatprep.mubr.bf16.mxu0 0
      %3672 = vmatmul.mubr.bf16.gmra.mrb[0].mxu0 %v3564
      %v3673 = vpop.f32.mrb[0].mxu0
      %v3674 = vadd.f32 0.0, %v3673
      %v3675 = vpop.f32.mrb[0].mxu0
      %v3676 = vpop.f32.mrb[0].mxu0
      %v3677 = vadd.f32 0.0, %v3676
      %v3678 = vpop.f32.mrb[0].mxu0
      %3679 = vmatprep.mubr.bf16.mxu0 0
      %3680 = vmatmul.mubr.bf16.gmra.mrb[0].mxu0 %v3567
      %v3681 = vpop.f32.mrb[0].mxu0
      %v3682 = vadd.f32 0.0, %v3681
      %v3683 = vpop.f32.mrb[0].mxu0
      %v3684 = vpop.f32.mrb[0].mxu0
      %v3685 = vadd.f32 0.0, %v3684
      %v3686 = vpop.f32.mrb[0].mxu0
      %3687 = vmatprep.mubr.bf16.mxu0 0
      %3688 = vmatmul.mubr.bf16.gmra.mrb[0].mxu0 %v3570
      %v3689 = vpop.f32.mrb[0].mxu0
      %v3690 = vadd.f32 0.0, %v3689
      %v3691 = vpop.f32.mrb[0].mxu0
      %v3692 = vpop.f32.mrb[0].mxu0
      %v3693 = vadd.f32 0.0, %v3692
      %v3694 = vpop.f32.mrb[0].mxu0
      %3695 = vmatprep.mubr.bf16.mxu0 0
      %3696 = vmatmul.mubr.bf16.gmra.mrb[0].mxu0 %v3573
      %v3697 = vpop.f32.mrb[0].mxu0
      %v3698 = vadd.f32 0.0, %v3697
      %v3699 = vpop.f32.mrb[0].mxu0
      %v3700 = vpop.f32.mrb[0].mxu0
      %v3701 = vadd.f32 0.0, %v3700
      %v3702 = vpop.f32.mrb[0].mxu0
      %3703 = vmatprep.mubr.bf16.mxu0 0
      %3704 = vmatmul.mubr.bf16.gmra.mrb[0].mxu0 %v3576
      %v3705 = vpop.f32.mrb[0].mxu0
      %v3706 = vadd.f32 0.0, %v3705
      %v3707 = vpop.f32.mrb[0].mxu0
      %v3708 = vpop.f32.mrb[0].mxu0
      %v3709 = vadd.f32 0.0, %v3708
      %v3710 = vpop.f32.mrb[0].mxu0
      %3711 = vmatprep.mubr.bf16.mxu0 0
      %3712 = vmatmul.mubr.bf16.gmra.mrb[0].mxu0 %v3579
      %v3713 = vpop.f32.mrb[0].mxu0
      %v3714 = vadd.f32 0.0, %v3713
      %v3715 = vpop.f32.mrb[0].mxu0
      %v3716 = vpop.f32.mrb[0].mxu0
      %v3717 = vadd.f32 0.0, %v3716
      %v3718 = vpop.f32.mrb[0].mxu0
      %3719 = vmatprep.mubr.bf16.mxu0 0
      %3720 = vmatmul.mubr.bf16.gmra.mrb[0].mxu0 %v3582
      %v3721 = vpop.f32.mrb[0].mxu0
      %v3722 = vadd.f32 0.0, %v3721
      %v3723 = vpop.f32.mrb[0].mxu0
      %v3724 = vpop.f32.mrb[0].mxu0
      %v3725 = vadd.f32 0.0, %v3724
      %v3726 = vpop.f32.mrb[0].mxu0
      %3727 = vmatprep.mubr.bf16.mxu0 0
      %3728 = vmatmul.mubr.bf16.gmra.mrb[0].mxu0 %v3585
      %v3729 = vpop.f32.mrb[0].mxu0
      %v3730 = vadd.f32 0.0, %v3729
      %v3731 = vpop.f32.mrb[0].mxu0
      %v3732 = vpop.f32.mrb[0].mxu0
      %v3733 = vadd.f32 0.0, %v3732
      %v3734 = vpop.f32.mrb[0].mxu0
      %3735 = vmatprep.mubr.bf16.mxu0 0
      %3736 = vmatmul.mubr.bf16.gmra.mrb[0].mxu0 %v3588
      %v3737 = vpop.f32.mrb[0].mxu0
      %v3738 = vadd.f32 0.0, %v3737
      %v3739 = vpop.f32.mrb[0].mxu0
      %v3740 = vpop.f32.mrb[0].mxu0
      %v3741 = vadd.f32 0.0, %v3740
      %v3742 = vpop.f32.mrb[0].mxu0
      %3743 = vmatprep.mubr.bf16.mxu0 0
      %3744 = vmatmul.mubr.bf16.gmra.mrb[0].mxu0 %v3591
      %v3745 = vpop.f32.mrb[0].mxu0
      %v3746 = vadd.f32 0.0, %v3745
      %v3747 = vpop.f32.mrb[0].mxu0
      %v3748 = vpop.f32.mrb[0].mxu0
      %v3749 = vadd.f32 0.0, %v3748
      %v3750 = vpop.f32.mrb[0].mxu0
      %3751 = vmatprep.mubr.bf16.mxu0 0
      %3752 = vmatmul.mubr.bf16.gmra.mrb[0].mxu0 %v3594
      %v3753 = vpop.f32.mrb[0].mxu0
      %v3754 = vadd.f32 0.0, %v3753
      %v3755 = vpop.f32.mrb[0].mxu0
      %v3756 = vpop.f32.mrb[0].mxu0
      %v3757 = vadd.f32 0.0, %v3756
      %v3758 = vpop.f32.mrb[0].mxu0
      %3759 = vdwg.mxu0
      %v3760 = vadd.f32 %v3434, %v3634
      %v3761 = vadd.f32 %v3435, %v3637
      %v3762 = vadd.f32 %v3436, %v3642
      %v3763 = vadd.f32 %v3437, %v3645
      %v3764 = vadd.f32 %v3438, %v3650
      %v3765 = vadd.f32 %v3439, %v3653
      %v3766 = vadd.f32 %v3440, %v3658
      %v3767 = vadd.f32 %v3441, %v3661
      %v3768 = vadd.f32 %v3442, %v3666
      %v3769 = vadd.f32 %v3443, %v3669
      %v3770 = vadd.f32 %v3444, %v3674
      %v3771 = vadd.f32 %v3445, %v3677
      %v3772 = vadd.f32 %v3446, %v3682
      %v3773 = vadd.f32 %v3447, %v3685
      %v3774 = vadd.f32 %v3448, %v3690
      %v3775 = vadd.f32 %v3449, %v3693
      %v3776 = vadd.f32 %v3450, %v3698
      %v3777 = vadd.f32 %v3451, %v3701
      %v3778 = vadd.f32 %v3452, %v3706
      %v3779 = vadd.f32 %v3453, %v3709
      %v3780 = vadd.f32 %v3454, %v3714
      %v3781 = vadd.f32 %v3455, %v3717
      %v3782 = vadd.f32 %v3456, %v3722
      %v3783 = vadd.f32 %v3457, %v3725
      %v3784 = vadd.f32 %v3458, %v3730
      %v3785 = vadd.f32 %v3459, %v3733
      %v3786 = vadd.f32 %v3460, %v3738
      %v3787 = vadd.f32 %v3461, %v3741
      %v3788 = vadd.f32 %v3462, %v3746
      %v3789 = vadd.f32 %v3463, %v3749
      %v3790 = vadd.f32 %v3464, %v3754
      %v3791 = vadd.f32 %v3465, %v3757
      %vm3792 = vcmask 64512
      %3793 = vst.msk [vmem:[%s238] sm:$0xff] %vm3792, %v3760
      %3794 = vst.msk [vmem:[%s238 + $0x8] sm:$0xff] %vm3792, %v3761
      %3795 = vst.msk [vmem:[%s238 + $0x10] sm:$0xff] %vm3792, %v3762
      %3796 = vst.msk [vmem:[%s238 + $0x18] sm:$0xff] %vm3792, %v3763
      %3797 = vst.msk [vmem:[%s238 + $0x20] sm:$0xff] %vm3792, %v3764
      %3798 = vst.msk [vmem:[%s238 + $0x28] sm:$0xff] %vm3792, %v3765
      %3799 = vst.msk [vmem:[%s238 + $0x30] sm:$0xff] %vm3792, %v3766
      %3800 = vst.msk [vmem:[%s238 + $0x38] sm:$0xff] %vm3792, %v3767
      %3801 = vst.msk [vmem:[%s238 + $0x40] sm:$0xff] %vm3792, %v3768
      %3802 = vst.msk [vmem:[%s238 + $0x48] sm:$0xff] %vm3792, %v3769
      %3803 = vst.msk [vmem:[%s238 + $0x50] sm:$0xff] %vm3792, %v3770
      %3804 = vst.msk [vmem:[%s238 + $0x58] sm:$0xff] %vm3792, %v3771
      %3805 = vst.msk [vmem:[%s238 + $0x60] sm:$0xff] %vm3792, %v3772
      %3806 = vst.msk [vmem:[%s238 + $0x68] sm:$0xff] %vm3792, %v3773
      %3807 = vst.msk [vmem:[%s238 + $0x70] sm:$0xff] %vm3792, %v3774
      %3808 = vst.msk [vmem:[%s238 + $0x78] sm:$0xff] %vm3792, %v3775
      %3809 = vst.msk [vmem:[%s238 + $0x80] sm:$0xff] %vm3792, %v3776
      %3810 = vst.msk [vmem:[%s238 + $0x88] sm:$0xff] %vm3792, %v3777
      %3811 = vst.msk [vmem:[%s238 + $0x90] sm:$0xff] %vm3792, %v3778
      %3812 = vst.msk [vmem:[%s238 + $0x98] sm:$0xff] %vm3792, %v3779
      %3813 = vst.msk [vmem:[%s238 + $0xa0] sm:$0xff] %vm3792, %v3780
      %3814 = vst.msk [vmem:[%s238 + $0xa8] sm:$0xff] %vm3792, %v3781
      %3815 = vst.msk [vmem:[%s238 + $0xb0] sm:$0xff] %vm3792, %v3782
      %3816 = vst.msk [vmem:[%s238 + $0xb8] sm:$0xff] %vm3792, %v3783
      %3817 = vst.msk [vmem:[%s238 + $0xc0] sm:$0xff] %vm3792, %v3784
      %3818 = vst.msk [vmem:[%s238 + $0xc8] sm:$0xff] %vm3792, %v3785
      %3819 = vst.msk [vmem:[%s238 + $0xd0] sm:$0xff] %vm3792, %v3786
      %3820 = vst.msk [vmem:[%s238 + $0xd8] sm:$0xff] %vm3792, %v3787
      %3821 = vst.msk [vmem:[%s238 + $0xe0] sm:$0xff] %vm3792, %v3788
      %3822 = vst.msk [vmem:[%s238 + $0xe8] sm:$0xff] %vm3792, %v3789
      %3823 = vst.msk [vmem:[%s238 + $0xf0] sm:$0xff] %vm3792, %v3790
      %3824 = vst.msk [vmem:[%s238 + $0xf8] sm:$0xff] %vm3792, %v3791
      %3825 = vst.msk [vmem:[%s243] sm:$0xff] %vm3792, %v506
      %3826 = vst.msk [vmem:[%s243 + $0x8] sm:$0xff] %vm3792, %v509
      %3827 = vst.msk [vmem:[%s243 + $0x10] sm:$0xff] %vm3792, %v514
      %3828 = vst.msk [vmem:[%s243 + $0x18] sm:$0xff] %vm3792, %v517
      %3829 = vst.msk [vmem:[%s243 + $0x20] sm:$0xff] %vm3792, %v522
      %3830 = vst.msk [vmem:[%s243 + $0x28] sm:$0xff] %vm3792, %v525
      %3831 = vst.msk [vmem:[%s243 + $0x30] sm:$0xff] %vm3792, %v530
      %3832 = vst.msk [vmem:[%s243 + $0x38] sm:$0xff] %vm3792, %v533
      %3833 = vst.msk [vmem:[%s243 + $0x40] sm:$0xff] %vm3792, %v538
      %3834 = vst.msk [vmem:[%s243 + $0x48] sm:$0xff] %vm3792, %v541
      %3835 = vst.msk [vmem:[%s243 + $0x50] sm:$0xff] %vm3792, %v546
      %3836 = vst.msk [vmem:[%s243 + $0x58] sm:$0xff] %vm3792, %v549
      %3837 = vst.msk [vmem:[%s243 + $0x60] sm:$0xff] %vm3792, %v554
      %3838 = vst.msk [vmem:[%s243 + $0x68] sm:$0xff] %vm3792, %v557
      %3839 = vst.msk [vmem:[%s243 + $0x70] sm:$0xff] %vm3792, %v562
      %3840 = vst.msk [vmem:[%s243 + $0x78] sm:$0xff] %vm3792, %v565
      %3841 = vst.msk [vmem:[%s243 + $0x80] sm:$0xff] %vm3792, %v570
      %3842 = vst.msk [vmem:[%s243 + $0x88] sm:$0xff] %vm3792, %v573
      %3843 = vst.msk [vmem:[%s243 + $0x90] sm:$0xff] %vm3792, %v578
      %3844 = vst.msk [vmem:[%s243 + $0x98] sm:$0xff] %vm3792, %v581
      %3845 = vst.msk [vmem:[%s243 + $0xa0] sm:$0xff] %vm3792, %v586
      %3846 = vst.msk [vmem:[%s243 + $0xa8] sm:$0xff] %vm3792, %v589
      %3847 = vst.msk [vmem:[%s243 + $0xb0] sm:$0xff] %vm3792, %v594
      %3848 = vst.msk [vmem:[%s243 + $0xb8] sm:$0xff] %vm3792, %v597
      %3849 = vst.msk [vmem:[%s243 + $0xc0] sm:$0xff] %vm3792, %v602
      %3850 = vst.msk [vmem:[%s243 + $0xc8] sm:$0xff] %vm3792, %v605
      %3851 = vst.msk [vmem:[%s243 + $0xd0] sm:$0xff] %vm3792, %v610
      %3852 = vst.msk [vmem:[%s243 + $0xd8] sm:$0xff] %vm3792, %v613
      %3853 = vst.msk [vmem:[%s243 + $0xe0] sm:$0xff] %vm3792, %v618
      %3854 = vst.msk [vmem:[%s243 + $0xe8] sm:$0xff] %vm3792, %v621
      %3855 = vst.msk [vmem:[%s243 + $0xf0] sm:$0xff] %vm3792, %v626
      %3856 = vst.msk [vmem:[%s243 + $0xf8] sm:$0xff] %vm3792, %v629
      %v3857 = vsel %vm3792, %v3760, 0.0
      %v3858 = vsel %vm3792, %v3761, 0.0
      %v3859 = vadd.f32 %v3857, %v3858
      %v3860 = vsel %vm3792, %v3762, 0.0
      %v3861 = vadd.f32 %v3859, %v3860
      %v3862 = vsel %vm3792, %v3763, 0.0
      %v3863 = vadd.f32 %v3861, %v3862
      %v3864 = vsel %vm3792, %v3764, 0.0
      %v3865 = vadd.f32 %v3863, %v3864
      %v3866 = vsel %vm3792, %v3765, 0.0
      %v3867 = vadd.f32 %v3865, %v3866
      %v3868 = vsel %vm3792, %v3766, 0.0
      %v3869 = vadd.f32 %v3867, %v3868
      %v3870 = vsel %vm3792, %v3767, 0.0
      %v3871 = vadd.f32 %v3869, %v3870
      %v3872 = vsel %vm3792, %v3768, 0.0
      %v3873 = vadd.f32 %v3871, %v3872
      %v3874 = vsel %vm3792, %v3769, 0.0
      %v3875 = vadd.f32 %v3873, %v3874
      %v3876 = vsel %vm3792, %v3770, 0.0
      %v3877 = vadd.f32 %v3875, %v3876
      %v3878 = vsel %vm3792, %v3771, 0.0
      %v3879 = vadd.f32 %v3877, %v3878
      %v3880 = vsel %vm3792, %v3772, 0.0
      %v3881 = vadd.f32 %v3879, %v3880
      %v3882 = vsel %vm3792, %v3773, 0.0
      %v3883 = vadd.f32 %v3881, %v3882
      %v3884 = vsel %vm3792, %v3774, 0.0
      %v3885 = vadd.f32 %v3883, %v3884
      %v3886 = vsel %vm3792, %v3775, 0.0
      %v3887 = vadd.f32 %v3885, %v3886
      %v3888 = vsel %vm3792, %v3776, 0.0
      %v3889 = vadd.f32 %v3887, %v3888
      %v3890 = vsel %vm3792, %v3777, 0.0
      %v3891 = vadd.f32 %v3889, %v3890
      %v3892 = vsel %vm3792, %v3778, 0.0
      %v3893 = vadd.f32 %v3891, %v3892
      %v3894 = vsel %vm3792, %v3779, 0.0
      %v3895 = vadd.f32 %v3893, %v3894
      %v3896 = vsel %vm3792, %v3780, 0.0
      %v3897 = vadd.f32 %v3895, %v3896
      %v3898 = vsel %vm3792, %v3781, 0.0
      %v3899 = vadd.f32 %v3897, %v3898
      %v3900 = vsel %vm3792, %v3782, 0.0
      %v3901 = vadd.f32 %v3899, %v3900
      %v3902 = vsel %vm3792, %v3783, 0.0
      %v3903 = vadd.f32 %v3901, %v3902
      %v3904 = vsel %vm3792, %v3784, 0.0
      %v3905 = vadd.f32 %v3903, %v3904
      %v3906 = vsel %vm3792, %v3785, 0.0
      %v3907 = vadd.f32 %v3905, %v3906
      %v3908 = vsel %vm3792, %v3786, 0.0
      %v3909 = vadd.f32 %v3907, %v3908
      %v3910 = vsel %vm3792, %v3787, 0.0
      %v3911 = vadd.f32 %v3909, %v3910
      %v3912 = vsel %vm3792, %v3788, 0.0
      %v3913 = vadd.f32 %v3911, %v3912
      %v3914 = vsel %vm3792, %v3789, 0.0
      %v3915 = vadd.f32 %v3913, %v3914
      %v3916 = vsel %vm3792, %v3790, 0.0
      %v3917 = vadd.f32 %v3915, %v3916
      %v3918 = vsel %vm3792, %v3791, 0.0
      %v3919 = vadd.f32 %v3917, %v3918
      %v3920 = vrot.slane %v3919, 4
      %v3921 = vadd.f32 %v3919, %v3920
      %v3922 = vrot.slane %v3921, 2
      %v3923 = vadd.f32 %v3921, %v3922
      %v3924 = vrot.slane %v3923, 1
      %v3925 = vadd.f32 %v3923, %v3924
      %v3926 = vmul.f32 %v3760, %v3760
      %v3927 = vmul.f32 %v3761, %v3761
      %v3928 = vmul.f32 %v3762, %v3762
      %v3929 = vmul.f32 %v3763, %v3763
      %v3930 = vmul.f32 %v3764, %v3764
      %v3931 = vmul.f32 %v3765, %v3765
      %v3932 = vmul.f32 %v3766, %v3766
      %v3933 = vmul.f32 %v3767, %v3767
      %v3934 = vmul.f32 %v3768, %v3768
      %v3935 = vmul.f32 %v3769, %v3769
      %v3936 = vmul.f32 %v3770, %v3770
      %v3937 = vmul.f32 %v3771, %v3771
      %v3938 = vmul.f32 %v3772, %v3772
      %v3939 = vmul.f32 %v3773, %v3773
      %v3940 = vmul.f32 %v3774, %v3774
      %v3941 = vmul.f32 %v3775, %v3775
      %v3942 = vmul.f32 %v3776, %v3776
      %v3943 = vmul.f32 %v3777, %v3777
      %v3944 = vmul.f32 %v3778, %v3778
      %v3945 = vmul.f32 %v3779, %v3779
      %v3946 = vmul.f32 %v3780, %v3780
      %v3947 = vmul.f32 %v3781, %v3781
      %v3948 = vmul.f32 %v3782, %v3782
      %v3949 = vmul.f32 %v3783, %v3783
      %v3950 = vmul.f32 %v3784, %v3784
      %v3951 = vmul.f32 %v3785, %v3785
      %v3952 = vmul.f32 %v3786, %v3786
      %v3953 = vmul.f32 %v3787, %v3787
      %v3954 = vmul.f32 %v3788, %v3788
      %v3955 = vmul.f32 %v3789, %v3789
      %v3956 = vmul.f32 %v3790, %v3790
      %v3957 = vmul.f32 %v3791, %v3791
      %v3958 = vsel %vm3792, %v3926, 0.0
      %v3959 = vsel %vm3792, %v3927, 0.0
      %v3960 = vadd.f32 %v3958, %v3959
      %v3961 = vsel %vm3792, %v3928, 0.0
      %v3962 = vadd.f32 %v3960, %v3961
      %v3963 = vsel %vm3792, %v3929, 0.0
      %v3964 = vadd.f32 %v3962, %v3963
      %v3965 = vsel %vm3792, %v3930, 0.0
      %v3966 = vadd.f32 %v3964, %v3965
      %v3967 = vsel %vm3792, %v3931, 0.0
      %v3968 = vadd.f32 %v3966, %v3967
      %v3969 = vsel %vm3792, %v3932, 0.0
      %v3970 = vadd.f32 %v3968, %v3969
      %v3971 = vsel %vm3792, %v3933, 0.0
      %v3972 = vadd.f32 %v3970, %v3971
      %v3973 = vsel %vm3792, %v3934, 0.0
      %v3974 = vadd.f32 %v3972, %v3973
      %v3975 = vsel %vm3792, %v3935, 0.0
      %v3976 = vadd.f32 %v3974, %v3975
      %v3977 = vsel %vm3792, %v3936, 0.0
      %v3978 = vadd.f32 %v3976, %v3977
      %v3979 = vsel %vm3792, %v3937, 0.0
      %v3980 = vadd.f32 %v3978, %v3979
      %v3981 = vsel %vm3792, %v3938, 0.0
      %v3982 = vadd.f32 %v3980, %v3981
      %v3983 = vsel %vm3792, %v3939, 0.0
      %v3984 = vadd.f32 %v3982, %v3983
      %v3985 = vsel %vm3792, %v3940, 0.0
      %v3986 = vadd.f32 %v3984, %v3985
      %v3987 = vsel %vm3792, %v3941, 0.0
      %v3988 = vadd.f32 %v3986, %v3987
      %v3989 = vsel %vm3792, %v3942, 0.0
      %v3990 = vadd.f32 %v3988, %v3989
      %v3991 = vsel %vm3792, %v3943, 0.0
      %v3992 = vadd.f32 %v3990, %v3991
      %v3993 = vsel %vm3792, %v3944, 0.0
      %v3994 = vadd.f32 %v3992, %v3993
      %v3995 = vsel %vm3792, %v3945, 0.0
      %v3996 = vadd.f32 %v3994, %v3995
      %v3997 = vsel %vm3792, %v3946, 0.0
      %v3998 = vadd.f32 %v3996, %v3997
      %v3999 = vsel %vm3792, %v3947, 0.0
      %v4000 = vadd.f32 %v3998, %v3999
      %v4001 = vsel %vm3792, %v3948, 0.0
      %v4002 = vadd.f32 %v4000, %v4001
      %v4003 = vsel %vm3792, %v3949, 0.0
      %v4004 = vadd.f32 %v4002, %v4003
      %v4005 = vsel %vm3792, %v3950, 0.0
      %v4006 = vadd.f32 %v4004, %v4005
      %v4007 = vsel %vm3792, %v3951, 0.0
      %v4008 = vadd.f32 %v4006, %v4007
      %v4009 = vsel %vm3792, %v3952, 0.0
      %v4010 = vadd.f32 %v4008, %v4009
      %v4011 = vsel %vm3792, %v3953, 0.0
      %v4012 = vadd.f32 %v4010, %v4011
      %v4013 = vsel %vm3792, %v3954, 0.0
      %v4014 = vadd.f32 %v4012, %v4013
      %v4015 = vsel %vm3792, %v3955, 0.0
      %v4016 = vadd.f32 %v4014, %v4015
      %v4017 = vsel %vm3792, %v3956, 0.0
      %v4018 = vadd.f32 %v4016, %v4017
      %v4019 = vsel %vm3792, %v3957, 0.0
      %v4020 = vadd.f32 %v4018, %v4019
      %v4021 = vrot.slane %v4020, 4
      %v4022 = vadd.f32 %v4020, %v4021
      %v4023 = vrot.slane %v4022, 2
      %v4024 = vadd.f32 %v4022, %v4023
      %v4025 = vrot.slane %v4024, 1
      %v4026 = vadd.f32 %v4024, %v4025
      %v4027 = vsel %vm3792, %v506, 0.0
      %v4028 = vsel %vm3792, %v509, 0.0
      %v4029 = vadd.f32 %v4027, %v4028
      %v4030 = vsel %vm3792, %v514, 0.0
      %v4031 = vadd.f32 %v4029, %v4030
      %v4032 = vsel %vm3792, %v517, 0.0
      %v4033 = vadd.f32 %v4031, %v4032
      %v4034 = vsel %vm3792, %v522, 0.0
      %v4035 = vadd.f32 %v4033, %v4034
      %v4036 = vsel %vm3792, %v525, 0.0
      %v4037 = vadd.f32 %v4035, %v4036
      %v4038 = vsel %vm3792, %v530, 0.0
      %v4039 = vadd.f32 %v4037, %v4038
      %v4040 = vsel %vm3792, %v533, 0.0
      %v4041 = vadd.f32 %v4039, %v4040
      %v4042 = vsel %vm3792, %v538, 0.0
      %v4043 = vadd.f32 %v4041, %v4042
      %v4044 = vsel %vm3792, %v541, 0.0
      %v4045 = vadd.f32 %v4043, %v4044
      %v4046 = vsel %vm3792, %v546, 0.0
      %v4047 = vadd.f32 %v4045, %v4046
      %v4048 = vsel %vm3792, %v549, 0.0
      %v4049 = vadd.f32 %v4047, %v4048
      %v4050 = vsel %vm3792, %v554, 0.0
      %v4051 = vadd.f32 %v4049, %v4050
      %v4052 = vsel %vm3792, %v557, 0.0
      %v4053 = vadd.f32 %v4051, %v4052
      %v4054 = vsel %vm3792, %v562, 0.0
      %v4055 = vadd.f32 %v4053, %v4054
      %v4056 = vsel %vm3792, %v565, 0.0
      %v4057 = vadd.f32 %v4055, %v4056
      %v4058 = vsel %vm3792, %v570, 0.0
      %v4059 = vadd.f32 %v4057, %v4058
      %v4060 = vsel %vm3792, %v573, 0.0
      %v4061 = vadd.f32 %v4059, %v4060
      %v4062 = vsel %vm3792, %v578, 0.0
      %v4063 = vadd.f32 %v4061, %v4062
      %v4064 = vsel %vm3792, %v581, 0.0
      %v4065 = vadd.f32 %v4063, %v4064
      %v4066 = vsel %vm3792, %v586, 0.0
      %v4067 = vadd.f32 %v4065, %v4066
      %v4068 = vsel %vm3792, %v589, 0.0
      %v4069 = vadd.f32 %v4067, %v4068
      %v4070 = vsel %vm3792, %v594, 0.0
      %v4071 = vadd.f32 %v4069, %v4070
      %v4072 = vsel %vm3792, %v597, 0.0
      %v4073 = vadd.f32 %v4071, %v4072
      %v4074 = vsel %vm3792, %v602, 0.0
      %v4075 = vadd.f32 %v4073, %v4074
      %v4076 = vsel %vm3792, %v605, 0.0
      %v4077 = vadd.f32 %v4075, %v4076
      %v4078 = vsel %vm3792, %v610, 0.0
      %v4079 = vadd.f32 %v4077, %v4078
      %v4080 = vsel %vm3792, %v613, 0.0
      %v4081 = vadd.f32 %v4079, %v4080
      %v4082 = vsel %vm3792, %v618, 0.0
      %v4083 = vadd.f32 %v4081, %v4082
      %v4084 = vsel %vm3792, %v621, 0.0
      %v4085 = vadd.f32 %v4083, %v4084
      %v4086 = vsel %vm3792, %v626, 0.0
      %v4087 = vadd.f32 %v4085, %v4086
      %v4088 = vsel %vm3792, %v629, 0.0
      %v4089 = vadd.f32 %v4087, %v4088
      %v4090 = vrot.slane %v4089, 4
      %v4091 = vadd.f32 %v4089, %v4090
      %v4092 = vrot.slane %v4091, 2
      %v4093 = vadd.f32 %v4091, %v4092
      %v4094 = vrot.slane %v4093, 1
      %v4095 = vadd.f32 %v4093, %v4094
      %v4096 = vmul.f32 %v506, %v506
      %v4097 = vmul.f32 %v509, %v509
      %v4098 = vmul.f32 %v514, %v514
      %v4099 = vmul.f32 %v517, %v517
      %v4100 = vmul.f32 %v522, %v522
      %v4101 = vmul.f32 %v525, %v525
      %v4102 = vmul.f32 %v530, %v530
      %v4103 = vmul.f32 %v533, %v533
      %v4104 = vmul.f32 %v538, %v538
      %v4105 = vmul.f32 %v541, %v541
      %v4106 = vmul.f32 %v546, %v546
      %v4107 = vmul.f32 %v549, %v549
      %v4108 = vmul.f32 %v554, %v554
      %v4109 = vmul.f32 %v557, %v557
      %v4110 = vmul.f32 %v562, %v562
      %v4111 = vmul.f32 %v565, %v565
      %v4112 = vmul.f32 %v570, %v570
      %v4113 = vmul.f32 %v573, %v573
      %v4114 = vmul.f32 %v578, %v578
      %v4115 = vmul.f32 %v581, %v581
      %v4116 = vmul.f32 %v586, %v586
      %v4117 = vmul.f32 %v589, %v589
      %v4118 = vmul.f32 %v594, %v594
      %v4119 = vmul.f32 %v597, %v597
      %v4120 = vmul.f32 %v602, %v602
      %v4121 = vmul.f32 %v605, %v605
      %v4122 = vmul.f32 %v610, %v610
      %v4123 = vmul.f32 %v613, %v613
      %v4124 = vmul.f32 %v618, %v618
      %v4125 = vmul.f32 %v621, %v621
      %v4126 = vmul.f32 %v626, %v626
      %v4127 = vmul.f32 %v629, %v629
      %v4128 = vsel %vm3792, %v4096, 0.0
      %v4129 = vsel %vm3792, %v4097, 0.0
      %v4130 = vadd.f32 %v4128, %v4129
      %v4131 = vsel %vm3792, %v4098, 0.0
      %v4132 = vadd.f32 %v4130, %v4131
      %v4133 = vsel %vm3792, %v4099, 0.0
      %v4134 = vadd.f32 %v4132, %v4133
      %v4135 = vsel %vm3792, %v4100, 0.0
      %v4136 = vadd.f32 %v4134, %v4135
      %v4137 = vsel %vm3792, %v4101, 0.0
      %v4138 = vadd.f32 %v4136, %v4137
      %v4139 = vsel %vm3792, %v4102, 0.0
      %v4140 = vadd.f32 %v4138, %v4139
      %v4141 = vsel %vm3792, %v4103, 0.0
      %v4142 = vadd.f32 %v4140, %v4141
      %v4143 = vsel %vm3792, %v4104, 0.0
      %v4144 = vadd.f32 %v4142, %v4143
      %v4145 = vsel %vm3792, %v4105, 0.0
      %v4146 = vadd.f32 %v4144, %v4145
      %v4147 = vsel %vm3792, %v4106, 0.0
      %v4148 = vadd.f32 %v4146, %v4147
      %v4149 = vsel %vm3792, %v4107, 0.0
      %v4150 = vadd.f32 %v4148, %v4149
      %v4151 = vsel %vm3792, %v4108, 0.0
      %v4152 = vadd.f32 %v4150, %v4151
      %v4153 = vsel %vm3792, %v4109, 0.0
      %v4154 = vadd.f32 %v4152, %v4153
      %v4155 = vsel %vm3792, %v4110, 0.0
      %v4156 = vadd.f32 %v4154, %v4155
      %v4157 = vsel %vm3792, %v4111, 0.0
      %v4158 = vadd.f32 %v4156, %v4157
      %v4159 = vsel %vm3792, %v4112, 0.0
      %v4160 = vadd.f32 %v4158, %v4159
      %v4161 = vsel %vm3792, %v4113, 0.0
      %v4162 = vadd.f32 %v4160, %v4161
      %v4163 = vsel %vm3792, %v4114, 0.0
      %v4164 = vadd.f32 %v4162, %v4163
      %v4165 = vsel %vm3792, %v4115, 0.0
      %v4166 = vadd.f32 %v4164, %v4165
      %v4167 = vsel %vm3792, %v4116, 0.0
      %v4168 = vadd.f32 %v4166, %v4167
      %v4169 = vsel %vm3792, %v4117, 0.0
      %v4170 = vadd.f32 %v4168, %v4169
      %v4171 = vsel %vm3792, %v4118, 0.0
      %v4172 = vadd.f32 %v4170, %v4171
      %v4173 = vsel %vm3792, %v4119, 0.0
      %v4174 = vadd.f32 %v4172, %v4173
      %v4175 = vsel %vm3792, %v4120, 0.0
      %v4176 = vadd.f32 %v4174, %v4175
      %v4177 = vsel %vm3792, %v4121, 0.0
      %v4178 = vadd.f32 %v4176, %v4177
      %v4179 = vsel %vm3792, %v4122, 0.0
      %v4180 = vadd.f32 %v4178, %v4179
      %v4181 = vsel %vm3792, %v4123, 0.0
      %v4182 = vadd.f32 %v4180, %v4181
      %v4183 = vsel %vm3792, %v4124, 0.0
      %v4184 = vadd.f32 %v4182, %v4183
      %v4185 = vsel %vm3792, %v4125, 0.0
      %v4186 = vadd.f32 %v4184, %v4185
      %v4187 = vsel %vm3792, %v4126, 0.0
      %v4188 = vadd.f32 %v4186, %v4187
      %v4189 = vsel %vm3792, %v4127, 0.0
      %v4190 = vadd.f32 %v4188, %v4189
      %v4191 = vrot.slane %v4190, 4
      %v4192 = vadd.f32 %v4190, %v4191
      %v4193 = vrot.slane %v4192, 2
      %v4194 = vadd.f32 %v4192, %v4193
      %v4195 = vrot.slane %v4194, 1
      %v4196 = vadd.f32 %v4194, %v4195
      %vm4197 = vcmask 1040384
      %v4198 = vsel %vm4197, %v3925, %v4026
      %v4199 = vsel %vm467, %v4198, %v4095
      %vm4200 = vcmask 1042432
      %v4201 = vsel %vm4200, %v4199, %v4196
      %vm4202 = vcmask 60416
      %4203 = vst.msk [vmem:[%s247] sm:$0xf] %vm4202, %v4201
      %p4204 = scmp.lt.s32.totalorder %s17, 1
      %s4205 = scalar_select %p4204, %s17, 1
      %s4206 = smul.addr %s4205, 32
      %s4207 = smul.addr %s4206, 8
      %s4208 = scalar_lea.vmem %s3, %s4207
      %p4209 = scmp.lt.s32.totalorder %s17, 1
      %s4210 = scalar_select %p4209, %s17, 1
      %s4211 = smul.addr %s4210, 32
      %s4212 = smul.addr %s4211, 8
      %s4213 = scalar_lea.vmem %s4, %s4212
      %p4214 = scmp.lt.s32.totalorder %s17, 1
      %s4215 = scalar_select %p4214, %s17, 1
      %s4216 = smul.addr %s4215, 4
      %s4217 = scalar_lea.vmem %s5, %s4216
      // Predicated region
      $region33: #{block_forward.3} parent=31 // pred_check
        %p4218 = pneg %p103
      $region34: #{block_forward.3} parent=31 // pred_check_branch
        %4220 = sbr.rel (%p4218) target = $region36
      $region35: #{block_forward.3} parent=31 // pred_region
        _
      $region36: #{block_forward.3} parent=31 // pred_fallthru
        _
      // Predicated region
      $region37: #{block_forward.3} parent=31 // pred_check
        %p4221 = pneg %p129
      $region38: #{block_forward.3} parent=31 // pred_check_branch
        %4223 = sbr.rel (%p4221) target = $region40
      $region39: #{block_forward.3} parent=31 // pred_region
        _
      $region40: #{block_forward.3} parent=31 // pred_fallthru
        _
      // Predicated region
      $region41: #{block_forward.3} parent=31 // pred_check
        %p4224 = pneg %p155
      $region42: #{block_forward.3} parent=31 // pred_check_branch
        %4226 = sbr.rel (%p4224) target = $region44
      $region43: #{block_forward.3} parent=31 // pred_region
        _
      $region44: #{block_forward.3} parent=31 // pred_fallthru
        _
    $region32: #{block_forward.3} parent=5 // pred_fallthru
      _
    %p4227 = scmp.le.s32.totalorder 2, %s12
    // Predicated region
    $region45: #{block_forward.3} parent=5 // pred_check
      %p4228 = pneg %p4227
    $region46: #{block_forward.3} parent=5 // pred_check_branch
      %4230 = sbr.rel (%p4228) target = $region48
    $region47: #{block_forward.3} parent=5 // pred_region
      %s4231 = ssub.s32 %s12, 2
      // Predicated region
      $region49: #{block_forward.3} parent=47 // pred_check
        %p4232 = pneg %p109
      $region50: #{block_forward.3} parent=47 // pred_check_branch
        %4234 = sbr.rel (%p4232) target = $region52
      $region51: #{block_forward.3} parent=47 // pred_region
        %p4235 = scmp.lt.s32.totalorder %s18, 1
        %s4236 = scalar_select %p4235, %s18, 1
        %s4237 = smul.addr %s4236, 32
        %s4238 = smul.addr %s4237, 8
        %s4239 = scalar_lea.vmem %s3, %s4238
      $region52: #{block_forward.3} parent=47 // pred_fallthru
        _
      // Predicated region
      $region53: #{block_forward.3} parent=47 // pred_check
        %p4240 = pneg %p135
      $region54: #{block_forward.3} parent=47 // pred_check_branch
        %4242 = sbr.rel (%p4240) target = $region56
      $region55: #{block_forward.3} parent=47 // pred_region
        %p4243 = scmp.lt.s32.totalorder %s18, 1
        %s4244 = scalar_select %p4243, %s18, 1
        %s4245 = smul.addr %s4244, 32
        %s4246 = smul.addr %s4245, 8
        %s4247 = scalar_lea.vmem %s4, %s4246
      $region56: #{block_forward.3} parent=47 // pred_fallthru
        _
      // Predicated region
      $region57: #{block_forward.3} parent=47 // pred_check
        %p4248 = pneg %p161
      $region58: #{block_forward.3} parent=47 // pred_check_branch
        %4250 = sbr.rel (%p4248) target = $region60
      $region59: #{block_forward.3} parent=47 // pred_region
        %p4251 = scmp.lt.s32.totalorder %s18, 1
        %s4252 = scalar_select %p4251, %s18, 1
        %s4253 = smul.addr %s4252, 4
        %s4254 = scalar_lea.vmem %s5, %s4253
      $region60: #{block_forward.3} parent=47 // pred_fallthru
        _
    $region48: #{block_forward.3} parent=5 // pred_fallthru
      _
  $region6: #{block_forward.3} parent=0 // loop_footer
    %s16 = sadd.s32 1, %s12
  $region7: #{block_forward.3} parent=0 // loop_footer_branch
    %11 = sbr.rel target = $region3
  $region8: #{block_forward.3} parent=0 // loop_exit
    _

</llo_original>
